<compile_context>
chip_gen: v7x
topology: tpu7x:2x2x1
jax: 0.10.0
libtpu: 0.0.40
codegen_flags: <defaults>
</compile_context>

<pallas_src>
import functools

import jax
import jax.numpy as jnp
from jax.experimental import pallas as pl
from jax.experimental.pallas import tpu as pltpu


# ---------------------------------------------------------------------------
# Kernel
# ---------------------------------------------------------------------------
def _rpn_head_kernel(fuse_k, x_ref, xt_ref, xb_ref, wconv_ref, shift_ref,
                     whead_ref, bhead_ref, t_ref, head_ref, xcol):
    # x_ref     : (1, TH, W, C)   bf16  input strip
    # xt_ref    : (1, 1, W, C)    bf16  row above the strip (clamped at border)
    # xb_ref    : (1, 1, W, C)    bf16  row below the strip (clamped at border)
    # wconv_ref : (9C, CO) or (3, 3C, CO)  bf16  BN-scaled 3x3 conv weights
    # shift_ref : (1, CO)         f32   folded conv-bias + BN shift
    # whead_ref : (CO, P)         bf16  block-diag fused [obj | deltas] weights
    # bhead_ref : (1, P)          f32
    # t_ref     : (1, TH, W, CO)  bf16  shared hidden state strip
    # head_ref  : (1, TH, W, P)   bf16  fused lane-dense head strip (P = 128*k)
    # xcol      : VMEM im2col scratch, (TH, W, 9C) fused / (TH+2, W, 3C) sliding
    TH, W, C = x_ref.shape[1], x_ref.shape[2], x_ref.shape[3]
    CO = t_ref.shape[3]
    P = head_ref.shape[3]

    s = pl.program_id(1)
    ns = pl.num_programs(1)

    xs = x_ref[0]                                       # (TH, W, C)
    top = xt_ref[0]                                     # (1, W, C)
    bot = xb_ref[0]
    # Zero the halo rows that fall outside the image (index_map clamps them).
    top = jnp.where(s > 0, top, jnp.zeros_like(top))
    bot = jnp.where(s < ns - 1, bot, jnp.zeros_like(bot))

    def write_taps(r0, nrows, src, base):
        # src: (nrows, W, C) rows of the (implicitly padded) window for one kh.
        # Writes the three kw taps (j-1, j, j+1) with the W-border zeros baked in.
        zc = jnp.zeros((nrows, 1, C), dtype=xcol.dtype)
        xcol[r0:r0 + nrows, :, base + C:base + 2 * C] = src                 # kw = 1
        xcol[r0:r0 + nrows, 0:1, base:base + C] = zc                        # kw = 0
        xcol[r0:r0 + nrows, 1:W, base:base + C] = src[:, 0:W - 1, :]
        xcol[r0:r0 + nrows, W - 1:W, base + 2 * C:base + 3 * C] = zc        # kw = 2
        xcol[r0:r0 + nrows, 0:W - 1, base + 2 * C:base + 3 * C] = src[:, 1:W, :]

    if fuse_k:
        # (TH, W, 9C) im2col: slot (kh, kw) of row i holds x[row0+i+kh-1, j+kw-1].
        for kh, base in ((0, 0), (1, 3 * C), (2, 6 * C)):
            if kh == 0:
                write_taps(0, 1, top, base)
                if TH > 1:
                    write_taps(1, TH - 1, xs[0:TH - 1], base)
            elif kh == 1:
                write_taps(0, TH, xs, base)
            else:
                if TH > 1:
                    write_taps(0, TH - 1, xs[1:TH], base)
                write_taps(TH - 1, 1, bot, base)
        acc = jnp.dot(xcol[...].reshape(TH * W, 9 * C), wconv_ref[...],
                      preferred_element_type=jnp.float32)
    else:
        # (TH+2, W, 3C) sliding im2col: rows 0 / TH+1 are the halo rows.
        write_taps(0, 1, top, 0)
        write_taps(1, TH, xs, 0)
        write_taps(TH + 1, 1, bot, 0)
        acc = jnp.zeros((TH * W, CO), jnp.float32)
        for kh in range(3):
            acc = acc + jnp.dot(xcol[kh:kh + TH].reshape(TH * W, 3 * C),
                                wconv_ref[kh],
                                preferred_element_type=jnp.float32)

    # conv bias + inference BatchNorm already folded into (weights, shift); ReLU.
    t = jnp.maximum(acc + shift_ref[...], 0.0)                  # (TH*W, CO) f32
    t_bf = t.astype(t_ref.dtype)

    # fused objectness + anchor-delta 1x1 convs: one lane-dense MXU matmul.
    head = jnp.dot(t_bf, whead_ref[...], preferred_element_type=jnp.float32)
    head = head + bhead_ref[...]

    t_ref[0] = t_bf.reshape(TH, W, CO)
    head_ref[0] = head.astype(head_ref.dtype).reshape(TH, W, P)


# ---------------------------------------------------------------------------
# VMEM budgeting / strip sizing
# ---------------------------------------------------------------------------
def _vmem_limit_bytes():
    """Per-generation VMEM limit: physical capacity minus headroom."""
    try:
        cap = int(pltpu.get_tpu_info().vmem_capacity_bytes)
    except Exception:
        cap = 64 * 1024 * 1024          # conservative (v7x-sized) fallback
    # 64 MiB (v7x) -> 50 MiB, 128 MiB (v5e/v6e) -> 100 MiB.
    return (cap // 32) * 25


def _strip_vmem_bytes(TH, W, C, CO, P, fuse_k):
    """Rough per-step VMEM footprint estimate (double-buffered I/O + temps)."""
    bf, f32 = 2, 4
    total = 0
    total += 2 * TH * W * C * bf                     # x strip blocks
    total += 2 * 2 * W * C * bf                      # halo row blocks
    total += 2 * (9 * C * CO * bf + CO * f32 + CO * P * bf + P * f32)   # weights
    total += 2 * TH * W * (CO + P) * bf              # t / head output blocks
    total += (TH * W * 9 * C * bf) if fuse_k else ((TH + 2) * W * 3 * C * bf)
    total += TH * W * CO * (2 * f32 + bf)            # conv acc + t temporaries
    total += TH * W * P * f32                        # head acc temporary
    return total


def _pick_strip_rows(H, W, C, CO, P, fuse_k, budget, max_rows=None):
    cap = H if max_rows is None else max(1, min(int(max_rows), H))
    for th in range(cap, 0, -1):
        if H % th:
            continue
        if _strip_vmem_bytes(th, W, C, CO, P, fuse_k) <= budget:
            return th
    return 1    # nothing fits the budget; let the compiler try the smallest strip


# ---------------------------------------------------------------------------
# Per-level wrapper
# ---------------------------------------------------------------------------
@functools.partial(jax.jit, static_argnames=(
    "num_cell_anchors", "box_dim", "strip_rows", "fuse_k",
    "single_buffer_weights", "vmem_limit_bytes"))
def _rpn_head_level(x_nchw, w_conv, shift, w_head, b_head, *,
                    num_cell_anchors, box_dim, strip_rows, fuse_k,
                    single_buffer_weights, vmem_limit_bytes):
    """One pyramid level. x_nchw: (B, C, H, W) float32 (PyTorch layout)."""
    A, D = num_cell_anchors, box_dim
    B, C, H, W = x_nchw.shape
    CO = A * C
    P = w_head.shape[1]
    TH = strip_rows
    if H % TH != 0:
        raise ValueError(f"strip_rows={TH} must divide H={H}")
    n_strips = H // TH

    # NCHW -> NHWC with the bf16 cast fused into the same XLA op.
    x = jnp.transpose(x_nchw, (0, 2, 3, 1)).astype(jnp.bfloat16)

    # Single-buffer the constant weight blocks when supported (saves VMEM on v7x).
    wkw = dict(pipeline_mode=pl.Buffered(1)) if single_buffer_weights else {}

    if fuse_k:
        w_conv_k = w_conv.reshape(9 * C, CO)
        wconv_spec = pl.BlockSpec((9 * C, CO), lambda b, s: (0, 0), **wkw)
        scratch = pltpu.VMEM((TH, W, 9 * C), jnp.bfloat16)
    else:
        w_conv_k = w_conv
        wconv_spec = pl.BlockSpec((3, 3 * C, CO), lambda b, s: (0, 0, 0), **wkw)
        scratch = pltpu.VMEM((TH + 2, W, 3 * C), jnp.bfloat16)

    t_nhwc, head = pl.pallas_call(
        functools.partial(_rpn_head_kernel, fuse_k),
        out_shape=(
            jax.ShapeDtypeStruct((B, H, W, CO), jnp.bfloat16),
            jax.ShapeDtypeStruct((B, H, W, P), jnp.bfloat16),
        ),
        grid_spec=pltpu.PrefetchScalarGridSpec(
            num_scalar_prefetch=0,
            grid=(B, n_strips),
            in_specs=[
                # TH-row strip of the input image.
                pl.BlockSpec((1, TH, W, C), lambda b, s: (b, s, 0, 0)),
                # Halo rows (clamped at the image border; zeroed in the kernel).
                pl.BlockSpec((1, 1, W, C),
                             lambda b, s: (b, jnp.maximum(s * TH - 1, 0), 0, 0)),
                pl.BlockSpec((1, 1, W, C),
                             lambda b, s: (b, jnp.minimum(s * TH + TH, H - 1), 0, 0)),
                # Constant-index weight blocks.
                wconv_spec,
                pl.BlockSpec((1, CO), lambda b, s: (0, 0), **wkw),
                pl.BlockSpec((CO, P), lambda b, s: (0, 0), **wkw),
                pl.BlockSpec((1, P), lambda b, s: (0, 0), **wkw),
            ],
            out_specs=[
                pl.BlockSpec((1, TH, W, CO), lambda b, s: (b, s, 0, 0)),
                pl.BlockSpec((1, TH, W, P), lambda b, s: (b, s, 0, 0)),
            ],
            scratch_shapes=[scratch],
        ),
        compiler_params=pltpu.CompilerParams(
            dimension_semantics=("parallel", "parallel"),
            vmem_limit_bytes=vmem_limit_bytes),
    )(x, x, x, w_conv_k, shift, w_head, b_head)

    # Unpack to the module's PyTorch (NCHW-style) output conventions.
    # TODO(synk): fuse these transposes/slices into the downstream consumer.
    F = A * (1 + D)
    head = head[..., :F].astype(jnp.float32).reshape(B, H, W, A, 1 + D)
    obj = jnp.transpose(head[..., 0], (0, 3, 1, 2))                      # (B, A, H, W)
    deltas = jnp.transpose(head[..., 1:], (0, 3, 4, 1, 2))               # (B, A, D, H, W)
    deltas = deltas.reshape(B, A * D, H, W)
    t = jnp.transpose(t_nhwc.reshape(B, H, W, A, C), (0, 3, 4, 1, 2))    # (B, A, C, H, W)
    t = t.reshape(B * A, C, H, W)                                        # bf16
    return obj, deltas, t


_BUFFERED_WEIGHTS_OK = [True]   # flipped off if pipeline_mode=pl.Buffered(1) is rejected


def _call_level(*args, **static_kw):
    if _BUFFERED_WEIGHTS_OK[0]:
        try:
            out = _rpn_head_level(*args, single_buffer_weights=True, **static_kw)
            jax.block_until_ready(out)
            return out
        except Exception:
            _BUFFERED_WEIGHTS_OK[0] = False
    return _rpn_head_level(*args, single_buffer_weights=False, **static_kw)


# ---------------------------------------------------------------------------
# Parameter preparation (PyTorch layouts -> kernel layouts)
# ---------------------------------------------------------------------------
def _prepare_kernel_params(p):
    C, A, D = p["in_channels"], p["num_cell_anchors"], p["box_dim"]
    CO = A * C

    # 3x3 conv: (Cout=A*C, Cin=C, kh, kw) -> (kh, kw*C + cin, cout), f32.
    w3 = jnp.transpose(p["w_conv"], (2, 3, 1, 0)).reshape(3, 3 * C, CO)

    # Per-level: fold inference BN (and conv bias) into per-level bf16 weights
    # plus a per-channel f32 shift (conv channel index co = a*C + c).
    w_conv_levels, shift_levels = [], []
    for (gamma, beta, mean, var) in p["bn"]:
        s = gamma / jnp.sqrt(var + p["eps"])                    # (C,)
        scale = jnp.tile(s, A)                                  # (CO,)
        w_conv_levels.append((w3 * scale[None, None, :]).astype(jnp.bfloat16))
        shift = scale * (p["b_conv"] - jnp.tile(mean, A)) + jnp.tile(beta, A)
        shift_levels.append(shift.reshape(1, CO).astype(jnp.float32))

    # Fused 1x1 heads: block-diagonal (A*C, P), P padded to a multiple of 128
    # lanes so the kernel writes one lane-dense head slab.
    F = A * (1 + D)
    P = int(pl.cdiv(F, 128) * 128)
    w_obj = jnp.transpose(p["w_obj"][:, :, 0, 0], (1, 0))       # (C, 1)
    w_del = jnp.transpose(p["w_del"][:, :, 0, 0], (1, 0))       # (C, D)
    blk = jnp.concatenate([w_obj, w_del], axis=1)               # (C, 1+D)
    bias_blk = jnp.concatenate([p["b_obj"], p["b_del"]])        # (1+D,)
    w_head = jnp.zeros((CO, P), jnp.float32)
    b_head = jnp.zeros((P,), jnp.float32)
    for a in range(A):
        w_head = w_head.at[a * C:(a + 1) * C, a * (1 + D):(a + 1) * (1 + D)].set(blk)
        b_head = b_head.at[a * (1 + D):(a + 1) * (1 + D)].set(bias_blk)
    w_head = w_head.astype(jnp.bfloat16)
    b_head = b_head.reshape(1, P)
    return w_conv_levels, shift_levels, w_head, b_head, A, D, P


def contrast_rpn_head_forward(features, params, *, max_strip_rows=None, fuse_k=None):
    """features: list of NCHW (B, C, H, W) feature maps (same channel count)."""
    (w_conv_levels, shift_levels, w_head, b_head, A, D, P) = \
        _prepare_kernel_params(params)
    vmem_limit = _vmem_limit_bytes()
    strip_budget = (vmem_limit * 3) // 4

    pred_objectness_logits, pred_anchor_deltas, features_per_level = [], [], []
    for i, x in enumerate(features):
        _, C, H, W = x.shape
        CO = A * C
        fused = (3 * C < 256) if fuse_k is None else bool(fuse_k)
        TH = _pick_strip_rows(H, W, C, CO, P, fused, strip_budget, max_strip_rows)
        obj, dlt, t = _call_level(
            x, w_conv_levels[i], shift_levels[i], w_head, b_head,
            num_cell_anchors=A, box_dim=D, strip_rows=TH, fuse_k=fused,
            vmem_limit_bytes=vmem_limit)
        pred_objectness_logits.append(obj)
        pred_anchor_deltas.append(dlt)
        features_per_level.append(t)
    return pred_objectness_logits, pred_anchor_deltas, features_per_level


# ---------------------------------------------------------------------------
# Parameter init (matches the PyTorch module init) and pure-JAX reference
# ---------------------------------------------------------------------------
def init_params(key, in_channels, num_levels, num_cell_anchors, box_dim, eps=1e-5):
    C, A, D = in_channels, num_cell_anchors, box_dim
    keys = jax.random.split(key, 3 + num_levels)
    w_conv = 0.01 * jax.random.normal(keys[0], (A * C, C, 3, 3), jnp.float32)
    w_obj = 0.01 * jax.random.normal(keys[1], (1, C, 1, 1), jnp.float32)
    w_del = 0.01 * jax.random.normal(keys[2], (D, C, 1, 1), jnp.float32)
    b_conv = jnp.zeros((A * C,), jnp.float32)
    b_obj = jnp.zeros((1,), jnp.float32)
    b_del = jnp.zeros((D,), jnp.float32)
    bn = []
    for i in range(num_levels):
        kg, kb, km, kv = jax.random.split(keys[3 + i], 4)
        gamma = 1.0 + 0.1 * jax.random.normal(kg, (C,), jnp.float32)
        beta = 0.1 * jax.random.normal(kb, (C,), jnp.float32)
        mean = 0.1 * jax.random.normal(km, (C,), jnp.float32)
        var = 1.0 + 0.2 * jax.random.uniform(kv, (C,), jnp.float32)
        bn.append((gamma, beta, mean, var))
    return dict(w_conv=w_conv, b_conv=b_conv, w_obj=w_obj, b_obj=b_obj,
                w_del=w_del, b_del=b_del, bn=bn, eps=eps,
                in_channels=C, num_cell_anchors=A, box_dim=D)


def _reference_level(x_nchw, p, level):
    """Pure-JAX reference (bf16-quantized operands, f32 math) following the
    PyTorch ContrastRPNHead forward exactly."""
    C, A, D = p["in_channels"], p["num_cell_anchors"], p["box_dim"]
    B, _, H, W = x_nchw.shape
    q = lambda a: a.astype(jnp.bfloat16).astype(jnp.float32)

    xq = q(x_nchw)
    wq = q(p["w_conv"])
    dn = jax.lax.conv_dimension_numbers(xq.shape, wq.shape, ("NCHW", "OIHW", "NCHW"))
    y = jax.lax.conv_general_dilated(xq, wq, (1, 1), "SAME", dimension_numbers=dn)
    y = y + p["b_conv"][None, :, None, None]
    y = y.reshape(B * A, C, H, W)

    gamma, beta, mean, var = p["bn"][level]
    s = gamma / jnp.sqrt(var + p["eps"])
    t = jax.nn.relu((y - mean[None, :, None, None]) * s[None, :, None, None]
                    + beta[None, :, None, None])

    tq = q(t)
    w_obj = q(p["w_obj"][:, :, 0, 0])   # (1, C)
    w_del = q(p["w_del"][:, :, 0, 0])   # (D, C)
    obj = jnp.einsum("nchw,oc->nohw", tq, w_obj) + p["b_obj"][None, :, None, None]
    dlt = jnp.einsum("nchw,oc->nohw", tq, w_del) + p["b_del"][None, :, None, None]
    obj = obj.reshape(B, A, H, W)
    dlt = dlt.reshape(B, A * D, H, W)
    return obj, dlt, t


if __name__ == "__main__":
    key = jax.random.PRNGKey(0)
    k_feat0, k_feat1, k_param = jax.random.split(key, 3)

    in_channels = 32
    num_cell_anchors = 3
    box_dim = 4

    # Two FPN-like levels, NCHW (PyTorch convention).
    features = [
        jax.random.normal(k_feat0, (2, in_channels, 16, 16), jnp.float32),
        jax.random.normal(k_feat1, (2, in_channels, 8, 8), jnp.float32),
    ]
    params = init_params(k_param, in_channels, len(features),
                         num_cell_anchors, box_dim)

    refs = [_reference_level(x, params, i) for i, x in enumerate(features)]

    def check(outputs):
        pred_obj, pred_del, feats = outputs
        for i in range(len(features)):
            o_ref, d_ref, t_ref = refs[i]
            o, d, t = pred_obj[i], pred_del[i], feats[i]
            assert o.shape == o_ref.shape, (o.shape, o_ref.shape)
            assert d.shape == d_ref.shape, (d.shape, d_ref.shape)
            assert t.shape == t_ref.shape, (t.shape, t_ref.shape)
            # bf16 t/head outputs + BN-scale folded into bf16 weights -> loosened tol.
            assert jnp.allclose(t.astype(jnp.float32), t_ref, rtol=2e-2, atol=3e-3)
            assert jnp.allclose(o, o_ref, rtol=2e-2, atol=1e-3)
            assert jnp.allclose(d, d_ref, rtol=2e-2, atol=1e-3)

    # 1) default config: auto strip sizing (whole-image strips at these shapes),
    #    fused K=9C conv matmul (small C).
    out = contrast_rpn_head_forward(features, params)
    jax.block_until_ready(out)
    check(out)

    # 2) forced multi-strip tiling (exercises the halo-row path used at
    #    production FPN shapes).
    out = contrast_rpn_head_forward(features, params, max_strip_rows=4)
    jax.block_until_ready(out)
    check(out)

    # 3) large-channel code path: 3 x (K=3C) matmuls with the sliding scratch.
    out = contrast_rpn_head_forward(features, params, max_strip_rows=8, fuse_k=False)
    jax.block_until_ready(out)
    check(out)

    print("KERNEL_OK")
</pallas_src>

<mosaic_0001>
module attributes {stable_mosaic.version = 11 : i64} {
  func.func @_rpn_head_kernel(%arg0: i32, %arg1: i32, %arg2: memref<1x16x16x32xbf16, #tpu.memory_space<vmem>>, %arg3: memref<1x1x16x32xbf16, #tpu.memory_space<vmem>>, %arg4: memref<1x1x16x32xbf16, #tpu.memory_space<vmem>>, %arg5: memref<288x96xbf16, #tpu.memory_space<vmem>>, %arg6: memref<1x96xf32, #tpu.memory_space<vmem>>, %arg7: memref<96x128xbf16, #tpu.memory_space<vmem>>, %arg8: memref<1x128xf32, #tpu.memory_space<vmem>>, %arg9: memref<1x16x16x96xbf16, #tpu.memory_space<vmem>>, %arg10: memref<1x16x16x128xbf16, #tpu.memory_space<vmem>>, %arg11: memref<16x16x288xbf16, #tpu.memory_space<vmem>>) attributes {dimension_semantics = [#tpu.dimension_semantics<parallel>, #tpu.dimension_semantics<parallel>], iteration_bounds = array<i64: 2, 1>, scalar_prefetch = 0 : i64, scratch_operands = 1 : i64, tpu.core_type = #tpu.core_type<tc>, window_params = [{transform_indices = @transform_0, window_bounds = array<i64: 1, 16, 16, 32>}, {transform_indices = @transform_1, window_bounds = array<i64: 1, 1, 16, 32>}, {transform_indices = @transform_2, window_bounds = array<i64: 1, 1, 16, 32>}, {pipeline_mode = #tpu.pipeline_mode<synchronous>, transform_indices = @transform_3, window_bounds = array<i64: 288, 96>}, {pipeline_mode = #tpu.pipeline_mode<synchronous>, transform_indices = @transform_4, window_bounds = array<i64: 1, 96>}, {pipeline_mode = #tpu.pipeline_mode<synchronous>, transform_indices = @transform_5, window_bounds = array<i64: 96, 128>}, {pipeline_mode = #tpu.pipeline_mode<synchronous>, transform_indices = @transform_6, window_bounds = array<i64: 1, 128>}, {transform_indices = @transform_7, window_bounds = array<i64: 1, 16, 16, 96>}, {transform_indices = @transform_8, window_bounds = array<i64: 1, 16, 16, 128>}]} {
    %c0 = arith.constant 0 : index
    %c0_0 = arith.constant 0 : index
    %c0_1 = arith.constant 0 : index
    %c0_2 = arith.constant 0 : index
    %0 = vector.load %arg2[%c0, %c0_0, %c0_1, %c0_2] : memref<1x16x16x32xbf16, #tpu.memory_space<vmem>>, vector<1x16x16x32xbf16>
    %1 = vector.shape_cast %0 : vector<1x16x16x32xbf16> to vector<16x16x32xbf16>
    %c0_3 = arith.constant 0 : index
    %c0_4 = arith.constant 0 : index
    %c0_5 = arith.constant 0 : index
    %c0_6 = arith.constant 0 : index
    %2 = vector.load %arg3[%c0_3, %c0_4, %c0_5, %c0_6] : memref<1x1x16x32xbf16, #tpu.memory_space<vmem>>, vector<1x1x16x32xbf16>
    %3 = vector.shape_cast %2 : vector<1x1x16x32xbf16> to vector<1x16x32xbf16>
    %c0_7 = arith.constant 0 : index
    %c0_8 = arith.constant 0 : index
    %c0_9 = arith.constant 0 : index
    %c0_10 = arith.constant 0 : index
    %4 = vector.load %arg4[%c0_7, %c0_8, %c0_9, %c0_10] : memref<1x1x16x32xbf16, #tpu.memory_space<vmem>>, vector<1x1x16x32xbf16>
    %5 = vector.shape_cast %4 : vector<1x1x16x32xbf16> to vector<1x16x32xbf16>
    %c0_i32 = arith.constant 0 : i32
    %6 = arith.cmpi sgt, %arg1, %c0_i32 : i32
    %cst = arith.constant 0.000000e+00 : bf16
    %7 = vector.broadcast %cst : bf16 to vector<1x16x32xbf16>
    %8 = arith.select %6, %3, %7 : vector<1x16x32xbf16>
    %c0_i32_11 = arith.constant 0 : i32
    %9 = arith.cmpi slt, %arg1, %c0_i32_11 : i32
    %cst_12 = arith.constant 0.000000e+00 : bf16
    %10 = vector.broadcast %cst_12 : bf16 to vector<1x16x32xbf16>
    %11 = arith.select %9, %5, %10 : vector<1x16x32xbf16>
    %cst_13 = arith.constant 0.000000e+00 : bf16
    %12 = vector.broadcast %cst_13 : bf16 to vector<1x1x32xbf16>
    %c0_14 = arith.constant 0 : index
    %c0_15 = arith.constant 0 : index
    %c32 = arith.constant 32 : index
    %13 = vector.load %arg11[%c0_14, %c0_15, %c32] : memref<16x16x288xbf16, #tpu.memory_space<vmem>>, vector<1x16x32xbf16>
    tpu.vector_store %arg11[%c0_14, %c0_15, %c32], %8 {strides = array<i32>} : memref<16x16x288xbf16, #tpu.memory_space<vmem>>, vector<1x16x32xbf16>,
    %c0_16 = arith.constant 0 : index
    %c0_17 = arith.constant 0 : index
    %c0_18 = arith.constant 0 : index
    %14 = vector.load %arg11[%c0_16, %c0_17, %c0_18] : memref<16x16x288xbf16, #tpu.memory_space<vmem>>, vector<1x1x32xbf16>
    tpu.vector_store %arg11[%c0_16, %c0_17, %c0_18], %12 {strides = array<i32>} : memref<16x16x288xbf16, #tpu.memory_space<vmem>>, vector<1x1x32xbf16>,
    %15 = vector.extract_strided_slice %8 {offsets = [0, 0, 0], sizes = [1, 15, 32], strides = [1, 1, 1]} : vector<1x16x32xbf16> to vector<1x15x32xbf16>
    %c0_19 = arith.constant 0 : index
    %c1 = arith.constant 1 : index
    %c0_20 = arith.constant 0 : index
    %16 = vector.load %arg11[%c0_19, %c1, %c0_20] : memref<16x16x288xbf16, #tpu.memory_space<vmem>>, vector<1x15x32xbf16>
    tpu.vector_store %arg11[%c0_19, %c1, %c0_20], %15 {strides = array<i32>} : memref<16x16x288xbf16, #tpu.memory_space<vmem>>, vector<1x15x32xbf16>,
    %c0_21 = arith.constant 0 : index
    %c15 = arith.constant 15 : index
    %c64 = arith.constant 64 : index
    %17 = vector.load %arg11[%c0_21, %c15, %c64] : memref<16x16x288xbf16, #tpu.memory_space<vmem>>, vector<1x1x32xbf16>
    tpu.vector_store %arg11[%c0_21, %c15, %c64], %12 {strides = array<i32>} : memref<16x16x288xbf16, #tpu.memory_space<vmem>>, vector<1x1x32xbf16>,
    %18 = vector.extract_strided_slice %8 {offsets = [0, 1, 0], sizes = [1, 15, 32], strides = [1, 1, 1]} : vector<1x16x32xbf16> to vector<1x15x32xbf16>
    %c0_22 = arith.constant 0 : index
    %c0_23 = arith.constant 0 : index
    %c64_24 = arith.constant 64 : index
    %19 = vector.load %arg11[%c0_22, %c0_23, %c64_24] : memref<16x16x288xbf16, #tpu.memory_space<vmem>>, vector<1x15x32xbf16>
    tpu.vector_store %arg11[%c0_22, %c0_23, %c64_24], %18 {strides = array<i32>} : memref<16x16x288xbf16, #tpu.memory_space<vmem>>, vector<1x15x32xbf16>,
    %20 = vector.extract_strided_slice %1 {offsets = [0, 0, 0], sizes = [15, 16, 32], strides = [1, 1, 1]} : vector<16x16x32xbf16> to vector<15x16x32xbf16>
    %cst_25 = arith.constant 0.000000e+00 : bf16
    %21 = vector.broadcast %cst_25 : bf16 to vector<15x1x32xbf16>
    %c1_26 = arith.constant 1 : index
    %c0_27 = arith.constant 0 : index
    %c32_28 = arith.constant 32 : index
    %22 = vector.load %arg11[%c1_26, %c0_27, %c32_28] : memref<16x16x288xbf16, #tpu.memory_space<vmem>>, vector<15x16x32xbf16>
    tpu.vector_store %arg11[%c1_26, %c0_27, %c32_28], %20 {strides = array<i32>} : memref<16x16x288xbf16, #tpu.memory_space<vmem>>, vector<15x16x32xbf16>,
    %c1_29 = arith.constant 1 : index
    %c0_30 = arith.constant 0 : index
    %c0_31 = arith.constant 0 : index
    %23 = vector.load %arg11[%c1_29, %c0_30, %c0_31] : memref<16x16x288xbf16, #tpu.memory_space<vmem>>, vector<15x1x32xbf16>
    tpu.vector_store %arg11[%c1_29, %c0_30, %c0_31], %21 {strides = array<i32>} : memref<16x16x288xbf16, #tpu.memory_space<vmem>>, vector<15x1x32xbf16>,
    %24 = vector.extract_strided_slice %20 {offsets = [0, 0, 0], sizes = [15, 15, 32], strides = [1, 1, 1]} : vector<15x16x32xbf16> to vector<15x15x32xbf16>
    %c1_32 = arith.constant 1 : index
    %c1_33 = arith.constant 1 : index
    %c0_34 = arith.constant 0 : index
    %25 = vector.load %arg11[%c1_32, %c1_33, %c0_34] : memref<16x16x288xbf16, #tpu.memory_space<vmem>>, vector<15x15x32xbf16>
    tpu.vector_store %arg11[%c1_32, %c1_33, %c0_34], %24 {strides = array<i32>} : memref<16x16x288xbf16, #tpu.memory_space<vmem>>, vector<15x15x32xbf16>,
    %c1_35 = arith.constant 1 : index
    %c15_36 = arith.constant 15 : index
    %c64_37 = arith.constant 64 : index
    %26 = vector.load %arg11[%c1_35, %c15_36, %c64_37] : memref<16x16x288xbf16, #tpu.memory_space<vmem>>, vector<15x1x32xbf16>
    tpu.vector_store %arg11[%c1_35, %c15_36, %c64_37], %21 {strides = array<i32>} : memref<16x16x288xbf16, #tpu.memory_space<vmem>>, vector<15x1x32xbf16>,
    %27 = vector.extract_strided_slice %20 {offsets = [0, 1, 0], sizes = [15, 15, 32], strides = [1, 1, 1]} : vector<15x16x32xbf16> to vector<15x15x32xbf16>
    %c1_38 = arith.constant 1 : index
    %c0_39 = arith.constant 0 : index
    %c64_40 = arith.constant 64 : index
    %28 = vector.load %arg11[%c1_38, %c0_39, %c64_40] : memref<16x16x288xbf16, #tpu.memory_space<vmem>>, vector<15x15x32xbf16>
    tpu.vector_store %arg11[%c1_38, %c0_39, %c64_40], %27 {strides = array<i32>} : memref<16x16x288xbf16, #tpu.memory_space<vmem>>, vector<15x15x32xbf16>,
    %cst_41 = arith.constant 0.000000e+00 : bf16
    %29 = vector.broadcast %cst_41 : bf16 to vector<16x1x32xbf16>
    %c0_42 = arith.constant 0 : index
    %c0_43 = arith.constant 0 : index
    %c128 = arith.constant 128 : index
    %30 = vector.load %arg11[%c0_42, %c0_43, %c128] : memref<16x16x288xbf16, #tpu.memory_space<vmem>>, vector<16x16x32xbf16>
    tpu.vector_store %arg11[%c0_42, %c0_43, %c128], %1 {strides = array<i32>} : memref<16x16x288xbf16, #tpu.memory_space<vmem>>, vector<16x16x32xbf16>,
    %c0_44 = arith.constant 0 : index
    %c0_45 = arith.constant 0 : index
    %c96 = arith.constant 96 : index
    %31 = vector.load %arg11[%c0_44, %c0_45, %c96] : memref<16x16x288xbf16, #tpu.memory_space<vmem>>, vector<16x1x32xbf16>
    tpu.vector_store %arg11[%c0_44, %c0_45, %c96], %29 {strides = array<i32>} : memref<16x16x288xbf16, #tpu.memory_space<vmem>>, vector<16x1x32xbf16>,
    %32 = vector.extract_strided_slice %1 {offsets = [0, 0, 0], sizes = [16, 15, 32], strides = [1, 1, 1]} : vector<16x16x32xbf16> to vector<16x15x32xbf16>
    %c0_46 = arith.constant 0 : index
    %c1_47 = arith.constant 1 : index
    %c96_48 = arith.constant 96 : index
    %33 = vector.load %arg11[%c0_46, %c1_47, %c96_48] : memref<16x16x288xbf16, #tpu.memory_space<vmem>>, vector<16x15x32xbf16>
    tpu.vector_store %arg11[%c0_46, %c1_47, %c96_48], %32 {strides = array<i32>} : memref<16x16x288xbf16, #tpu.memory_space<vmem>>, vector<16x15x32xbf16>,
    %c0_49 = arith.constant 0 : index
    %c15_50 = arith.constant 15 : index
    %c160 = arith.constant 160 : index
    %34 = vector.load %arg11[%c0_49, %c15_50, %c160] : memref<16x16x288xbf16, #tpu.memory_space<vmem>>, vector<16x1x32xbf16>
    tpu.vector_store %arg11[%c0_49, %c15_50, %c160], %29 {strides = array<i32>} : memref<16x16x288xbf16, #tpu.memory_space<vmem>>, vector<16x1x32xbf16>,
    %35 = vector.extract_strided_slice %1 {offsets = [0, 1, 0], sizes = [16, 15, 32], strides = [1, 1, 1]} : vector<16x16x32xbf16> to vector<16x15x32xbf16>
    %c0_51 = arith.constant 0 : index
    %c0_52 = arith.constant 0 : index
    %c160_53 = arith.constant 160 : index
    %36 = vector.load %arg11[%c0_51, %c0_52, %c160_53] : memref<16x16x288xbf16, #tpu.memory_space<vmem>>, vector<16x15x32xbf16>
    tpu.vector_store %arg11[%c0_51, %c0_52, %c160_53], %35 {strides = array<i32>} : memref<16x16x288xbf16, #tpu.memory_space<vmem>>, vector<16x15x32xbf16>,
    %37 = vector.extract_strided_slice %1 {offsets = [1, 0, 0], sizes = [15, 16, 32], strides = [1, 1, 1]} : vector<16x16x32xbf16> to vector<15x16x32xbf16>
    %cst_54 = arith.constant 0.000000e+00 : bf16
    %38 = vector.broadcast %cst_54 : bf16 to vector<15x1x32xbf16>
    %c0_55 = arith.constant 0 : index
    %c0_56 = arith.constant 0 : index
    %c224 = arith.constant 224 : index
    %39 = vector.load %arg11[%c0_55, %c0_56, %c224] : memref<16x16x288xbf16, #tpu.memory_space<vmem>>, vector<15x16x32xbf16>
    tpu.vector_store %arg11[%c0_55, %c0_56, %c224], %37 {strides = array<i32>} : memref<16x16x288xbf16, #tpu.memory_space<vmem>>, vector<15x16x32xbf16>,
    %c0_57 = arith.constant 0 : index
    %c0_58 = arith.constant 0 : index
    %c192 = arith.constant 192 : index
    %40 = vector.load %arg11[%c0_57, %c0_58, %c192] : memref<16x16x288xbf16, #tpu.memory_space<vmem>>, vector<15x1x32xbf16>
    tpu.vector_store %arg11[%c0_57, %c0_58, %c192], %38 {strides = array<i32>} : memref<16x16x288xbf16, #tpu.memory_space<vmem>>, vector<15x1x32xbf16>,
    %41 = vector.extract_strided_slice %37 {offsets = [0, 0, 0], sizes = [15, 15, 32], strides = [1, 1, 1]} : vector<15x16x32xbf16> to vector<15x15x32xbf16>
    %c0_59 = arith.constant 0 : index
    %c1_60 = arith.constant 1 : index
    %c192_61 = arith.constant 192 : index
    %42 = vector.load %arg11[%c0_59, %c1_60, %c192_61] : memref<16x16x288xbf16, #tpu.memory_space<vmem>>, vector<15x15x32xbf16>
    tpu.vector_store %arg11[%c0_59, %c1_60, %c192_61], %41 {strides = array<i32>} : memref<16x16x288xbf16, #tpu.memory_space<vmem>>, vector<15x15x32xbf16>,
    %c0_62 = arith.constant 0 : index
    %c15_63 = arith.constant 15 : index
    %c256 = arith.constant 256 : index
    %43 = vector.load %arg11[%c0_62, %c15_63, %c256] : memref<16x16x288xbf16, #tpu.memory_space<vmem>>, vector<15x1x32xbf16>
    tpu.vector_store %arg11[%c0_62, %c15_63, %c256], %38 {strides = array<i32>} : memref<16x16x288xbf16, #tpu.memory_space<vmem>>, vector<15x1x32xbf16>,
    %44 = vector.extract_strided_slice %37 {offsets = [0, 1, 0], sizes = [15, 15, 32], strides = [1, 1, 1]} : vector<15x16x32xbf16> to vector<15x15x32xbf16>
    %c0_64 = arith.constant 0 : index
    %c0_65 = arith.constant 0 : index
    %c256_66 = arith.constant 256 : index
    %45 = vector.load %arg11[%c0_64, %c0_65, %c256_66] : memref<16x16x288xbf16, #tpu.memory_space<vmem>>, vector<15x15x32xbf16>
    tpu.vector_store %arg11[%c0_64, %c0_65, %c256_66], %44 {strides = array<i32>} : memref<16x16x288xbf16, #tpu.memory_space<vmem>>, vector<15x15x32xbf16>,
    %cst_67 = arith.constant 0.000000e+00 : bf16
    %46 = vector.broadcast %cst_67 : bf16 to vector<1x1x32xbf16>
    %c15_68 = arith.constant 15 : index
    %c0_69 = arith.constant 0 : index
    %c224_70 = arith.constant 224 : index
    %47 = vector.load %arg11[%c15_68, %c0_69, %c224_70] : memref<16x16x288xbf16, #tpu.memory_space<vmem>>, vector<1x16x32xbf16>
    tpu.vector_store %arg11[%c15_68, %c0_69, %c224_70], %11 {strides = array<i32>} : memref<16x16x288xbf16, #tpu.memory_space<vmem>>, vector<1x16x32xbf16>,
    %c15_71 = arith.constant 15 : index
    %c0_72 = arith.constant 0 : index
    %c192_73 = arith.constant 192 : index
    %48 = vector.load %arg11[%c15_71, %c0_72, %c192_73] : memref<16x16x288xbf16, #tpu.memory_space<vmem>>, vector<1x1x32xbf16>
    tpu.vector_store %arg11[%c15_71, %c0_72, %c192_73], %46 {strides = array<i32>} : memref<16x16x288xbf16, #tpu.memory_space<vmem>>, vector<1x1x32xbf16>,
    %49 = vector.extract_strided_slice %11 {offsets = [0, 0, 0], sizes = [1, 15, 32], strides = [1, 1, 1]} : vector<1x16x32xbf16> to vector<1x15x32xbf16>
    %c15_74 = arith.constant 15 : index
    %c1_75 = arith.constant 1 : index
    %c192_76 = arith.constant 192 : index
    %50 = vector.load %arg11[%c15_74, %c1_75, %c192_76] : memref<16x16x288xbf16, #tpu.memory_space<vmem>>, vector<1x15x32xbf16>
    tpu.vector_store %arg11[%c15_74, %c1_75, %c192_76], %49 {strides = array<i32>} : memref<16x16x288xbf16, #tpu.memory_space<vmem>>, vector<1x15x32xbf16>,
    %c15_77 = arith.constant 15 : index
    %c15_78 = arith.constant 15 : index
    %c256_79 = arith.constant 256 : index
    %51 = vector.load %arg11[%c15_77, %c15_78, %c256_79] : memref<16x16x288xbf16, #tpu.memory_space<vmem>>, vector<1x1x32xbf16>
    tpu.vector_store %arg11[%c15_77, %c15_78, %c256_79], %46 {strides = array<i32>} : memref<16x16x288xbf16, #tpu.memory_space<vmem>>, vector<1x1x32xbf16>,
    %52 = vector.extract_strided_slice %11 {offsets = [0, 1, 0], sizes = [1, 15, 32], strides = [1, 1, 1]} : vector<1x16x32xbf16> to vector<1x15x32xbf16>
    %c15_80 = arith.constant 15 : index
    %c0_81 = arith.constant 0 : index
    %c256_82 = arith.constant 256 : index
    %53 = vector.load %arg11[%c15_80, %c0_81, %c256_82] : memref<16x16x288xbf16, #tpu.memory_space<vmem>>, vector<1x15x32xbf16>
    tpu.vector_store %arg11[%c15_80, %c0_81, %c256_82], %52 {strides = array<i32>} : memref<16x16x288xbf16, #tpu.memory_space<vmem>>, vector<1x15x32xbf16>,
    %c0_83 = arith.constant 0 : index
    %c0_84 = arith.constant 0 : index
    %c0_85 = arith.constant 0 : index
    %54 = vector.load %arg11[%c0_83, %c0_84, %c0_85] : memref<16x16x288xbf16, #tpu.memory_space<vmem>>, vector<16x16x288xbf16>
    %55 = vector.shape_cast %54 : vector<16x16x288xbf16> to vector<256x288xbf16>
    %c0_86 = arith.constant 0 : index
    %c0_87 = arith.constant 0 : index
    %56 = vector.load %arg5[%c0_86, %c0_87] : memref<288x96xbf16, #tpu.memory_space<vmem>>, vector<288x96xbf16>
    %cst_88 = arith.constant dense<0.000000e+00> : vector<256x96xf32>
    %57 = tpu.matmul %55, %56, %cst_88 {dimension_numbers = #tpu.dot_dimension_numbers<[1], [0], [0], [1], [0, 0, 1, 1], [], []>} : vector<256x288xbf16>, vector<288x96xbf16>, vector<256x96xf32> -> vector<256x96xf32>
    %c0_89 = arith.constant 0 : index
    %c0_90 = arith.constant 0 : index
    %58 = vector.load %arg6[%c0_89, %c0_90] : memref<1x96xf32, #tpu.memory_space<vmem>>, vector<1x96xf32>
    %59 = vector.broadcast %58 : vector<1x96xf32> to vector<256x96xf32>
    %60 = arith.addf %57, %59 : vector<256x96xf32>
    %cst_91 = arith.constant 0.000000e+00 : f32
    %61 = vector.broadcast %cst_91 : f32 to vector<256x96xf32>
    %62 = arith.maximumf %60, %61 : vector<256x96xf32>
    %63 = arith.truncf %62 : vector<256x96xf32> to vector<256x96xbf16>
    %c0_92 = arith.constant 0 : index
    %c0_93 = arith.constant 0 : index
    %64 = vector.load %arg7[%c0_92, %c0_93] : memref<96x128xbf16, #tpu.memory_space<vmem>>, vector<96x128xbf16>
    %cst_94 = arith.constant dense<0.000000e+00> : vector<256x128xf32>
    %65 = tpu.matmul %63, %64, %cst_94 {dimension_numbers = #tpu.dot_dimension_numbers<[1], [0], [0], [1], [0, 0, 1, 1], [], []>} : vector<256x96xbf16>, vector<96x128xbf16>, vector<256x128xf32> -> vector<256x128xf32>
    %c0_95 = arith.constant 0 : index
    %c0_96 = arith.constant 0 : index
    %66 = vector.load %arg8[%c0_95, %c0_96] : memref<1x128xf32, #tpu.memory_space<vmem>>, vector<1x128xf32>
    %67 = vector.broadcast %66 : vector<1x128xf32> to vector<256x128xf32>
    %68 = arith.addf %65, %67 : vector<256x128xf32>
    %69 = vector.shape_cast %63 : vector<256x96xbf16> to vector<16x16x96xbf16>
    %c0_97 = arith.constant 0 : index
    %c0_98 = arith.constant 0 : index
    %c0_99 = arith.constant 0 : index
    %c0_100 = arith.constant 0 : index
    %70 = vector.load %arg9[%c0_97, %c0_98, %c0_99, %c0_100] : memref<1x16x16x96xbf16, #tpu.memory_space<vmem>>, vector<1x16x16x96xbf16>
    %71 = vector.shape_cast %70 : vector<1x16x16x96xbf16> to vector<16x16x96xbf16>
    %72 = vector.shape_cast %69 : vector<16x16x96xbf16> to vector<1x16x16x96xbf16>
    tpu.vector_store %arg9[%c0_97, %c0_98, %c0_99, %c0_100], %72 {strides = array<i32>} : memref<1x16x16x96xbf16, #tpu.memory_space<vmem>>, vector<1x16x16x96xbf16>,
    %73 = arith.truncf %68 : vector<256x128xf32> to vector<256x128xbf16>
    %74 = vector.shape_cast %73 : vector<256x128xbf16> to vector<16x16x128xbf16>
    %c0_101 = arith.constant 0 : index
    %c0_102 = arith.constant 0 : index
    %c0_103 = arith.constant 0 : index
    %c0_104 = arith.constant 0 : index
    %75 = vector.load %arg10[%c0_101, %c0_102, %c0_103, %c0_104] : memref<1x16x16x128xbf16, #tpu.memory_space<vmem>>, vector<1x16x16x128xbf16>
    %76 = vector.shape_cast %75 : vector<1x16x16x128xbf16> to vector<16x16x128xbf16>
    %77 = vector.shape_cast %74 : vector<16x16x128xbf16> to vector<1x16x16x128xbf16>
    tpu.vector_store %arg10[%c0_101, %c0_102, %c0_103, %c0_104], %77 {strides = array<i32>} : memref<1x16x16x128xbf16, #tpu.memory_space<vmem>>, vector<1x16x16x128xbf16>,
    return
  }
  func.func @transform_0(%arg0: i32, %arg1: i32) -> (i32, i32, i32, i32) {
    %c0_i32 = arith.constant 0 : i32
    %c0_i32_0 = arith.constant 0 : i32
    %c0_i32_1 = arith.constant 0 : i32
    return %arg0, %arg1, %c0_i32, %c0_i32_0 : i32, i32, i32, i32
  }
  func.func @transform_1(%arg0: i32, %arg1: i32) -> (i32, i32, i32, i32) {
    %c16_i32 = arith.constant 16 : i32
    %0 = arith.muli %arg1, %c16_i32 : i32
    %c1_i32 = arith.constant 1 : i32
    %1 = arith.subi %0, %c1_i32 : i32
    %c0_i32 = arith.constant 0 : i32
    %2 = arith.maxsi %1, %c0_i32 : i32
    %c0_i32_0 = arith.constant 0 : i32
    %c0_i32_1 = arith.constant 0 : i32
    %c0_i32_2 = arith.constant 0 : i32
    return %arg0, %2, %c0_i32_0, %c0_i32_1 : i32, i32, i32, i32
  }
  func.func @transform_2(%arg0: i32, %arg1: i32) -> (i32, i32, i32, i32) {
    %c16_i32 = arith.constant 16 : i32
    %0 = arith.muli %arg1, %c16_i32 : i32
    %c16_i32_0 = arith.constant 16 : i32
    %1 = arith.addi %0, %c16_i32_0 : i32
    %c15_i32 = arith.constant 15 : i32
    %2 = arith.minsi %1, %c15_i32 : i32
    %c0_i32 = arith.constant 0 : i32
    %c0_i32_1 = arith.constant 0 : i32
    %c0_i32_2 = arith.constant 0 : i32
    return %arg0, %2, %c0_i32, %c0_i32_1 : i32, i32, i32, i32
  }
  func.func @transform_3(%arg0: i32, %arg1: i32) -> (i32, i32) {
    %c0_i32 = arith.constant 0 : i32
    %c0_i32_0 = arith.constant 0 : i32
    %c0_i32_1 = arith.constant 0 : i32
    return %c0_i32, %c0_i32_0 : i32, i32
  }
  func.func @transform_4(%arg0: i32, %arg1: i32) -> (i32, i32) {
    %c0_i32 = arith.constant 0 : i32
    %c0_i32_0 = arith.constant 0 : i32
    %c0_i32_1 = arith.constant 0 : i32
    return %c0_i32, %c0_i32_0 : i32, i32
  }
  func.func @transform_5(%arg0: i32, %arg1: i32) -> (i32, i32) {
    %c0_i32 = arith.constant 0 : i32
    %c0_i32_0 = arith.constant 0 : i32
    %c0_i32_1 = arith.constant 0 : i32
    return %c0_i32, %c0_i32_0 : i32, i32
  }
  func.func @transform_6(%arg0: i32, %arg1: i32) -> (i32, i32) {
    %c0_i32 = arith.constant 0 : i32
    %c0_i32_0 = arith.constant 0 : i32
    %c0_i32_1 = arith.constant 0 : i32
    return %c0_i32, %c0_i32_0 : i32, i32
  }
  func.func @transform_7(%arg0: i32, %arg1: i32) -> (i32, i32, i32, i32) {
    %c0_i32 = arith.constant 0 : i32
    %c0_i32_0 = arith.constant 0 : i32
    %c0_i32_1 = arith.constant 0 : i32
    return %arg0, %arg1, %c0_i32, %c0_i32_0 : i32, i32, i32, i32
  }
  func.func @transform_8(%arg0: i32, %arg1: i32) -> (i32, i32, i32, i32) {
    %c0_i32 = arith.constant 0 : i32
    %c0_i32_0 = arith.constant 0 : i32
    %c0_i32_1 = arith.constant 0 : i32
    return %arg0, %arg1, %c0_i32, %c0_i32_0 : i32, i32, i32, i32
  }
}

module attributes {stable_mosaic.version = 11 : i64} {
  func.func @_rpn_head_kernel(%arg0: i32, %arg1: i32, %arg2: memref<1x16x16x32xbf16, #tpu.memory_space<vmem>>, %arg3: memref<1x1x16x32xbf16, #tpu.memory_space<vmem>>, %arg4: memref<1x1x16x32xbf16, #tpu.memory_space<vmem>>, %arg5: memref<288x96xbf16, #tpu.memory_space<vmem>>, %arg6: memref<1x96xf32, #tpu.memory_space<vmem>>, %arg7: memref<96x128xbf16, #tpu.memory_space<vmem>>, %arg8: memref<1x128xf32, #tpu.memory_space<vmem>>, %arg9: memref<1x16x16x96xbf16, #tpu.memory_space<vmem>>, %arg10: memref<1x16x16x128xbf16, #tpu.memory_space<vmem>>, %arg11: memref<16x16x288xbf16, #tpu.memory_space<vmem>>) attributes {dimension_semantics = [#tpu.dimension_semantics<parallel>, #tpu.dimension_semantics<parallel>], iteration_bounds = array<i64: 2, 1>, scalar_prefetch = 0 : i64, scratch_operands = 1 : i64, tpu.core_type = #tpu.core_type<tc>, window_params = [{transform_indices = @transform_0, window_bounds = array<i64: 1, 16, 16, 32>}, {transform_indices = @transform_1, window_bounds = array<i64: 1, 1, 16, 32>}, {transform_indices = @transform_2, window_bounds = array<i64: 1, 1, 16, 32>}, {pipeline_mode = #tpu.pipeline_mode<synchronous>, transform_indices = @transform_3, window_bounds = array<i64: 288, 96>}, {pipeline_mode = #tpu.pipeline_mode<synchronous>, transform_indices = @transform_4, window_bounds = array<i64: 1, 96>}, {pipeline_mode = #tpu.pipeline_mode<synchronous>, transform_indices = @transform_5, window_bounds = array<i64: 96, 128>}, {pipeline_mode = #tpu.pipeline_mode<synchronous>, transform_indices = @transform_6, window_bounds = array<i64: 1, 128>}, {transform_indices = @transform_7, window_bounds = array<i64: 1, 16, 16, 96>}, {transform_indices = @transform_8, window_bounds = array<i64: 1, 16, 16, 128>}]} {
    %c0 = arith.constant 0 : index
    %c0_0 = arith.constant 0 : index
    %c0_1 = arith.constant 0 : index
    %c0_2 = arith.constant 0 : index
    %0 = vector.load %arg2[%c0, %c0_0, %c0_1, %c0_2] : memref<1x16x16x32xbf16, #tpu.memory_space<vmem>>, vector<1x16x16x32xbf16>
    %1 = vector.shape_cast %0 : vector<1x16x16x32xbf16> to vector<16x16x32xbf16>
    %c0_3 = arith.constant 0 : index
    %c0_4 = arith.constant 0 : index
    %c0_5 = arith.constant 0 : index
    %c0_6 = arith.constant 0 : index
    %2 = vector.load %arg3[%c0_3, %c0_4, %c0_5, %c0_6] : memref<1x1x16x32xbf16, #tpu.memory_space<vmem>>, vector<1x1x16x32xbf16>
    %3 = vector.shape_cast %2 : vector<1x1x16x32xbf16> to vector<1x16x32xbf16>
    %c0_7 = arith.constant 0 : index
    %c0_8 = arith.constant 0 : index
    %c0_9 = arith.constant 0 : index
    %c0_10 = arith.constant 0 : index
    %4 = vector.load %arg4[%c0_7, %c0_8, %c0_9, %c0_10] : memref<1x1x16x32xbf16, #tpu.memory_space<vmem>>, vector<1x1x16x32xbf16>
    %5 = vector.shape_cast %4 : vector<1x1x16x32xbf16> to vector<1x16x32xbf16>
    %c0_i32 = arith.constant 0 : i32
    %6 = arith.cmpi sgt, %arg1, %c0_i32 : i32
    %cst = arith.constant 0.000000e+00 : bf16
    %7 = vector.broadcast %cst : bf16 to vector<1x16x32xbf16>
    %8 = arith.select %6, %3, %7 : vector<1x16x32xbf16>
    %c0_i32_11 = arith.constant 0 : i32
    %9 = arith.cmpi slt, %arg1, %c0_i32_11 : i32
    %cst_12 = arith.constant 0.000000e+00 : bf16
    %10 = vector.broadcast %cst_12 : bf16 to vector<1x16x32xbf16>
    %11 = arith.select %9, %5, %10 : vector<1x16x32xbf16>
    %cst_13 = arith.constant 0.000000e+00 : bf16
    %12 = vector.broadcast %cst_13 : bf16 to vector<1x1x32xbf16>
    %c0_14 = arith.constant 0 : index
    %c0_15 = arith.constant 0 : index
    %c32 = arith.constant 32 : index
    %13 = vector.load %arg11[%c0_14, %c0_15, %c32] : memref<16x16x288xbf16, #tpu.memory_space<vmem>>, vector<1x16x32xbf16>
    tpu.vector_store %arg11[%c0_14, %c0_15, %c32], %8 {strides = array<i32>} : memref<16x16x288xbf16, #tpu.memory_space<vmem>>, vector<1x16x32xbf16>,
    %c0_16 = arith.constant 0 : index
    %c0_17 = arith.constant 0 : index
    %c0_18 = arith.constant 0 : index
    %14 = vector.load %arg11[%c0_16, %c0_17, %c0_18] : memref<16x16x288xbf16, #tpu.memory_space<vmem>>, vector<1x1x32xbf16>
    tpu.vector_store %arg11[%c0_16, %c0_17, %c0_18], %12 {strides = array<i32>} : memref<16x16x288xbf16, #tpu.memory_space<vmem>>, vector<1x1x32xbf16>,
    %15 = vector.extract_strided_slice %8 {offsets = [0, 0, 0], sizes = [1, 15, 32], strides = [1, 1, 1]} : vector<1x16x32xbf16> to vector<1x15x32xbf16>
    %c0_19 = arith.constant 0 : index
    %c1 = arith.constant 1 : index
    %c0_20 = arith.constant 0 : index
    %16 = vector.load %arg11[%c0_19, %c1, %c0_20] : memref<16x16x288xbf16, #tpu.memory_space<vmem>>, vector<1x15x32xbf16>
    tpu.vector_store %arg11[%c0_19, %c1, %c0_20], %15 {strides = array<i32>} : memref<16x16x288xbf16, #tpu.memory_space<vmem>>, vector<1x15x32xbf16>,
    %c0_21 = arith.constant 0 : index
    %c15 = arith.constant 15 : index
    %c64 = arith.constant 64 : index
    %17 = vector.load %arg11[%c0_21, %c15, %c64] : memref<16x16x288xbf16, #tpu.memory_space<vmem>>, vector<1x1x32xbf16>
    tpu.vector_store %arg11[%c0_21, %c15, %c64], %12 {strides = array<i32>} : memref<16x16x288xbf16, #tpu.memory_space<vmem>>, vector<1x1x32xbf16>,
    %18 = vector.extract_strided_slice %8 {offsets = [0, 1, 0], sizes = [1, 15, 32], strides = [1, 1, 1]} : vector<1x16x32xbf16> to vector<1x15x32xbf16>
    %c0_22 = arith.constant 0 : index
    %c0_23 = arith.constant 0 : index
    %c64_24 = arith.constant 64 : index
    %19 = vector.load %arg11[%c0_22, %c0_23, %c64_24] : memref<16x16x288xbf16, #tpu.memory_space<vmem>>, vector<1x15x32xbf16>
    tpu.vector_store %arg11[%c0_22, %c0_23, %c64_24], %18 {strides = array<i32>} : memref<16x16x288xbf16, #tpu.memory_space<vmem>>, vector<1x15x32xbf16>,
    %20 = vector.extract_strided_slice %1 {offsets = [0, 0, 0], sizes = [15, 16, 32], strides = [1, 1, 1]} : vector<16x16x32xbf16> to vector<15x16x32xbf16>
    %cst_25 = arith.constant 0.000000e+00 : bf16
    %21 = vector.broadcast %cst_25 : bf16 to vector<15x1x32xbf16>
    %c1_26 = arith.constant 1 : index
    %c0_27 = arith.constant 0 : index
    %c32_28 = arith.constant 32 : index
    %22 = vector.load %arg11[%c1_26, %c0_27, %c32_28] : memref<16x16x288xbf16, #tpu.memory_space<vmem>>, vector<15x16x32xbf16>
    tpu.vector_store %arg11[%c1_26, %c0_27, %c32_28], %20 {strides = array<i32>} : memref<16x16x288xbf16, #tpu.memory_space<vmem>>, vector<15x16x32xbf16>,
    %c1_29 = arith.constant 1 : index
    %c0_30 = arith.constant 0 : index
    %c0_31 = arith.constant 0 : index
    %23 = vector.load %arg11[%c1_29, %c0_30, %c0_31] : memref<16x16x288xbf16, #tpu.memory_space<vmem>>, vector<15x1x32xbf16>
    tpu.vector_store %arg11[%c1_29, %c0_30, %c0_31], %21 {strides = array<i32>} : memref<16x16x288xbf16, #tpu.memory_space<vmem>>, vector<15x1x32xbf16>,
    %24 = vector.extract_strided_slice %20 {offsets = [0, 0, 0], sizes = [15, 15, 32], strides = [1, 1, 1]} : vector<15x16x32xbf16> to vector<15x15x32xbf16>
    %c1_32 = arith.constant 1 : index
    %c1_33 = arith.constant 1 : index
    %c0_34 = arith.constant 0 : index
    %25 = vector.load %arg11[%c1_32, %c1_33, %c0_34] : memref<16x16x288xbf16, #tpu.memory_space<vmem>>, vector<15x15x32xbf16>
    tpu.vector_store %arg11[%c1_32, %c1_33, %c0_34], %24 {strides = array<i32>} : memref<16x16x288xbf16, #tpu.memory_space<vmem>>, vector<15x15x32xbf16>,
    %c1_35 = arith.constant 1 : index
    %c15_36 = arith.constant 15 : index
    %c64_37 = arith.constant 64 : index
    %26 = vector.load %arg11[%c1_35, %c15_36, %c64_37] : memref<16x16x288xbf16, #tpu.memory_space<vmem>>, vector<15x1x32xbf16>
    tpu.vector_store %arg11[%c1_35, %c15_36, %c64_37], %21 {strides = array<i32>} : memref<16x16x288xbf16, #tpu.memory_space<vmem>>, vector<15x1x32xbf16>,
    %27 = vector.extract_strided_slice %20 {offsets = [0, 1, 0], sizes = [15, 15, 32], strides = [1, 1, 1]} : vector<15x16x32xbf16> to vector<15x15x32xbf16>
    %c1_38 = arith.constant 1 : index
    %c0_39 = arith.constant 0 : index
    %c64_40 = arith.constant 64 : index
    %28 = vector.load %arg11[%c1_38, %c0_39, %c64_40] : memref<16x16x288xbf16, #tpu.memory_space<vmem>>, vector<15x15x32xbf16>
    tpu.vector_store %arg11[%c1_38, %c0_39, %c64_40], %27 {strides = array<i32>} : memref<16x16x288xbf16, #tpu.memory_space<vmem>>, vector<15x15x32xbf16>,
    %cst_41 = arith.constant 0.000000e+00 : bf16
    %29 = vector.broadcast %cst_41 : bf16 to vector<16x1x32xbf16>
    %c0_42 = arith.constant 0 : index
    %c0_43 = arith.constant 0 : index
    %c128 = arith.constant 128 : index
    %30 = vector.load %arg11[%c0_42, %c0_43, %c128] : memref<16x16x288xbf16, #tpu.memory_space<vmem>>, vector<16x16x32xbf16>
    tpu.vector_store %arg11[%c0_42, %c0_43, %c128], %1 {strides = array<i32>} : memref<16x16x288xbf16, #tpu.memory_space<vmem>>, vector<16x16x32xbf16>,
    %c0_44 = arith.constant 0 : index
    %c0_45 = arith.constant 0 : index
    %c96 = arith.constant 96 : index
    %31 = vector.load %arg11[%c0_44, %c0_45, %c96] : memref<16x16x288xbf16, #tpu.memory_space<vmem>>, vector<16x1x32xbf16>
    tpu.vector_store %arg11[%c0_44, %c0_45, %c96], %29 {strides = array<i32>} : memref<16x16x288xbf16, #tpu.memory_space<vmem>>, vector<16x1x32xbf16>,
    %32 = vector.extract_strided_slice %1 {offsets = [0, 0, 0], sizes = [16, 15, 32], strides = [1, 1, 1]} : vector<16x16x32xbf16> to vector<16x15x32xbf16>
    %c0_46 = arith.constant 0 : index
    %c1_47 = arith.constant 1 : index
    %c96_48 = arith.constant 96 : index
    %33 = vector.load %arg11[%c0_46, %c1_47, %c96_48] : memref<16x16x288xbf16, #tpu.memory_space<vmem>>, vector<16x15x32xbf16>
    tpu.vector_store %arg11[%c0_46, %c1_47, %c96_48], %32 {strides = array<i32>} : memref<16x16x288xbf16, #tpu.memory_space<vmem>>, vector<16x15x32xbf16>,
    %c0_49 = arith.constant 0 : index
    %c15_50 = arith.constant 15 : index
    %c160 = arith.constant 160 : index
    %34 = vector.load %arg11[%c0_49, %c15_50, %c160] : memref<16x16x288xbf16, #tpu.memory_space<vmem>>, vector<16x1x32xbf16>
    tpu.vector_store %arg11[%c0_49, %c15_50, %c160], %29 {strides = array<i32>} : memref<16x16x288xbf16, #tpu.memory_space<vmem>>, vector<16x1x32xbf16>,
    %35 = vector.extract_strided_slice %1 {offsets = [0, 1, 0], sizes = [16, 15, 32], strides = [1, 1, 1]} : vector<16x16x32xbf16> to vector<16x15x32xbf16>
    %c0_51 = arith.constant 0 : index
    %c0_52 = arith.constant 0 : index
    %c160_53 = arith.constant 160 : index
    %36 = vector.load %arg11[%c0_51, %c0_52, %c160_53] : memref<16x16x288xbf16, #tpu.memory_space<vmem>>, vector<16x15x32xbf16>
    tpu.vector_store %arg11[%c0_51, %c0_52, %c160_53], %35 {strides = array<i32>} : memref<16x16x288xbf16, #tpu.memory_space<vmem>>, vector<16x15x32xbf16>,
    %37 = vector.extract_strided_slice %1 {offsets = [1, 0, 0], sizes = [15, 16, 32], strides = [1, 1, 1]} : vector<16x16x32xbf16> to vector<15x16x32xbf16>
    %cst_54 = arith.constant 0.000000e+00 : bf16
    %38 = vector.broadcast %cst_54 : bf16 to vector<15x1x32xbf16>
    %c0_55 = arith.constant 0 : index
    %c0_56 = arith.constant 0 : index
    %c224 = arith.constant 224 : index
    %39 = vector.load %arg11[%c0_55, %c0_56, %c224] : memref<16x16x288xbf16, #tpu.memory_space<vmem>>, vector<15x16x32xbf16>
    tpu.vector_store %arg11[%c0_55, %c0_56, %c224], %37 {strides = array<i32>} : memref<16x16x288xbf16, #tpu.memory_space<vmem>>, vector<15x16x32xbf16>,
    %c0_57 = arith.constant 0 : index
    %c0_58 = arith.constant 0 : index
    %c192 = arith.constant 192 : index
    %40 = vector.load %arg11[%c0_57, %c0_58, %c192] : memref<16x16x288xbf16, #tpu.memory_space<vmem>>, vector<15x1x32xbf16>
    tpu.vector_store %arg11[%c0_57, %c0_58, %c192], %38 {strides = array<i32>} : memref<16x16x288xbf16, #tpu.memory_space<vmem>>, vector<15x1x32xbf16>,
    %41 = vector.extract_strided_slice %37 {offsets = [0, 0, 0], sizes = [15, 15, 32], strides = [1, 1, 1]} : vector<15x16x32xbf16> to vector<15x15x32xbf16>
    %c0_59 = arith.constant 0 : index
    %c1_60 = arith.constant 1 : index
    %c192_61 = arith.constant 192 : index
    %42 = vector.load %arg11[%c0_59, %c1_60, %c192_61] : memref<16x16x288xbf16, #tpu.memory_space<vmem>>, vector<15x15x32xbf16>
    tpu.vector_store %arg11[%c0_59, %c1_60, %c192_61], %41 {strides = array<i32>} : memref<16x16x288xbf16, #tpu.memory_space<vmem>>, vector<15x15x32xbf16>,
    %c0_62 = arith.constant 0 : index
    %c15_63 = arith.constant 15 : index
    %c256 = arith.constant 256 : index
    %43 = vector.load %arg11[%c0_62, %c15_63, %c256] : memref<16x16x288xbf16, #tpu.memory_space<vmem>>, vector<15x1x32xbf16>
    tpu.vector_store %arg11[%c0_62, %c15_63, %c256], %38 {strides = array<i32>} : memref<16x16x288xbf16, #tpu.memory_space<vmem>>, vector<15x1x32xbf16>,
    %44 = vector.extract_strided_slice %37 {offsets = [0, 1, 0], sizes = [15, 15, 32], strides = [1, 1, 1]} : vector<15x16x32xbf16> to vector<15x15x32xbf16>
    %c0_64 = arith.constant 0 : index
    %c0_65 = arith.constant 0 : index
    %c256_66 = arith.constant 256 : index
    %45 = vector.load %arg11[%c0_64, %c0_65, %c256_66] : memref<16x16x288xbf16, #tpu.memory_space<vmem>>, vector<15x15x32xbf16>
    tpu.vector_store %arg11[%c0_64, %c0_65, %c256_66], %44 {strides = array<i32>} : memref<16x16x288xbf16, #tpu.memory_space<vmem>>, vector<15x15x32xbf16>,
    %cst_67 = arith.constant 0.000000e+00 : bf16
    %46 = vector.broadcast %cst_67 : bf16 to vector<1x1x32xbf16>
    %c15_68 = arith.constant 15 : index
    %c0_69 = arith.constant 0 : index
    %c224_70 = arith.constant 224 : index
    %47 = vector.load %arg11[%c15_68, %c0_69, %c224_70] : memref<16x16x288xbf16, #tpu.memory_space<vmem>>, vector<1x16x32xbf16>
    tpu.vector_store %arg11[%c15_68, %c0_69, %c224_70], %11 {strides = array<i32>} : memref<16x16x288xbf16, #tpu.memory_space<vmem>>, vector<1x16x32xbf16>,
    %c15_71 = arith.constant 15 : index
    %c0_72 = arith.constant 0 : index
    %c192_73 = arith.constant 192 : index
    %48 = vector.load %arg11[%c15_71, %c0_72, %c192_73] : memref<16x16x288xbf16, #tpu.memory_space<vmem>>, vector<1x1x32xbf16>
    tpu.vector_store %arg11[%c15_71, %c0_72, %c192_73], %46 {strides = array<i32>} : memref<16x16x288xbf16, #tpu.memory_space<vmem>>, vector<1x1x32xbf16>,
    %49 = vector.extract_strided_slice %11 {offsets = [0, 0, 0], sizes = [1, 15, 32], strides = [1, 1, 1]} : vector<1x16x32xbf16> to vector<1x15x32xbf16>
    %c15_74 = arith.constant 15 : index
    %c1_75 = arith.constant 1 : index
    %c192_76 = arith.constant 192 : index
    %50 = vector.load %arg11[%c15_74, %c1_75, %c192_76] : memref<16x16x288xbf16, #tpu.memory_space<vmem>>, vector<1x15x32xbf16>
    tpu.vector_store %arg11[%c15_74, %c1_75, %c192_76], %49 {strides = array<i32>} : memref<16x16x288xbf16, #tpu.memory_space<vmem>>, vector<1x15x32xbf16>,
    %c15_77 = arith.constant 15 : index
    %c15_78 = arith.constant 15 : index
    %c256_79 = arith.constant 256 : index
    %51 = vector.load %arg11[%c15_77, %c15_78, %c256_79] : memref<16x16x288xbf16, #tpu.memory_space<vmem>>, vector<1x1x32xbf16>
    tpu.vector_store %arg11[%c15_77, %c15_78, %c256_79], %46 {strides = array<i32>} : memref<16x16x288xbf16, #tpu.memory_space<vmem>>, vector<1x1x32xbf16>,
    %52 = vector.extract_strided_slice %11 {offsets = [0, 1, 0], sizes = [1, 15, 32], strides = [1, 1, 1]} : vector<1x16x32xbf16> to vector<1x15x32xbf16>
    %c15_80 = arith.constant 15 : index
    %c0_81 = arith.constant 0 : index
    %c256_82 = arith.constant 256 : index
    %53 = vector.load %arg11[%c15_80, %c0_81, %c256_82] : memref<16x16x288xbf16, #tpu.memory_space<vmem>>, vector<1x15x32xbf16>
    tpu.vector_store %arg11[%c15_80, %c0_81, %c256_82], %52 {strides = array<i32>} : memref<16x16x288xbf16, #tpu.memory_space<vmem>>, vector<1x15x32xbf16>,
    %c0_83 = arith.constant 0 : index
    %c0_84 = arith.constant 0 : index
    %c0_85 = arith.constant 0 : index
    %54 = vector.load %arg11[%c0_83, %c0_84, %c0_85] : memref<16x16x288xbf16, #tpu.memory_space<vmem>>, vector<16x16x288xbf16>
    %55 = vector.shape_cast %54 : vector<16x16x288xbf16> to vector<256x288xbf16>
    %c0_86 = arith.constant 0 : index
    %c0_87 = arith.constant 0 : index
    %56 = vector.load %arg5[%c0_86, %c0_87] : memref<288x96xbf16, #tpu.memory_space<vmem>>, vector<288x96xbf16>
    %cst_88 = arith.constant dense<0.000000e+00> : vector<256x96xf32>
    %57 = tpu.matmul %55, %56, %cst_88 {dimension_numbers = #tpu.dot_dimension_numbers<[1], [0], [0], [1], [0, 0, 1, 1], [], []>} : vector<256x288xbf16>, vector<288x96xbf16>, vector<256x96xf32> -> vector<256x96xf32>
    %c0_89 = arith.constant 0 : index
    %c0_90 = arith.constant 0 : index
    %58 = vector.load %arg6[%c0_89, %c0_90] : memref<1x96xf32, #tpu.memory_space<vmem>>, vector<1x96xf32>
    %59 = vector.broadcast %58 : vector<1x96xf32> to vector<256x96xf32>
    %60 = arith.addf %57, %59 : vector<256x96xf32>
    %cst_91 = arith.constant 0.000000e+00 : f32
    %61 = vector.broadcast %cst_91 : f32 to vector<256x96xf32>
    %62 = arith.maximumf %60, %61 : vector<256x96xf32>
    %63 = arith.truncf %62 : vector<256x96xf32> to vector<256x96xbf16>
    %c0_92 = arith.constant 0 : index
    %c0_93 = arith.constant 0 : index
    %64 = vector.load %arg7[%c0_92, %c0_93] : memref<96x128xbf16, #tpu.memory_space<vmem>>, vector<96x128xbf16>
    %cst_94 = arith.constant dense<0.000000e+00> : vector<256x128xf32>
    %65 = tpu.matmul %63, %64, %cst_94 {dimension_numbers = #tpu.dot_dimension_numbers<[1], [0], [0], [1], [0, 0, 1, 1], [], []>} : vector<256x96xbf16>, vector<96x128xbf16>, vector<256x128xf32> -> vector<256x128xf32>
    %c0_95 = arith.constant 0 : index
    %c0_96 = arith.constant 0 : index
    %66 = vector.load %arg8[%c0_95, %c0_96] : memref<1x128xf32, #tpu.memory_space<vmem>>, vector<1x128xf32>
    %67 = vector.broadcast %66 : vector<1x128xf32> to vector<256x128xf32>
    %68 = arith.addf %65, %67 : vector<256x128xf32>
    %69 = vector.shape_cast %63 : vector<256x96xbf16> to vector<16x16x96xbf16>
    %c0_97 = arith.constant 0 : index
    %c0_98 = arith.constant 0 : index
    %c0_99 = arith.constant 0 : index
    %c0_100 = arith.constant 0 : index
    %70 = vector.load %arg9[%c0_97, %c0_98, %c0_99, %c0_100] : memref<1x16x16x96xbf16, #tpu.memory_space<vmem>>, vector<1x16x16x96xbf16>
    %71 = vector.shape_cast %70 : vector<1x16x16x96xbf16> to vector<16x16x96xbf16>
    %72 = vector.shape_cast %69 : vector<16x16x96xbf16> to vector<1x16x16x96xbf16>
    tpu.vector_store %arg9[%c0_97, %c0_98, %c0_99, %c0_100], %72 {strides = array<i32>} : memref<1x16x16x96xbf16, #tpu.memory_space<vmem>>, vector<1x16x16x96xbf16>,
    %73 = arith.truncf %68 : vector<256x128xf32> to vector<256x128xbf16>
    %74 = vector.shape_cast %73 : vector<256x128xbf16> to vector<16x16x128xbf16>
    %c0_101 = arith.constant 0 : index
    %c0_102 = arith.constant 0 : index
    %c0_103 = arith.constant 0 : index
    %c0_104 = arith.constant 0 : index
    %75 = vector.load %arg10[%c0_101, %c0_102, %c0_103, %c0_104] : memref<1x16x16x128xbf16, #tpu.memory_space<vmem>>, vector<1x16x16x128xbf16>
    %76 = vector.shape_cast %75 : vector<1x16x16x128xbf16> to vector<16x16x128xbf16>
    %77 = vector.shape_cast %74 : vector<16x16x128xbf16> to vector<1x16x16x128xbf16>
    tpu.vector_store %arg10[%c0_101, %c0_102, %c0_103, %c0_104], %77 {strides = array<i32>} : memref<1x16x16x128xbf16, #tpu.memory_space<vmem>>, vector<1x16x16x128xbf16>,
    return
  }
  func.func @transform_0(%arg0: i32, %arg1: i32) -> (i32, i32, i32, i32) {
    %c0_i32 = arith.constant 0 : i32
    %c0_i32_0 = arith.constant 0 : i32
    %c0_i32_1 = arith.constant 0 : i32
    return %arg0, %arg1, %c0_i32, %c0_i32_0 : i32, i32, i32, i32
  }
  func.func @transform_1(%arg0: i32, %arg1: i32) -> (i32, i32, i32, i32) {
    %c16_i32 = arith.constant 16 : i32
    %0 = arith.muli %arg1, %c16_i32 : i32
    %c1_i32 = arith.constant 1 : i32
    %1 = arith.subi %0, %c1_i32 : i32
    %c0_i32 = arith.constant 0 : i32
    %2 = arith.maxsi %1, %c0_i32 : i32
    %c0_i32_0 = arith.constant 0 : i32
    %c0_i32_1 = arith.constant 0 : i32
    %c0_i32_2 = arith.constant 0 : i32
    return %arg0, %2, %c0_i32_0, %c0_i32_1 : i32, i32, i32, i32
  }
  func.func @transform_2(%arg0: i32, %arg1: i32) -> (i32, i32, i32, i32) {
    %c16_i32 = arith.constant 16 : i32
    %0 = arith.muli %arg1, %c16_i32 : i32
    %c16_i32_0 = arith.constant 16 : i32
    %1 = arith.addi %0, %c16_i32_0 : i32
    %c15_i32 = arith.constant 15 : i32
    %2 = arith.minsi %1, %c15_i32 : i32
    %c0_i32 = arith.constant 0 : i32
    %c0_i32_1 = arith.constant 0 : i32
    %c0_i32_2 = arith.constant 0 : i32
    return %arg0, %2, %c0_i32, %c0_i32_1 : i32, i32, i32, i32
  }
  func.func @transform_3(%arg0: i32, %arg1: i32) -> (i32, i32) {
    %c0_i32 = arith.constant 0 : i32
    %c0_i32_0 = arith.constant 0 : i32
    %c0_i32_1 = arith.constant 0 : i32
    return %c0_i32, %c0_i32_0 : i32, i32
  }
  func.func @transform_4(%arg0: i32, %arg1: i32) -> (i32, i32) {
    %c0_i32 = arith.constant 0 : i32
    %c0_i32_0 = arith.constant 0 : i32
    %c0_i32_1 = arith.constant 0 : i32
    return %c0_i32, %c0_i32_0 : i32, i32
  }
  func.func @transform_5(%arg0: i32, %arg1: i32) -> (i32, i32) {
    %c0_i32 = arith.constant 0 : i32
    %c0_i32_0 = arith.constant 0 : i32
    %c0_i32_1 = arith.constant 0 : i32
    return %c0_i32, %c0_i32_0 : i32, i32
  }
  func.func @transform_6(%arg0: i32, %arg1: i32) -> (i32, i32) {
    %c0_i32 = arith.constant 0 : i32
    %c0_i32_0 = arith.constant 0 : i32
    %c0_i32_1 = arith.constant 0 : i32
    return %c0_i32, %c0_i32_0 : i32, i32
  }
  func.func @transform_7(%arg0: i32, %arg1: i32) -> (i32, i32, i32, i32) {
    %c0_i32 = arith.constant 0 : i32
    %c0_i32_0 = arith.constant 0 : i32
    %c0_i32_1 = arith.constant 0 : i32
    return %arg0, %arg1, %c0_i32, %c0_i32_0 : i32, i32, i32, i32
  }
  func.func @transform_8(%arg0: i32, %arg1: i32) -> (i32, i32, i32, i32) {
    %c0_i32 = arith.constant 0 : i32
    %c0_i32_0 = arith.constant 0 : i32
    %c0_i32_1 = arith.constant 0 : i32
    return %arg0, %arg1, %c0_i32, %c0_i32_0 : i32, i32, i32, i32
  }
}

</mosaic_0001>

<llo_original>
// kernel: _rpn_head_level.1
$region0: #{_rpn_head_level.1}
  #allocation0 [shape = 'u32[]', space=smem, size = 0x4, offset = 0x4, fixed_abs, tag = 'smem constant byte address 0x4 - core index']
  #allocation1 [shape = 'u32[144,128]{1,0:T(1,128)}', space=vmem, size = 0x12000, scoped, tag = 'internal scratch']
  #allocation2 [shape = 'bf16[16,16,288]{2,1,0:T(16,128)(2,1)}', space=vmem, size = 0x30000, scoped, tag = 'scratch operand']
  %s0 = inlined_call_operand.vmem [shape: bf16[2,16,16,32], index: 0, kind: input, shape index: {}, may-alias: {0,1,2}]
  %s1 = inlined_call_operand.vmem [shape: bf16[2,16,16,32], index: 1, kind: input, shape index: {}, may-alias: {0,1,2}]
  %s2 = inlined_call_operand.vmem [shape: bf16[2,16,16,32], index: 2, kind: input, shape index: {}, may-alias: {0,1,2}]
  %s3 = inlined_call_operand.vmem [shape: bf16[288,96], index: 3, kind: input, shape index: {}]
  %s4 = inlined_call_operand.vmem [shape: f32[1,96], index: 4, kind: input, shape index: {}]
  %s5 = inlined_call_operand.vmem [shape: bf16[96,128], index: 5, kind: input, shape index: {}]
  %s6 = inlined_call_operand.vmem [shape: f32[1,128], index: 6, kind: input, shape index: {}]
  %s7 = inlined_call_operand.vmem [shape: bf16[2,16,16,96], index: 7, kind: output, shape index: {0}]
  %s8 = inlined_call_operand.vmem [shape: bf16[2,16,16,128], index: 8, kind: output, shape index: {1}]
  %9 = xla_tuple %s7, %s8
  %s10 = sld [smem:[#allocation0]]
  $region69: #{_rpn_head_level.1} parent=0
    _
  %s12 = ssub.s32 1, %s10
  %s13 = scalar_select 0, %s12, %s10
  loop: start=0, step=1, limit=4
  $region2: #{_rpn_head_level.1} parent=0 // loop_pre_header
    _
  $region3: #{_rpn_head_level.1} parent=0 // loop_header
    %s15 = sphi 0, %s19
    %p16 = scmp.ge.s32.totalorder %s15, 4
    %s22 = sphi 0, %s34
    %s23 = sphi 0, %s30
    %s24 = sphi 0, %s22
    %s25 = sphi 0, %s23
    %s26 = sphi 0, %s24
    %s27 = sphi 0, %s25
    %s39 = sphi 0, %s41
    %s42 = sphi 0, %s39
    %s43 = sphi 0, %s42
    %s59 = sphi 0, %s43
    %s75 = sphi 0, %s77
    %s78 = sphi 0, %s75
    %s79 = sphi 0, %s78
    %s95 = sphi 0, %s79
    %s111 = sphi 0, %s113
    %s114 = sphi 0, %s111
    %s115 = sphi 0, %s114
    %s131 = sphi 0, %s115
    %s135 = sphi 0, %s135
    %s137 = sphi 0, %s135
    %s138 = sphi 0, %s137
    %s152 = sphi 0, %s138
    %s156 = sphi 0, %s156
    %s158 = sphi 0, %s156
    %s159 = sphi 0, %s158
    %s173 = sphi 0, %s159
    %s177 = sphi 0, %s177
    %s179 = sphi 0, %s177
    %s180 = sphi 0, %s179
    %s194 = sphi 0, %s180
    %s198 = sphi 0, %s198
    %s200 = sphi 0, %s198
    %s201 = sphi 0, %s200
    %s215 = sphi 0, %s201
    %s223 = sphi 0, %s225
    %s226 = sphi 0, %s223
    %s227 = sphi 0, %s226
    %s243 = sphi 0, %s227
    %s251 = sphi 0, %s253
    %s254 = sphi 0, %s251
    %s255 = sphi 0, %s254
    %s271 = sphi 0, %s255
  $region4: #{_rpn_head_level.1} parent=0 // loop_header_branch
    %18 = sbr.rel (%p16) target = $region8
  $region5: #{_rpn_head_level.1} parent=0 // loop_body
    %s20 = ssub.s32 %s15, 1
    %s21 = ssub.s32 %s15, 2
    %s28 = sadd.s32 1, %s23
    %p29 = scmp.ge.s32.totalorder %s28, 1
    %s30 = scalar_select %p29, 0, %s28
    %s31 = sadd.s32 1, %s22
    %s32 = scalar_select %p29, %s31, %s22
    %p33 = scmp.ge.s32.totalorder %s32, 2
    %s34 = scalar_select %p33, 0, %s32
    %s35 = ssub.s32 %s22, %s34
    %s36 = ssub.s32 %s23, %s30
    %s37 = sor.u32 %s35, %s36
    %p38 = scmp.eq.s32.totalorder %s37, 0
    %s40 = sadd.s32 %s39, 1
    %s41 = scalar_select %p38, %s39, %s40
    %p44 = pneg %p38
    %p45 = scmp.eq.s32.totalorder %s15, 1
    %p46 = por %p44, %p45
    %p47 = scmp.ne.s32.totalorder %s39, %s42
    %p48 = scmp.eq.s32.totalorder %s15, 0
    %p49 = por %p47, %p48
    %p50 = scmp.ne.s32.totalorder %s39, %s42
    %p51 = scmp.eq.s32.totalorder %s20, 1
    %p52 = por %p50, %p51
    %p53 = scmp.ne.s32.totalorder %s42, %s43
    %p54 = scmp.eq.s32.totalorder %s20, 0
    %p55 = por %p53, %p54
    %p56 = scmp.ne.s32.totalorder %s42, %s43
    %p57 = scmp.eq.s32.totalorder %s21, 1
    %p58 = por %p56, %p57
    %p60 = scmp.ne.s32.totalorder %s43, %s59
    %p61 = scmp.eq.s32.totalorder %s21, 0
    %p62 = por %p60, %p61
    %s63 = smul.u32 %s23, 16
    %s64 = ssub.s32 %s63, 1
    %p65 = scmp.gt.s32.totalorder %s64, 0
    %s66 = scalar_select %p65, %s64, 0
    %s67 = smul.u32 %s30, 16
    %s68 = ssub.s32 %s67, 1
    %p69 = scmp.gt.s32.totalorder %s68, 0
    %s70 = scalar_select %p69, %s68, 0
    %s71 = ssub.s32 %s22, %s34
    %s72 = ssub.s32 %s66, %s70
    %s73 = sor.u32 %s71, %s72
    %p74 = scmp.eq.s32.totalorder %s73, 0
    %s76 = sadd.s32 %s75, 1
    %s77 = scalar_select %p74, %s75, %s76
    %p80 = pneg %p74
    %p81 = scmp.eq.s32.totalorder %s15, 1
    %p82 = por %p80, %p81
    %p83 = scmp.ne.s32.totalorder %s75, %s78
    %p84 = scmp.eq.s32.totalorder %s15, 0
    %p85 = por %p83, %p84
    %p86 = scmp.ne.s32.totalorder %s75, %s78
    %p87 = scmp.eq.s32.totalorder %s20, 1
    %p88 = por %p86, %p87
    %p89 = scmp.ne.s32.totalorder %s78, %s79
    %p90 = scmp.eq.s32.totalorder %s20, 0
    %p91 = por %p89, %p90
    %p92 = scmp.ne.s32.totalorder %s78, %s79
    %p93 = scmp.eq.s32.totalorder %s21, 1
    %p94 = por %p92, %p93
    %p96 = scmp.ne.s32.totalorder %s79, %s95
    %p97 = scmp.eq.s32.totalorder %s21, 0
    %p98 = por %p96, %p97
    %s99 = smul.u32 %s23, 16
    %s100 = sadd.s32 %s99, 16
    %p101 = scmp.lt.s32.totalorder %s100, 15
    %s102 = scalar_select %p101, %s100, 15
    %s103 = smul.u32 %s30, 16
    %s104 = sadd.s32 %s103, 16
    %p105 = scmp.lt.s32.totalorder %s104, 15
    %s106 = scalar_select %p105, %s104, 15
    %s107 = ssub.s32 %s22, %s34
    %s108 = ssub.s32 %s102, %s106
    %s109 = sor.u32 %s107, %s108
    %p110 = scmp.eq.s32.totalorder %s109, 0
    %s112 = sadd.s32 %s111, 1
    %s113 = scalar_select %p110, %s111, %s112
    %p116 = pneg %p110
    %p117 = scmp.eq.s32.totalorder %s15, 1
    %p118 = por %p116, %p117
    %p119 = scmp.ne.s32.totalorder %s111, %s114
    %p120 = scmp.eq.s32.totalorder %s15, 0
    %p121 = por %p119, %p120
    %p122 = scmp.ne.s32.totalorder %s111, %s114
    %p123 = scmp.eq.s32.totalorder %s20, 1
    %p124 = por %p122, %p123
    %p125 = scmp.ne.s32.totalorder %s114, %s115
    %p126 = scmp.eq.s32.totalorder %s20, 0
    %p127 = por %p125, %p126
    %p128 = scmp.ne.s32.totalorder %s114, %s115
    %p129 = scmp.eq.s32.totalorder %s21, 1
    %p130 = por %p128, %p129
    %p132 = scmp.ne.s32.totalorder %s115, %s131
    %p133 = scmp.eq.s32.totalorder %s21, 0
    %p134 = por %p132, %p133
    %s136 = sadd.s32 %s135, 1
    %p139 = scmp.eq.s32.totalorder %s15, 1
    %p140 = scmp.ne.s32.totalorder %s135, %s137
    %p141 = scmp.eq.s32.totalorder %s15, 0
    %p142 = por %p140, %p141
    %p143 = scmp.ne.s32.totalorder %s135, %s137
    %p144 = scmp.eq.s32.totalorder %s20, 1
    %p145 = por %p143, %p144
    %p146 = scmp.ne.s32.totalorder %s137, %s138
    %p147 = scmp.eq.s32.totalorder %s20, 0
    %p148 = por %p146, %p147
    %p149 = scmp.ne.s32.totalorder %s137, %s138
    %p150 = scmp.eq.s32.totalorder %s21, 1
    %p151 = por %p149, %p150
    %p153 = scmp.ne.s32.totalorder %s138, %s152
    %p154 = scmp.eq.s32.totalorder %s21, 0
    %p155 = por %p153, %p154
    %s157 = sadd.s32 %s156, 1
    %p160 = scmp.eq.s32.totalorder %s15, 1
    %p161 = scmp.ne.s32.totalorder %s156, %s158
    %p162 = scmp.eq.s32.totalorder %s15, 0
    %p163 = por %p161, %p162
    %p164 = scmp.ne.s32.totalorder %s156, %s158
    %p165 = scmp.eq.s32.totalorder %s20, 1
    %p166 = por %p164, %p165
    %p167 = scmp.ne.s32.totalorder %s158, %s159
    %p168 = scmp.eq.s32.totalorder %s20, 0
    %p169 = por %p167, %p168
    %p170 = scmp.ne.s32.totalorder %s158, %s159
    %p171 = scmp.eq.s32.totalorder %s21, 1
    %p172 = por %p170, %p171
    %p174 = scmp.ne.s32.totalorder %s159, %s173
    %p175 = scmp.eq.s32.totalorder %s21, 0
    %p176 = por %p174, %p175
    %s178 = sadd.s32 %s177, 1
    %p181 = scmp.eq.s32.totalorder %s15, 1
    %p182 = scmp.ne.s32.totalorder %s177, %s179
    %p183 = scmp.eq.s32.totalorder %s15, 0
    %p184 = por %p182, %p183
    %p185 = scmp.ne.s32.totalorder %s177, %s179
    %p186 = scmp.eq.s32.totalorder %s20, 1
    %p187 = por %p185, %p186
    %p188 = scmp.ne.s32.totalorder %s179, %s180
    %p189 = scmp.eq.s32.totalorder %s20, 0
    %p190 = por %p188, %p189
    %p191 = scmp.ne.s32.totalorder %s179, %s180
    %p192 = scmp.eq.s32.totalorder %s21, 1
    %p193 = por %p191, %p192
    %p195 = scmp.ne.s32.totalorder %s180, %s194
    %p196 = scmp.eq.s32.totalorder %s21, 0
    %p197 = por %p195, %p196
    %s199 = sadd.s32 %s198, 1
    %p202 = scmp.eq.s32.totalorder %s15, 1
    %p203 = scmp.ne.s32.totalorder %s198, %s200
    %p204 = scmp.eq.s32.totalorder %s15, 0
    %p205 = por %p203, %p204
    %p206 = scmp.ne.s32.totalorder %s198, %s200
    %p207 = scmp.eq.s32.totalorder %s20, 1
    %p208 = por %p206, %p207
    %p209 = scmp.ne.s32.totalorder %s200, %s201
    %p210 = scmp.eq.s32.totalorder %s20, 0
    %p211 = por %p209, %p210
    %p212 = scmp.ne.s32.totalorder %s200, %s201
    %p213 = scmp.eq.s32.totalorder %s21, 1
    %p214 = por %p212, %p213
    %p216 = scmp.ne.s32.totalorder %s201, %s215
    %p217 = scmp.eq.s32.totalorder %s21, 0
    %p218 = por %p216, %p217
    %s219 = ssub.s32 %s22, %s34
    %s220 = ssub.s32 %s23, %s30
    %s221 = sor.u32 %s219, %s220
    %p222 = scmp.eq.s32.totalorder %s221, 0
    %s224 = sadd.s32 %s223, 1
    %s225 = scalar_select %p222, %s223, %s224
    %p228 = pneg %p222
    %p229 = scmp.eq.s32.totalorder %s15, 1
    %p230 = por %p228, %p229
    %p231 = scmp.ne.s32.totalorder %s223, %s226
    %p232 = scmp.eq.s32.totalorder %s15, 0
    %p233 = por %p231, %p232
    %p234 = scmp.ne.s32.totalorder %s223, %s226
    %p235 = scmp.eq.s32.totalorder %s20, 1
    %p236 = por %p234, %p235
    %p237 = scmp.ne.s32.totalorder %s226, %s227
    %p238 = scmp.eq.s32.totalorder %s20, 0
    %p239 = por %p237, %p238
    %p240 = scmp.ne.s32.totalorder %s226, %s227
    %p241 = scmp.eq.s32.totalorder %s21, 1
    %p242 = por %p240, %p241
    %p244 = scmp.ne.s32.totalorder %s227, %s243
    %p245 = scmp.eq.s32.totalorder %s21, 0
    %p246 = por %p244, %p245
    %s247 = ssub.s32 %s22, %s34
    %s248 = ssub.s32 %s23, %s30
    %s249 = sor.u32 %s247, %s248
    %p250 = scmp.eq.s32.totalorder %s249, 0
    %s252 = sadd.s32 %s251, 1
    %s253 = scalar_select %p250, %s251, %s252
    %p256 = pneg %p250
    %p257 = scmp.eq.s32.totalorder %s15, 1
    %p258 = por %p256, %p257
    %p259 = scmp.ne.s32.totalorder %s251, %s254
    %p260 = scmp.eq.s32.totalorder %s15, 0
    %p261 = por %p259, %p260
    %p262 = scmp.ne.s32.totalorder %s251, %s254
    %p263 = scmp.eq.s32.totalorder %s20, 1
    %p264 = por %p262, %p263
    %p265 = scmp.ne.s32.totalorder %s254, %s255
    %p266 = scmp.eq.s32.totalorder %s20, 0
    %p267 = por %p265, %p266
    %p268 = scmp.ne.s32.totalorder %s254, %s255
    %p269 = scmp.eq.s32.totalorder %s21, 1
    %p270 = por %p268, %p269
    %p272 = scmp.ne.s32.totalorder %s255, %s271
    %p273 = scmp.eq.s32.totalorder %s21, 0
    %p274 = por %p272, %p273
    %p275 = scmp.le.s32.totalorder 1, %s15
    %p276 = scmp.lt.s32.totalorder %s15, 3
    %p277 = pnand %p275, %p276
    %p278 = pneg %p277
    // Predicated region
    $region9: #{_rpn_head_level.1} parent=5 // pred_check
      _
    $region10: #{_rpn_head_level.1} parent=5 // pred_check_branch
      %280 = sbr.rel (%p277) target = $region12
    $region11: #{_rpn_head_level.1} parent=5 // pred_region
      %s281 = ssub.s32 %s15, 1
      // Predicated region
      $region13: #{_rpn_head_level.1} parent=11 // pred_check
        %p282 = pneg %p148
      $region14: #{_rpn_head_level.1} parent=11 // pred_check_branch
        %284 = sbr.rel (%p282) target = $region16
      $region15: #{_rpn_head_level.1} parent=11 // pred_region
        _
      $region16: #{_rpn_head_level.1} parent=11 // pred_fallthru
        _
      // Predicated region
      $region17: #{_rpn_head_level.1} parent=11 // pred_check
        %p285 = pneg %p169
      $region18: #{_rpn_head_level.1} parent=11 // pred_check_branch
        %287 = sbr.rel (%p285) target = $region20
      $region19: #{_rpn_head_level.1} parent=11 // pred_region
        _
      $region20: #{_rpn_head_level.1} parent=11 // pred_fallthru
        _
      // Predicated region
      $region21: #{_rpn_head_level.1} parent=11 // pred_check
        %p288 = pneg %p190
      $region22: #{_rpn_head_level.1} parent=11 // pred_check_branch
        %290 = sbr.rel (%p288) target = $region24
      $region23: #{_rpn_head_level.1} parent=11 // pred_region
        _
      $region24: #{_rpn_head_level.1} parent=11 // pred_fallthru
        _
      // Predicated region
      $region25: #{_rpn_head_level.1} parent=11 // pred_check
        %p291 = pneg %p211
      $region26: #{_rpn_head_level.1} parent=11 // pred_check_branch
        %293 = sbr.rel (%p291) target = $region28
      $region27: #{_rpn_head_level.1} parent=11 // pred_region
        _
      $region28: #{_rpn_head_level.1} parent=11 // pred_fallthru
        _
    $region12: #{_rpn_head_level.1} parent=5 // pred_fallthru
      _
    %p294 = scmp.lt.s32.totalorder %s15, 2
    // Predicated region
    $region29: #{_rpn_head_level.1} parent=5 // pred_check
      %p295 = pneg %p294
    $region30: #{_rpn_head_level.1} parent=5 // pred_check_branch
      %297 = sbr.rel (%p295) target = $region32
    $region31: #{_rpn_head_level.1} parent=5 // pred_region
      // Predicated region
      $region33: #{_rpn_head_level.1} parent=31 // pred_check
        %p298 = pneg %p49
      $region34: #{_rpn_head_level.1} parent=31 // pred_check_branch
        %300 = sbr.rel (%p298) target = $region36
      $region35: #{_rpn_head_level.1} parent=31 // pred_region
        %s301 = smul.u32 16, %s23
        %p302 = scmp.lt.s32.totalorder %s22, 1
        %s303 = scalar_select %p302, %s22, 1
        %p304 = scmp.lt.s32.totalorder %s301, 15
        %s305 = scalar_select %p304, %s301, 15
        %s306 = smul.addr %s305, 2
        %s307 = smul.addr %s303, 32
        %s308 = sadd.s32 %s306, %s307
        %s309 = smul.addr %s308, 4
        %s310 = scalar_lea.vmem %s0, %s309
        %s311 = smul.u32 16, %s23
      $region36: #{_rpn_head_level.1} parent=31 // pred_fallthru
        _
      // Predicated region
      $region37: #{_rpn_head_level.1} parent=31 // pred_check
        %p312 = pneg %p85
      $region38: #{_rpn_head_level.1} parent=31 // pred_check_branch
        %314 = sbr.rel (%p312) target = $region40
      $region39: #{_rpn_head_level.1} parent=31 // pred_region
        %s315 = smul.u32 %s23, 16
        %s316 = ssub.s32 %s315, 1
        %p317 = scmp.gt.s32.totalorder %s316, 0
        %s318 = scalar_select %p317, %s316, 0
        %p319 = scmp.lt.s32.totalorder %s22, 1
        %s320 = scalar_select %p319, %s22, 1
        %p321 = scmp.lt.s32.totalorder %s318, 15
        %s322 = scalar_select %p321, %s318, 15
        %s323 = smul.addr %s322, 2
        %s324 = smul.addr %s320, 32
        %s325 = sadd.s32 %s323, %s324
        %s326 = smul.addr %s325, 4
        %s327 = scalar_lea.vmem %s1, %s326
        %s328 = smul.u32 %s23, 16
        %s329 = ssub.s32 %s328, 1
        %p330 = scmp.gt.s32.totalorder %s329, 0
        %s331 = scalar_select %p330, %s329, 0
      $region40: #{_rpn_head_level.1} parent=31 // pred_fallthru
        _
      // Predicated region
      $region41: #{_rpn_head_level.1} parent=31 // pred_check
        %p332 = pneg %p121
      $region42: #{_rpn_head_level.1} parent=31 // pred_check_branch
        %334 = sbr.rel (%p332) target = $region44
      $region43: #{_rpn_head_level.1} parent=31 // pred_region
        %s335 = smul.u32 %s23, 16
        %s336 = sadd.s32 %s335, 16
        %p337 = scmp.lt.s32.totalorder %s336, 15
        %s338 = scalar_select %p337, %s336, 15
        %p339 = scmp.lt.s32.totalorder %s22, 1
        %s340 = scalar_select %p339, %s22, 1
        %p341 = scmp.lt.s32.totalorder %s338, 15
        %s342 = scalar_select %p341, %s338, 15
        %s343 = smul.addr %s342, 2
        %s344 = smul.addr %s340, 32
        %s345 = sadd.s32 %s343, %s344
        %s346 = smul.addr %s345, 4
        %s347 = scalar_lea.vmem %s2, %s346
        %s348 = smul.u32 %s23, 16
        %s349 = sadd.s32 %s348, 16
        %p350 = scmp.lt.s32.totalorder %s349, 15
        %s351 = scalar_select %p350, %s349, 15
      $region44: #{_rpn_head_level.1} parent=31 // pred_fallthru
        _
    $region32: #{_rpn_head_level.1} parent=5 // pred_fallthru
      _
    %p352 = scmp.le.s32.totalorder 1, %s15
    %p353 = scmp.lt.s32.totalorder %s15, 3
    %p354 = pnand %p352, %p353
    %p355 = pneg %p354
    // Predicated region
    $region45: #{_rpn_head_level.1} parent=5 // pred_check
      _
    $region46: #{_rpn_head_level.1} parent=5 // pred_check_branch
      %357 = sbr.rel (%p354) target = $region48
    $region47: #{_rpn_head_level.1} parent=5 // pred_region
      %s358 = ssub.s32 %s15, 1
      %s359 = smul.u32 16, %s25
      %p360 = scmp.lt.s32.totalorder %s24, 1
      %s361 = scalar_select %p360, %s24, 1
      %p362 = scmp.lt.s32.totalorder %s359, 15
      %s363 = scalar_select %p362, %s359, 15
      %s364 = smul.addr %s363, 2
      %s365 = smul.addr %s361, 32
      %s366 = sadd.s32 %s364, %s365
      %s367 = smul.addr %s366, 4
      %s368 = scalar_lea.vmem %s0, %s367
      %p369 = pneg %p55
      %p370 = pneg %p52
      %s371 = smul.u32 %s25, 16
      %s372 = ssub.s32 %s371, 1
      %p373 = scmp.gt.s32.totalorder %s372, 0
      %s374 = scalar_select %p373, %s372, 0
      %p375 = scmp.lt.s32.totalorder %s24, 1
      %s376 = scalar_select %p375, %s24, 1
      %p377 = scmp.lt.s32.totalorder %s374, 15
      %s378 = scalar_select %p377, %s374, 15
      %s379 = smul.addr %s378, 2
      %s380 = smul.addr %s376, 32
      %s381 = sadd.s32 %s379, %s380
      %s382 = smul.addr %s381, 4
      %s383 = scalar_lea.vmem %s1, %s382
      %p384 = pneg %p91
      %p385 = pneg %p88
      %s386 = smul.u32 %s25, 16
      %s387 = sadd.s32 %s386, 16
      %p388 = scmp.lt.s32.totalorder %s387, 15
      %s389 = scalar_select %p388, %s387, 15
      %p390 = scmp.lt.s32.totalorder %s24, 1
      %s391 = scalar_select %p390, %s24, 1
      %p392 = scmp.lt.s32.totalorder %s389, 15
      %s393 = scalar_select %p392, %s389, 15
      %s394 = smul.addr %s393, 2
      %s395 = smul.addr %s391, 32
      %s396 = sadd.s32 %s394, %s395
      %s397 = smul.addr %s396, 4
      %s398 = scalar_lea.vmem %s2, %s397
      %p399 = pneg %p127
      %p400 = pneg %p124
      %p401 = pneg %p148
      %p402 = pneg %p145
      %p403 = pneg %p169
      %p404 = pneg %p166
      %p405 = pneg %p190
      %p406 = pneg %p187
      %p407 = pneg %p211
      %p408 = pneg %p208
      %p409 = pneg %p239
      %p410 = pneg %p236
      %s411 = smul.u32 16, %s25
      %p412 = scmp.lt.s32.totalorder %s24, 1
      %s413 = scalar_select %p412, %s24, 1
      %p414 = scmp.lt.s32.totalorder %s411, 15
      %s415 = scalar_select %p414, %s411, 15
      %s416 = smul.addr %s415, 2
      %s417 = smul.addr %s413, 32
      %s418 = sadd.s32 %s416, %s417
      %s419 = smul.addr %s418, 4
      %s420 = scalar_lea.vmem %s7, %s419
      %p421 = pneg %p267
      %p422 = pneg %p264
      %s423 = smul.u32 16, %s25
      %p424 = scmp.lt.s32.totalorder %s24, 1
      %s425 = scalar_select %p424, %s24, 1
      %p426 = scmp.lt.s32.totalorder %s423, 15
      %s427 = scalar_select %p426, %s423, 15
      %s428 = smul.addr %s427, 2
      %s429 = smul.addr %s425, 32
      %s430 = sadd.s32 %s428, %s429
      %s431 = smul.addr %s430, 4
      %s432 = scalar_lea.vmem %s8, %s431
      %s433 = smul.u32 16, %s25
      %p434 = scmp.lt.s32.totalorder %s24, 1
      %s435 = scalar_select %p434, %s24, 1
      %p436 = scmp.lt.s32.totalorder %s433, 15
      %s437 = scalar_select %p436, %s433, 15
      %s438 = smul.addr %s437, 2
      %s439 = smul.addr %s435, 32
      %s440 = sadd.s32 %s438, %s439
      %s441 = smul.addr %s440, 4
      %s442 = scalar_lea.vmem %s0, %s441
      %s443 = smul.u32 16, %s25
      %s444 = smul.u32 %s25, 16
      %s445 = ssub.s32 %s444, 1
      %p446 = scmp.gt.s32.totalorder %s445, 0
      %s447 = scalar_select %p446, %s445, 0
      %p448 = scmp.lt.s32.totalorder %s24, 1
      %s449 = scalar_select %p448, %s24, 1
      %p450 = scmp.lt.s32.totalorder %s447, 15
      %s451 = scalar_select %p450, %s447, 15
      %s452 = smul.addr %s451, 2
      %s453 = smul.addr %s449, 32
      %s454 = sadd.s32 %s452, %s453
      %s455 = smul.addr %s454, 4
      %s456 = scalar_lea.vmem %s1, %s455
      %s457 = smul.u32 %s25, 16
      %s458 = ssub.s32 %s457, 1
      %p459 = scmp.gt.s32.totalorder %s458, 0
      %s460 = scalar_select %p459, %s458, 0
      %s461 = smul.u32 %s25, 16
      %s462 = sadd.s32 %s461, 16
      %p463 = scmp.lt.s32.totalorder %s462, 15
      %s464 = scalar_select %p463, %s462, 15
      %p465 = scmp.lt.s32.totalorder %s24, 1
      %s466 = scalar_select %p465, %s24, 1
      %p467 = scmp.lt.s32.totalorder %s464, 15
      %s468 = scalar_select %p467, %s464, 15
      %s469 = smul.addr %s468, 2
      %s470 = smul.addr %s466, 32
      %s471 = sadd.s32 %s469, %s470
      %s472 = smul.addr %s471, 4
      %s473 = scalar_lea.vmem %s2, %s472
      %s474 = smul.u32 %s25, 16
      %s475 = sadd.s32 %s474, 16
      %p476 = scmp.lt.s32.totalorder %s475, 15
      %s477 = scalar_select %p476, %s475, 15
      %s478 = smul.u32 16, %s25
      %p479 = scmp.lt.s32.totalorder %s24, 1
      %s480 = scalar_select %p479, %s24, 1
      %p481 = scmp.lt.s32.totalorder %s478, 15
      %s482 = scalar_select %p481, %s478, 15
      %s483 = smul.addr %s482, 2
      %s484 = smul.addr %s480, 32
      %s485 = sadd.s32 %s483, %s484
      %s486 = smul.addr %s485, 4
      %s487 = scalar_lea.vmem %s7, %s486
      %s488 = smul.u32 16, %s25
      %s489 = smul.u32 16, %s25
      %p490 = scmp.lt.s32.totalorder %s24, 1
      %s491 = scalar_select %p490, %s24, 1
      %p492 = scmp.lt.s32.totalorder %s489, 15
      %s493 = scalar_select %p492, %s489, 15
      %s494 = smul.addr %s493, 2
      %s495 = smul.addr %s491, 32
      %s496 = sadd.s32 %s494, %s495
      %s497 = smul.addr %s496, 4
      %s498 = scalar_lea.vmem %s8, %s497
      %s499 = smul.u32 16, %s25
      %v501 = vld [vmem:[%s442] sm:$0xf]
      %v502 = vld [vmem:[%s442 + $0x4] sm:$0xf]
      %v503 = vld [vmem:[%s442 + $0x8] sm:$0xf]
      %v504 = vld [vmem:[%s442 + $0xc] sm:$0xf]
      %v505 = vld [vmem:[%s442 + $0x10] sm:$0xf]
      %v506 = vld [vmem:[%s442 + $0x14] sm:$0xf]
      %v507 = vld [vmem:[%s442 + $0x18] sm:$0xf]
      %v508 = vld [vmem:[%s442 + $0x1c] sm:$0xf]
      %v509 = vld [vmem:[%s442 + $0x20] sm:$0xf]
      %v510 = vld [vmem:[%s442 + $0x24] sm:$0xf]
      %v511 = vld [vmem:[%s442 + $0x28] sm:$0xf]
      %v512 = vld [vmem:[%s442 + $0x2c] sm:$0xf]
      %v513 = vld [vmem:[%s442 + $0x30] sm:$0xf]
      %v514 = vld [vmem:[%s442 + $0x34] sm:$0xf]
      %v515 = vld [vmem:[%s442 + $0x38] sm:$0xf]
      %v516 = vld [vmem:[%s442 + $0x3c] sm:$0xf]
      %v517 = vld [vmem:[%s442 + $0x40] sm:$0xf]
      %v518 = vld [vmem:[%s442 + $0x44] sm:$0xf]
      %v519 = vld [vmem:[%s442 + $0x48] sm:$0xf]
      %v520 = vld [vmem:[%s442 + $0x4c] sm:$0xf]
      %v521 = vld [vmem:[%s442 + $0x50] sm:$0xf]
      %v522 = vld [vmem:[%s442 + $0x54] sm:$0xf]
      %v523 = vld [vmem:[%s442 + $0x58] sm:$0xf]
      %v524 = vld [vmem:[%s442 + $0x5c] sm:$0xf]
      %v525 = vld [vmem:[%s442 + $0x60] sm:$0xf]
      %v526 = vld [vmem:[%s442 + $0x64] sm:$0xf]
      %v527 = vld [vmem:[%s442 + $0x68] sm:$0xf]
      %v528 = vld [vmem:[%s442 + $0x6c] sm:$0xf]
      %v529 = vld [vmem:[%s442 + $0x70] sm:$0xf]
      %v530 = vld [vmem:[%s442 + $0x74] sm:$0xf]
      %v531 = vld [vmem:[%s442 + $0x78] sm:$0xf]
      %v532 = vld [vmem:[%s442 + $0x7c] sm:$0xf]
      %v533 = vld [vmem:[%s456] sm:$0xf]
      %v534 = vld [vmem:[%s456 + $0x4] sm:$0xf]
      %v535 = vld [vmem:[%s473] sm:$0xf]
      %v536 = vld [vmem:[%s473 + $0x4] sm:$0xf]
      %p537 = scmp.gt.s32.totalorder %s25, 0
      %s538 = scalar_select %p537, 1, 0
      %v539 = vstv %s538
      %vm540 = vcmp.eq.s32.totalorder %v539, 1
      %v541 = vsel %vm540, %v533, 0
      %v542 = vsel %vm540, %v534, 0
      %p543 = scmp.lt.s32.totalorder %s25, 0
      %s544 = scalar_select %p543, 1, 0
      %v545 = vstv %s544
      %vm546 = vcmp.eq.s32.totalorder %v545, 1
      %v547 = vsel %vm546, %v535, 0
      %v548 = vsel %vm546, %v536, 0
      %v551 = vunpack.c.l.b16 %v541
      %v552 = vunpack.c.l.b16 %v542
      %v553 = vpack.c.b16 %v552, %v551
      %554 = vrot.lane.b32.xlu0 %v553, 32
      %v555 = vpop.permute.xlu0 %554
      %vm557 = vcmask 523520
      %558 = vst.msk [vmem:[#allocation2] sm:$0xff] %vm557, %v555
      %vm559 = vcmask 253952
      %vm560 = vsmask.f32 256
      %vm561 = vmand %vm559, %vm560
      %v562 = vld [vmem:[#allocation2] sm:$0x1]
      %v563 = vsel %vm561, 0, %v562
      %564 = vst [vmem:[#allocation2] sm:$0x1] %v563
      %v566 = vshrl.u32 %v553, 16
      %v568 = vrot.slane %v566, 7
      %v569 = vshll.u32 %v553, 16
      %v571 = vor.u32 %v568, %v569
      %vm573 = vcmask 261120
      %vm574 = vsmask.f32 7938
      %vm575 = vmand %vm573, %vm574
      %v576 = vld [vmem:[#allocation2] sm:$0xff]
      %v577 = vsel %vm575, %v571, %v576
      %578 = vst [vmem:[#allocation2] sm:$0xff] %v577
      %vm579 = vcmask 785927
      %vm580 = vsmask.f32 7966
      %vm581 = vmand %vm579, %vm580
      %v582 = vld [vmem:[#allocation2] sm:$0x80]
      %v583 = vsel %vm581, 0, %v582
      %584 = vst [vmem:[#allocation2] sm:$0x80] %v583
      %v585 = vrot.slane %v569, 1
      %v586 = vor.u32 %v566, %v585
      %587 = vrot.lane.b32.xlu0 %v586, 64
      %v588 = vpop.permute.xlu0 %587
      %vm590 = vcmask 785920
      %vm591 = vsmask.f32 7424
      %vm592 = vmand %vm590, %vm591
      %v593 = vld [vmem:[#allocation2] sm:$0xff]
      %v594 = vsel %vm592, %v588, %v593
      %595 = vst [vmem:[#allocation2] sm:$0xff] %v594
      %v626 = vunpack.c.l.b16 %v501
      %v627 = vunpack.c.l.b16 %v502
      %v628 = vunpack.c.l.b16 %v503
      %v629 = vunpack.c.l.b16 %v504
      %v630 = vunpack.c.l.b16 %v505
      %v631 = vunpack.c.l.b16 %v506
      %v632 = vunpack.c.l.b16 %v507
      %v633 = vunpack.c.l.b16 %v508
      %v634 = vunpack.c.l.b16 %v509
      %v635 = vunpack.c.l.b16 %v510
      %v636 = vunpack.c.l.b16 %v511
      %v637 = vunpack.c.l.b16 %v512
      %v638 = vunpack.c.l.b16 %v513
      %v639 = vunpack.c.l.b16 %v514
      %v640 = vunpack.c.l.b16 %v515
      %v641 = vunpack.c.l.b16 %v516
      %v642 = vunpack.c.l.b16 %v517
      %v643 = vunpack.c.l.b16 %v518
      %v644 = vunpack.c.l.b16 %v519
      %v645 = vunpack.c.l.b16 %v520
      %v646 = vunpack.c.l.b16 %v521
      %v647 = vunpack.c.l.b16 %v522
      %v648 = vunpack.c.l.b16 %v523
      %v649 = vunpack.c.l.b16 %v524
      %v650 = vunpack.c.l.b16 %v525
      %v651 = vunpack.c.l.b16 %v526
      %v652 = vunpack.c.l.b16 %v527
      %v653 = vunpack.c.l.b16 %v528
      %v654 = vunpack.c.l.b16 %v529
      %v655 = vunpack.c.l.b16 %v530
      %v656 = vpack.c.b16 %v627, %v626
      %v657 = vpack.c.b16 %v629, %v628
      %v658 = vpack.c.b16 %v631, %v630
      %v659 = vpack.c.b16 %v633, %v632
      %v660 = vpack.c.b16 %v635, %v634
      %v661 = vpack.c.b16 %v637, %v636
      %v662 = vpack.c.b16 %v639, %v638
      %v663 = vpack.c.b16 %v641, %v640
      %v664 = vpack.c.b16 %v643, %v642
      %v665 = vpack.c.b16 %v645, %v644
      %v666 = vpack.c.b16 %v647, %v646
      %v667 = vpack.c.b16 %v649, %v648
      %v668 = vpack.c.b16 %v651, %v650
      %v669 = vpack.c.b16 %v653, %v652
      %v670 = vpack.c.b16 %v655, %v654
      %671 = vrot.lane.b32.xlu0 %v656, 32
      %v672 = vpop.permute.xlu0 %671
      %673 = vrot.lane.b32.xlu0 %v657, 32
      %v674 = vpop.permute.xlu0 %673
      %675 = vrot.lane.b32.xlu0 %v658, 32
      %v676 = vpop.permute.xlu0 %675
      %677 = vrot.lane.b32.xlu0 %v659, 32
      %v678 = vpop.permute.xlu0 %677
      %679 = vrot.lane.b32.xlu0 %v660, 32
      %v680 = vpop.permute.xlu0 %679
      %681 = vrot.lane.b32.xlu0 %v661, 32
      %v682 = vpop.permute.xlu0 %681
      %683 = vrot.lane.b32.xlu0 %v662, 32
      %v684 = vpop.permute.xlu0 %683
      %685 = vrot.lane.b32.xlu0 %v663, 32
      %v686 = vpop.permute.xlu0 %685
      %687 = vrot.lane.b32.xlu0 %v664, 32
      %v688 = vpop.permute.xlu0 %687
      %689 = vrot.lane.b32.xlu0 %v665, 32
      %v690 = vpop.permute.xlu0 %689
      %691 = vrot.lane.b32.xlu0 %v666, 32
      %v692 = vpop.permute.xlu0 %691
      %693 = vrot.lane.b32.xlu0 %v667, 32
      %v694 = vpop.permute.xlu0 %693
      %695 = vrot.lane.b32.xlu0 %v668, 32
      %v696 = vpop.permute.xlu0 %695
      %697 = vrot.lane.b32.xlu0 %v669, 32
      %v698 = vpop.permute.xlu0 %697
      %699 = vrot.lane.b32.xlu0 %v670, 32
      %v700 = vpop.permute.xlu0 %699
      %s716 = scalar_lea.vmem [#allocation2], 24
      %717 = vst.msk [vmem:[%s716] sm:$0xff] %vm557, %v672
      %718 = vst.msk [vmem:[%s716 + $0x18] sm:$0xff] %vm557, %v674
      %719 = vst.msk [vmem:[%s716 + $0x30] sm:$0xff] %vm557, %v676
      %720 = vst.msk [vmem:[%s716 + $0x48] sm:$0xff] %vm557, %v678
      %721 = vst.msk [vmem:[%s716 + $0x60] sm:$0xff] %vm557, %v680
      %722 = vst.msk [vmem:[%s716 + $0x78] sm:$0xff] %vm557, %v682
      %723 = vst.msk [vmem:[%s716 + $0x90] sm:$0xff] %vm557, %v684
      %724 = vst.msk [vmem:[%s716 + $0xa8] sm:$0xff] %vm557, %v686
      %725 = vst.msk [vmem:[%s716 + $0xc0] sm:$0xff] %vm557, %v688
      %726 = vst.msk [vmem:[%s716 + $0xd8] sm:$0xff] %vm557, %v690
      %727 = vst.msk [vmem:[%s716 + $0xf0] sm:$0xff] %vm557, %v692
      %728 = vst.msk [vmem:[%s716 + $0x108] sm:$0xff] %vm557, %v694
      %729 = vst.msk [vmem:[%s716 + $0x120] sm:$0xff] %vm557, %v696
      %730 = vst.msk [vmem:[%s716 + $0x138] sm:$0xff] %vm557, %v698
      %731 = vst.msk [vmem:[%s716 + $0x150] sm:$0xff] %vm557, %v700
      %v732 = vld [vmem:[%s716] sm:$0x1]
      %v733 = vsel %vm561, 0, %v732
      %734 = vst [vmem:[%s716] sm:$0x1] %v733
      %v735 = vld [vmem:[%s716 + $0x18] sm:$0x1]
      %v736 = vsel %vm561, 0, %v735
      %737 = vst [vmem:[%s716 + $0x18] sm:$0x1] %v736
      %v738 = vld [vmem:[%s716 + $0x30] sm:$0x1]
      %v739 = vsel %vm561, 0, %v738
      %740 = vst [vmem:[%s716 + $0x30] sm:$0x1] %v739
      %v741 = vld [vmem:[%s716 + $0x48] sm:$0x1]
      %v742 = vsel %vm561, 0, %v741
      %743 = vst [vmem:[%s716 + $0x48] sm:$0x1] %v742
      %v744 = vld [vmem:[%s716 + $0x60] sm:$0x1]
      %v745 = vsel %vm561, 0, %v744
      %746 = vst [vmem:[%s716 + $0x60] sm:$0x1] %v745
      %v747 = vld [vmem:[%s716 + $0x78] sm:$0x1]
      %v748 = vsel %vm561, 0, %v747
      %749 = vst [vmem:[%s716 + $0x78] sm:$0x1] %v748
      %v750 = vld [vmem:[%s716 + $0x90] sm:$0x1]
      %v751 = vsel %vm561, 0, %v750
      %752 = vst [vmem:[%s716 + $0x90] sm:$0x1] %v751
      %v753 = vld [vmem:[%s716 + $0xa8] sm:$0x1]
      %v754 = vsel %vm561, 0, %v753
      %755 = vst [vmem:[%s716 + $0xa8] sm:$0x1] %v754
      %v756 = vld [vmem:[%s716 + $0xc0] sm:$0x1]
      %v757 = vsel %vm561, 0, %v756
      %758 = vst [vmem:[%s716 + $0xc0] sm:$0x1] %v757
      %v759 = vld [vmem:[%s716 + $0xd8] sm:$0x1]
      %v760 = vsel %vm561, 0, %v759
      %761 = vst [vmem:[%s716 + $0xd8] sm:$0x1] %v760
      %v762 = vld [vmem:[%s716 + $0xf0] sm:$0x1]
      %v763 = vsel %vm561, 0, %v762
      %764 = vst [vmem:[%s716 + $0xf0] sm:$0x1] %v763
      %v765 = vld [vmem:[%s716 + $0x108] sm:$0x1]
      %v766 = vsel %vm561, 0, %v765
      %767 = vst [vmem:[%s716 + $0x108] sm:$0x1] %v766
      %v768 = vld [vmem:[%s716 + $0x120] sm:$0x1]
      %v769 = vsel %vm561, 0, %v768
      %770 = vst [vmem:[%s716 + $0x120] sm:$0x1] %v769
      %v771 = vld [vmem:[%s716 + $0x138] sm:$0x1]
      %v772 = vsel %vm561, 0, %v771
      %773 = vst [vmem:[%s716 + $0x138] sm:$0x1] %v772
      %v774 = vld [vmem:[%s716 + $0x150] sm:$0x1]
      %v775 = vsel %vm561, 0, %v774
      %776 = vst [vmem:[%s716 + $0x150] sm:$0x1] %v775
      %v778 = vshrl.u32 %v656, 16
      %v780 = vrot.slane %v778, 7
      %v781 = vshll.u32 %v656, 16
      %v783 = vor.u32 %v780, %v781
      %v785 = vshrl.u32 %v657, 16
      %v787 = vrot.slane %v785, 7
      %v788 = vshll.u32 %v657, 16
      %v790 = vor.u32 %v787, %v788
      %v792 = vshrl.u32 %v658, 16
      %v794 = vrot.slane %v792, 7
      %v795 = vshll.u32 %v658, 16
      %v797 = vor.u32 %v794, %v795
      %v799 = vshrl.u32 %v659, 16
      %v801 = vrot.slane %v799, 7
      %v802 = vshll.u32 %v659, 16
      %v804 = vor.u32 %v801, %v802
      %v806 = vshrl.u32 %v660, 16
      %v808 = vrot.slane %v806, 7
      %v809 = vshll.u32 %v660, 16
      %v811 = vor.u32 %v808, %v809
      %v813 = vshrl.u32 %v661, 16
      %v815 = vrot.slane %v813, 7
      %v816 = vshll.u32 %v661, 16
      %v818 = vor.u32 %v815, %v816
      %v820 = vshrl.u32 %v662, 16
      %v822 = vrot.slane %v820, 7
      %v823 = vshll.u32 %v662, 16
      %v825 = vor.u32 %v822, %v823
      %v827 = vshrl.u32 %v663, 16
      %v829 = vrot.slane %v827, 7
      %v830 = vshll.u32 %v663, 16
      %v832 = vor.u32 %v829, %v830
      %v834 = vshrl.u32 %v664, 16
      %v836 = vrot.slane %v834, 7
      %v837 = vshll.u32 %v664, 16
      %v839 = vor.u32 %v836, %v837
      %v841 = vshrl.u32 %v665, 16
      %v843 = vrot.slane %v841, 7
      %v844 = vshll.u32 %v665, 16
      %v846 = vor.u32 %v843, %v844
      %v848 = vshrl.u32 %v666, 16
      %v850 = vrot.slane %v848, 7
      %v851 = vshll.u32 %v666, 16
      %v853 = vor.u32 %v850, %v851
      %v855 = vshrl.u32 %v667, 16
      %v857 = vrot.slane %v855, 7
      %v858 = vshll.u32 %v667, 16
      %v860 = vor.u32 %v857, %v858
      %v862 = vshrl.u32 %v668, 16
      %v864 = vrot.slane %v862, 7
      %v865 = vshll.u32 %v668, 16
      %v867 = vor.u32 %v864, %v865
      %v869 = vshrl.u32 %v669, 16
      %v871 = vrot.slane %v869, 7
      %v872 = vshll.u32 %v669, 16
      %v874 = vor.u32 %v871, %v872
      %v876 = vshrl.u32 %v670, 16
      %v878 = vrot.slane %v876, 7
      %v879 = vshll.u32 %v670, 16
      %v881 = vor.u32 %v878, %v879
      %v897 = vld [vmem:[%s716] sm:$0xff]
      %v898 = vsel %vm575, %v783, %v897
      %899 = vst [vmem:[%s716] sm:$0xff] %v898
      %v900 = vld [vmem:[%s716 + $0x18] sm:$0xff]
      %v901 = vsel %vm575, %v790, %v900
      %902 = vst [vmem:[%s716 + $0x18] sm:$0xff] %v901
      %v903 = vld [vmem:[%s716 + $0x30] sm:$0xff]
      %v904 = vsel %vm575, %v797, %v903
      %905 = vst [vmem:[%s716 + $0x30] sm:$0xff] %v904
      %v906 = vld [vmem:[%s716 + $0x48] sm:$0xff]
      %v907 = vsel %vm575, %v804, %v906
      %908 = vst [vmem:[%s716 + $0x48] sm:$0xff] %v907
      %v909 = vld [vmem:[%s716 + $0x60] sm:$0xff]
      %v910 = vsel %vm575, %v811, %v909
      %911 = vst [vmem:[%s716 + $0x60] sm:$0xff] %v910
      %v912 = vld [vmem:[%s716 + $0x78] sm:$0xff]
      %v913 = vsel %vm575, %v818, %v912
      %914 = vst [vmem:[%s716 + $0x78] sm:$0xff] %v913
      %v915 = vld [vmem:[%s716 + $0x90] sm:$0xff]
      %v916 = vsel %vm575, %v825, %v915
      %917 = vst [vmem:[%s716 + $0x90] sm:$0xff] %v916
      %v918 = vld [vmem:[%s716 + $0xa8] sm:$0xff]
      %v919 = vsel %vm575, %v832, %v918
      %920 = vst [vmem:[%s716 + $0xa8] sm:$0xff] %v919
      %v921 = vld [vmem:[%s716 + $0xc0] sm:$0xff]
      %v922 = vsel %vm575, %v839, %v921
      %923 = vst [vmem:[%s716 + $0xc0] sm:$0xff] %v922
      %v924 = vld [vmem:[%s716 + $0xd8] sm:$0xff]
      %v925 = vsel %vm575, %v846, %v924
      %926 = vst [vmem:[%s716 + $0xd8] sm:$0xff] %v925
      %v927 = vld [vmem:[%s716 + $0xf0] sm:$0xff]
      %v928 = vsel %vm575, %v853, %v927
      %929 = vst [vmem:[%s716 + $0xf0] sm:$0xff] %v928
      %v930 = vld [vmem:[%s716 + $0x108] sm:$0xff]
      %v931 = vsel %vm575, %v860, %v930
      %932 = vst [vmem:[%s716 + $0x108] sm:$0xff] %v931
      %v933 = vld [vmem:[%s716 + $0x120] sm:$0xff]
      %v934 = vsel %vm575, %v867, %v933
      %935 = vst [vmem:[%s716 + $0x120] sm:$0xff] %v934
      %v936 = vld [vmem:[%s716 + $0x138] sm:$0xff]
      %v937 = vsel %vm575, %v874, %v936
      %938 = vst [vmem:[%s716 + $0x138] sm:$0xff] %v937
      %v939 = vld [vmem:[%s716 + $0x150] sm:$0xff]
      %v940 = vsel %vm575, %v881, %v939
      %941 = vst [vmem:[%s716 + $0x150] sm:$0xff] %v940
      %v942 = vld [vmem:[%s716] sm:$0x80]
      %v943 = vsel %vm581, 0, %v942
      %944 = vst [vmem:[%s716] sm:$0x80] %v943
      %v945 = vld [vmem:[%s716 + $0x18] sm:$0x80]
      %v946 = vsel %vm581, 0, %v945
      %947 = vst [vmem:[%s716 + $0x18] sm:$0x80] %v946
      %v948 = vld [vmem:[%s716 + $0x30] sm:$0x80]
      %v949 = vsel %vm581, 0, %v948
      %950 = vst [vmem:[%s716 + $0x30] sm:$0x80] %v949
      %v951 = vld [vmem:[%s716 + $0x48] sm:$0x80]
      %v952 = vsel %vm581, 0, %v951
      %953 = vst [vmem:[%s716 + $0x48] sm:$0x80] %v952
      %v954 = vld [vmem:[%s716 + $0x60] sm:$0x80]
      %v955 = vsel %vm581, 0, %v954
      %956 = vst [vmem:[%s716 + $0x60] sm:$0x80] %v955
      %v957 = vld [vmem:[%s716 + $0x78] sm:$0x80]
      %v958 = vsel %vm581, 0, %v957
      %959 = vst [vmem:[%s716 + $0x78] sm:$0x80] %v958
      %v960 = vld [vmem:[%s716 + $0x90] sm:$0x80]
      %v961 = vsel %vm581, 0, %v960
      %962 = vst [vmem:[%s716 + $0x90] sm:$0x80] %v961
      %v963 = vld [vmem:[%s716 + $0xa8] sm:$0x80]
      %v964 = vsel %vm581, 0, %v963
      %965 = vst [vmem:[%s716 + $0xa8] sm:$0x80] %v964
      %v966 = vld [vmem:[%s716 + $0xc0] sm:$0x80]
      %v967 = vsel %vm581, 0, %v966
      %968 = vst [vmem:[%s716 + $0xc0] sm:$0x80] %v967
      %v969 = vld [vmem:[%s716 + $0xd8] sm:$0x80]
      %v970 = vsel %vm581, 0, %v969
      %971 = vst [vmem:[%s716 + $0xd8] sm:$0x80] %v970
      %v972 = vld [vmem:[%s716 + $0xf0] sm:$0x80]
      %v973 = vsel %vm581, 0, %v972
      %974 = vst [vmem:[%s716 + $0xf0] sm:$0x80] %v973
      %v975 = vld [vmem:[%s716 + $0x108] sm:$0x80]
      %v976 = vsel %vm581, 0, %v975
      %977 = vst [vmem:[%s716 + $0x108] sm:$0x80] %v976
      %v978 = vld [vmem:[%s716 + $0x120] sm:$0x80]
      %v979 = vsel %vm581, 0, %v978
      %980 = vst [vmem:[%s716 + $0x120] sm:$0x80] %v979
      %v981 = vld [vmem:[%s716 + $0x138] sm:$0x80]
      %v982 = vsel %vm581, 0, %v981
      %983 = vst [vmem:[%s716 + $0x138] sm:$0x80] %v982
      %v984 = vld [vmem:[%s716 + $0x150] sm:$0x80]
      %v985 = vsel %vm581, 0, %v984
      %986 = vst [vmem:[%s716 + $0x150] sm:$0x80] %v985
      %v987 = vrot.slane %v781, 1
      %v988 = vor.u32 %v778, %v987
      %v989 = vrot.slane %v788, 1
      %v990 = vor.u32 %v785, %v989
      %v991 = vrot.slane %v795, 1
      %v992 = vor.u32 %v792, %v991
      %v993 = vrot.slane %v802, 1
      %v994 = vor.u32 %v799, %v993
      %v995 = vrot.slane %v809, 1
      %v996 = vor.u32 %v806, %v995
      %v997 = vrot.slane %v816, 1
      %v998 = vor.u32 %v813, %v997
      %v999 = vrot.slane %v823, 1
      %v1000 = vor.u32 %v820, %v999
      %v1001 = vrot.slane %v830, 1
      %v1002 = vor.u32 %v827, %v1001
      %v1003 = vrot.slane %v837, 1
      %v1004 = vor.u32 %v834, %v1003
      %v1005 = vrot.slane %v844, 1
      %v1006 = vor.u32 %v841, %v1005
      %v1007 = vrot.slane %v851, 1
      %v1008 = vor.u32 %v848, %v1007
      %v1009 = vrot.slane %v858, 1
      %v1010 = vor.u32 %v855, %v1009
      %v1011 = vrot.slane %v865, 1
      %v1012 = vor.u32 %v862, %v1011
      %v1013 = vrot.slane %v872, 1
      %v1014 = vor.u32 %v869, %v1013
      %v1015 = vrot.slane %v879, 1
      %v1016 = vor.u32 %v876, %v1015
      %1017 = vrot.lane.b32.xlu0 %v988, 64
      %v1018 = vpop.permute.xlu0 %1017
      %1019 = vrot.lane.b32.xlu0 %v990, 64
      %v1020 = vpop.permute.xlu0 %1019
      %1021 = vrot.lane.b32.xlu0 %v992, 64
      %v1022 = vpop.permute.xlu0 %1021
      %1023 = vrot.lane.b32.xlu0 %v994, 64
      %v1024 = vpop.permute.xlu0 %1023
      %1025 = vrot.lane.b32.xlu0 %v996, 64
      %v1026 = vpop.permute.xlu0 %1025
      %1027 = vrot.lane.b32.xlu0 %v998, 64
      %v1028 = vpop.permute.xlu0 %1027
      %1029 = vrot.lane.b32.xlu0 %v1000, 64
      %v1030 = vpop.permute.xlu0 %1029
      %1031 = vrot.lane.b32.xlu0 %v1002, 64
      %v1032 = vpop.permute.xlu0 %1031
      %1033 = vrot.lane.b32.xlu0 %v1004, 64
      %v1034 = vpop.permute.xlu0 %1033
      %1035 = vrot.lane.b32.xlu0 %v1006, 64
      %v1036 = vpop.permute.xlu0 %1035
      %1037 = vrot.lane.b32.xlu0 %v1008, 64
      %v1038 = vpop.permute.xlu0 %1037
      %1039 = vrot.lane.b32.xlu0 %v1010, 64
      %v1040 = vpop.permute.xlu0 %1039
      %1041 = vrot.lane.b32.xlu0 %v1012, 64
      %v1042 = vpop.permute.xlu0 %1041
      %1043 = vrot.lane.b32.xlu0 %v1014, 64
      %v1044 = vpop.permute.xlu0 %1043
      %1045 = vrot.lane.b32.xlu0 %v1016, 64
      %v1046 = vpop.permute.xlu0 %1045
      %v1062 = vld [vmem:[%s716] sm:$0xff]
      %v1063 = vsel %vm592, %v1018, %v1062
      %1064 = vst [vmem:[%s716] sm:$0xff] %v1063
      %v1065 = vld [vmem:[%s716 + $0x18] sm:$0xff]
      %v1066 = vsel %vm592, %v1020, %v1065
      %1067 = vst [vmem:[%s716 + $0x18] sm:$0xff] %v1066
      %v1068 = vld [vmem:[%s716 + $0x30] sm:$0xff]
      %v1069 = vsel %vm592, %v1022, %v1068
      %1070 = vst [vmem:[%s716 + $0x30] sm:$0xff] %v1069
      %v1071 = vld [vmem:[%s716 + $0x48] sm:$0xff]
      %v1072 = vsel %vm592, %v1024, %v1071
      %1073 = vst [vmem:[%s716 + $0x48] sm:$0xff] %v1072
      %v1074 = vld [vmem:[%s716 + $0x60] sm:$0xff]
      %v1075 = vsel %vm592, %v1026, %v1074
      %1076 = vst [vmem:[%s716 + $0x60] sm:$0xff] %v1075
      %v1077 = vld [vmem:[%s716 + $0x78] sm:$0xff]
      %v1078 = vsel %vm592, %v1028, %v1077
      %1079 = vst [vmem:[%s716 + $0x78] sm:$0xff] %v1078
      %v1080 = vld [vmem:[%s716 + $0x90] sm:$0xff]
      %v1081 = vsel %vm592, %v1030, %v1080
      %1082 = vst [vmem:[%s716 + $0x90] sm:$0xff] %v1081
      %v1083 = vld [vmem:[%s716 + $0xa8] sm:$0xff]
      %v1084 = vsel %vm592, %v1032, %v1083
      %1085 = vst [vmem:[%s716 + $0xa8] sm:$0xff] %v1084
      %v1086 = vld [vmem:[%s716 + $0xc0] sm:$0xff]
      %v1087 = vsel %vm592, %v1034, %v1086
      %1088 = vst [vmem:[%s716 + $0xc0] sm:$0xff] %v1087
      %v1089 = vld [vmem:[%s716 + $0xd8] sm:$0xff]
      %v1090 = vsel %vm592, %v1036, %v1089
      %1091 = vst [vmem:[%s716 + $0xd8] sm:$0xff] %v1090
      %v1092 = vld [vmem:[%s716 + $0xf0] sm:$0xff]
      %v1093 = vsel %vm592, %v1038, %v1092
      %1094 = vst [vmem:[%s716 + $0xf0] sm:$0xff] %v1093
      %v1095 = vld [vmem:[%s716 + $0x108] sm:$0xff]
      %v1096 = vsel %vm592, %v1040, %v1095
      %1097 = vst [vmem:[%s716 + $0x108] sm:$0xff] %v1096
      %v1098 = vld [vmem:[%s716 + $0x120] sm:$0xff]
      %v1099 = vsel %vm592, %v1042, %v1098
      %1100 = vst [vmem:[%s716 + $0x120] sm:$0xff] %v1099
      %v1101 = vld [vmem:[%s716 + $0x138] sm:$0xff]
      %v1102 = vsel %vm592, %v1044, %v1101
      %1103 = vst [vmem:[%s716 + $0x138] sm:$0xff] %v1102
      %v1104 = vld [vmem:[%s716 + $0x150] sm:$0xff]
      %v1105 = vsel %vm592, %v1046, %v1104
      %1106 = vst [vmem:[%s716 + $0x150] sm:$0xff] %v1105
      %v1109 = vunpack.c.l.b16 %v531
      %v1110 = vunpack.c.l.b16 %v532
      %v1111 = vpack.c.b16 %v1110, %v1109
      %vm1128 = vcmask 261120
      %1129 = vst.msk [vmem:[#allocation2 + $0x8] sm:$0xff] %vm1128, %v656
      %1130 = vst.msk [vmem:[#allocation2 + $0x20] sm:$0xff] %vm1128, %v657
      %1131 = vst.msk [vmem:[#allocation2 + $0x38] sm:$0xff] %vm1128, %v658
      %1132 = vst.msk [vmem:[#allocation2 + $0x50] sm:$0xff] %vm1128, %v659
      %1133 = vst.msk [vmem:[#allocation2 + $0x68] sm:$0xff] %vm1128, %v660
      %1134 = vst.msk [vmem:[#allocation2 + $0x80] sm:$0xff] %vm1128, %v661
      %1135 = vst.msk [vmem:[#allocation2 + $0x98] sm:$0xff] %vm1128, %v662
      %1136 = vst.msk [vmem:[#allocation2 + $0xb0] sm:$0xff] %vm1128, %v663
      %1137 = vst.msk [vmem:[#allocation2 + $0xc8] sm:$0xff] %vm1128, %v664
      %1138 = vst.msk [vmem:[#allocation2 + $0xe0] sm:$0xff] %vm1128, %v665
      %1139 = vst.msk [vmem:[#allocation2 + $0xf8] sm:$0xff] %vm1128, %v666
      %1140 = vst.msk [vmem:[#allocation2 + $0x110] sm:$0xff] %vm1128, %v667
      %1141 = vst.msk [vmem:[#allocation2 + $0x128] sm:$0xff] %vm1128, %v668
      %1142 = vst.msk [vmem:[#allocation2 + $0x140] sm:$0xff] %vm1128, %v669
      %1143 = vst.msk [vmem:[#allocation2 + $0x158] sm:$0xff] %vm1128, %v670
      %1144 = vst.msk [vmem:[#allocation2 + $0x170] sm:$0xff] %vm1128, %v1111
      %vm1145 = vcmask 1041152
      %vm1146 = vmand %vm1145, %vm560
      %v1147 = vld [vmem:[#allocation2] sm:$0x1]
      %v1148 = vsel %vm1146, 0, %v1147
      %1149 = vst [vmem:[#allocation2] sm:$0x1] %v1148
      %v1150 = vld [vmem:[#allocation2 + $0x18] sm:$0x1]
      %v1151 = vsel %vm1146, 0, %v1150
      %1152 = vst [vmem:[#allocation2 + $0x18] sm:$0x1] %v1151
      %v1153 = vld [vmem:[#allocation2 + $0x30] sm:$0x1]
      %v1154 = vsel %vm1146, 0, %v1153
      %1155 = vst [vmem:[#allocation2 + $0x30] sm:$0x1] %v1154
      %v1156 = vld [vmem:[#allocation2 + $0x48] sm:$0x1]
      %v1157 = vsel %vm1146, 0, %v1156
      %1158 = vst [vmem:[#allocation2 + $0x48] sm:$0x1] %v1157
      %v1159 = vld [vmem:[#allocation2 + $0x60] sm:$0x1]
      %v1160 = vsel %vm1146, 0, %v1159
      %1161 = vst [vmem:[#allocation2 + $0x60] sm:$0x1] %v1160
      %v1162 = vld [vmem:[#allocation2 + $0x78] sm:$0x1]
      %v1163 = vsel %vm1146, 0, %v1162
      %1164 = vst [vmem:[#allocation2 + $0x78] sm:$0x1] %v1163
      %v1165 = vld [vmem:[#allocation2 + $0x90] sm:$0x1]
      %v1166 = vsel %vm1146, 0, %v1165
      %1167 = vst [vmem:[#allocation2 + $0x90] sm:$0x1] %v1166
      %v1168 = vld [vmem:[#allocation2 + $0xa8] sm:$0x1]
      %v1169 = vsel %vm1146, 0, %v1168
      %1170 = vst [vmem:[#allocation2 + $0xa8] sm:$0x1] %v1169
      %v1171 = vld [vmem:[#allocation2 + $0xc0] sm:$0x1]
      %v1172 = vsel %vm1146, 0, %v1171
      %1173 = vst [vmem:[#allocation2 + $0xc0] sm:$0x1] %v1172
      %v1174 = vld [vmem:[#allocation2 + $0xd8] sm:$0x1]
      %v1175 = vsel %vm1146, 0, %v1174
      %1176 = vst [vmem:[#allocation2 + $0xd8] sm:$0x1] %v1175
      %v1177 = vld [vmem:[#allocation2 + $0xf0] sm:$0x1]
      %v1178 = vsel %vm1146, 0, %v1177
      %1179 = vst [vmem:[#allocation2 + $0xf0] sm:$0x1] %v1178
      %v1180 = vld [vmem:[#allocation2 + $0x108] sm:$0x1]
      %v1181 = vsel %vm1146, 0, %v1180
      %1182 = vst [vmem:[#allocation2 + $0x108] sm:$0x1] %v1181
      %v1183 = vld [vmem:[#allocation2 + $0x120] sm:$0x1]
      %v1184 = vsel %vm1146, 0, %v1183
      %1185 = vst [vmem:[#allocation2 + $0x120] sm:$0x1] %v1184
      %v1186 = vld [vmem:[#allocation2 + $0x138] sm:$0x1]
      %v1187 = vsel %vm1146, 0, %v1186
      %1188 = vst [vmem:[#allocation2 + $0x138] sm:$0x1] %v1187
      %v1189 = vld [vmem:[#allocation2 + $0x150] sm:$0x1]
      %v1190 = vsel %vm1146, 0, %v1189
      %1191 = vst [vmem:[#allocation2 + $0x150] sm:$0x1] %v1190
      %v1192 = vld [vmem:[#allocation2 + $0x168] sm:$0x1]
      %v1193 = vsel %vm1146, 0, %v1192
      %1194 = vst [vmem:[#allocation2 + $0x168] sm:$0x1] %v1193
      %v1196 = vshrl.u32 %v1111, 16
      %v1198 = vrot.slane %v1196, 7
      %v1199 = vshll.u32 %v1111, 16
      %v1201 = vor.u32 %v1198, %v1199
      %1202 = vrot.lane.b32.xlu0 %v783, 96
      %v1203 = vpop.permute.xlu0 %1202
      %1204 = vrot.lane.b32.xlu0 %v790, 96
      %v1205 = vpop.permute.xlu0 %1204
      %1206 = vrot.lane.b32.xlu0 %v797, 96
      %v1207 = vpop.permute.xlu0 %1206
      %1208 = vrot.lane.b32.xlu0 %v804, 96
      %v1209 = vpop.permute.xlu0 %1208
      %1210 = vrot.lane.b32.xlu0 %v811, 96
      %v1211 = vpop.permute.xlu0 %1210
      %1212 = vrot.lane.b32.xlu0 %v818, 96
      %v1213 = vpop.permute.xlu0 %1212
      %1214 = vrot.lane.b32.xlu0 %v825, 96
      %v1215 = vpop.permute.xlu0 %1214
      %1216 = vrot.lane.b32.xlu0 %v832, 96
      %v1217 = vpop.permute.xlu0 %1216
      %1218 = vrot.lane.b32.xlu0 %v839, 96
      %v1219 = vpop.permute.xlu0 %1218
      %1220 = vrot.lane.b32.xlu0 %v846, 96
      %v1221 = vpop.permute.xlu0 %1220
      %1222 = vrot.lane.b32.xlu0 %v853, 96
      %v1223 = vpop.permute.xlu0 %1222
      %1224 = vrot.lane.b32.xlu0 %v860, 96
      %v1225 = vpop.permute.xlu0 %1224
      %1226 = vrot.lane.b32.xlu0 %v867, 96
      %v1227 = vpop.permute.xlu0 %1226
      %1228 = vrot.lane.b32.xlu0 %v874, 96
      %v1229 = vpop.permute.xlu0 %1228
      %1230 = vrot.lane.b32.xlu0 %v881, 96
      %v1231 = vpop.permute.xlu0 %1230
      %1232 = vrot.lane.b32.xlu0 %v1201, 96
      %v1233 = vpop.permute.xlu0 %1232
      %vm1250 = vcmask 1048320
      %vm1251 = vmand %vm1250, %vm574
      %v1252 = vld [vmem:[#allocation2] sm:$0xff]
      %v1253 = vsel %vm1251, %v1203, %v1252
      %1254 = vst [vmem:[#allocation2] sm:$0xff] %v1253
      %v1255 = vld [vmem:[#allocation2 + $0x18] sm:$0xff]
      %v1256 = vsel %vm1251, %v1205, %v1255
      %1257 = vst [vmem:[#allocation2 + $0x18] sm:$0xff] %v1256
      %v1258 = vld [vmem:[#allocation2 + $0x30] sm:$0xff]
      %v1259 = vsel %vm1251, %v1207, %v1258
      %1260 = vst [vmem:[#allocation2 + $0x30] sm:$0xff] %v1259
      %v1261 = vld [vmem:[#allocation2 + $0x48] sm:$0xff]
      %v1262 = vsel %vm1251, %v1209, %v1261
      %1263 = vst [vmem:[#allocation2 + $0x48] sm:$0xff] %v1262
      %v1264 = vld [vmem:[#allocation2 + $0x60] sm:$0xff]
      %v1265 = vsel %vm1251, %v1211, %v1264
      %1266 = vst [vmem:[#allocation2 + $0x60] sm:$0xff] %v1265
      %v1267 = vld [vmem:[#allocation2 + $0x78] sm:$0xff]
      %v1268 = vsel %vm1251, %v1213, %v1267
      %1269 = vst [vmem:[#allocation2 + $0x78] sm:$0xff] %v1268
      %v1270 = vld [vmem:[#allocation2 + $0x90] sm:$0xff]
      %v1271 = vsel %vm1251, %v1215, %v1270
      %1272 = vst [vmem:[#allocation2 + $0x90] sm:$0xff] %v1271
      %v1273 = vld [vmem:[#allocation2 + $0xa8] sm:$0xff]
      %v1274 = vsel %vm1251, %v1217, %v1273
      %1275 = vst [vmem:[#allocation2 + $0xa8] sm:$0xff] %v1274
      %v1276 = vld [vmem:[#allocation2 + $0xc0] sm:$0xff]
      %v1277 = vsel %vm1251, %v1219, %v1276
      %1278 = vst [vmem:[#allocation2 + $0xc0] sm:$0xff] %v1277
      %v1279 = vld [vmem:[#allocation2 + $0xd8] sm:$0xff]
      %v1280 = vsel %vm1251, %v1221, %v1279
      %1281 = vst [vmem:[#allocation2 + $0xd8] sm:$0xff] %v1280
      %v1282 = vld [vmem:[#allocation2 + $0xf0] sm:$0xff]
      %v1283 = vsel %vm1251, %v1223, %v1282
      %1284 = vst [vmem:[#allocation2 + $0xf0] sm:$0xff] %v1283
      %v1285 = vld [vmem:[#allocation2 + $0x108] sm:$0xff]
      %v1286 = vsel %vm1251, %v1225, %v1285
      %1287 = vst [vmem:[#allocation2 + $0x108] sm:$0xff] %v1286
      %v1288 = vld [vmem:[#allocation2 + $0x120] sm:$0xff]
      %v1289 = vsel %vm1251, %v1227, %v1288
      %1290 = vst [vmem:[#allocation2 + $0x120] sm:$0xff] %v1289
      %v1291 = vld [vmem:[#allocation2 + $0x138] sm:$0xff]
      %v1292 = vsel %vm1251, %v1229, %v1291
      %1293 = vst [vmem:[#allocation2 + $0x138] sm:$0xff] %v1292
      %v1294 = vld [vmem:[#allocation2 + $0x150] sm:$0xff]
      %v1295 = vsel %vm1251, %v1231, %v1294
      %1296 = vst [vmem:[#allocation2 + $0x150] sm:$0xff] %v1295
      %v1297 = vld [vmem:[#allocation2 + $0x168] sm:$0xff]
      %v1298 = vsel %vm1251, %v1233, %v1297
      %1299 = vst [vmem:[#allocation2 + $0x168] sm:$0xff] %v1298
      %vm1300 = vcmask 523527
      %vm1301 = vmand %vm1300, %vm580
      %v1302 = vld [vmem:[#allocation2 + $0x8] sm:$0x80]
      %v1303 = vsel %vm1301, 0, %v1302
      %1304 = vst [vmem:[#allocation2 + $0x8] sm:$0x80] %v1303
      %v1305 = vld [vmem:[#allocation2 + $0x20] sm:$0x80]
      %v1306 = vsel %vm1301, 0, %v1305
      %1307 = vst [vmem:[#allocation2 + $0x20] sm:$0x80] %v1306
      %v1308 = vld [vmem:[#allocation2 + $0x38] sm:$0x80]
      %v1309 = vsel %vm1301, 0, %v1308
      %1310 = vst [vmem:[#allocation2 + $0x38] sm:$0x80] %v1309
      %v1311 = vld [vmem:[#allocation2 + $0x50] sm:$0x80]
      %v1312 = vsel %vm1301, 0, %v1311
      %1313 = vst [vmem:[#allocation2 + $0x50] sm:$0x80] %v1312
      %v1314 = vld [vmem:[#allocation2 + $0x68] sm:$0x80]
      %v1315 = vsel %vm1301, 0, %v1314
      %1316 = vst [vmem:[#allocation2 + $0x68] sm:$0x80] %v1315
      %v1317 = vld [vmem:[#allocation2 + $0x80] sm:$0x80]
      %v1318 = vsel %vm1301, 0, %v1317
      %1319 = vst [vmem:[#allocation2 + $0x80] sm:$0x80] %v1318
      %v1320 = vld [vmem:[#allocation2 + $0x98] sm:$0x80]
      %v1321 = vsel %vm1301, 0, %v1320
      %1322 = vst [vmem:[#allocation2 + $0x98] sm:$0x80] %v1321
      %v1323 = vld [vmem:[#allocation2 + $0xb0] sm:$0x80]
      %v1324 = vsel %vm1301, 0, %v1323
      %1325 = vst [vmem:[#allocation2 + $0xb0] sm:$0x80] %v1324
      %v1326 = vld [vmem:[#allocation2 + $0xc8] sm:$0x80]
      %v1327 = vsel %vm1301, 0, %v1326
      %1328 = vst [vmem:[#allocation2 + $0xc8] sm:$0x80] %v1327
      %v1329 = vld [vmem:[#allocation2 + $0xe0] sm:$0x80]
      %v1330 = vsel %vm1301, 0, %v1329
      %1331 = vst [vmem:[#allocation2 + $0xe0] sm:$0x80] %v1330
      %v1332 = vld [vmem:[#allocation2 + $0xf8] sm:$0x80]
      %v1333 = vsel %vm1301, 0, %v1332
      %1334 = vst [vmem:[#allocation2 + $0xf8] sm:$0x80] %v1333
      %v1335 = vld [vmem:[#allocation2 + $0x110] sm:$0x80]
      %v1336 = vsel %vm1301, 0, %v1335
      %1337 = vst [vmem:[#allocation2 + $0x110] sm:$0x80] %v1336
      %v1338 = vld [vmem:[#allocation2 + $0x128] sm:$0x80]
      %v1339 = vsel %vm1301, 0, %v1338
      %1340 = vst [vmem:[#allocation2 + $0x128] sm:$0x80] %v1339
      %v1341 = vld [vmem:[#allocation2 + $0x140] sm:$0x80]
      %v1342 = vsel %vm1301, 0, %v1341
      %1343 = vst [vmem:[#allocation2 + $0x140] sm:$0x80] %v1342
      %v1344 = vld [vmem:[#allocation2 + $0x158] sm:$0x80]
      %v1345 = vsel %vm1301, 0, %v1344
      %1346 = vst [vmem:[#allocation2 + $0x158] sm:$0x80] %v1345
      %v1347 = vld [vmem:[#allocation2 + $0x170] sm:$0x80]
      %v1348 = vsel %vm1301, 0, %v1347
      %1349 = vst [vmem:[#allocation2 + $0x170] sm:$0x80] %v1348
      %v1350 = vrot.slane %v1199, 1
      %v1351 = vor.u32 %v1196, %v1350
      %1352 = vrot.lane.b32.xlu0 %v988, 32
      %v1353 = vpop.permute.xlu0 %1352
      %1354 = vrot.lane.b32.xlu0 %v990, 32
      %v1355 = vpop.permute.xlu0 %1354
      %1356 = vrot.lane.b32.xlu0 %v992, 32
      %v1357 = vpop.permute.xlu0 %1356
      %1358 = vrot.lane.b32.xlu0 %v994, 32
      %v1359 = vpop.permute.xlu0 %1358
      %1360 = vrot.lane.b32.xlu0 %v996, 32
      %v1361 = vpop.permute.xlu0 %1360
      %1362 = vrot.lane.b32.xlu0 %v998, 32
      %v1363 = vpop.permute.xlu0 %1362
      %1364 = vrot.lane.b32.xlu0 %v1000, 32
      %v1365 = vpop.permute.xlu0 %1364
      %1366 = vrot.lane.b32.xlu0 %v1002, 32
      %v1367 = vpop.permute.xlu0 %1366
      %1368 = vrot.lane.b32.xlu0 %v1004, 32
      %v1369 = vpop.permute.xlu0 %1368
      %1370 = vrot.lane.b32.xlu0 %v1006, 32
      %v1371 = vpop.permute.xlu0 %1370
      %1372 = vrot.lane.b32.xlu0 %v1008, 32
      %v1373 = vpop.permute.xlu0 %1372
      %1374 = vrot.lane.b32.xlu0 %v1010, 32
      %v1375 = vpop.permute.xlu0 %1374
      %1376 = vrot.lane.b32.xlu0 %v1012, 32
      %v1377 = vpop.permute.xlu0 %1376
      %1378 = vrot.lane.b32.xlu0 %v1014, 32
      %v1379 = vpop.permute.xlu0 %1378
      %1380 = vrot.lane.b32.xlu0 %v1016, 32
      %v1381 = vpop.permute.xlu0 %1380
      %1382 = vrot.lane.b32.xlu0 %v1351, 32
      %v1383 = vpop.permute.xlu0 %1382
      %vm1400 = vcmask 523520
      %vm1401 = vmand %vm1400, %vm591
      %v1402 = vld [vmem:[#allocation2 + $0x8] sm:$0xff]
      %v1403 = vsel %vm1401, %v1353, %v1402
      %1404 = vst [vmem:[#allocation2 + $0x8] sm:$0xff] %v1403
      %v1405 = vld [vmem:[#allocation2 + $0x20] sm:$0xff]
      %v1406 = vsel %vm1401, %v1355, %v1405
      %1407 = vst [vmem:[#allocation2 + $0x20] sm:$0xff] %v1406
      %v1408 = vld [vmem:[#allocation2 + $0x38] sm:$0xff]
      %v1409 = vsel %vm1401, %v1357, %v1408
      %1410 = vst [vmem:[#allocation2 + $0x38] sm:$0xff] %v1409
      %v1411 = vld [vmem:[#allocation2 + $0x50] sm:$0xff]
      %v1412 = vsel %vm1401, %v1359, %v1411
      %1413 = vst [vmem:[#allocation2 + $0x50] sm:$0xff] %v1412
      %v1414 = vld [vmem:[#allocation2 + $0x68] sm:$0xff]
      %v1415 = vsel %vm1401, %v1361, %v1414
      %1416 = vst [vmem:[#allocation2 + $0x68] sm:$0xff] %v1415
      %v1417 = vld [vmem:[#allocation2 + $0x80] sm:$0xff]
      %v1418 = vsel %vm1401, %v1363, %v1417
      %1419 = vst [vmem:[#allocation2 + $0x80] sm:$0xff] %v1418
      %v1420 = vld [vmem:[#allocation2 + $0x98] sm:$0xff]
      %v1421 = vsel %vm1401, %v1365, %v1420
      %1422 = vst [vmem:[#allocation2 + $0x98] sm:$0xff] %v1421
      %v1423 = vld [vmem:[#allocation2 + $0xb0] sm:$0xff]
      %v1424 = vsel %vm1401, %v1367, %v1423
      %1425 = vst [vmem:[#allocation2 + $0xb0] sm:$0xff] %v1424
      %v1426 = vld [vmem:[#allocation2 + $0xc8] sm:$0xff]
      %v1427 = vsel %vm1401, %v1369, %v1426
      %1428 = vst [vmem:[#allocation2 + $0xc8] sm:$0xff] %v1427
      %v1429 = vld [vmem:[#allocation2 + $0xe0] sm:$0xff]
      %v1430 = vsel %vm1401, %v1371, %v1429
      %1431 = vst [vmem:[#allocation2 + $0xe0] sm:$0xff] %v1430
      %v1432 = vld [vmem:[#allocation2 + $0xf8] sm:$0xff]
      %v1433 = vsel %vm1401, %v1373, %v1432
      %1434 = vst [vmem:[#allocation2 + $0xf8] sm:$0xff] %v1433
      %v1435 = vld [vmem:[#allocation2 + $0x110] sm:$0xff]
      %v1436 = vsel %vm1401, %v1375, %v1435
      %1437 = vst [vmem:[#allocation2 + $0x110] sm:$0xff] %v1436
      %v1438 = vld [vmem:[#allocation2 + $0x128] sm:$0xff]
      %v1439 = vsel %vm1401, %v1377, %v1438
      %1440 = vst [vmem:[#allocation2 + $0x128] sm:$0xff] %v1439
      %v1441 = vld [vmem:[#allocation2 + $0x140] sm:$0xff]
      %v1442 = vsel %vm1401, %v1379, %v1441
      %1443 = vst [vmem:[#allocation2 + $0x140] sm:$0xff] %v1442
      %v1444 = vld [vmem:[#allocation2 + $0x158] sm:$0xff]
      %v1445 = vsel %vm1401, %v1381, %v1444
      %1446 = vst [vmem:[#allocation2 + $0x158] sm:$0xff] %v1445
      %v1447 = vld [vmem:[#allocation2 + $0x170] sm:$0xff]
      %v1448 = vsel %vm1401, %v1383, %v1447
      %1449 = vst [vmem:[#allocation2 + $0x170] sm:$0xff] %v1448
      %1450 = vrot.lane.b32.xlu0 %v657, 96
      %v1451 = vpop.permute.xlu0 %1450
      %1452 = vrot.lane.b32.xlu0 %v658, 96
      %v1453 = vpop.permute.xlu0 %1452
      %1454 = vrot.lane.b32.xlu0 %v659, 96
      %v1455 = vpop.permute.xlu0 %1454
      %1456 = vrot.lane.b32.xlu0 %v660, 96
      %v1457 = vpop.permute.xlu0 %1456
      %1458 = vrot.lane.b32.xlu0 %v661, 96
      %v1459 = vpop.permute.xlu0 %1458
      %1460 = vrot.lane.b32.xlu0 %v662, 96
      %v1461 = vpop.permute.xlu0 %1460
      %1462 = vrot.lane.b32.xlu0 %v663, 96
      %v1463 = vpop.permute.xlu0 %1462
      %1464 = vrot.lane.b32.xlu0 %v664, 96
      %v1465 = vpop.permute.xlu0 %1464
      %1466 = vrot.lane.b32.xlu0 %v665, 96
      %v1467 = vpop.permute.xlu0 %1466
      %1468 = vrot.lane.b32.xlu0 %v666, 96
      %v1469 = vpop.permute.xlu0 %1468
      %1470 = vrot.lane.b32.xlu0 %v667, 96
      %v1471 = vpop.permute.xlu0 %1470
      %1472 = vrot.lane.b32.xlu0 %v668, 96
      %v1473 = vpop.permute.xlu0 %1472
      %1474 = vrot.lane.b32.xlu0 %v669, 96
      %v1475 = vpop.permute.xlu0 %1474
      %1476 = vrot.lane.b32.xlu0 %v670, 96
      %v1477 = vpop.permute.xlu0 %1476
      %1478 = vrot.lane.b32.xlu0 %v1111, 96
      %v1479 = vpop.permute.xlu0 %1478
      %vm1495 = vcmask 1048320
      %1496 = vst.msk [vmem:[#allocation2 + $0x8] sm:$0xff] %vm1495, %v1451
      %1497 = vst.msk [vmem:[#allocation2 + $0x20] sm:$0xff] %vm1495, %v1453
      %1498 = vst.msk [vmem:[#allocation2 + $0x38] sm:$0xff] %vm1495, %v1455
      %1499 = vst.msk [vmem:[#allocation2 + $0x50] sm:$0xff] %vm1495, %v1457
      %1500 = vst.msk [vmem:[#allocation2 + $0x68] sm:$0xff] %vm1495, %v1459
      %1501 = vst.msk [vmem:[#allocation2 + $0x80] sm:$0xff] %vm1495, %v1461
      %1502 = vst.msk [vmem:[#allocation2 + $0x98] sm:$0xff] %vm1495, %v1463
      %1503 = vst.msk [vmem:[#allocation2 + $0xb0] sm:$0xff] %vm1495, %v1465
      %1504 = vst.msk [vmem:[#allocation2 + $0xc8] sm:$0xff] %vm1495, %v1467
      %1505 = vst.msk [vmem:[#allocation2 + $0xe0] sm:$0xff] %vm1495, %v1469
      %1506 = vst.msk [vmem:[#allocation2 + $0xf8] sm:$0xff] %vm1495, %v1471
      %1507 = vst.msk [vmem:[#allocation2 + $0x110] sm:$0xff] %vm1495, %v1473
      %1508 = vst.msk [vmem:[#allocation2 + $0x128] sm:$0xff] %vm1495, %v1475
      %1509 = vst.msk [vmem:[#allocation2 + $0x140] sm:$0xff] %vm1495, %v1477
      %1510 = vst.msk [vmem:[#allocation2 + $0x158] sm:$0xff] %vm1495, %v1479
      %vm1511 = vcmask 778752
      %vm1512 = vmand %vm1511, %vm560
      %v1513 = vld [vmem:[#allocation2 + $0x8] sm:$0x1]
      %v1514 = vsel %vm1512, 0, %v1513
      %1515 = vst [vmem:[#allocation2 + $0x8] sm:$0x1] %v1514
      %v1516 = vld [vmem:[#allocation2 + $0x20] sm:$0x1]
      %v1517 = vsel %vm1512, 0, %v1516
      %1518 = vst [vmem:[#allocation2 + $0x20] sm:$0x1] %v1517
      %v1519 = vld [vmem:[#allocation2 + $0x38] sm:$0x1]
      %v1520 = vsel %vm1512, 0, %v1519
      %1521 = vst [vmem:[#allocation2 + $0x38] sm:$0x1] %v1520
      %v1522 = vld [vmem:[#allocation2 + $0x50] sm:$0x1]
      %v1523 = vsel %vm1512, 0, %v1522
      %1524 = vst [vmem:[#allocation2 + $0x50] sm:$0x1] %v1523
      %v1525 = vld [vmem:[#allocation2 + $0x68] sm:$0x1]
      %v1526 = vsel %vm1512, 0, %v1525
      %1527 = vst [vmem:[#allocation2 + $0x68] sm:$0x1] %v1526
      %v1528 = vld [vmem:[#allocation2 + $0x80] sm:$0x1]
      %v1529 = vsel %vm1512, 0, %v1528
      %1530 = vst [vmem:[#allocation2 + $0x80] sm:$0x1] %v1529
      %v1531 = vld [vmem:[#allocation2 + $0x98] sm:$0x1]
      %v1532 = vsel %vm1512, 0, %v1531
      %1533 = vst [vmem:[#allocation2 + $0x98] sm:$0x1] %v1532
      %v1534 = vld [vmem:[#allocation2 + $0xb0] sm:$0x1]
      %v1535 = vsel %vm1512, 0, %v1534
      %1536 = vst [vmem:[#allocation2 + $0xb0] sm:$0x1] %v1535
      %v1537 = vld [vmem:[#allocation2 + $0xc8] sm:$0x1]
      %v1538 = vsel %vm1512, 0, %v1537
      %1539 = vst [vmem:[#allocation2 + $0xc8] sm:$0x1] %v1538
      %v1540 = vld [vmem:[#allocation2 + $0xe0] sm:$0x1]
      %v1541 = vsel %vm1512, 0, %v1540
      %1542 = vst [vmem:[#allocation2 + $0xe0] sm:$0x1] %v1541
      %v1543 = vld [vmem:[#allocation2 + $0xf8] sm:$0x1]
      %v1544 = vsel %vm1512, 0, %v1543
      %1545 = vst [vmem:[#allocation2 + $0xf8] sm:$0x1] %v1544
      %v1546 = vld [vmem:[#allocation2 + $0x110] sm:$0x1]
      %v1547 = vsel %vm1512, 0, %v1546
      %1548 = vst [vmem:[#allocation2 + $0x110] sm:$0x1] %v1547
      %v1549 = vld [vmem:[#allocation2 + $0x128] sm:$0x1]
      %v1550 = vsel %vm1512, 0, %v1549
      %1551 = vst [vmem:[#allocation2 + $0x128] sm:$0x1] %v1550
      %v1552 = vld [vmem:[#allocation2 + $0x140] sm:$0x1]
      %v1553 = vsel %vm1512, 0, %v1552
      %1554 = vst [vmem:[#allocation2 + $0x140] sm:$0x1] %v1553
      %v1555 = vld [vmem:[#allocation2 + $0x158] sm:$0x1]
      %v1556 = vsel %vm1512, 0, %v1555
      %1557 = vst [vmem:[#allocation2 + $0x158] sm:$0x1] %v1556
      %1558 = vrot.lane.b32.xlu0 %v790, 64
      %v1559 = vpop.permute.xlu0 %1558
      %1560 = vrot.lane.b32.xlu0 %v797, 64
      %v1561 = vpop.permute.xlu0 %1560
      %1562 = vrot.lane.b32.xlu0 %v804, 64
      %v1563 = vpop.permute.xlu0 %1562
      %1564 = vrot.lane.b32.xlu0 %v811, 64
      %v1565 = vpop.permute.xlu0 %1564
      %1566 = vrot.lane.b32.xlu0 %v818, 64
      %v1567 = vpop.permute.xlu0 %1566
      %1568 = vrot.lane.b32.xlu0 %v825, 64
      %v1569 = vpop.permute.xlu0 %1568
      %1570 = vrot.lane.b32.xlu0 %v832, 64
      %v1571 = vpop.permute.xlu0 %1570
      %1572 = vrot.lane.b32.xlu0 %v839, 64
      %v1573 = vpop.permute.xlu0 %1572
      %1574 = vrot.lane.b32.xlu0 %v846, 64
      %v1575 = vpop.permute.xlu0 %1574
      %1576 = vrot.lane.b32.xlu0 %v853, 64
      %v1577 = vpop.permute.xlu0 %1576
      %1578 = vrot.lane.b32.xlu0 %v860, 64
      %v1579 = vpop.permute.xlu0 %1578
      %1580 = vrot.lane.b32.xlu0 %v867, 64
      %v1581 = vpop.permute.xlu0 %1580
      %1582 = vrot.lane.b32.xlu0 %v874, 64
      %v1583 = vpop.permute.xlu0 %1582
      %1584 = vrot.lane.b32.xlu0 %v881, 64
      %v1585 = vpop.permute.xlu0 %1584
      %1586 = vrot.lane.b32.xlu0 %v1201, 64
      %v1587 = vpop.permute.xlu0 %1586
      %vm1603 = vmand %vm590, %vm574
      %v1604 = vld [vmem:[#allocation2 + $0x8] sm:$0xff]
      %v1605 = vsel %vm1603, %v1559, %v1604
      %1606 = vst [vmem:[#allocation2 + $0x8] sm:$0xff] %v1605
      %v1607 = vld [vmem:[#allocation2 + $0x20] sm:$0xff]
      %v1608 = vsel %vm1603, %v1561, %v1607
      %1609 = vst [vmem:[#allocation2 + $0x20] sm:$0xff] %v1608
      %v1610 = vld [vmem:[#allocation2 + $0x38] sm:$0xff]
      %v1611 = vsel %vm1603, %v1563, %v1610
      %1612 = vst [vmem:[#allocation2 + $0x38] sm:$0xff] %v1611
      %v1613 = vld [vmem:[#allocation2 + $0x50] sm:$0xff]
      %v1614 = vsel %vm1603, %v1565, %v1613
      %1615 = vst [vmem:[#allocation2 + $0x50] sm:$0xff] %v1614
      %v1616 = vld [vmem:[#allocation2 + $0x68] sm:$0xff]
      %v1617 = vsel %vm1603, %v1567, %v1616
      %1618 = vst [vmem:[#allocation2 + $0x68] sm:$0xff] %v1617
      %v1619 = vld [vmem:[#allocation2 + $0x80] sm:$0xff]
      %v1620 = vsel %vm1603, %v1569, %v1619
      %1621 = vst [vmem:[#allocation2 + $0x80] sm:$0xff] %v1620
      %v1622 = vld [vmem:[#allocation2 + $0x98] sm:$0xff]
      %v1623 = vsel %vm1603, %v1571, %v1622
      %1624 = vst [vmem:[#allocation2 + $0x98] sm:$0xff] %v1623
      %v1625 = vld [vmem:[#allocation2 + $0xb0] sm:$0xff]
      %v1626 = vsel %vm1603, %v1573, %v1625
      %1627 = vst [vmem:[#allocation2 + $0xb0] sm:$0xff] %v1626
      %v1628 = vld [vmem:[#allocation2 + $0xc8] sm:$0xff]
      %v1629 = vsel %vm1603, %v1575, %v1628
      %1630 = vst [vmem:[#allocation2 + $0xc8] sm:$0xff] %v1629
      %v1631 = vld [vmem:[#allocation2 + $0xe0] sm:$0xff]
      %v1632 = vsel %vm1603, %v1577, %v1631
      %1633 = vst [vmem:[#allocation2 + $0xe0] sm:$0xff] %v1632
      %v1634 = vld [vmem:[#allocation2 + $0xf8] sm:$0xff]
      %v1635 = vsel %vm1603, %v1579, %v1634
      %1636 = vst [vmem:[#allocation2 + $0xf8] sm:$0xff] %v1635
      %v1637 = vld [vmem:[#allocation2 + $0x110] sm:$0xff]
      %v1638 = vsel %vm1603, %v1581, %v1637
      %1639 = vst [vmem:[#allocation2 + $0x110] sm:$0xff] %v1638
      %v1640 = vld [vmem:[#allocation2 + $0x128] sm:$0xff]
      %v1641 = vsel %vm1603, %v1583, %v1640
      %1642 = vst [vmem:[#allocation2 + $0x128] sm:$0xff] %v1641
      %v1643 = vld [vmem:[#allocation2 + $0x140] sm:$0xff]
      %v1644 = vsel %vm1603, %v1585, %v1643
      %1645 = vst [vmem:[#allocation2 + $0x140] sm:$0xff] %v1644
      %v1646 = vld [vmem:[#allocation2 + $0x158] sm:$0xff]
      %v1647 = vsel %vm1603, %v1587, %v1646
      %1648 = vst [vmem:[#allocation2 + $0x158] sm:$0xff] %v1647
      %vm1649 = vcmask 261127
      %vm1650 = vmand %vm1649, %vm580
      %v1651 = vld [vmem:[#allocation2 + $0x10] sm:$0x80]
      %v1652 = vsel %vm1650, 0, %v1651
      %1653 = vst [vmem:[#allocation2 + $0x10] sm:$0x80] %v1652
      %v1654 = vld [vmem:[#allocation2 + $0x28] sm:$0x80]
      %v1655 = vsel %vm1650, 0, %v1654
      %1656 = vst [vmem:[#allocation2 + $0x28] sm:$0x80] %v1655
      %v1657 = vld [vmem:[#allocation2 + $0x40] sm:$0x80]
      %v1658 = vsel %vm1650, 0, %v1657
      %1659 = vst [vmem:[#allocation2 + $0x40] sm:$0x80] %v1658
      %v1660 = vld [vmem:[#allocation2 + $0x58] sm:$0x80]
      %v1661 = vsel %vm1650, 0, %v1660
      %1662 = vst [vmem:[#allocation2 + $0x58] sm:$0x80] %v1661
      %v1663 = vld [vmem:[#allocation2 + $0x70] sm:$0x80]
      %v1664 = vsel %vm1650, 0, %v1663
      %1665 = vst [vmem:[#allocation2 + $0x70] sm:$0x80] %v1664
      %v1666 = vld [vmem:[#allocation2 + $0x88] sm:$0x80]
      %v1667 = vsel %vm1650, 0, %v1666
      %1668 = vst [vmem:[#allocation2 + $0x88] sm:$0x80] %v1667
      %v1669 = vld [vmem:[#allocation2 + $0xa0] sm:$0x80]
      %v1670 = vsel %vm1650, 0, %v1669
      %1671 = vst [vmem:[#allocation2 + $0xa0] sm:$0x80] %v1670
      %v1672 = vld [vmem:[#allocation2 + $0xb8] sm:$0x80]
      %v1673 = vsel %vm1650, 0, %v1672
      %1674 = vst [vmem:[#allocation2 + $0xb8] sm:$0x80] %v1673
      %v1675 = vld [vmem:[#allocation2 + $0xd0] sm:$0x80]
      %v1676 = vsel %vm1650, 0, %v1675
      %1677 = vst [vmem:[#allocation2 + $0xd0] sm:$0x80] %v1676
      %v1678 = vld [vmem:[#allocation2 + $0xe8] sm:$0x80]
      %v1679 = vsel %vm1650, 0, %v1678
      %1680 = vst [vmem:[#allocation2 + $0xe8] sm:$0x80] %v1679
      %v1681 = vld [vmem:[#allocation2 + $0x100] sm:$0x80]
      %v1682 = vsel %vm1650, 0, %v1681
      %1683 = vst [vmem:[#allocation2 + $0x100] sm:$0x80] %v1682
      %v1684 = vld [vmem:[#allocation2 + $0x118] sm:$0x80]
      %v1685 = vsel %vm1650, 0, %v1684
      %1686 = vst [vmem:[#allocation2 + $0x118] sm:$0x80] %v1685
      %v1687 = vld [vmem:[#allocation2 + $0x130] sm:$0x80]
      %v1688 = vsel %vm1650, 0, %v1687
      %1689 = vst [vmem:[#allocation2 + $0x130] sm:$0x80] %v1688
      %v1690 = vld [vmem:[#allocation2 + $0x148] sm:$0x80]
      %v1691 = vsel %vm1650, 0, %v1690
      %1692 = vst [vmem:[#allocation2 + $0x148] sm:$0x80] %v1691
      %v1693 = vld [vmem:[#allocation2 + $0x160] sm:$0x80]
      %v1694 = vsel %vm1650, 0, %v1693
      %1695 = vst [vmem:[#allocation2 + $0x160] sm:$0x80] %v1694
      %vm1711 = vmand %vm573, %vm591
      %v1712 = vld [vmem:[#allocation2 + $0x10] sm:$0xff]
      %v1713 = vsel %vm1711, %v990, %v1712
      %1714 = vst [vmem:[#allocation2 + $0x10] sm:$0xff] %v1713
      %v1715 = vld [vmem:[#allocation2 + $0x28] sm:$0xff]
      %v1716 = vsel %vm1711, %v992, %v1715
      %1717 = vst [vmem:[#allocation2 + $0x28] sm:$0xff] %v1716
      %v1718 = vld [vmem:[#allocation2 + $0x40] sm:$0xff]
      %v1719 = vsel %vm1711, %v994, %v1718
      %1720 = vst [vmem:[#allocation2 + $0x40] sm:$0xff] %v1719
      %v1721 = vld [vmem:[#allocation2 + $0x58] sm:$0xff]
      %v1722 = vsel %vm1711, %v996, %v1721
      %1723 = vst [vmem:[#allocation2 + $0x58] sm:$0xff] %v1722
      %v1724 = vld [vmem:[#allocation2 + $0x70] sm:$0xff]
      %v1725 = vsel %vm1711, %v998, %v1724
      %1726 = vst [vmem:[#allocation2 + $0x70] sm:$0xff] %v1725
      %v1727 = vld [vmem:[#allocation2 + $0x88] sm:$0xff]
      %v1728 = vsel %vm1711, %v1000, %v1727
      %1729 = vst [vmem:[#allocation2 + $0x88] sm:$0xff] %v1728
      %v1730 = vld [vmem:[#allocation2 + $0xa0] sm:$0xff]
      %v1731 = vsel %vm1711, %v1002, %v1730
      %1732 = vst [vmem:[#allocation2 + $0xa0] sm:$0xff] %v1731
      %v1733 = vld [vmem:[#allocation2 + $0xb8] sm:$0xff]
      %v1734 = vsel %vm1711, %v1004, %v1733
      %1735 = vst [vmem:[#allocation2 + $0xb8] sm:$0xff] %v1734
      %v1736 = vld [vmem:[#allocation2 + $0xd0] sm:$0xff]
      %v1737 = vsel %vm1711, %v1006, %v1736
      %1738 = vst [vmem:[#allocation2 + $0xd0] sm:$0xff] %v1737
      %v1739 = vld [vmem:[#allocation2 + $0xe8] sm:$0xff]
      %v1740 = vsel %vm1711, %v1008, %v1739
      %1741 = vst [vmem:[#allocation2 + $0xe8] sm:$0xff] %v1740
      %v1742 = vld [vmem:[#allocation2 + $0x100] sm:$0xff]
      %v1743 = vsel %vm1711, %v1010, %v1742
      %1744 = vst [vmem:[#allocation2 + $0x100] sm:$0xff] %v1743
      %v1745 = vld [vmem:[#allocation2 + $0x118] sm:$0xff]
      %v1746 = vsel %vm1711, %v1012, %v1745
      %1747 = vst [vmem:[#allocation2 + $0x118] sm:$0xff] %v1746
      %v1748 = vld [vmem:[#allocation2 + $0x130] sm:$0xff]
      %v1749 = vsel %vm1711, %v1014, %v1748
      %1750 = vst [vmem:[#allocation2 + $0x130] sm:$0xff] %v1749
      %v1751 = vld [vmem:[#allocation2 + $0x148] sm:$0xff]
      %v1752 = vsel %vm1711, %v1016, %v1751
      %1753 = vst [vmem:[#allocation2 + $0x148] sm:$0xff] %v1752
      %v1754 = vld [vmem:[#allocation2 + $0x160] sm:$0xff]
      %v1755 = vsel %vm1711, %v1351, %v1754
      %1756 = vst [vmem:[#allocation2 + $0x160] sm:$0xff] %v1755
      %v1759 = vunpack.c.l.b16 %v547
      %v1760 = vunpack.c.l.b16 %v548
      %v1761 = vpack.c.b16 %v1760, %v1759
      %1762 = vrot.lane.b32.xlu0 %v1761, 96
      %v1763 = vpop.permute.xlu0 %1762
      %s1765 = scalar_lea.vmem [#allocation2], 360
      %1766 = vst.msk [vmem:[%s1765 + $0x8] sm:$0xff] %vm1495, %v1763
      %v1767 = vld [vmem:[%s1765 + $0x8] sm:$0x1]
      %v1768 = vsel %vm1512, 0, %v1767
      %1769 = vst [vmem:[%s1765 + $0x8] sm:$0x1] %v1768
      %v1771 = vshrl.u32 %v1761, 16
      %v1773 = vrot.slane %v1771, 7
      %v1774 = vshll.u32 %v1761, 16
      %v1776 = vor.u32 %v1773, %v1774
      %1777 = vrot.lane.b32.xlu0 %v1776, 64
      %v1778 = vpop.permute.xlu0 %1777
      %v1780 = vld [vmem:[%s1765 + $0x8] sm:$0xff]
      %v1781 = vsel %vm1603, %v1778, %v1780
      %1782 = vst [vmem:[%s1765 + $0x8] sm:$0xff] %v1781
      %v1783 = vld [vmem:[%s1765 + $0x10] sm:$0x80]
      %v1784 = vsel %vm1650, 0, %v1783
      %1785 = vst [vmem:[%s1765 + $0x10] sm:$0x80] %v1784
      %v1786 = vrot.slane %v1774, 1
      %v1787 = vor.u32 %v1771, %v1786
      %v1789 = vld [vmem:[%s1765 + $0x10] sm:$0xff]
      %v1790 = vsel %vm1711, %v1787, %v1789
      %1791 = vst [vmem:[%s1765 + $0x10] sm:$0xff] %v1790
      %v1792 = vld [vmem:[#allocation2] sm:$0xff]
      %v1793 = vld [vmem:[#allocation2 + $0x8] sm:$0xff]
      %v1794 = vld [vmem:[#allocation2 + $0x10] sm:$0xff]
      %v1795 = vld [vmem:[#allocation2 + $0x18] sm:$0xff]
      %v1796 = vld [vmem:[#allocation2 + $0x20] sm:$0xff]
      %v1797 = vld [vmem:[#allocation2 + $0x28] sm:$0xff]
      %v1798 = vld [vmem:[#allocation2 + $0x30] sm:$0xff]
      %v1799 = vld [vmem:[#allocation2 + $0x38] sm:$0xff]
      %v1800 = vld [vmem:[#allocation2 + $0x40] sm:$0xff]
      %v1801 = vld [vmem:[#allocation2 + $0x48] sm:$0xff]
      %v1802 = vld [vmem:[#allocation2 + $0x50] sm:$0xff]
      %v1803 = vld [vmem:[#allocation2 + $0x58] sm:$0xff]
      %v1804 = vld [vmem:[#allocation2 + $0x60] sm:$0xff]
      %v1805 = vld [vmem:[#allocation2 + $0x68] sm:$0xff]
      %v1806 = vld [vmem:[#allocation2 + $0x70] sm:$0xff]
      %v1807 = vld [vmem:[#allocation2 + $0x78] sm:$0xff]
      %v1808 = vld [vmem:[#allocation2 + $0x80] sm:$0xff]
      %v1809 = vld [vmem:[#allocation2 + $0x88] sm:$0xff]
      %v1810 = vld [vmem:[#allocation2 + $0x90] sm:$0xff]
      %v1811 = vld [vmem:[#allocation2 + $0x98] sm:$0xff]
      %v1812 = vld [vmem:[#allocation2 + $0xa0] sm:$0xff]
      %v1813 = vld [vmem:[#allocation2 + $0xa8] sm:$0xff]
      %v1814 = vld [vmem:[#allocation2 + $0xb0] sm:$0xff]
      %v1815 = vld [vmem:[#allocation2 + $0xb8] sm:$0xff]
      %v1816 = vld [vmem:[#allocation2 + $0xc0] sm:$0xff]
      %v1817 = vld [vmem:[#allocation2 + $0xc8] sm:$0xff]
      %v1818 = vld [vmem:[#allocation2 + $0xd0] sm:$0xff]
      %v1819 = vld [vmem:[#allocation2 + $0xd8] sm:$0xff]
      %v1820 = vld [vmem:[#allocation2 + $0xe0] sm:$0xff]
      %v1821 = vld [vmem:[#allocation2 + $0xe8] sm:$0xff]
      %v1822 = vld [vmem:[#allocation2 + $0xf0] sm:$0xff]
      %v1823 = vld [vmem:[#allocation2 + $0xf8] sm:$0xff]
      %v1824 = vld [vmem:[#allocation2 + $0x100] sm:$0xff]
      %v1825 = vld [vmem:[#allocation2 + $0x108] sm:$0xff]
      %v1826 = vld [vmem:[#allocation2 + $0x110] sm:$0xff]
      %v1827 = vld [vmem:[#allocation2 + $0x118] sm:$0xff]
      %v1828 = vld [vmem:[#allocation2 + $0x120] sm:$0xff]
      %v1829 = vld [vmem:[#allocation2 + $0x128] sm:$0xff]
      %v1830 = vld [vmem:[#allocation2 + $0x130] sm:$0xff]
      %v1831 = vld [vmem:[#allocation2 + $0x138] sm:$0xff]
      %v1832 = vld [vmem:[#allocation2 + $0x140] sm:$0xff]
      %v1833 = vld [vmem:[#allocation2 + $0x148] sm:$0xff]
      %v1834 = vld [vmem:[#allocation2 + $0x150] sm:$0xff]
      %v1835 = vld [vmem:[#allocation2 + $0x158] sm:$0xff]
      %v1836 = vld [vmem:[#allocation2 + $0x160] sm:$0xff]
      %v1837 = vld [vmem:[#allocation2 + $0x168] sm:$0xff]
      %v1838 = vld [vmem:[#allocation2 + $0x170] sm:$0xff]
      %v1839 = vld [vmem:[#allocation2 + $0x178] sm:$0xff]
      %v1840 = vld [vmem:[%s3] sm:$0xf]
      %v1841 = vld [vmem:[%s3 + $0x4] sm:$0xf]
      %v1842 = vld [vmem:[%s3 + $0x8] sm:$0xf]
      %v1843 = vld [vmem:[%s3 + $0xc] sm:$0xf]
      %v1844 = vld [vmem:[%s3 + $0x10] sm:$0xf]
      %v1845 = vld [vmem:[%s3 + $0x14] sm:$0xf]
      %v1846 = vld [vmem:[%s3 + $0x18] sm:$0xf]
      %v1847 = vld [vmem:[%s3 + $0x1c] sm:$0xf]
      %v1848 = vld [vmem:[%s3 + $0x20] sm:$0xf]
      %v1849 = vld [vmem:[%s3 + $0x24] sm:$0xf]
      %v1850 = vld [vmem:[%s3 + $0x28] sm:$0xf]
      %v1851 = vld [vmem:[%s3 + $0x2c] sm:$0xf]
      %v1852 = vld [vmem:[%s3 + $0x30] sm:$0xf]
      %v1853 = vld [vmem:[%s3 + $0x34] sm:$0xf]
      %v1854 = vld [vmem:[%s3 + $0x38] sm:$0xf]
      %v1855 = vld [vmem:[%s3 + $0x3c] sm:$0xf]
      %v1856 = vld [vmem:[%s3 + $0x40] sm:$0xf]
      %v1857 = vld [vmem:[%s3 + $0x44] sm:$0xf]
      %v1858 = vld [vmem:[%s3 + $0x48] sm:$0xf]
      %v1859 = vld [vmem:[%s3 + $0x4c] sm:$0xf]
      %v1860 = vld [vmem:[%s3 + $0x50] sm:$0xf]
      %v1861 = vld [vmem:[%s3 + $0x54] sm:$0xf]
      %v1862 = vld [vmem:[%s3 + $0x58] sm:$0xf]
      %v1863 = vld [vmem:[%s3 + $0x5c] sm:$0xf]
      %v1864 = vld [vmem:[%s3 + $0x60] sm:$0xf]
      %v1865 = vld [vmem:[%s3 + $0x64] sm:$0xf]
      %v1866 = vld [vmem:[%s3 + $0x68] sm:$0xf]
      %v1867 = vld [vmem:[%s3 + $0x6c] sm:$0xf]
      %v1868 = vld [vmem:[%s3 + $0x70] sm:$0xf]
      %v1869 = vld [vmem:[%s3 + $0x74] sm:$0xf]
      %v1870 = vld [vmem:[%s3 + $0x78] sm:$0xf]
      %v1871 = vld [vmem:[%s3 + $0x7c] sm:$0xf]
      %v1872 = vld [vmem:[%s3 + $0x80] sm:$0xf]
      %v1873 = vld [vmem:[%s3 + $0x84] sm:$0xf]
      %v1874 = vld [vmem:[%s3 + $0x88] sm:$0xf]
      %v1875 = vld [vmem:[%s3 + $0x8c] sm:$0xf]
      %v1876 = vld [vmem:[%s4] sm:$0x1]
      %v1878 = vlaneseq
      %v1879 = vshrl.u32 %v1878, 7
      %v1880 = vsub.s32 0, %v1879
      %v1881 = vrot.slane %v1876, %v1880
      %v1919 = vunpack.c.l.b16 %v1840
      %v1920 = vunpack.c.l.b16 %v1841
      %v1921 = vunpack.c.l.b16 %v1842
      %v1922 = vunpack.c.l.b16 %v1843
      %v1923 = vunpack.c.l.b16 %v1844
      %v1924 = vunpack.c.l.b16 %v1845
      %v1925 = vunpack.c.l.b16 %v1846
      %v1926 = vunpack.c.l.b16 %v1847
      %v1927 = vunpack.c.l.b16 %v1848
      %v1928 = vunpack.c.l.b16 %v1849
      %v1929 = vunpack.c.l.b16 %v1850
      %v1930 = vunpack.c.l.b16 %v1851
      %v1931 = vunpack.c.l.b16 %v1852
      %v1932 = vunpack.c.l.b16 %v1853
      %v1933 = vunpack.c.l.b16 %v1854
      %v1934 = vunpack.c.l.b16 %v1855
      %v1935 = vunpack.c.l.b16 %v1856
      %v1936 = vunpack.c.l.b16 %v1857
      %v1937 = vunpack.c.l.b16 %v1858
      %v1938 = vunpack.c.l.b16 %v1859
      %v1939 = vunpack.c.l.b16 %v1860
      %v1940 = vunpack.c.l.b16 %v1861
      %v1941 = vunpack.c.l.b16 %v1862
      %v1942 = vunpack.c.l.b16 %v1863
      %v1943 = vunpack.c.l.b16 %v1864
      %v1944 = vunpack.c.l.b16 %v1865
      %v1945 = vunpack.c.l.b16 %v1866
      %v1946 = vunpack.c.l.b16 %v1867
      %v1947 = vunpack.c.l.b16 %v1868
      %v1948 = vunpack.c.l.b16 %v1869
      %v1949 = vunpack.c.l.b16 %v1870
      %v1950 = vunpack.c.l.b16 %v1871
      %v1951 = vunpack.c.l.b16 %v1872
      %v1952 = vunpack.c.l.b16 %v1873
      %v1953 = vunpack.c.l.b16 %v1874
      %v1954 = vunpack.c.l.b16 %v1875
      %v1955 = vpack.c.b16 %v1920, %v1919
      %v1956 = vpack.c.b16 %v1922, %v1921
      %v1957 = vpack.c.b16 %v1924, %v1923
      %v1958 = vpack.c.b16 %v1926, %v1925
      %v1959 = vpack.c.b16 %v1928, %v1927
      %v1960 = vpack.c.b16 %v1930, %v1929
      %v1961 = vpack.c.b16 %v1932, %v1931
      %v1962 = vpack.c.b16 %v1934, %v1933
      %v1963 = vpack.c.b16 %v1936, %v1935
      %v1964 = vpack.c.b16 %v1938, %v1937
      %v1965 = vpack.c.b16 %v1940, %v1939
      %v1966 = vpack.c.b16 %v1942, %v1941
      %v1967 = vpack.c.b16 %v1944, %v1943
      %v1968 = vpack.c.b16 %v1946, %v1945
      %v1969 = vpack.c.b16 %v1948, %v1947
      %v1970 = vpack.c.b16 %v1950, %v1949
      %v1971 = vpack.c.b16 %v1952, %v1951
      %v1972 = vpack.c.b16 %v1954, %v1953
      %v1992 = vsel %vm1128, %v1794, 0
      %v1995 = vsel %vm1128, %v1797, 0
      %v1998 = vsel %vm1128, %v1800, 0
      %v2001 = vsel %vm1128, %v1803, 0
      %v2004 = vsel %vm1128, %v1806, 0
      %v2007 = vsel %vm1128, %v1809, 0
      %v2010 = vsel %vm1128, %v1812, 0
      %v2013 = vsel %vm1128, %v1815, 0
      %v2016 = vsel %vm1128, %v1818, 0
      %v2019 = vsel %vm1128, %v1821, 0
      %v2022 = vsel %vm1128, %v1824, 0
      %v2025 = vsel %vm1128, %v1827, 0
      %v2028 = vsel %vm1128, %v1830, 0
      %v2031 = vsel %vm1128, %v1833, 0
      %v2034 = vsel %vm1128, %v1836, 0
      %v2037 = vsel %vm1128, %v1839, 0
      %2039 = vmatprep.subr.bf16.mxu0 0
      %2040 = vmatpush1.bf16.msra.mxu0 %v1955
      %2041 = vmatprep.subr.bf16.mxu0 0
      %2042 = vmatpush1.bf16.msra.mxu0 %v1956
      %2043 = vmatprep.subr.bf16.mxu0 0
      %2044 = vmatpush1.bf16.msra.mxu0 %v1957
      %2045 = vmatprep.subr.bf16.mxu0 0
      %2046 = vmatpush1.bf16.msra.mxu0 %v1958
      %2047 = vmatprep.subr.bf16.mxu0 0
      %2048 = vmatpush1.bf16.msra.mxu0 %v1959
      %2049 = vmatprep.subr.bf16.mxu0 0
      %2050 = vmatpush1.bf16.msra.mxu0 %v1960
      %2051 = vmatprep.subr.bf16.mxu0 0
      %2052 = vmatpush1.bf16.msra.mxu0 %v1961
      %2053 = vmatprep.subr.bf16.mxu0 0
      %2054 = vmatpush1.bf16.msra.mxu0 %v1962
      %2055 = vmatprep.subr.bf16.mxu0 0
      %2056 = vmatpush1.bf16.msra.mxu0 %v1963
      %2057 = vmatprep.subr.bf16.mxu0 0
      %2058 = vmatpush1.bf16.msra.mxu0 %v1964
      %2059 = vmatprep.subr.bf16.mxu0 0
      %2060 = vmatpush1.bf16.msra.mxu0 %v1965
      %2061 = vmatprep.subr.bf16.mxu0 0
      %2062 = vmatpush1.bf16.msra.mxu0 %v1966
      %2063 = vmatprep.subr.bf16.mxu0 0
      %2064 = vmatpush1.bf16.msra.mxu0 %v1967
      %2065 = vmatprep.subr.bf16.mxu0 0
      %2066 = vmatpush1.bf16.msra.mxu0 %v1968
      %2067 = vmatprep.subr.bf16.mxu0 0
      %2068 = vmatpush1.bf16.msra.mxu0 %v1969
      %2069 = vmatprep.subr.bf16.mxu0 0
      %2070 = vmatpush1.bf16.msra.mxu0 %v1970
      %2071 = vmatprep.mubr.bf16.mxu0 %v1793
      %2072 = vmatmul.mubr.bf16.gmra.mrb[0].mxu0 %v1792
      %v2073 = vpop.f32.mrb[0].mxu0
      %v2074 = vadd.f32 %v1881, %v2073
      %v2075 = vpop.f32.mrb[0].mxu0
      %v2076 = vpop.f32.mrb[0].mxu0
      %v2077 = vadd.f32 %v1881, %v2076
      %v2078 = vpop.f32.mrb[0].mxu0
      %2079 = vmatprep.mubr.bf16.mxu0 %v1796
      %2080 = vmatmul.mubr.bf16.gmra.mrb[0].mxu0 %v1795
      %v2081 = vpop.f32.mrb[0].mxu0
      %v2082 = vadd.f32 %v1881, %v2081
      %v2083 = vpop.f32.mrb[0].mxu0
      %v2084 = vpop.f32.mrb[0].mxu0
      %v2085 = vadd.f32 %v1881, %v2084
      %v2086 = vpop.f32.mrb[0].mxu0
      %2087 = vmatprep.mubr.bf16.mxu0 %v1799
      %2088 = vmatmul.mubr.bf16.gmra.mrb[0].mxu0 %v1798
      %v2089 = vpop.f32.mrb[0].mxu0
      %v2090 = vadd.f32 %v1881, %v2089
      %v2091 = vpop.f32.mrb[0].mxu0
      %v2092 = vpop.f32.mrb[0].mxu0
      %v2093 = vadd.f32 %v1881, %v2092
      %v2094 = vpop.f32.mrb[0].mxu0
      %2095 = vmatprep.mubr.bf16.mxu0 %v1802
      %2096 = vmatmul.mubr.bf16.gmra.mrb[0].mxu0 %v1801
      %v2097 = vpop.f32.mrb[0].mxu0
      %v2098 = vadd.f32 %v1881, %v2097
      %v2099 = vpop.f32.mrb[0].mxu0
      %v2100 = vpop.f32.mrb[0].mxu0
      %v2101 = vadd.f32 %v1881, %v2100
      %v2102 = vpop.f32.mrb[0].mxu0
      %2103 = vmatprep.mubr.bf16.mxu0 %v1805
      %2104 = vmatmul.mubr.bf16.gmra.mrb[0].mxu0 %v1804
      %v2105 = vpop.f32.mrb[0].mxu0
      %v2106 = vadd.f32 %v1881, %v2105
      %v2107 = vpop.f32.mrb[0].mxu0
      %v2108 = vpop.f32.mrb[0].mxu0
      %v2109 = vadd.f32 %v1881, %v2108
      %v2110 = vpop.f32.mrb[0].mxu0
      %2111 = vmatprep.mubr.bf16.mxu0 %v1808
      %2112 = vmatmul.mubr.bf16.gmra.mrb[0].mxu0 %v1807
      %v2113 = vpop.f32.mrb[0].mxu0
      %v2114 = vadd.f32 %v1881, %v2113
      %v2115 = vpop.f32.mrb[0].mxu0
      %v2116 = vpop.f32.mrb[0].mxu0
      %v2117 = vadd.f32 %v1881, %v2116
      %v2118 = vpop.f32.mrb[0].mxu0
      %2119 = vmatprep.mubr.bf16.mxu0 %v1811
      %2120 = vmatmul.mubr.bf16.gmra.mrb[0].mxu0 %v1810
      %v2121 = vpop.f32.mrb[0].mxu0
      %v2122 = vadd.f32 %v1881, %v2121
      %v2123 = vpop.f32.mrb[0].mxu0
      %v2124 = vpop.f32.mrb[0].mxu0
      %v2125 = vadd.f32 %v1881, %v2124
      %v2126 = vpop.f32.mrb[0].mxu0
      %2127 = vmatprep.mubr.bf16.mxu0 %v1814
      %2128 = vmatmul.mubr.bf16.gmra.mrb[0].mxu0 %v1813
      %v2129 = vpop.f32.mrb[0].mxu0
      %v2130 = vadd.f32 %v1881, %v2129
      %v2131 = vpop.f32.mrb[0].mxu0
      %v2132 = vpop.f32.mrb[0].mxu0
      %v2133 = vadd.f32 %v1881, %v2132
      %v2134 = vpop.f32.mrb[0].mxu0
      %2135 = vmatprep.mubr.bf16.mxu0 %v1817
      %2136 = vmatmul.mubr.bf16.gmra.mrb[0].mxu0 %v1816
      %v2137 = vpop.f32.mrb[0].mxu0
      %v2138 = vadd.f32 %v1881, %v2137
      %v2139 = vpop.f32.mrb[0].mxu0
      %v2140 = vpop.f32.mrb[0].mxu0
      %v2141 = vadd.f32 %v1881, %v2140
      %v2142 = vpop.f32.mrb[0].mxu0
      %2143 = vmatprep.mubr.bf16.mxu0 %v1820
      %2144 = vmatmul.mubr.bf16.gmra.mrb[0].mxu0 %v1819
      %v2145 = vpop.f32.mrb[0].mxu0
      %v2146 = vadd.f32 %v1881, %v2145
      %v2147 = vpop.f32.mrb[0].mxu0
      %v2148 = vpop.f32.mrb[0].mxu0
      %v2149 = vadd.f32 %v1881, %v2148
      %v2150 = vpop.f32.mrb[0].mxu0
      %2151 = vmatprep.mubr.bf16.mxu0 %v1823
      %2152 = vmatmul.mubr.bf16.gmra.mrb[0].mxu0 %v1822
      %v2153 = vpop.f32.mrb[0].mxu0
      %v2154 = vadd.f32 %v1881, %v2153
      %v2155 = vpop.f32.mrb[0].mxu0
      %v2156 = vpop.f32.mrb[0].mxu0
      %v2157 = vadd.f32 %v1881, %v2156
      %v2158 = vpop.f32.mrb[0].mxu0
      %2159 = vmatprep.mubr.bf16.mxu0 %v1826
      %2160 = vmatmul.mubr.bf16.gmra.mrb[0].mxu0 %v1825
      %v2161 = vpop.f32.mrb[0].mxu0
      %v2162 = vadd.f32 %v1881, %v2161
      %v2163 = vpop.f32.mrb[0].mxu0
      %v2164 = vpop.f32.mrb[0].mxu0
      %v2165 = vadd.f32 %v1881, %v2164
      %v2166 = vpop.f32.mrb[0].mxu0
      %2167 = vmatprep.mubr.bf16.mxu0 %v1829
      %2168 = vmatmul.mubr.bf16.gmra.mrb[0].mxu0 %v1828
      %v2169 = vpop.f32.mrb[0].mxu0
      %v2170 = vadd.f32 %v1881, %v2169
      %v2171 = vpop.f32.mrb[0].mxu0
      %v2172 = vpop.f32.mrb[0].mxu0
      %v2173 = vadd.f32 %v1881, %v2172
      %v2174 = vpop.f32.mrb[0].mxu0
      %2175 = vmatprep.mubr.bf16.mxu0 %v1832
      %2176 = vmatmul.mubr.bf16.gmra.mrb[0].mxu0 %v1831
      %v2177 = vpop.f32.mrb[0].mxu0
      %v2178 = vadd.f32 %v1881, %v2177
      %v2179 = vpop.f32.mrb[0].mxu0
      %v2180 = vpop.f32.mrb[0].mxu0
      %v2181 = vadd.f32 %v1881, %v2180
      %v2182 = vpop.f32.mrb[0].mxu0
      %2183 = vmatprep.mubr.bf16.mxu0 %v1835
      %2184 = vmatmul.mubr.bf16.gmra.mrb[0].mxu0 %v1834
      %v2185 = vpop.f32.mrb[0].mxu0
      %v2186 = vadd.f32 %v1881, %v2185
      %v2187 = vpop.f32.mrb[0].mxu0
      %v2188 = vpop.f32.mrb[0].mxu0
      %v2189 = vadd.f32 %v1881, %v2188
      %v2190 = vpop.f32.mrb[0].mxu0
      %2191 = vmatprep.mubr.bf16.mxu0 %v1838
      %2192 = vmatmul.mubr.bf16.gmra.mrb[0].mxu0 %v1837
      %v2193 = vpop.f32.mrb[0].mxu0
      %v2194 = vadd.f32 %v1881, %v2193
      %v2195 = vpop.f32.mrb[0].mxu0
      %v2196 = vpop.f32.mrb[0].mxu0
      %v2197 = vadd.f32 %v1881, %v2196
      %v2198 = vpop.f32.mrb[0].mxu0
      %2199 = vdwg.mxu0
      %2200 = vmatprep.subr.bf16.mxu0 0
      %2201 = vmatpush1.bf16.msra.mxu0 %v1971
      %2202 = vmatprep.subr.bf16.mxu0 0
      %2203 = vmatpush1.bf16.msra.mxu0 %v1972
      %2204 = vmatprep.subr.bf16.mxu0 0
      %2205 = vmatpush1.bf16.msra.mxu0 0
      %2206 = vmatprep.subr.bf16.mxu0 0
      %2207 = vmatpush1.bf16.msra.mxu0 0
      %2208 = vmatprep.subr.bf16.mxu0 0
      %2209 = vmatpush1.bf16.msra.mxu0 0
      %2210 = vmatprep.subr.bf16.mxu0 0
      %2211 = vmatpush1.bf16.msra.mxu0 0
      %2212 = vmatprep.subr.bf16.mxu0 0
      %2213 = vmatpush1.bf16.msra.mxu0 0
      %2214 = vmatprep.subr.bf16.mxu0 0
      %2215 = vmatpush1.bf16.msra.mxu0 0
      %2216 = vmatprep.subr.bf16.mxu0 0
      %2217 = vmatpush1.bf16.msra.mxu0 0
      %2218 = vmatprep.subr.bf16.mxu0 0
      %2219 = vmatpush1.bf16.msra.mxu0 0
      %2220 = vmatprep.subr.bf16.mxu0 0
      %2221 = vmatpush1.bf16.msra.mxu0 0
      %2222 = vmatprep.subr.bf16.mxu0 0
      %2223 = vmatpush1.bf16.msra.mxu0 0
      %2224 = vmatprep.subr.bf16.mxu0 0
      %2225 = vmatpush1.bf16.msra.mxu0 0
      %2226 = vmatprep.subr.bf16.mxu0 0
      %2227 = vmatpush1.bf16.msra.mxu0 0
      %2228 = vmatprep.subr.bf16.mxu0 0
      %2229 = vmatpush1.bf16.msra.mxu0 0
      %2230 = vmatprep.subr.bf16.mxu0 0
      %2231 = vmatpush1.bf16.msra.mxu0 0
      %2232 = vmatprep.mubr.bf16.mxu0 0
      %2233 = vmatmul.mubr.bf16.gmra.mrb[0].mxu0 %v1992
      %v2234 = vpop.f32.mrb[0].mxu0
      %v2235 = vadd.f32 %v2074, %v2234
      %v2236 = vpop.f32.mrb[0].mxu0
      %v2237 = vpop.f32.mrb[0].mxu0
      %v2238 = vadd.f32 %v2077, %v2237
      %v2239 = vpop.f32.mrb[0].mxu0
      %2240 = vmatprep.mubr.bf16.mxu0 0
      %2241 = vmatmul.mubr.bf16.gmra.mrb[0].mxu0 %v1995
      %v2242 = vpop.f32.mrb[0].mxu0
      %v2243 = vadd.f32 %v2082, %v2242
      %v2244 = vpop.f32.mrb[0].mxu0
      %v2245 = vpop.f32.mrb[0].mxu0
      %v2246 = vadd.f32 %v2085, %v2245
      %v2247 = vpop.f32.mrb[0].mxu0
      %2248 = vmatprep.mubr.bf16.mxu0 0
      %2249 = vmatmul.mubr.bf16.gmra.mrb[0].mxu0 %v1998
      %v2250 = vpop.f32.mrb[0].mxu0
      %v2251 = vadd.f32 %v2090, %v2250
      %v2252 = vpop.f32.mrb[0].mxu0
      %v2253 = vpop.f32.mrb[0].mxu0
      %v2254 = vadd.f32 %v2093, %v2253
      %v2255 = vpop.f32.mrb[0].mxu0
      %2256 = vmatprep.mubr.bf16.mxu0 0
      %2257 = vmatmul.mubr.bf16.gmra.mrb[0].mxu0 %v2001
      %v2258 = vpop.f32.mrb[0].mxu0
      %v2259 = vadd.f32 %v2098, %v2258
      %v2260 = vpop.f32.mrb[0].mxu0
      %v2261 = vpop.f32.mrb[0].mxu0
      %v2262 = vadd.f32 %v2101, %v2261
      %v2263 = vpop.f32.mrb[0].mxu0
      %2264 = vmatprep.mubr.bf16.mxu0 0
      %2265 = vmatmul.mubr.bf16.gmra.mrb[0].mxu0 %v2004
      %v2266 = vpop.f32.mrb[0].mxu0
      %v2267 = vadd.f32 %v2106, %v2266
      %v2268 = vpop.f32.mrb[0].mxu0
      %v2269 = vpop.f32.mrb[0].mxu0
      %v2270 = vadd.f32 %v2109, %v2269
      %v2271 = vpop.f32.mrb[0].mxu0
      %2272 = vmatprep.mubr.bf16.mxu0 0
      %2273 = vmatmul.mubr.bf16.gmra.mrb[0].mxu0 %v2007
      %v2274 = vpop.f32.mrb[0].mxu0
      %v2275 = vadd.f32 %v2114, %v2274
      %v2276 = vpop.f32.mrb[0].mxu0
      %v2277 = vpop.f32.mrb[0].mxu0
      %v2278 = vadd.f32 %v2117, %v2277
      %v2279 = vpop.f32.mrb[0].mxu0
      %2280 = vmatprep.mubr.bf16.mxu0 0
      %2281 = vmatmul.mubr.bf16.gmra.mrb[0].mxu0 %v2010
      %v2282 = vpop.f32.mrb[0].mxu0
      %v2283 = vadd.f32 %v2122, %v2282
      %v2284 = vpop.f32.mrb[0].mxu0
      %v2285 = vpop.f32.mrb[0].mxu0
      %v2286 = vadd.f32 %v2125, %v2285
      %v2287 = vpop.f32.mrb[0].mxu0
      %2288 = vmatprep.mubr.bf16.mxu0 0
      %2289 = vmatmul.mubr.bf16.gmra.mrb[0].mxu0 %v2013
      %v2290 = vpop.f32.mrb[0].mxu0
      %v2291 = vadd.f32 %v2130, %v2290
      %v2292 = vpop.f32.mrb[0].mxu0
      %v2293 = vpop.f32.mrb[0].mxu0
      %v2294 = vadd.f32 %v2133, %v2293
      %v2295 = vpop.f32.mrb[0].mxu0
      %2296 = vmatprep.mubr.bf16.mxu0 0
      %2297 = vmatmul.mubr.bf16.gmra.mrb[0].mxu0 %v2016
      %v2298 = vpop.f32.mrb[0].mxu0
      %v2299 = vadd.f32 %v2138, %v2298
      %v2300 = vpop.f32.mrb[0].mxu0
      %v2301 = vpop.f32.mrb[0].mxu0
      %v2302 = vadd.f32 %v2141, %v2301
      %v2303 = vpop.f32.mrb[0].mxu0
      %2304 = vmatprep.mubr.bf16.mxu0 0
      %2305 = vmatmul.mubr.bf16.gmra.mrb[0].mxu0 %v2019
      %v2306 = vpop.f32.mrb[0].mxu0
      %v2307 = vadd.f32 %v2146, %v2306
      %v2308 = vpop.f32.mrb[0].mxu0
      %v2309 = vpop.f32.mrb[0].mxu0
      %v2310 = vadd.f32 %v2149, %v2309
      %v2311 = vpop.f32.mrb[0].mxu0
      %2312 = vmatprep.mubr.bf16.mxu0 0
      %2313 = vmatmul.mubr.bf16.gmra.mrb[0].mxu0 %v2022
      %v2314 = vpop.f32.mrb[0].mxu0
      %v2315 = vadd.f32 %v2154, %v2314
      %v2316 = vpop.f32.mrb[0].mxu0
      %v2317 = vpop.f32.mrb[0].mxu0
      %v2318 = vadd.f32 %v2157, %v2317
      %v2319 = vpop.f32.mrb[0].mxu0
      %2320 = vmatprep.mubr.bf16.mxu0 0
      %2321 = vmatmul.mubr.bf16.gmra.mrb[0].mxu0 %v2025
      %v2322 = vpop.f32.mrb[0].mxu0
      %v2323 = vadd.f32 %v2162, %v2322
      %v2324 = vpop.f32.mrb[0].mxu0
      %v2325 = vpop.f32.mrb[0].mxu0
      %v2326 = vadd.f32 %v2165, %v2325
      %v2327 = vpop.f32.mrb[0].mxu0
      %2328 = vmatprep.mubr.bf16.mxu0 0
      %2329 = vmatmul.mubr.bf16.gmra.mrb[0].mxu0 %v2028
      %v2330 = vpop.f32.mrb[0].mxu0
      %v2331 = vadd.f32 %v2170, %v2330
      %v2332 = vpop.f32.mrb[0].mxu0
      %v2333 = vpop.f32.mrb[0].mxu0
      %v2334 = vadd.f32 %v2173, %v2333
      %v2335 = vpop.f32.mrb[0].mxu0
      %2336 = vmatprep.mubr.bf16.mxu0 0
      %2337 = vmatmul.mubr.bf16.gmra.mrb[0].mxu0 %v2031
      %v2338 = vpop.f32.mrb[0].mxu0
      %v2339 = vadd.f32 %v2178, %v2338
      %v2340 = vpop.f32.mrb[0].mxu0
      %v2341 = vpop.f32.mrb[0].mxu0
      %v2342 = vadd.f32 %v2181, %v2341
      %v2343 = vpop.f32.mrb[0].mxu0
      %2344 = vmatprep.mubr.bf16.mxu0 0
      %2345 = vmatmul.mubr.bf16.gmra.mrb[0].mxu0 %v2034
      %v2346 = vpop.f32.mrb[0].mxu0
      %v2347 = vadd.f32 %v2186, %v2346
      %v2348 = vpop.f32.mrb[0].mxu0
      %v2349 = vpop.f32.mrb[0].mxu0
      %v2350 = vadd.f32 %v2189, %v2349
      %v2351 = vpop.f32.mrb[0].mxu0
      %2352 = vmatprep.mubr.bf16.mxu0 0
      %2353 = vmatmul.mubr.bf16.gmra.mrb[0].mxu0 %v2037
      %v2354 = vpop.f32.mrb[0].mxu0
      %v2355 = vadd.f32 %v2194, %v2354
      %v2356 = vpop.f32.mrb[0].mxu0
      %v2357 = vpop.f32.mrb[0].mxu0
      %v2358 = vadd.f32 %v2197, %v2357
      %v2359 = vpop.f32.mrb[0].mxu0
      %2360 = vdwg.mxu0
      %v2361 = vmax.f32 %v2235, 0.0
      %v2362 = vmax.f32 %v2238, 0.0
      %v2363 = vmax.f32 %v2243, 0.0
      %v2364 = vmax.f32 %v2246, 0.0
      %v2365 = vmax.f32 %v2251, 0.0
      %v2366 = vmax.f32 %v2254, 0.0
      %v2367 = vmax.f32 %v2259, 0.0
      %v2368 = vmax.f32 %v2262, 0.0
      %v2369 = vmax.f32 %v2267, 0.0
      %v2370 = vmax.f32 %v2270, 0.0
      %v2371 = vmax.f32 %v2275, 0.0
      %v2372 = vmax.f32 %v2278, 0.0
      %v2373 = vmax.f32 %v2283, 0.0
      %v2374 = vmax.f32 %v2286, 0.0
      %v2375 = vmax.f32 %v2291, 0.0
      %v2376 = vmax.f32 %v2294, 0.0
      %v2377 = vmax.f32 %v2299, 0.0
      %v2378 = vmax.f32 %v2302, 0.0
      %v2379 = vmax.f32 %v2307, 0.0
      %v2380 = vmax.f32 %v2310, 0.0
      %v2381 = vmax.f32 %v2315, 0.0
      %v2382 = vmax.f32 %v2318, 0.0
      %v2383 = vmax.f32 %v2323, 0.0
      %v2384 = vmax.f32 %v2326, 0.0
      %v2385 = vmax.f32 %v2331, 0.0
      %v2386 = vmax.f32 %v2334, 0.0
      %v2387 = vmax.f32 %v2339, 0.0
      %v2388 = vmax.f32 %v2342, 0.0
      %v2389 = vmax.f32 %v2347, 0.0
      %v2390 = vmax.f32 %v2350, 0.0
      %v2391 = vmax.f32 %v2355, 0.0
      %v2392 = vmax.f32 %v2358, 0.0
      %v2393 = vpack.c.bf16 %v2362, %v2361
      %v2394 = vpack.c.bf16 %v2364, %v2363
      %v2395 = vpack.c.bf16 %v2366, %v2365
      %v2396 = vpack.c.bf16 %v2368, %v2367
      %v2397 = vpack.c.bf16 %v2370, %v2369
      %v2398 = vpack.c.bf16 %v2372, %v2371
      %v2399 = vpack.c.bf16 %v2374, %v2373
      %v2400 = vpack.c.bf16 %v2376, %v2375
      %v2401 = vpack.c.bf16 %v2378, %v2377
      %v2402 = vpack.c.bf16 %v2380, %v2379
      %v2403 = vpack.c.bf16 %v2382, %v2381
      %v2404 = vpack.c.bf16 %v2384, %v2383
      %v2405 = vpack.c.bf16 %v2386, %v2385
      %v2406 = vpack.c.bf16 %v2388, %v2387
      %v2407 = vpack.c.bf16 %v2390, %v2389
      %v2408 = vpack.c.bf16 %v2392, %v2391
      %v2409 = vld [vmem:[%s5] sm:$0xf]
      %v2410 = vld [vmem:[%s5 + $0x4] sm:$0xf]
      %v2411 = vld [vmem:[%s5 + $0x8] sm:$0xf]
      %v2412 = vld [vmem:[%s5 + $0xc] sm:$0xf]
      %v2413 = vld [vmem:[%s5 + $0x10] sm:$0xf]
      %v2414 = vld [vmem:[%s5 + $0x14] sm:$0xf]
      %v2415 = vld [vmem:[%s5 + $0x18] sm:$0xf]
      %v2416 = vld [vmem:[%s5 + $0x1c] sm:$0xf]
      %v2417 = vld [vmem:[%s5 + $0x20] sm:$0xf]
      %v2418 = vld [vmem:[%s5 + $0x24] sm:$0xf]
      %v2419 = vld [vmem:[%s5 + $0x28] sm:$0xf]
      %v2420 = vld [vmem:[%s5 + $0x2c] sm:$0xf]
      %v2421 = vld [vmem:[%s6] sm:$0x1]
      %v2423 = vlaneseq
      %v2424 = vshrl.u32 %v2423, 7
      %v2425 = vsub.s32 0, %v2424
      %v2426 = vrot.slane %v2421, %v2425
      %v2440 = vunpack.c.l.b16 %v2409
      %v2441 = vunpack.c.l.b16 %v2410
      %v2442 = vunpack.c.l.b16 %v2411
      %v2443 = vunpack.c.l.b16 %v2412
      %v2444 = vunpack.c.l.b16 %v2413
      %v2445 = vunpack.c.l.b16 %v2414
      %v2446 = vunpack.c.l.b16 %v2415
      %v2447 = vunpack.c.l.b16 %v2416
      %v2448 = vunpack.c.l.b16 %v2417
      %v2449 = vunpack.c.l.b16 %v2418
      %v2450 = vunpack.c.l.b16 %v2419
      %v2451 = vunpack.c.l.b16 %v2420
      %v2452 = vpack.c.b16 %v2441, %v2440
      %v2453 = vpack.c.b16 %v2443, %v2442
      %v2454 = vpack.c.b16 %v2445, %v2444
      %v2455 = vpack.c.b16 %v2447, %v2446
      %v2456 = vpack.c.b16 %v2449, %v2448
      %v2457 = vpack.c.b16 %v2451, %v2450
      %vm2464 = vcmask 785408
      %v2466 = vsel %vm2464, %v2393, 0
      %v2469 = vsel %vm2464, %v2394, 0
      %v2472 = vsel %vm2464, %v2395, 0
      %v2475 = vsel %vm2464, %v2396, 0
      %v2478 = vsel %vm2464, %v2397, 0
      %v2481 = vsel %vm2464, %v2398, 0
      %v2484 = vsel %vm2464, %v2399, 0
      %v2487 = vsel %vm2464, %v2400, 0
      %v2490 = vsel %vm2464, %v2401, 0
      %v2493 = vsel %vm2464, %v2402, 0
      %v2496 = vsel %vm2464, %v2403, 0
      %v2499 = vsel %vm2464, %v2404, 0
      %v2502 = vsel %vm2464, %v2405, 0
      %v2505 = vsel %vm2464, %v2406, 0
      %v2508 = vsel %vm2464, %v2407, 0
      %v2511 = vsel %vm2464, %v2408, 0
      %2513 = vmatprep.subr.bf16.mxu0 0
      %2514 = vmatpush1.bf16.msra.mxu0 %v2452
      %2515 = vmatprep.subr.bf16.mxu0 0
      %2516 = vmatpush1.bf16.msra.mxu0 %v2453
      %2517 = vmatprep.subr.bf16.mxu0 0
      %2518 = vmatpush1.bf16.msra.mxu0 %v2454
      %2519 = vmatprep.subr.bf16.mxu0 0
      %2520 = vmatpush1.bf16.msra.mxu0 %v2455
      %2521 = vmatprep.subr.bf16.mxu0 0
      %2522 = vmatpush1.bf16.msra.mxu0 %v2456
      %2523 = vmatprep.subr.bf16.mxu0 0
      %2524 = vmatpush1.bf16.msra.mxu0 %v2457
      %2525 = vmatprep.subr.bf16.mxu0 0
      %2526 = vmatpush1.bf16.msra.mxu0 0
      %2527 = vmatprep.subr.bf16.mxu0 0
      %2528 = vmatpush1.bf16.msra.mxu0 0
      %2529 = vmatprep.subr.bf16.mxu0 0
      %2530 = vmatpush1.bf16.msra.mxu0 0
      %2531 = vmatprep.subr.bf16.mxu0 0
      %2532 = vmatpush1.bf16.msra.mxu0 0
      %2533 = vmatprep.subr.bf16.mxu0 0
      %2534 = vmatpush1.bf16.msra.mxu0 0
      %2535 = vmatprep.subr.bf16.mxu0 0
      %2536 = vmatpush1.bf16.msra.mxu0 0
      %2537 = vmatprep.subr.bf16.mxu0 0
      %2538 = vmatpush1.bf16.msra.mxu0 0
      %2539 = vmatprep.subr.bf16.mxu0 0
      %2540 = vmatpush1.bf16.msra.mxu0 0
      %2541 = vmatprep.subr.bf16.mxu0 0
      %2542 = vmatpush1.bf16.msra.mxu0 0
      %2543 = vmatprep.subr.bf16.mxu0 0
      %2544 = vmatpush1.bf16.msra.mxu0 0
      %2545 = vmatprep.mubr.bf16.mxu0 0
      %2546 = vmatmul.mubr.bf16.gmra.mrb[0].mxu0 %v2466
      %v2547 = vpop.f32.mrb[0].mxu0
      %v2548 = vadd.f32 %v2426, %v2547
      %v2549 = vpop.f32.mrb[0].mxu0
      %v2550 = vpop.f32.mrb[0].mxu0
      %v2551 = vadd.f32 %v2426, %v2550
      %v2552 = vpop.f32.mrb[0].mxu0
      %2553 = vmatprep.mubr.bf16.mxu0 0
      %2554 = vmatmul.mubr.bf16.gmra.mrb[0].mxu0 %v2469
      %v2555 = vpop.f32.mrb[0].mxu0
      %v2556 = vadd.f32 %v2426, %v2555
      %v2557 = vpop.f32.mrb[0].mxu0
      %v2558 = vpop.f32.mrb[0].mxu0
      %v2559 = vadd.f32 %v2426, %v2558
      %v2560 = vpop.f32.mrb[0].mxu0
      %2561 = vmatprep.mubr.bf16.mxu0 0
      %2562 = vmatmul.mubr.bf16.gmra.mrb[0].mxu0 %v2472
      %v2563 = vpop.f32.mrb[0].mxu0
      %v2564 = vadd.f32 %v2426, %v2563
      %v2565 = vpop.f32.mrb[0].mxu0
      %v2566 = vpop.f32.mrb[0].mxu0
      %v2567 = vadd.f32 %v2426, %v2566
      %v2568 = vpop.f32.mrb[0].mxu0
      %2569 = vmatprep.mubr.bf16.mxu0 0
      %2570 = vmatmul.mubr.bf16.gmra.mrb[0].mxu0 %v2475
      %v2571 = vpop.f32.mrb[0].mxu0
      %v2572 = vadd.f32 %v2426, %v2571
      %v2573 = vpop.f32.mrb[0].mxu0
      %v2574 = vpop.f32.mrb[0].mxu0
      %v2575 = vadd.f32 %v2426, %v2574
      %v2576 = vpop.f32.mrb[0].mxu0
      %2577 = vmatprep.mubr.bf16.mxu0 0
      %2578 = vmatmul.mubr.bf16.gmra.mrb[0].mxu0 %v2478
      %v2579 = vpop.f32.mrb[0].mxu0
      %v2580 = vadd.f32 %v2426, %v2579
      %v2581 = vpop.f32.mrb[0].mxu0
      %v2582 = vpop.f32.mrb[0].mxu0
      %v2583 = vadd.f32 %v2426, %v2582
      %v2584 = vpop.f32.mrb[0].mxu0
      %2585 = vmatprep.mubr.bf16.mxu0 0
      %2586 = vmatmul.mubr.bf16.gmra.mrb[0].mxu0 %v2481
      %v2587 = vpop.f32.mrb[0].mxu0
      %v2588 = vadd.f32 %v2426, %v2587
      %v2589 = vpop.f32.mrb[0].mxu0
      %v2590 = vpop.f32.mrb[0].mxu0
      %v2591 = vadd.f32 %v2426, %v2590
      %v2592 = vpop.f32.mrb[0].mxu0
      %2593 = vmatprep.mubr.bf16.mxu0 0
      %2594 = vmatmul.mubr.bf16.gmra.mrb[0].mxu0 %v2484
      %v2595 = vpop.f32.mrb[0].mxu0
      %v2596 = vadd.f32 %v2426, %v2595
      %v2597 = vpop.f32.mrb[0].mxu0
      %v2598 = vpop.f32.mrb[0].mxu0
      %v2599 = vadd.f32 %v2426, %v2598
      %v2600 = vpop.f32.mrb[0].mxu0
      %2601 = vmatprep.mubr.bf16.mxu0 0
      %2602 = vmatmul.mubr.bf16.gmra.mrb[0].mxu0 %v2487
      %v2603 = vpop.f32.mrb[0].mxu0
      %v2604 = vadd.f32 %v2426, %v2603
      %v2605 = vpop.f32.mrb[0].mxu0
      %v2606 = vpop.f32.mrb[0].mxu0
      %v2607 = vadd.f32 %v2426, %v2606
      %v2608 = vpop.f32.mrb[0].mxu0
      %2609 = vmatprep.mubr.bf16.mxu0 0
      %2610 = vmatmul.mubr.bf16.gmra.mrb[0].mxu0 %v2490
      %v2611 = vpop.f32.mrb[0].mxu0
      %v2612 = vadd.f32 %v2426, %v2611
      %v2613 = vpop.f32.mrb[0].mxu0
      %v2614 = vpop.f32.mrb[0].mxu0
      %v2615 = vadd.f32 %v2426, %v2614
      %v2616 = vpop.f32.mrb[0].mxu0
      %2617 = vmatprep.mubr.bf16.mxu0 0
      %2618 = vmatmul.mubr.bf16.gmra.mrb[0].mxu0 %v2493
      %v2619 = vpop.f32.mrb[0].mxu0
      %v2620 = vadd.f32 %v2426, %v2619
      %v2621 = vpop.f32.mrb[0].mxu0
      %v2622 = vpop.f32.mrb[0].mxu0
      %v2623 = vadd.f32 %v2426, %v2622
      %v2624 = vpop.f32.mrb[0].mxu0
      %2625 = vmatprep.mubr.bf16.mxu0 0
      %2626 = vmatmul.mubr.bf16.gmra.mrb[0].mxu0 %v2496
      %v2627 = vpop.f32.mrb[0].mxu0
      %v2628 = vadd.f32 %v2426, %v2627
      %v2629 = vpop.f32.mrb[0].mxu0
      %v2630 = vpop.f32.mrb[0].mxu0
      %v2631 = vadd.f32 %v2426, %v2630
      %v2632 = vpop.f32.mrb[0].mxu0
      %2633 = vmatprep.mubr.bf16.mxu0 0
      %2634 = vmatmul.mubr.bf16.gmra.mrb[0].mxu0 %v2499
      %v2635 = vpop.f32.mrb[0].mxu0
      %v2636 = vadd.f32 %v2426, %v2635
      %v2637 = vpop.f32.mrb[0].mxu0
      %v2638 = vpop.f32.mrb[0].mxu0
      %v2639 = vadd.f32 %v2426, %v2638
      %v2640 = vpop.f32.mrb[0].mxu0
      %2641 = vmatprep.mubr.bf16.mxu0 0
      %2642 = vmatmul.mubr.bf16.gmra.mrb[0].mxu0 %v2502
      %v2643 = vpop.f32.mrb[0].mxu0
      %v2644 = vadd.f32 %v2426, %v2643
      %v2645 = vpop.f32.mrb[0].mxu0
      %v2646 = vpop.f32.mrb[0].mxu0
      %v2647 = vadd.f32 %v2426, %v2646
      %v2648 = vpop.f32.mrb[0].mxu0
      %2649 = vmatprep.mubr.bf16.mxu0 0
      %2650 = vmatmul.mubr.bf16.gmra.mrb[0].mxu0 %v2505
      %v2651 = vpop.f32.mrb[0].mxu0
      %v2652 = vadd.f32 %v2426, %v2651
      %v2653 = vpop.f32.mrb[0].mxu0
      %v2654 = vpop.f32.mrb[0].mxu0
      %v2655 = vadd.f32 %v2426, %v2654
      %v2656 = vpop.f32.mrb[0].mxu0
      %2657 = vmatprep.mubr.bf16.mxu0 0
      %2658 = vmatmul.mubr.bf16.gmra.mrb[0].mxu0 %v2508
      %v2659 = vpop.f32.mrb[0].mxu0
      %v2660 = vadd.f32 %v2426, %v2659
      %v2661 = vpop.f32.mrb[0].mxu0
      %v2662 = vpop.f32.mrb[0].mxu0
      %v2663 = vadd.f32 %v2426, %v2662
      %v2664 = vpop.f32.mrb[0].mxu0
      %2665 = vmatprep.mubr.bf16.mxu0 0
      %2666 = vmatmul.mubr.bf16.gmra.mrb[0].mxu0 %v2511
      %v2667 = vpop.f32.mrb[0].mxu0
      %v2668 = vadd.f32 %v2426, %v2667
      %v2669 = vpop.f32.mrb[0].mxu0
      %v2670 = vpop.f32.mrb[0].mxu0
      %v2671 = vadd.f32 %v2426, %v2670
      %v2672 = vpop.f32.mrb[0].mxu0
      %2673 = vdwg.mxu0
      %v2690 = vunpack.c.l.b16 %v2393
      %v2691 = vunpack.c.h.b16 %v2393
      %v2692 = vunpack.c.l.b16 %v2394
      %v2693 = vunpack.c.h.b16 %v2394
      %v2694 = vunpack.c.l.b16 %v2395
      %v2695 = vunpack.c.h.b16 %v2395
      %v2696 = vunpack.c.l.b16 %v2396
      %v2697 = vunpack.c.h.b16 %v2396
      %v2698 = vunpack.c.l.b16 %v2397
      %v2699 = vunpack.c.h.b16 %v2397
      %v2700 = vunpack.c.l.b16 %v2398
      %v2701 = vunpack.c.h.b16 %v2398
      %v2702 = vunpack.c.l.b16 %v2399
      %v2703 = vunpack.c.h.b16 %v2399
      %v2704 = vunpack.c.l.b16 %v2400
      %v2705 = vunpack.c.h.b16 %v2400
      %v2706 = vunpack.c.l.b16 %v2401
      %v2707 = vunpack.c.h.b16 %v2401
      %v2708 = vunpack.c.l.b16 %v2402
      %v2709 = vunpack.c.h.b16 %v2402
      %v2710 = vunpack.c.l.b16 %v2403
      %v2711 = vunpack.c.h.b16 %v2403
      %v2712 = vunpack.c.l.b16 %v2404
      %v2713 = vunpack.c.h.b16 %v2404
      %v2714 = vunpack.c.l.b16 %v2405
      %v2715 = vunpack.c.h.b16 %v2405
      %v2716 = vunpack.c.l.b16 %v2406
      %v2717 = vunpack.c.h.b16 %v2406
      %v2718 = vunpack.c.l.b16 %v2407
      %v2719 = vunpack.c.h.b16 %v2407
      %v2720 = vunpack.c.l.b16 %v2408
      %v2721 = vunpack.c.h.b16 %v2408
      %v2722 = vpack.c.b16 %v2690, %v2690
      %v2723 = vpack.c.b16 %v2691, %v2691
      %v2724 = vpack.c.b16 %v2692, %v2692
      %v2725 = vpack.c.b16 %v2693, %v2693
      %v2726 = vpack.c.b16 %v2694, %v2694
      %v2727 = vpack.c.b16 %v2695, %v2695
      %v2728 = vpack.c.b16 %v2696, %v2696
      %v2729 = vpack.c.b16 %v2697, %v2697
      %v2730 = vpack.c.b16 %v2698, %v2698
      %v2731 = vpack.c.b16 %v2699, %v2699
      %v2732 = vpack.c.b16 %v2700, %v2700
      %v2733 = vpack.c.b16 %v2701, %v2701
      %v2734 = vpack.c.b16 %v2702, %v2702
      %v2735 = vpack.c.b16 %v2703, %v2703
      %v2736 = vpack.c.b16 %v2704, %v2704
      %v2737 = vpack.c.b16 %v2705, %v2705
      %v2738 = vpack.c.b16 %v2706, %v2706
      %v2739 = vpack.c.b16 %v2707, %v2707
      %v2740 = vpack.c.b16 %v2708, %v2708
      %v2741 = vpack.c.b16 %v2709, %v2709
      %v2742 = vpack.c.b16 %v2710, %v2710
      %v2743 = vpack.c.b16 %v2711, %v2711
      %v2744 = vpack.c.b16 %v2712, %v2712
      %v2745 = vpack.c.b16 %v2713, %v2713
      %v2746 = vpack.c.b16 %v2714, %v2714
      %v2747 = vpack.c.b16 %v2715, %v2715
      %v2748 = vpack.c.b16 %v2716, %v2716
      %v2749 = vpack.c.b16 %v2717, %v2717
      %v2750 = vpack.c.b16 %v2718, %v2718
      %v2751 = vpack.c.b16 %v2719, %v2719
      %v2752 = vpack.c.b16 %v2720, %v2720
      %v2753 = vpack.c.b16 %v2721, %v2721
      %vm2786 = vcmask 781312
      %2787 = vst.msk [vmem:[%s487] sm:$0xf] %vm2786, %v2722
      %2788 = vst.msk [vmem:[%s487 + $0x4] sm:$0xf] %vm2786, %v2723
      %2789 = vst.msk [vmem:[%s487 + $0x8] sm:$0xf] %vm2786, %v2724
      %2790 = vst.msk [vmem:[%s487 + $0xc] sm:$0xf] %vm2786, %v2725
      %2791 = vst.msk [vmem:[%s487 + $0x10] sm:$0xf] %vm2786, %v2726
      %2792 = vst.msk [vmem:[%s487 + $0x14] sm:$0xf] %vm2786, %v2727
      %2793 = vst.msk [vmem:[%s487 + $0x18] sm:$0xf] %vm2786, %v2728
      %2794 = vst.msk [vmem:[%s487 + $0x1c] sm:$0xf] %vm2786, %v2729
      %2795 = vst.msk [vmem:[%s487 + $0x20] sm:$0xf] %vm2786, %v2730
      %2796 = vst.msk [vmem:[%s487 + $0x24] sm:$0xf] %vm2786, %v2731
      %2797 = vst.msk [vmem:[%s487 + $0x28] sm:$0xf] %vm2786, %v2732
      %2798 = vst.msk [vmem:[%s487 + $0x2c] sm:$0xf] %vm2786, %v2733
      %2799 = vst.msk [vmem:[%s487 + $0x30] sm:$0xf] %vm2786, %v2734
      %2800 = vst.msk [vmem:[%s487 + $0x34] sm:$0xf] %vm2786, %v2735
      %2801 = vst.msk [vmem:[%s487 + $0x38] sm:$0xf] %vm2786, %v2736
      %2802 = vst.msk [vmem:[%s487 + $0x3c] sm:$0xf] %vm2786, %v2737
      %2803 = vst.msk [vmem:[%s487 + $0x40] sm:$0xf] %vm2786, %v2738
      %2804 = vst.msk [vmem:[%s487 + $0x44] sm:$0xf] %vm2786, %v2739
      %2805 = vst.msk [vmem:[%s487 + $0x48] sm:$0xf] %vm2786, %v2740
      %2806 = vst.msk [vmem:[%s487 + $0x4c] sm:$0xf] %vm2786, %v2741
      %2807 = vst.msk [vmem:[%s487 + $0x50] sm:$0xf] %vm2786, %v2742
      %2808 = vst.msk [vmem:[%s487 + $0x54] sm:$0xf] %vm2786, %v2743
      %2809 = vst.msk [vmem:[%s487 + $0x58] sm:$0xf] %vm2786, %v2744
      %2810 = vst.msk [vmem:[%s487 + $0x5c] sm:$0xf] %vm2786, %v2745
      %2811 = vst.msk [vmem:[%s487 + $0x60] sm:$0xf] %vm2786, %v2746
      %2812 = vst.msk [vmem:[%s487 + $0x64] sm:$0xf] %vm2786, %v2747
      %2813 = vst.msk [vmem:[%s487 + $0x68] sm:$0xf] %vm2786, %v2748
      %2814 = vst.msk [vmem:[%s487 + $0x6c] sm:$0xf] %vm2786, %v2749
      %2815 = vst.msk [vmem:[%s487 + $0x70] sm:$0xf] %vm2786, %v2750
      %2816 = vst.msk [vmem:[%s487 + $0x74] sm:$0xf] %vm2786, %v2751
      %2817 = vst.msk [vmem:[%s487 + $0x78] sm:$0xf] %vm2786, %v2752
      %2818 = vst.msk [vmem:[%s487 + $0x7c] sm:$0xf] %vm2786, %v2753
      %v2819 = vpack.c.bf16 %v2551, %v2548
      %v2820 = vpack.c.bf16 %v2559, %v2556
      %v2821 = vpack.c.bf16 %v2567, %v2564
      %v2822 = vpack.c.bf16 %v2575, %v2572
      %v2823 = vpack.c.bf16 %v2583, %v2580
      %v2824 = vpack.c.bf16 %v2591, %v2588
      %v2825 = vpack.c.bf16 %v2599, %v2596
      %v2826 = vpack.c.bf16 %v2607, %v2604
      %v2827 = vpack.c.bf16 %v2615, %v2612
      %v2828 = vpack.c.bf16 %v2623, %v2620
      %v2829 = vpack.c.bf16 %v2631, %v2628
      %v2830 = vpack.c.bf16 %v2639, %v2636
      %v2831 = vpack.c.bf16 %v2647, %v2644
      %v2832 = vpack.c.bf16 %v2655, %v2652
      %v2833 = vpack.c.bf16 %v2663, %v2660
      %v2834 = vpack.c.bf16 %v2671, %v2668
      %v2851 = vunpack.c.l.b16 %v2819
      %v2852 = vunpack.c.h.b16 %v2819
      %v2853 = vunpack.c.l.b16 %v2820
      %v2854 = vunpack.c.h.b16 %v2820
      %v2855 = vunpack.c.l.b16 %v2821
      %v2856 = vunpack.c.h.b16 %v2821
      %v2857 = vunpack.c.l.b16 %v2822
      %v2858 = vunpack.c.h.b16 %v2822
      %v2859 = vunpack.c.l.b16 %v2823
      %v2860 = vunpack.c.h.b16 %v2823
      %v2861 = vunpack.c.l.b16 %v2824
      %v2862 = vunpack.c.h.b16 %v2824
      %v2863 = vunpack.c.l.b16 %v2825
      %v2864 = vunpack.c.h.b16 %v2825
      %v2865 = vunpack.c.l.b16 %v2826
      %v2866 = vunpack.c.h.b16 %v2826
      %v2867 = vunpack.c.l.b16 %v2827
      %v2868 = vunpack.c.h.b16 %v2827
      %v2869 = vunpack.c.l.b16 %v2828
      %v2870 = vunpack.c.h.b16 %v2828
      %v2871 = vunpack.c.l.b16 %v2829
      %v2872 = vunpack.c.h.b16 %v2829
      %v2873 = vunpack.c.l.b16 %v2830
      %v2874 = vunpack.c.h.b16 %v2830
      %v2875 = vunpack.c.l.b16 %v2831
      %v2876 = vunpack.c.h.b16 %v2831
      %v2877 = vunpack.c.l.b16 %v2832
      %v2878 = vunpack.c.h.b16 %v2832
      %v2879 = vunpack.c.l.b16 %v2833
      %v2880 = vunpack.c.h.b16 %v2833
      %v2881 = vunpack.c.l.b16 %v2834
      %v2882 = vunpack.c.h.b16 %v2834
      %v2883 = vpack.c.b16 %v2851, %v2851
      %v2884 = vpack.c.b16 %v2852, %v2852
      %v2885 = vpack.c.b16 %v2853, %v2853
      %v2886 = vpack.c.b16 %v2854, %v2854
      %v2887 = vpack.c.b16 %v2855, %v2855
      %v2888 = vpack.c.b16 %v2856, %v2856
      %v2889 = vpack.c.b16 %v2857, %v2857
      %v2890 = vpack.c.b16 %v2858, %v2858
      %v2891 = vpack.c.b16 %v2859, %v2859
      %v2892 = vpack.c.b16 %v2860, %v2860
      %v2893 = vpack.c.b16 %v2861, %v2861
      %v2894 = vpack.c.b16 %v2862, %v2862
      %v2895 = vpack.c.b16 %v2863, %v2863
      %v2896 = vpack.c.b16 %v2864, %v2864
      %v2897 = vpack.c.b16 %v2865, %v2865
      %v2898 = vpack.c.b16 %v2866, %v2866
      %v2899 = vpack.c.b16 %v2867, %v2867
      %v2900 = vpack.c.b16 %v2868, %v2868
      %v2901 = vpack.c.b16 %v2869, %v2869
      %v2902 = vpack.c.b16 %v2870, %v2870
      %v2903 = vpack.c.b16 %v2871, %v2871
      %v2904 = vpack.c.b16 %v2872, %v2872
      %v2905 = vpack.c.b16 %v2873, %v2873
      %v2906 = vpack.c.b16 %v2874, %v2874
      %v2907 = vpack.c.b16 %v2875, %v2875
      %v2908 = vpack.c.b16 %v2876, %v2876
      %v2909 = vpack.c.b16 %v2877, %v2877
      %v2910 = vpack.c.b16 %v2878, %v2878
      %v2911 = vpack.c.b16 %v2879, %v2879
      %v2912 = vpack.c.b16 %v2880, %v2880
      %v2913 = vpack.c.b16 %v2881, %v2881
      %v2914 = vpack.c.b16 %v2882, %v2882
      %2947 = vst [vmem:[%s498] sm:$0xf] %v2883
      %2948 = vst [vmem:[%s498 + $0x4] sm:$0xf] %v2884
      %2949 = vst [vmem:[%s498 + $0x8] sm:$0xf] %v2885
      %2950 = vst [vmem:[%s498 + $0xc] sm:$0xf] %v2886
      %2951 = vst [vmem:[%s498 + $0x10] sm:$0xf] %v2887
      %2952 = vst [vmem:[%s498 + $0x14] sm:$0xf] %v2888
      %2953 = vst [vmem:[%s498 + $0x18] sm:$0xf] %v2889
      %2954 = vst [vmem:[%s498 + $0x1c] sm:$0xf] %v2890
      %2955 = vst [vmem:[%s498 + $0x20] sm:$0xf] %v2891
      %2956 = vst [vmem:[%s498 + $0x24] sm:$0xf] %v2892
      %2957 = vst [vmem:[%s498 + $0x28] sm:$0xf] %v2893
      %2958 = vst [vmem:[%s498 + $0x2c] sm:$0xf] %v2894
      %2959 = vst [vmem:[%s498 + $0x30] sm:$0xf] %v2895
      %2960 = vst [vmem:[%s498 + $0x34] sm:$0xf] %v2896
      %2961 = vst [vmem:[%s498 + $0x38] sm:$0xf] %v2897
      %2962 = vst [vmem:[%s498 + $0x3c] sm:$0xf] %v2898
      %2963 = vst [vmem:[%s498 + $0x40] sm:$0xf] %v2899
      %2964 = vst [vmem:[%s498 + $0x44] sm:$0xf] %v2900
      %2965 = vst [vmem:[%s498 + $0x48] sm:$0xf] %v2901
      %2966 = vst [vmem:[%s498 + $0x4c] sm:$0xf] %v2902
      %2967 = vst [vmem:[%s498 + $0x50] sm:$0xf] %v2903
      %2968 = vst [vmem:[%s498 + $0x54] sm:$0xf] %v2904
      %2969 = vst [vmem:[%s498 + $0x58] sm:$0xf] %v2905
      %2970 = vst [vmem:[%s498 + $0x5c] sm:$0xf] %v2906
      %2971 = vst [vmem:[%s498 + $0x60] sm:$0xf] %v2907
      %2972 = vst [vmem:[%s498 + $0x64] sm:$0xf] %v2908
      %2973 = vst [vmem:[%s498 + $0x68] sm:$0xf] %v2909
      %2974 = vst [vmem:[%s498 + $0x6c] sm:$0xf] %v2910
      %2975 = vst [vmem:[%s498 + $0x70] sm:$0xf] %v2911
      %2976 = vst [vmem:[%s498 + $0x74] sm:$0xf] %v2912
      %2977 = vst [vmem:[%s498 + $0x78] sm:$0xf] %v2913
      %2978 = vst [vmem:[%s498 + $0x7c] sm:$0xf] %v2914
      %s2979 = smul.u32 16, %s25
      %p2980 = scmp.lt.s32.totalorder %s24, 1
      %s2981 = scalar_select %p2980, %s24, 1
      %p2982 = scmp.lt.s32.totalorder %s2979, 15
      %s2983 = scalar_select %p2982, %s2979, 15
      %s2984 = smul.addr %s2983, 2
      %s2985 = smul.addr %s2981, 32
      %s2986 = sadd.s32 %s2984, %s2985
      %s2987 = smul.addr %s2986, 4
      %s2988 = scalar_lea.vmem %s7, %s2987
      %s2989 = smul.u32 16, %s25
      %p2990 = scmp.lt.s32.totalorder %s24, 1
      %s2991 = scalar_select %p2990, %s24, 1
      %p2992 = scmp.lt.s32.totalorder %s2989, 15
      %s2993 = scalar_select %p2992, %s2989, 15
      %s2994 = smul.addr %s2993, 2
      %s2995 = smul.addr %s2991, 32
      %s2996 = sadd.s32 %s2994, %s2995
      %s2997 = smul.addr %s2996, 4
      %s2998 = scalar_lea.vmem %s8, %s2997
      // Predicated region
      $region49: #{_rpn_head_level.1} parent=47 // pred_check
        %p2999 = pneg %p236
      $region50: #{_rpn_head_level.1} parent=47 // pred_check_branch
        %3001 = sbr.rel (%p2999) target = $region52
      $region51: #{_rpn_head_level.1} parent=47 // pred_region
        %s3002 = smul.u32 16, %s25
      $region52: #{_rpn_head_level.1} parent=47 // pred_fallthru
        _
      // Predicated region
      $region53: #{_rpn_head_level.1} parent=47 // pred_check
        %p3003 = pneg %p264
      $region54: #{_rpn_head_level.1} parent=47 // pred_check_branch
        %3005 = sbr.rel (%p3003) target = $region56
      $region55: #{_rpn_head_level.1} parent=47 // pred_region
        %s3006 = smul.u32 16, %s25
      $region56: #{_rpn_head_level.1} parent=47 // pred_fallthru
        _
    $region48: #{_rpn_head_level.1} parent=5 // pred_fallthru
      _
    %p3007 = scmp.le.s32.totalorder 2, %s15
    // Predicated region
    $region57: #{_rpn_head_level.1} parent=5 // pred_check
      %p3008 = pneg %p3007
    $region58: #{_rpn_head_level.1} parent=5 // pred_check_branch
      %3010 = sbr.rel (%p3008) target = $region60
    $region59: #{_rpn_head_level.1} parent=5 // pred_region
      %s3011 = ssub.s32 %s15, 2
      // Predicated region
      $region61: #{_rpn_head_level.1} parent=59 // pred_check
        %p3012 = pneg %p242
      $region62: #{_rpn_head_level.1} parent=59 // pred_check_branch
        %3014 = sbr.rel (%p3012) target = $region64
      $region63: #{_rpn_head_level.1} parent=59 // pred_region
        %s3015 = smul.u32 16, %s27
        %p3016 = scmp.lt.s32.totalorder %s26, 1
        %s3017 = scalar_select %p3016, %s26, 1
        %p3018 = scmp.lt.s32.totalorder %s3015, 15
        %s3019 = scalar_select %p3018, %s3015, 15
        %s3020 = smul.addr %s3019, 2
        %s3021 = smul.addr %s3017, 32
        %s3022 = sadd.s32 %s3020, %s3021
        %s3023 = smul.addr %s3022, 4
        %s3024 = scalar_lea.vmem %s7, %s3023
      $region64: #{_rpn_head_level.1} parent=59 // pred_fallthru
        _
      // Predicated region
      $region65: #{_rpn_head_level.1} parent=59 // pred_check
        %p3025 = pneg %p270
      $region66: #{_rpn_head_level.1} parent=59 // pred_check_branch
        %3027 = sbr.rel (%p3025) target = $region68
      $region67: #{_rpn_head_level.1} parent=59 // pred_region
        %s3028 = smul.u32 16, %s27
        %p3029 = scmp.lt.s32.totalorder %s26, 1
        %s3030 = scalar_select %p3029, %s26, 1
        %p3031 = scmp.lt.s32.totalorder %s3028, 15
        %s3032 = scalar_select %p3031, %s3028, 15
        %s3033 = smul.addr %s3032, 2
        %s3034 = smul.addr %s3030, 32
        %s3035 = sadd.s32 %s3033, %s3034
        %s3036 = smul.addr %s3035, 4
        %s3037 = scalar_lea.vmem %s8, %s3036
      $region68: #{_rpn_head_level.1} parent=59 // pred_fallthru
        _
    $region60: #{_rpn_head_level.1} parent=5 // pred_fallthru
      _
  $region6: #{_rpn_head_level.1} parent=0 // loop_footer
    %s19 = sadd.s32 1, %s15
  $region7: #{_rpn_head_level.1} parent=0 // loop_footer_branch
    %14 = sbr.rel target = $region3
  $region8: #{_rpn_head_level.1} parent=0 // loop_exit
    _

// kernel: _rpn_head_level.1
$region0: #{_rpn_head_level.1}
  #allocation0 [shape = 'u32[]', space=smem, size = 0x4, offset = 0x4, fixed_abs, tag = 'smem constant byte address 0x4 - core index']
  #allocation1 [shape = 'u32[144,128]{1,0:T(1,128)}', space=vmem, size = 0x12000, scoped, tag = 'internal scratch']
  #allocation2 [shape = 'bf16[16,16,288]{2,1,0:T(16,128)(2,1)}', space=vmem, size = 0x30000, scoped, tag = 'scratch operand']
  %s0 = inlined_call_operand.vmem [shape: bf16[2,16,16,32], index: 0, kind: input, shape index: {}, may-alias: {0,1,2}]
  %s1 = inlined_call_operand.vmem [shape: bf16[2,16,16,32], index: 1, kind: input, shape index: {}, may-alias: {0,1,2}]
  %s2 = inlined_call_operand.vmem [shape: bf16[2,16,16,32], index: 2, kind: input, shape index: {}, may-alias: {0,1,2}]
  %s3 = inlined_call_operand.vmem [shape: bf16[288,96], index: 3, kind: input, shape index: {}]
  %s4 = inlined_call_operand.vmem [shape: f32[1,96], index: 4, kind: input, shape index: {}]
  %s5 = inlined_call_operand.vmem [shape: bf16[96,128], index: 5, kind: input, shape index: {}]
  %s6 = inlined_call_operand.vmem [shape: f32[1,128], index: 6, kind: input, shape index: {}]
  %s7 = inlined_call_operand.vmem [shape: bf16[2,16,16,96], index: 7, kind: output, shape index: {0}]
  %s8 = inlined_call_operand.vmem [shape: bf16[2,16,16,128], index: 8, kind: output, shape index: {1}]
  %9 = xla_tuple %s7, %s8
  %s10 = sld [smem:[#allocation0]]
  $region69: #{_rpn_head_level.1} parent=0
    _
  %s12 = ssub.s32 1, %s10
  %s13 = scalar_select 0, %s12, %s10
  loop: start=0, step=1, limit=4
  $region2: #{_rpn_head_level.1} parent=0 // loop_pre_header
    _
  $region3: #{_rpn_head_level.1} parent=0 // loop_header
    %s15 = sphi 0, %s19
    %p16 = scmp.ge.s32.totalorder %s15, 4
    %s22 = sphi 0, %s34
    %s23 = sphi 0, %s30
    %s24 = sphi 0, %s22
    %s25 = sphi 0, %s23
    %s26 = sphi 0, %s24
    %s27 = sphi 0, %s25
    %s39 = sphi 0, %s41
    %s42 = sphi 0, %s39
    %s43 = sphi 0, %s42
    %s59 = sphi 0, %s43
    %s75 = sphi 0, %s77
    %s78 = sphi 0, %s75
    %s79 = sphi 0, %s78
    %s95 = sphi 0, %s79
    %s111 = sphi 0, %s113
    %s114 = sphi 0, %s111
    %s115 = sphi 0, %s114
    %s131 = sphi 0, %s115
    %s135 = sphi 0, %s135
    %s137 = sphi 0, %s135
    %s138 = sphi 0, %s137
    %s152 = sphi 0, %s138
    %s156 = sphi 0, %s156
    %s158 = sphi 0, %s156
    %s159 = sphi 0, %s158
    %s173 = sphi 0, %s159
    %s177 = sphi 0, %s177
    %s179 = sphi 0, %s177
    %s180 = sphi 0, %s179
    %s194 = sphi 0, %s180
    %s198 = sphi 0, %s198
    %s200 = sphi 0, %s198
    %s201 = sphi 0, %s200
    %s215 = sphi 0, %s201
    %s223 = sphi 0, %s225
    %s226 = sphi 0, %s223
    %s227 = sphi 0, %s226
    %s243 = sphi 0, %s227
    %s251 = sphi 0, %s253
    %s254 = sphi 0, %s251
    %s255 = sphi 0, %s254
    %s271 = sphi 0, %s255
  $region4: #{_rpn_head_level.1} parent=0 // loop_header_branch
    %18 = sbr.rel (%p16) target = $region8
  $region5: #{_rpn_head_level.1} parent=0 // loop_body
    %s20 = ssub.s32 %s15, 1
    %s21 = ssub.s32 %s15, 2
    %s28 = sadd.s32 1, %s23
    %p29 = scmp.ge.s32.totalorder %s28, 1
    %s30 = scalar_select %p29, 0, %s28
    %s31 = sadd.s32 1, %s22
    %s32 = scalar_select %p29, %s31, %s22
    %p33 = scmp.ge.s32.totalorder %s32, 2
    %s34 = scalar_select %p33, 0, %s32
    %s35 = ssub.s32 %s22, %s34
    %s36 = ssub.s32 %s23, %s30
    %s37 = sor.u32 %s35, %s36
    %p38 = scmp.eq.s32.totalorder %s37, 0
    %s40 = sadd.s32 %s39, 1
    %s41 = scalar_select %p38, %s39, %s40
    %p44 = pneg %p38
    %p45 = scmp.eq.s32.totalorder %s15, 1
    %p46 = por %p44, %p45
    %p47 = scmp.ne.s32.totalorder %s39, %s42
    %p48 = scmp.eq.s32.totalorder %s15, 0
    %p49 = por %p47, %p48
    %p50 = scmp.ne.s32.totalorder %s39, %s42
    %p51 = scmp.eq.s32.totalorder %s20, 1
    %p52 = por %p50, %p51
    %p53 = scmp.ne.s32.totalorder %s42, %s43
    %p54 = scmp.eq.s32.totalorder %s20, 0
    %p55 = por %p53, %p54
    %p56 = scmp.ne.s32.totalorder %s42, %s43
    %p57 = scmp.eq.s32.totalorder %s21, 1
    %p58 = por %p56, %p57
    %p60 = scmp.ne.s32.totalorder %s43, %s59
    %p61 = scmp.eq.s32.totalorder %s21, 0
    %p62 = por %p60, %p61
    %s63 = smul.u32 %s23, 16
    %s64 = ssub.s32 %s63, 1
    %p65 = scmp.gt.s32.totalorder %s64, 0
    %s66 = scalar_select %p65, %s64, 0
    %s67 = smul.u32 %s30, 16
    %s68 = ssub.s32 %s67, 1
    %p69 = scmp.gt.s32.totalorder %s68, 0
    %s70 = scalar_select %p69, %s68, 0
    %s71 = ssub.s32 %s22, %s34
    %s72 = ssub.s32 %s66, %s70
    %s73 = sor.u32 %s71, %s72
    %p74 = scmp.eq.s32.totalorder %s73, 0
    %s76 = sadd.s32 %s75, 1
    %s77 = scalar_select %p74, %s75, %s76
    %p80 = pneg %p74
    %p81 = scmp.eq.s32.totalorder %s15, 1
    %p82 = por %p80, %p81
    %p83 = scmp.ne.s32.totalorder %s75, %s78
    %p84 = scmp.eq.s32.totalorder %s15, 0
    %p85 = por %p83, %p84
    %p86 = scmp.ne.s32.totalorder %s75, %s78
    %p87 = scmp.eq.s32.totalorder %s20, 1
    %p88 = por %p86, %p87
    %p89 = scmp.ne.s32.totalorder %s78, %s79
    %p90 = scmp.eq.s32.totalorder %s20, 0
    %p91 = por %p89, %p90
    %p92 = scmp.ne.s32.totalorder %s78, %s79
    %p93 = scmp.eq.s32.totalorder %s21, 1
    %p94 = por %p92, %p93
    %p96 = scmp.ne.s32.totalorder %s79, %s95
    %p97 = scmp.eq.s32.totalorder %s21, 0
    %p98 = por %p96, %p97
    %s99 = smul.u32 %s23, 16
    %s100 = sadd.s32 %s99, 16
    %p101 = scmp.lt.s32.totalorder %s100, 15
    %s102 = scalar_select %p101, %s100, 15
    %s103 = smul.u32 %s30, 16
    %s104 = sadd.s32 %s103, 16
    %p105 = scmp.lt.s32.totalorder %s104, 15
    %s106 = scalar_select %p105, %s104, 15
    %s107 = ssub.s32 %s22, %s34
    %s108 = ssub.s32 %s102, %s106
    %s109 = sor.u32 %s107, %s108
    %p110 = scmp.eq.s32.totalorder %s109, 0
    %s112 = sadd.s32 %s111, 1
    %s113 = scalar_select %p110, %s111, %s112
    %p116 = pneg %p110
    %p117 = scmp.eq.s32.totalorder %s15, 1
    %p118 = por %p116, %p117
    %p119 = scmp.ne.s32.totalorder %s111, %s114
    %p120 = scmp.eq.s32.totalorder %s15, 0
    %p121 = por %p119, %p120
    %p122 = scmp.ne.s32.totalorder %s111, %s114
    %p123 = scmp.eq.s32.totalorder %s20, 1
    %p124 = por %p122, %p123
    %p125 = scmp.ne.s32.totalorder %s114, %s115
    %p126 = scmp.eq.s32.totalorder %s20, 0
    %p127 = por %p125, %p126
    %p128 = scmp.ne.s32.totalorder %s114, %s115
    %p129 = scmp.eq.s32.totalorder %s21, 1
    %p130 = por %p128, %p129
    %p132 = scmp.ne.s32.totalorder %s115, %s131
    %p133 = scmp.eq.s32.totalorder %s21, 0
    %p134 = por %p132, %p133
    %s136 = sadd.s32 %s135, 1
    %p139 = scmp.eq.s32.totalorder %s15, 1
    %p140 = scmp.ne.s32.totalorder %s135, %s137
    %p141 = scmp.eq.s32.totalorder %s15, 0
    %p142 = por %p140, %p141
    %p143 = scmp.ne.s32.totalorder %s135, %s137
    %p144 = scmp.eq.s32.totalorder %s20, 1
    %p145 = por %p143, %p144
    %p146 = scmp.ne.s32.totalorder %s137, %s138
    %p147 = scmp.eq.s32.totalorder %s20, 0
    %p148 = por %p146, %p147
    %p149 = scmp.ne.s32.totalorder %s137, %s138
    %p150 = scmp.eq.s32.totalorder %s21, 1
    %p151 = por %p149, %p150
    %p153 = scmp.ne.s32.totalorder %s138, %s152
    %p154 = scmp.eq.s32.totalorder %s21, 0
    %p155 = por %p153, %p154
    %s157 = sadd.s32 %s156, 1
    %p160 = scmp.eq.s32.totalorder %s15, 1
    %p161 = scmp.ne.s32.totalorder %s156, %s158
    %p162 = scmp.eq.s32.totalorder %s15, 0
    %p163 = por %p161, %p162
    %p164 = scmp.ne.s32.totalorder %s156, %s158
    %p165 = scmp.eq.s32.totalorder %s20, 1
    %p166 = por %p164, %p165
    %p167 = scmp.ne.s32.totalorder %s158, %s159
    %p168 = scmp.eq.s32.totalorder %s20, 0
    %p169 = por %p167, %p168
    %p170 = scmp.ne.s32.totalorder %s158, %s159
    %p171 = scmp.eq.s32.totalorder %s21, 1
    %p172 = por %p170, %p171
    %p174 = scmp.ne.s32.totalorder %s159, %s173
    %p175 = scmp.eq.s32.totalorder %s21, 0
    %p176 = por %p174, %p175
    %s178 = sadd.s32 %s177, 1
    %p181 = scmp.eq.s32.totalorder %s15, 1
    %p182 = scmp.ne.s32.totalorder %s177, %s179
    %p183 = scmp.eq.s32.totalorder %s15, 0
    %p184 = por %p182, %p183
    %p185 = scmp.ne.s32.totalorder %s177, %s179
    %p186 = scmp.eq.s32.totalorder %s20, 1
    %p187 = por %p185, %p186
    %p188 = scmp.ne.s32.totalorder %s179, %s180
    %p189 = scmp.eq.s32.totalorder %s20, 0
    %p190 = por %p188, %p189
    %p191 = scmp.ne.s32.totalorder %s179, %s180
    %p192 = scmp.eq.s32.totalorder %s21, 1
    %p193 = por %p191, %p192
    %p195 = scmp.ne.s32.totalorder %s180, %s194
    %p196 = scmp.eq.s32.totalorder %s21, 0
    %p197 = por %p195, %p196
    %s199 = sadd.s32 %s198, 1
    %p202 = scmp.eq.s32.totalorder %s15, 1
    %p203 = scmp.ne.s32.totalorder %s198, %s200
    %p204 = scmp.eq.s32.totalorder %s15, 0
    %p205 = por %p203, %p204
    %p206 = scmp.ne.s32.totalorder %s198, %s200
    %p207 = scmp.eq.s32.totalorder %s20, 1
    %p208 = por %p206, %p207
    %p209 = scmp.ne.s32.totalorder %s200, %s201
    %p210 = scmp.eq.s32.totalorder %s20, 0
    %p211 = por %p209, %p210
    %p212 = scmp.ne.s32.totalorder %s200, %s201
    %p213 = scmp.eq.s32.totalorder %s21, 1
    %p214 = por %p212, %p213
    %p216 = scmp.ne.s32.totalorder %s201, %s215
    %p217 = scmp.eq.s32.totalorder %s21, 0
    %p218 = por %p216, %p217
    %s219 = ssub.s32 %s22, %s34
    %s220 = ssub.s32 %s23, %s30
    %s221 = sor.u32 %s219, %s220
    %p222 = scmp.eq.s32.totalorder %s221, 0
    %s224 = sadd.s32 %s223, 1
    %s225 = scalar_select %p222, %s223, %s224
    %p228 = pneg %p222
    %p229 = scmp.eq.s32.totalorder %s15, 1
    %p230 = por %p228, %p229
    %p231 = scmp.ne.s32.totalorder %s223, %s226
    %p232 = scmp.eq.s32.totalorder %s15, 0
    %p233 = por %p231, %p232
    %p234 = scmp.ne.s32.totalorder %s223, %s226
    %p235 = scmp.eq.s32.totalorder %s20, 1
    %p236 = por %p234, %p235
    %p237 = scmp.ne.s32.totalorder %s226, %s227
    %p238 = scmp.eq.s32.totalorder %s20, 0
    %p239 = por %p237, %p238
    %p240 = scmp.ne.s32.totalorder %s226, %s227
    %p241 = scmp.eq.s32.totalorder %s21, 1
    %p242 = por %p240, %p241
    %p244 = scmp.ne.s32.totalorder %s227, %s243
    %p245 = scmp.eq.s32.totalorder %s21, 0
    %p246 = por %p244, %p245
    %s247 = ssub.s32 %s22, %s34
    %s248 = ssub.s32 %s23, %s30
    %s249 = sor.u32 %s247, %s248
    %p250 = scmp.eq.s32.totalorder %s249, 0
    %s252 = sadd.s32 %s251, 1
    %s253 = scalar_select %p250, %s251, %s252
    %p256 = pneg %p250
    %p257 = scmp.eq.s32.totalorder %s15, 1
    %p258 = por %p256, %p257
    %p259 = scmp.ne.s32.totalorder %s251, %s254
    %p260 = scmp.eq.s32.totalorder %s15, 0
    %p261 = por %p259, %p260
    %p262 = scmp.ne.s32.totalorder %s251, %s254
    %p263 = scmp.eq.s32.totalorder %s20, 1
    %p264 = por %p262, %p263
    %p265 = scmp.ne.s32.totalorder %s254, %s255
    %p266 = scmp.eq.s32.totalorder %s20, 0
    %p267 = por %p265, %p266
    %p268 = scmp.ne.s32.totalorder %s254, %s255
    %p269 = scmp.eq.s32.totalorder %s21, 1
    %p270 = por %p268, %p269
    %p272 = scmp.ne.s32.totalorder %s255, %s271
    %p273 = scmp.eq.s32.totalorder %s21, 0
    %p274 = por %p272, %p273
    %p275 = scmp.le.s32.totalorder 1, %s15
    %p276 = scmp.lt.s32.totalorder %s15, 3
    %p277 = pnand %p275, %p276
    %p278 = pneg %p277
    // Predicated region
    $region9: #{_rpn_head_level.1} parent=5 // pred_check
      _
    $region10: #{_rpn_head_level.1} parent=5 // pred_check_branch
      %280 = sbr.rel (%p277) target = $region12
    $region11: #{_rpn_head_level.1} parent=5 // pred_region
      %s281 = ssub.s32 %s15, 1
      // Predicated region
      $region13: #{_rpn_head_level.1} parent=11 // pred_check
        %p282 = pneg %p148
      $region14: #{_rpn_head_level.1} parent=11 // pred_check_branch
        %284 = sbr.rel (%p282) target = $region16
      $region15: #{_rpn_head_level.1} parent=11 // pred_region
        _
      $region16: #{_rpn_head_level.1} parent=11 // pred_fallthru
        _
      // Predicated region
      $region17: #{_rpn_head_level.1} parent=11 // pred_check
        %p285 = pneg %p169
      $region18: #{_rpn_head_level.1} parent=11 // pred_check_branch
        %287 = sbr.rel (%p285) target = $region20
      $region19: #{_rpn_head_level.1} parent=11 // pred_region
        _
      $region20: #{_rpn_head_level.1} parent=11 // pred_fallthru
        _
      // Predicated region
      $region21: #{_rpn_head_level.1} parent=11 // pred_check
        %p288 = pneg %p190
      $region22: #{_rpn_head_level.1} parent=11 // pred_check_branch
        %290 = sbr.rel (%p288) target = $region24
      $region23: #{_rpn_head_level.1} parent=11 // pred_region
        _
      $region24: #{_rpn_head_level.1} parent=11 // pred_fallthru
        _
      // Predicated region
      $region25: #{_rpn_head_level.1} parent=11 // pred_check
        %p291 = pneg %p211
      $region26: #{_rpn_head_level.1} parent=11 // pred_check_branch
        %293 = sbr.rel (%p291) target = $region28
      $region27: #{_rpn_head_level.1} parent=11 // pred_region
        _
      $region28: #{_rpn_head_level.1} parent=11 // pred_fallthru
        _
    $region12: #{_rpn_head_level.1} parent=5 // pred_fallthru
      _
    %p294 = scmp.lt.s32.totalorder %s15, 2
    // Predicated region
    $region29: #{_rpn_head_level.1} parent=5 // pred_check
      %p295 = pneg %p294
    $region30: #{_rpn_head_level.1} parent=5 // pred_check_branch
      %297 = sbr.rel (%p295) target = $region32
    $region31: #{_rpn_head_level.1} parent=5 // pred_region
      // Predicated region
      $region33: #{_rpn_head_level.1} parent=31 // pred_check
        %p298 = pneg %p49
      $region34: #{_rpn_head_level.1} parent=31 // pred_check_branch
        %300 = sbr.rel (%p298) target = $region36
      $region35: #{_rpn_head_level.1} parent=31 // pred_region
        %s301 = smul.u32 16, %s23
        %p302 = scmp.lt.s32.totalorder %s22, 1
        %s303 = scalar_select %p302, %s22, 1
        %p304 = scmp.lt.s32.totalorder %s301, 15
        %s305 = scalar_select %p304, %s301, 15
        %s306 = smul.addr %s305, 2
        %s307 = smul.addr %s303, 32
        %s308 = sadd.s32 %s306, %s307
        %s309 = smul.addr %s308, 4
        %s310 = scalar_lea.vmem %s0, %s309
        %s311 = smul.u32 16, %s23
      $region36: #{_rpn_head_level.1} parent=31 // pred_fallthru
        _
      // Predicated region
      $region37: #{_rpn_head_level.1} parent=31 // pred_check
        %p312 = pneg %p85
      $region38: #{_rpn_head_level.1} parent=31 // pred_check_branch
        %314 = sbr.rel (%p312) target = $region40
      $region39: #{_rpn_head_level.1} parent=31 // pred_region
        %s315 = smul.u32 %s23, 16
        %s316 = ssub.s32 %s315, 1
        %p317 = scmp.gt.s32.totalorder %s316, 0
        %s318 = scalar_select %p317, %s316, 0
        %p319 = scmp.lt.s32.totalorder %s22, 1
        %s320 = scalar_select %p319, %s22, 1
        %p321 = scmp.lt.s32.totalorder %s318, 15
        %s322 = scalar_select %p321, %s318, 15
        %s323 = smul.addr %s322, 2
        %s324 = smul.addr %s320, 32
        %s325 = sadd.s32 %s323, %s324
        %s326 = smul.addr %s325, 4
        %s327 = scalar_lea.vmem %s1, %s326
        %s328 = smul.u32 %s23, 16
        %s329 = ssub.s32 %s328, 1
        %p330 = scmp.gt.s32.totalorder %s329, 0
        %s331 = scalar_select %p330, %s329, 0
      $region40: #{_rpn_head_level.1} parent=31 // pred_fallthru
        _
      // Predicated region
      $region41: #{_rpn_head_level.1} parent=31 // pred_check
        %p332 = pneg %p121
      $region42: #{_rpn_head_level.1} parent=31 // pred_check_branch
        %334 = sbr.rel (%p332) target = $region44
      $region43: #{_rpn_head_level.1} parent=31 // pred_region
        %s335 = smul.u32 %s23, 16
        %s336 = sadd.s32 %s335, 16
        %p337 = scmp.lt.s32.totalorder %s336, 15
        %s338 = scalar_select %p337, %s336, 15
        %p339 = scmp.lt.s32.totalorder %s22, 1
        %s340 = scalar_select %p339, %s22, 1
        %p341 = scmp.lt.s32.totalorder %s338, 15
        %s342 = scalar_select %p341, %s338, 15
        %s343 = smul.addr %s342, 2
        %s344 = smul.addr %s340, 32
        %s345 = sadd.s32 %s343, %s344
        %s346 = smul.addr %s345, 4
        %s347 = scalar_lea.vmem %s2, %s346
        %s348 = smul.u32 %s23, 16
        %s349 = sadd.s32 %s348, 16
        %p350 = scmp.lt.s32.totalorder %s349, 15
        %s351 = scalar_select %p350, %s349, 15
      $region44: #{_rpn_head_level.1} parent=31 // pred_fallthru
        _
    $region32: #{_rpn_head_level.1} parent=5 // pred_fallthru
      _
    %p352 = scmp.le.s32.totalorder 1, %s15
    %p353 = scmp.lt.s32.totalorder %s15, 3
    %p354 = pnand %p352, %p353
    %p355 = pneg %p354
    // Predicated region
    $region45: #{_rpn_head_level.1} parent=5 // pred_check
      _
    $region46: #{_rpn_head_level.1} parent=5 // pred_check_branch
      %357 = sbr.rel (%p354) target = $region48
    $region47: #{_rpn_head_level.1} parent=5 // pred_region
      %s358 = ssub.s32 %s15, 1
      %s359 = smul.u32 16, %s25
      %p360 = scmp.lt.s32.totalorder %s24, 1
      %s361 = scalar_select %p360, %s24, 1
      %p362 = scmp.lt.s32.totalorder %s359, 15
      %s363 = scalar_select %p362, %s359, 15
      %s364 = smul.addr %s363, 2
      %s365 = smul.addr %s361, 32
      %s366 = sadd.s32 %s364, %s365
      %s367 = smul.addr %s366, 4
      %s368 = scalar_lea.vmem %s0, %s367
      %p369 = pneg %p55
      %p370 = pneg %p52
      %s371 = smul.u32 %s25, 16
      %s372 = ssub.s32 %s371, 1
      %p373 = scmp.gt.s32.totalorder %s372, 0
      %s374 = scalar_select %p373, %s372, 0
      %p375 = scmp.lt.s32.totalorder %s24, 1
      %s376 = scalar_select %p375, %s24, 1
      %p377 = scmp.lt.s32.totalorder %s374, 15
      %s378 = scalar_select %p377, %s374, 15
      %s379 = smul.addr %s378, 2
      %s380 = smul.addr %s376, 32
      %s381 = sadd.s32 %s379, %s380
      %s382 = smul.addr %s381, 4
      %s383 = scalar_lea.vmem %s1, %s382
      %p384 = pneg %p91
      %p385 = pneg %p88
      %s386 = smul.u32 %s25, 16
      %s387 = sadd.s32 %s386, 16
      %p388 = scmp.lt.s32.totalorder %s387, 15
      %s389 = scalar_select %p388, %s387, 15
      %p390 = scmp.lt.s32.totalorder %s24, 1
      %s391 = scalar_select %p390, %s24, 1
      %p392 = scmp.lt.s32.totalorder %s389, 15
      %s393 = scalar_select %p392, %s389, 15
      %s394 = smul.addr %s393, 2
      %s395 = smul.addr %s391, 32
      %s396 = sadd.s32 %s394, %s395
      %s397 = smul.addr %s396, 4
      %s398 = scalar_lea.vmem %s2, %s397
      %p399 = pneg %p127
      %p400 = pneg %p124
      %p401 = pneg %p148
      %p402 = pneg %p145
      %p403 = pneg %p169
      %p404 = pneg %p166
      %p405 = pneg %p190
      %p406 = pneg %p187
      %p407 = pneg %p211
      %p408 = pneg %p208
      %p409 = pneg %p239
      %p410 = pneg %p236
      %s411 = smul.u32 16, %s25
      %p412 = scmp.lt.s32.totalorder %s24, 1
      %s413 = scalar_select %p412, %s24, 1
      %p414 = scmp.lt.s32.totalorder %s411, 15
      %s415 = scalar_select %p414, %s411, 15
      %s416 = smul.addr %s415, 2
      %s417 = smul.addr %s413, 32
      %s418 = sadd.s32 %s416, %s417
      %s419 = smul.addr %s418, 4
      %s420 = scalar_lea.vmem %s7, %s419
      %p421 = pneg %p267
      %p422 = pneg %p264
      %s423 = smul.u32 16, %s25
      %p424 = scmp.lt.s32.totalorder %s24, 1
      %s425 = scalar_select %p424, %s24, 1
      %p426 = scmp.lt.s32.totalorder %s423, 15
      %s427 = scalar_select %p426, %s423, 15
      %s428 = smul.addr %s427, 2
      %s429 = smul.addr %s425, 32
      %s430 = sadd.s32 %s428, %s429
      %s431 = smul.addr %s430, 4
      %s432 = scalar_lea.vmem %s8, %s431
      %s433 = smul.u32 16, %s25
      %p434 = scmp.lt.s32.totalorder %s24, 1
      %s435 = scalar_select %p434, %s24, 1
      %p436 = scmp.lt.s32.totalorder %s433, 15
      %s437 = scalar_select %p436, %s433, 15
      %s438 = smul.addr %s437, 2
      %s439 = smul.addr %s435, 32
      %s440 = sadd.s32 %s438, %s439
      %s441 = smul.addr %s440, 4
      %s442 = scalar_lea.vmem %s0, %s441
      %s443 = smul.u32 16, %s25
      %s444 = smul.u32 %s25, 16
      %s445 = ssub.s32 %s444, 1
      %p446 = scmp.gt.s32.totalorder %s445, 0
      %s447 = scalar_select %p446, %s445, 0
      %p448 = scmp.lt.s32.totalorder %s24, 1
      %s449 = scalar_select %p448, %s24, 1
      %p450 = scmp.lt.s32.totalorder %s447, 15
      %s451 = scalar_select %p450, %s447, 15
      %s452 = smul.addr %s451, 2
      %s453 = smul.addr %s449, 32
      %s454 = sadd.s32 %s452, %s453
      %s455 = smul.addr %s454, 4
      %s456 = scalar_lea.vmem %s1, %s455
      %s457 = smul.u32 %s25, 16
      %s458 = ssub.s32 %s457, 1
      %p459 = scmp.gt.s32.totalorder %s458, 0
      %s460 = scalar_select %p459, %s458, 0
      %s461 = smul.u32 %s25, 16
      %s462 = sadd.s32 %s461, 16
      %p463 = scmp.lt.s32.totalorder %s462, 15
      %s464 = scalar_select %p463, %s462, 15
      %p465 = scmp.lt.s32.totalorder %s24, 1
      %s466 = scalar_select %p465, %s24, 1
      %p467 = scmp.lt.s32.totalorder %s464, 15
      %s468 = scalar_select %p467, %s464, 15
      %s469 = smul.addr %s468, 2
      %s470 = smul.addr %s466, 32
      %s471 = sadd.s32 %s469, %s470
      %s472 = smul.addr %s471, 4
      %s473 = scalar_lea.vmem %s2, %s472
      %s474 = smul.u32 %s25, 16
      %s475 = sadd.s32 %s474, 16
      %p476 = scmp.lt.s32.totalorder %s475, 15
      %s477 = scalar_select %p476, %s475, 15
      %s478 = smul.u32 16, %s25
      %p479 = scmp.lt.s32.totalorder %s24, 1
      %s480 = scalar_select %p479, %s24, 1
      %p481 = scmp.lt.s32.totalorder %s478, 15
      %s482 = scalar_select %p481, %s478, 15
      %s483 = smul.addr %s482, 2
      %s484 = smul.addr %s480, 32
      %s485 = sadd.s32 %s483, %s484
      %s486 = smul.addr %s485, 4
      %s487 = scalar_lea.vmem %s7, %s486
      %s488 = smul.u32 16, %s25
      %s489 = smul.u32 16, %s25
      %p490 = scmp.lt.s32.totalorder %s24, 1
      %s491 = scalar_select %p490, %s24, 1
      %p492 = scmp.lt.s32.totalorder %s489, 15
      %s493 = scalar_select %p492, %s489, 15
      %s494 = smul.addr %s493, 2
      %s495 = smul.addr %s491, 32
      %s496 = sadd.s32 %s494, %s495
      %s497 = smul.addr %s496, 4
      %s498 = scalar_lea.vmem %s8, %s497
      %s499 = smul.u32 16, %s25
      %v501 = vld [vmem:[%s442] sm:$0xf]
      %v502 = vld [vmem:[%s442 + $0x4] sm:$0xf]
      %v503 = vld [vmem:[%s442 + $0x8] sm:$0xf]
      %v504 = vld [vmem:[%s442 + $0xc] sm:$0xf]
      %v505 = vld [vmem:[%s442 + $0x10] sm:$0xf]
      %v506 = vld [vmem:[%s442 + $0x14] sm:$0xf]
      %v507 = vld [vmem:[%s442 + $0x18] sm:$0xf]
      %v508 = vld [vmem:[%s442 + $0x1c] sm:$0xf]
      %v509 = vld [vmem:[%s442 + $0x20] sm:$0xf]
      %v510 = vld [vmem:[%s442 + $0x24] sm:$0xf]
      %v511 = vld [vmem:[%s442 + $0x28] sm:$0xf]
      %v512 = vld [vmem:[%s442 + $0x2c] sm:$0xf]
      %v513 = vld [vmem:[%s442 + $0x30] sm:$0xf]
      %v514 = vld [vmem:[%s442 + $0x34] sm:$0xf]
      %v515 = vld [vmem:[%s442 + $0x38] sm:$0xf]
      %v516 = vld [vmem:[%s442 + $0x3c] sm:$0xf]
      %v517 = vld [vmem:[%s442 + $0x40] sm:$0xf]
      %v518 = vld [vmem:[%s442 + $0x44] sm:$0xf]
      %v519 = vld [vmem:[%s442 + $0x48] sm:$0xf]
      %v520 = vld [vmem:[%s442 + $0x4c] sm:$0xf]
      %v521 = vld [vmem:[%s442 + $0x50] sm:$0xf]
      %v522 = vld [vmem:[%s442 + $0x54] sm:$0xf]
      %v523 = vld [vmem:[%s442 + $0x58] sm:$0xf]
      %v524 = vld [vmem:[%s442 + $0x5c] sm:$0xf]
      %v525 = vld [vmem:[%s442 + $0x60] sm:$0xf]
      %v526 = vld [vmem:[%s442 + $0x64] sm:$0xf]
      %v527 = vld [vmem:[%s442 + $0x68] sm:$0xf]
      %v528 = vld [vmem:[%s442 + $0x6c] sm:$0xf]
      %v529 = vld [vmem:[%s442 + $0x70] sm:$0xf]
      %v530 = vld [vmem:[%s442 + $0x74] sm:$0xf]
      %v531 = vld [vmem:[%s442 + $0x78] sm:$0xf]
      %v532 = vld [vmem:[%s442 + $0x7c] sm:$0xf]
      %v533 = vld [vmem:[%s456] sm:$0xf]
      %v534 = vld [vmem:[%s456 + $0x4] sm:$0xf]
      %v535 = vld [vmem:[%s473] sm:$0xf]
      %v536 = vld [vmem:[%s473 + $0x4] sm:$0xf]
      %p537 = scmp.gt.s32.totalorder %s25, 0
      %s538 = scalar_select %p537, 1, 0
      %v539 = vstv %s538
      %vm540 = vcmp.eq.s32.totalorder %v539, 1
      %v541 = vsel %vm540, %v533, 0
      %v542 = vsel %vm540, %v534, 0
      %p543 = scmp.lt.s32.totalorder %s25, 0
      %s544 = scalar_select %p543, 1, 0
      %v545 = vstv %s544
      %vm546 = vcmp.eq.s32.totalorder %v545, 1
      %v547 = vsel %vm546, %v535, 0
      %v548 = vsel %vm546, %v536, 0
      %v551 = vunpack.c.l.b16 %v541
      %v552 = vunpack.c.l.b16 %v542
      %v553 = vpack.c.b16 %v552, %v551
      %554 = vrot.lane.b32.xlu0 %v553, 32
      %v555 = vpop.permute.xlu0 %554
      %vm557 = vcmask 523520
      %558 = vst.msk [vmem:[#allocation2] sm:$0xff] %vm557, %v555
      %vm559 = vcmask 253952
      %vm560 = vsmask.f32 256
      %vm561 = vmand %vm559, %vm560
      %v562 = vld [vmem:[#allocation2] sm:$0x1]
      %v563 = vsel %vm561, 0, %v562
      %564 = vst [vmem:[#allocation2] sm:$0x1] %v563
      %v566 = vshrl.u32 %v553, 16
      %v568 = vrot.slane %v566, 7
      %v569 = vshll.u32 %v553, 16
      %v571 = vor.u32 %v568, %v569
      %vm573 = vcmask 261120
      %vm574 = vsmask.f32 7938
      %vm575 = vmand %vm573, %vm574
      %v576 = vld [vmem:[#allocation2] sm:$0xff]
      %v577 = vsel %vm575, %v571, %v576
      %578 = vst [vmem:[#allocation2] sm:$0xff] %v577
      %vm579 = vcmask 785927
      %vm580 = vsmask.f32 7966
      %vm581 = vmand %vm579, %vm580
      %v582 = vld [vmem:[#allocation2] sm:$0x80]
      %v583 = vsel %vm581, 0, %v582
      %584 = vst [vmem:[#allocation2] sm:$0x80] %v583
      %v585 = vrot.slane %v569, 1
      %v586 = vor.u32 %v566, %v585
      %587 = vrot.lane.b32.xlu0 %v586, 64
      %v588 = vpop.permute.xlu0 %587
      %vm590 = vcmask 785920
      %vm591 = vsmask.f32 7424
      %vm592 = vmand %vm590, %vm591
      %v593 = vld [vmem:[#allocation2] sm:$0xff]
      %v594 = vsel %vm592, %v588, %v593
      %595 = vst [vmem:[#allocation2] sm:$0xff] %v594
      %v626 = vunpack.c.l.b16 %v501
      %v627 = vunpack.c.l.b16 %v502
      %v628 = vunpack.c.l.b16 %v503
      %v629 = vunpack.c.l.b16 %v504
      %v630 = vunpack.c.l.b16 %v505
      %v631 = vunpack.c.l.b16 %v506
      %v632 = vunpack.c.l.b16 %v507
      %v633 = vunpack.c.l.b16 %v508
      %v634 = vunpack.c.l.b16 %v509
      %v635 = vunpack.c.l.b16 %v510
      %v636 = vunpack.c.l.b16 %v511
      %v637 = vunpack.c.l.b16 %v512
      %v638 = vunpack.c.l.b16 %v513
      %v639 = vunpack.c.l.b16 %v514
      %v640 = vunpack.c.l.b16 %v515
      %v641 = vunpack.c.l.b16 %v516
      %v642 = vunpack.c.l.b16 %v517
      %v643 = vunpack.c.l.b16 %v518
      %v644 = vunpack.c.l.b16 %v519
      %v645 = vunpack.c.l.b16 %v520
      %v646 = vunpack.c.l.b16 %v521
      %v647 = vunpack.c.l.b16 %v522
      %v648 = vunpack.c.l.b16 %v523
      %v649 = vunpack.c.l.b16 %v524
      %v650 = vunpack.c.l.b16 %v525
      %v651 = vunpack.c.l.b16 %v526
      %v652 = vunpack.c.l.b16 %v527
      %v653 = vunpack.c.l.b16 %v528
      %v654 = vunpack.c.l.b16 %v529
      %v655 = vunpack.c.l.b16 %v530
      %v656 = vpack.c.b16 %v627, %v626
      %v657 = vpack.c.b16 %v629, %v628
      %v658 = vpack.c.b16 %v631, %v630
      %v659 = vpack.c.b16 %v633, %v632
      %v660 = vpack.c.b16 %v635, %v634
      %v661 = vpack.c.b16 %v637, %v636
      %v662 = vpack.c.b16 %v639, %v638
      %v663 = vpack.c.b16 %v641, %v640
      %v664 = vpack.c.b16 %v643, %v642
      %v665 = vpack.c.b16 %v645, %v644
      %v666 = vpack.c.b16 %v647, %v646
      %v667 = vpack.c.b16 %v649, %v648
      %v668 = vpack.c.b16 %v651, %v650
      %v669 = vpack.c.b16 %v653, %v652
      %v670 = vpack.c.b16 %v655, %v654
      %671 = vrot.lane.b32.xlu0 %v656, 32
      %v672 = vpop.permute.xlu0 %671
      %673 = vrot.lane.b32.xlu0 %v657, 32
      %v674 = vpop.permute.xlu0 %673
      %675 = vrot.lane.b32.xlu0 %v658, 32
      %v676 = vpop.permute.xlu0 %675
      %677 = vrot.lane.b32.xlu0 %v659, 32
      %v678 = vpop.permute.xlu0 %677
      %679 = vrot.lane.b32.xlu0 %v660, 32
      %v680 = vpop.permute.xlu0 %679
      %681 = vrot.lane.b32.xlu0 %v661, 32
      %v682 = vpop.permute.xlu0 %681
      %683 = vrot.lane.b32.xlu0 %v662, 32
      %v684 = vpop.permute.xlu0 %683
      %685 = vrot.lane.b32.xlu0 %v663, 32
      %v686 = vpop.permute.xlu0 %685
      %687 = vrot.lane.b32.xlu0 %v664, 32
      %v688 = vpop.permute.xlu0 %687
      %689 = vrot.lane.b32.xlu0 %v665, 32
      %v690 = vpop.permute.xlu0 %689
      %691 = vrot.lane.b32.xlu0 %v666, 32
      %v692 = vpop.permute.xlu0 %691
      %693 = vrot.lane.b32.xlu0 %v667, 32
      %v694 = vpop.permute.xlu0 %693
      %695 = vrot.lane.b32.xlu0 %v668, 32
      %v696 = vpop.permute.xlu0 %695
      %697 = vrot.lane.b32.xlu0 %v669, 32
      %v698 = vpop.permute.xlu0 %697
      %699 = vrot.lane.b32.xlu0 %v670, 32
      %v700 = vpop.permute.xlu0 %699
      %s716 = scalar_lea.vmem [#allocation2], 24
      %717 = vst.msk [vmem:[%s716] sm:$0xff] %vm557, %v672
      %718 = vst.msk [vmem:[%s716 + $0x18] sm:$0xff] %vm557, %v674
      %719 = vst.msk [vmem:[%s716 + $0x30] sm:$0xff] %vm557, %v676
      %720 = vst.msk [vmem:[%s716 + $0x48] sm:$0xff] %vm557, %v678
      %721 = vst.msk [vmem:[%s716 + $0x60] sm:$0xff] %vm557, %v680
      %722 = vst.msk [vmem:[%s716 + $0x78] sm:$0xff] %vm557, %v682
      %723 = vst.msk [vmem:[%s716 + $0x90] sm:$0xff] %vm557, %v684
      %724 = vst.msk [vmem:[%s716 + $0xa8] sm:$0xff] %vm557, %v686
      %725 = vst.msk [vmem:[%s716 + $0xc0] sm:$0xff] %vm557, %v688
      %726 = vst.msk [vmem:[%s716 + $0xd8] sm:$0xff] %vm557, %v690
      %727 = vst.msk [vmem:[%s716 + $0xf0] sm:$0xff] %vm557, %v692
      %728 = vst.msk [vmem:[%s716 + $0x108] sm:$0xff] %vm557, %v694
      %729 = vst.msk [vmem:[%s716 + $0x120] sm:$0xff] %vm557, %v696
      %730 = vst.msk [vmem:[%s716 + $0x138] sm:$0xff] %vm557, %v698
      %731 = vst.msk [vmem:[%s716 + $0x150] sm:$0xff] %vm557, %v700
      %v732 = vld [vmem:[%s716] sm:$0x1]
      %v733 = vsel %vm561, 0, %v732
      %734 = vst [vmem:[%s716] sm:$0x1] %v733
      %v735 = vld [vmem:[%s716 + $0x18] sm:$0x1]
      %v736 = vsel %vm561, 0, %v735
      %737 = vst [vmem:[%s716 + $0x18] sm:$0x1] %v736
      %v738 = vld [vmem:[%s716 + $0x30] sm:$0x1]
      %v739 = vsel %vm561, 0, %v738
      %740 = vst [vmem:[%s716 + $0x30] sm:$0x1] %v739
      %v741 = vld [vmem:[%s716 + $0x48] sm:$0x1]
      %v742 = vsel %vm561, 0, %v741
      %743 = vst [vmem:[%s716 + $0x48] sm:$0x1] %v742
      %v744 = vld [vmem:[%s716 + $0x60] sm:$0x1]
      %v745 = vsel %vm561, 0, %v744
      %746 = vst [vmem:[%s716 + $0x60] sm:$0x1] %v745
      %v747 = vld [vmem:[%s716 + $0x78] sm:$0x1]
      %v748 = vsel %vm561, 0, %v747
      %749 = vst [vmem:[%s716 + $0x78] sm:$0x1] %v748
      %v750 = vld [vmem:[%s716 + $0x90] sm:$0x1]
      %v751 = vsel %vm561, 0, %v750
      %752 = vst [vmem:[%s716 + $0x90] sm:$0x1] %v751
      %v753 = vld [vmem:[%s716 + $0xa8] sm:$0x1]
      %v754 = vsel %vm561, 0, %v753
      %755 = vst [vmem:[%s716 + $0xa8] sm:$0x1] %v754
      %v756 = vld [vmem:[%s716 + $0xc0] sm:$0x1]
      %v757 = vsel %vm561, 0, %v756
      %758 = vst [vmem:[%s716 + $0xc0] sm:$0x1] %v757
      %v759 = vld [vmem:[%s716 + $0xd8] sm:$0x1]
      %v760 = vsel %vm561, 0, %v759
      %761 = vst [vmem:[%s716 + $0xd8] sm:$0x1] %v760
      %v762 = vld [vmem:[%s716 + $0xf0] sm:$0x1]
      %v763 = vsel %vm561, 0, %v762
      %764 = vst [vmem:[%s716 + $0xf0] sm:$0x1] %v763
      %v765 = vld [vmem:[%s716 + $0x108] sm:$0x1]
      %v766 = vsel %vm561, 0, %v765
      %767 = vst [vmem:[%s716 + $0x108] sm:$0x1] %v766
      %v768 = vld [vmem:[%s716 + $0x120] sm:$0x1]
      %v769 = vsel %vm561, 0, %v768
      %770 = vst [vmem:[%s716 + $0x120] sm:$0x1] %v769
      %v771 = vld [vmem:[%s716 + $0x138] sm:$0x1]
      %v772 = vsel %vm561, 0, %v771
      %773 = vst [vmem:[%s716 + $0x138] sm:$0x1] %v772
      %v774 = vld [vmem:[%s716 + $0x150] sm:$0x1]
      %v775 = vsel %vm561, 0, %v774
      %776 = vst [vmem:[%s716 + $0x150] sm:$0x1] %v775
      %v778 = vshrl.u32 %v656, 16
      %v780 = vrot.slane %v778, 7
      %v781 = vshll.u32 %v656, 16
      %v783 = vor.u32 %v780, %v781
      %v785 = vshrl.u32 %v657, 16
      %v787 = vrot.slane %v785, 7
      %v788 = vshll.u32 %v657, 16
      %v790 = vor.u32 %v787, %v788
      %v792 = vshrl.u32 %v658, 16
      %v794 = vrot.slane %v792, 7
      %v795 = vshll.u32 %v658, 16
      %v797 = vor.u32 %v794, %v795
      %v799 = vshrl.u32 %v659, 16
      %v801 = vrot.slane %v799, 7
      %v802 = vshll.u32 %v659, 16
      %v804 = vor.u32 %v801, %v802
      %v806 = vshrl.u32 %v660, 16
      %v808 = vrot.slane %v806, 7
      %v809 = vshll.u32 %v660, 16
      %v811 = vor.u32 %v808, %v809
      %v813 = vshrl.u32 %v661, 16
      %v815 = vrot.slane %v813, 7
      %v816 = vshll.u32 %v661, 16
      %v818 = vor.u32 %v815, %v816
      %v820 = vshrl.u32 %v662, 16
      %v822 = vrot.slane %v820, 7
      %v823 = vshll.u32 %v662, 16
      %v825 = vor.u32 %v822, %v823
      %v827 = vshrl.u32 %v663, 16
      %v829 = vrot.slane %v827, 7
      %v830 = vshll.u32 %v663, 16
      %v832 = vor.u32 %v829, %v830
      %v834 = vshrl.u32 %v664, 16
      %v836 = vrot.slane %v834, 7
      %v837 = vshll.u32 %v664, 16
      %v839 = vor.u32 %v836, %v837
      %v841 = vshrl.u32 %v665, 16
      %v843 = vrot.slane %v841, 7
      %v844 = vshll.u32 %v665, 16
      %v846 = vor.u32 %v843, %v844
      %v848 = vshrl.u32 %v666, 16
      %v850 = vrot.slane %v848, 7
      %v851 = vshll.u32 %v666, 16
      %v853 = vor.u32 %v850, %v851
      %v855 = vshrl.u32 %v667, 16
      %v857 = vrot.slane %v855, 7
      %v858 = vshll.u32 %v667, 16
      %v860 = vor.u32 %v857, %v858
      %v862 = vshrl.u32 %v668, 16
      %v864 = vrot.slane %v862, 7
      %v865 = vshll.u32 %v668, 16
      %v867 = vor.u32 %v864, %v865
      %v869 = vshrl.u32 %v669, 16
      %v871 = vrot.slane %v869, 7
      %v872 = vshll.u32 %v669, 16
      %v874 = vor.u32 %v871, %v872
      %v876 = vshrl.u32 %v670, 16
      %v878 = vrot.slane %v876, 7
      %v879 = vshll.u32 %v670, 16
      %v881 = vor.u32 %v878, %v879
      %v897 = vld [vmem:[%s716] sm:$0xff]
      %v898 = vsel %vm575, %v783, %v897
      %899 = vst [vmem:[%s716] sm:$0xff] %v898
      %v900 = vld [vmem:[%s716 + $0x18] sm:$0xff]
      %v901 = vsel %vm575, %v790, %v900
      %902 = vst [vmem:[%s716 + $0x18] sm:$0xff] %v901
      %v903 = vld [vmem:[%s716 + $0x30] sm:$0xff]
      %v904 = vsel %vm575, %v797, %v903
      %905 = vst [vmem:[%s716 + $0x30] sm:$0xff] %v904
      %v906 = vld [vmem:[%s716 + $0x48] sm:$0xff]
      %v907 = vsel %vm575, %v804, %v906
      %908 = vst [vmem:[%s716 + $0x48] sm:$0xff] %v907
      %v909 = vld [vmem:[%s716 + $0x60] sm:$0xff]
      %v910 = vsel %vm575, %v811, %v909
      %911 = vst [vmem:[%s716 + $0x60] sm:$0xff] %v910
      %v912 = vld [vmem:[%s716 + $0x78] sm:$0xff]
      %v913 = vsel %vm575, %v818, %v912
      %914 = vst [vmem:[%s716 + $0x78] sm:$0xff] %v913
      %v915 = vld [vmem:[%s716 + $0x90] sm:$0xff]
      %v916 = vsel %vm575, %v825, %v915
      %917 = vst [vmem:[%s716 + $0x90] sm:$0xff] %v916
      %v918 = vld [vmem:[%s716 + $0xa8] sm:$0xff]
      %v919 = vsel %vm575, %v832, %v918
      %920 = vst [vmem:[%s716 + $0xa8] sm:$0xff] %v919
      %v921 = vld [vmem:[%s716 + $0xc0] sm:$0xff]
      %v922 = vsel %vm575, %v839, %v921
      %923 = vst [vmem:[%s716 + $0xc0] sm:$0xff] %v922
      %v924 = vld [vmem:[%s716 + $0xd8] sm:$0xff]
      %v925 = vsel %vm575, %v846, %v924
      %926 = vst [vmem:[%s716 + $0xd8] sm:$0xff] %v925
      %v927 = vld [vmem:[%s716 + $0xf0] sm:$0xff]
      %v928 = vsel %vm575, %v853, %v927
      %929 = vst [vmem:[%s716 + $0xf0] sm:$0xff] %v928
      %v930 = vld [vmem:[%s716 + $0x108] sm:$0xff]
      %v931 = vsel %vm575, %v860, %v930
      %932 = vst [vmem:[%s716 + $0x108] sm:$0xff] %v931
      %v933 = vld [vmem:[%s716 + $0x120] sm:$0xff]
      %v934 = vsel %vm575, %v867, %v933
      %935 = vst [vmem:[%s716 + $0x120] sm:$0xff] %v934
      %v936 = vld [vmem:[%s716 + $0x138] sm:$0xff]
      %v937 = vsel %vm575, %v874, %v936
      %938 = vst [vmem:[%s716 + $0x138] sm:$0xff] %v937
      %v939 = vld [vmem:[%s716 + $0x150] sm:$0xff]
      %v940 = vsel %vm575, %v881, %v939
      %941 = vst [vmem:[%s716 + $0x150] sm:$0xff] %v940
      %v942 = vld [vmem:[%s716] sm:$0x80]
      %v943 = vsel %vm581, 0, %v942
      %944 = vst [vmem:[%s716] sm:$0x80] %v943
      %v945 = vld [vmem:[%s716 + $0x18] sm:$0x80]
      %v946 = vsel %vm581, 0, %v945
      %947 = vst [vmem:[%s716 + $0x18] sm:$0x80] %v946
      %v948 = vld [vmem:[%s716 + $0x30] sm:$0x80]
      %v949 = vsel %vm581, 0, %v948
      %950 = vst [vmem:[%s716 + $0x30] sm:$0x80] %v949
      %v951 = vld [vmem:[%s716 + $0x48] sm:$0x80]
      %v952 = vsel %vm581, 0, %v951
      %953 = vst [vmem:[%s716 + $0x48] sm:$0x80] %v952
      %v954 = vld [vmem:[%s716 + $0x60] sm:$0x80]
      %v955 = vsel %vm581, 0, %v954
      %956 = vst [vmem:[%s716 + $0x60] sm:$0x80] %v955
      %v957 = vld [vmem:[%s716 + $0x78] sm:$0x80]
      %v958 = vsel %vm581, 0, %v957
      %959 = vst [vmem:[%s716 + $0x78] sm:$0x80] %v958
      %v960 = vld [vmem:[%s716 + $0x90] sm:$0x80]
      %v961 = vsel %vm581, 0, %v960
      %962 = vst [vmem:[%s716 + $0x90] sm:$0x80] %v961
      %v963 = vld [vmem:[%s716 + $0xa8] sm:$0x80]
      %v964 = vsel %vm581, 0, %v963
      %965 = vst [vmem:[%s716 + $0xa8] sm:$0x80] %v964
      %v966 = vld [vmem:[%s716 + $0xc0] sm:$0x80]
      %v967 = vsel %vm581, 0, %v966
      %968 = vst [vmem:[%s716 + $0xc0] sm:$0x80] %v967
      %v969 = vld [vmem:[%s716 + $0xd8] sm:$0x80]
      %v970 = vsel %vm581, 0, %v969
      %971 = vst [vmem:[%s716 + $0xd8] sm:$0x80] %v970
      %v972 = vld [vmem:[%s716 + $0xf0] sm:$0x80]
      %v973 = vsel %vm581, 0, %v972
      %974 = vst [vmem:[%s716 + $0xf0] sm:$0x80] %v973
      %v975 = vld [vmem:[%s716 + $0x108] sm:$0x80]
      %v976 = vsel %vm581, 0, %v975
      %977 = vst [vmem:[%s716 + $0x108] sm:$0x80] %v976
      %v978 = vld [vmem:[%s716 + $0x120] sm:$0x80]
      %v979 = vsel %vm581, 0, %v978
      %980 = vst [vmem:[%s716 + $0x120] sm:$0x80] %v979
      %v981 = vld [vmem:[%s716 + $0x138] sm:$0x80]
      %v982 = vsel %vm581, 0, %v981
      %983 = vst [vmem:[%s716 + $0x138] sm:$0x80] %v982
      %v984 = vld [vmem:[%s716 + $0x150] sm:$0x80]
      %v985 = vsel %vm581, 0, %v984
      %986 = vst [vmem:[%s716 + $0x150] sm:$0x80] %v985
      %v987 = vrot.slane %v781, 1
      %v988 = vor.u32 %v778, %v987
      %v989 = vrot.slane %v788, 1
      %v990 = vor.u32 %v785, %v989
      %v991 = vrot.slane %v795, 1
      %v992 = vor.u32 %v792, %v991
      %v993 = vrot.slane %v802, 1
      %v994 = vor.u32 %v799, %v993
      %v995 = vrot.slane %v809, 1
      %v996 = vor.u32 %v806, %v995
      %v997 = vrot.slane %v816, 1
      %v998 = vor.u32 %v813, %v997
      %v999 = vrot.slane %v823, 1
      %v1000 = vor.u32 %v820, %v999
      %v1001 = vrot.slane %v830, 1
      %v1002 = vor.u32 %v827, %v1001
      %v1003 = vrot.slane %v837, 1
      %v1004 = vor.u32 %v834, %v1003
      %v1005 = vrot.slane %v844, 1
      %v1006 = vor.u32 %v841, %v1005
      %v1007 = vrot.slane %v851, 1
      %v1008 = vor.u32 %v848, %v1007
      %v1009 = vrot.slane %v858, 1
      %v1010 = vor.u32 %v855, %v1009
      %v1011 = vrot.slane %v865, 1
      %v1012 = vor.u32 %v862, %v1011
      %v1013 = vrot.slane %v872, 1
      %v1014 = vor.u32 %v869, %v1013
      %v1015 = vrot.slane %v879, 1
      %v1016 = vor.u32 %v876, %v1015
      %1017 = vrot.lane.b32.xlu0 %v988, 64
      %v1018 = vpop.permute.xlu0 %1017
      %1019 = vrot.lane.b32.xlu0 %v990, 64
      %v1020 = vpop.permute.xlu0 %1019
      %1021 = vrot.lane.b32.xlu0 %v992, 64
      %v1022 = vpop.permute.xlu0 %1021
      %1023 = vrot.lane.b32.xlu0 %v994, 64
      %v1024 = vpop.permute.xlu0 %1023
      %1025 = vrot.lane.b32.xlu0 %v996, 64
      %v1026 = vpop.permute.xlu0 %1025
      %1027 = vrot.lane.b32.xlu0 %v998, 64
      %v1028 = vpop.permute.xlu0 %1027
      %1029 = vrot.lane.b32.xlu0 %v1000, 64
      %v1030 = vpop.permute.xlu0 %1029
      %1031 = vrot.lane.b32.xlu0 %v1002, 64
      %v1032 = vpop.permute.xlu0 %1031
      %1033 = vrot.lane.b32.xlu0 %v1004, 64
      %v1034 = vpop.permute.xlu0 %1033
      %1035 = vrot.lane.b32.xlu0 %v1006, 64
      %v1036 = vpop.permute.xlu0 %1035
      %1037 = vrot.lane.b32.xlu0 %v1008, 64
      %v1038 = vpop.permute.xlu0 %1037
      %1039 = vrot.lane.b32.xlu0 %v1010, 64
      %v1040 = vpop.permute.xlu0 %1039
      %1041 = vrot.lane.b32.xlu0 %v1012, 64
      %v1042 = vpop.permute.xlu0 %1041
      %1043 = vrot.lane.b32.xlu0 %v1014, 64
      %v1044 = vpop.permute.xlu0 %1043
      %1045 = vrot.lane.b32.xlu0 %v1016, 64
      %v1046 = vpop.permute.xlu0 %1045
      %v1062 = vld [vmem:[%s716] sm:$0xff]
      %v1063 = vsel %vm592, %v1018, %v1062
      %1064 = vst [vmem:[%s716] sm:$0xff] %v1063
      %v1065 = vld [vmem:[%s716 + $0x18] sm:$0xff]
      %v1066 = vsel %vm592, %v1020, %v1065
      %1067 = vst [vmem:[%s716 + $0x18] sm:$0xff] %v1066
      %v1068 = vld [vmem:[%s716 + $0x30] sm:$0xff]
      %v1069 = vsel %vm592, %v1022, %v1068
      %1070 = vst [vmem:[%s716 + $0x30] sm:$0xff] %v1069
      %v1071 = vld [vmem:[%s716 + $0x48] sm:$0xff]
      %v1072 = vsel %vm592, %v1024, %v1071
      %1073 = vst [vmem:[%s716 + $0x48] sm:$0xff] %v1072
      %v1074 = vld [vmem:[%s716 + $0x60] sm:$0xff]
      %v1075 = vsel %vm592, %v1026, %v1074
      %1076 = vst [vmem:[%s716 + $0x60] sm:$0xff] %v1075
      %v1077 = vld [vmem:[%s716 + $0x78] sm:$0xff]
      %v1078 = vsel %vm592, %v1028, %v1077
      %1079 = vst [vmem:[%s716 + $0x78] sm:$0xff] %v1078
      %v1080 = vld [vmem:[%s716 + $0x90] sm:$0xff]
      %v1081 = vsel %vm592, %v1030, %v1080
      %1082 = vst [vmem:[%s716 + $0x90] sm:$0xff] %v1081
      %v1083 = vld [vmem:[%s716 + $0xa8] sm:$0xff]
      %v1084 = vsel %vm592, %v1032, %v1083
      %1085 = vst [vmem:[%s716 + $0xa8] sm:$0xff] %v1084
      %v1086 = vld [vmem:[%s716 + $0xc0] sm:$0xff]
      %v1087 = vsel %vm592, %v1034, %v1086
      %1088 = vst [vmem:[%s716 + $0xc0] sm:$0xff] %v1087
      %v1089 = vld [vmem:[%s716 + $0xd8] sm:$0xff]
      %v1090 = vsel %vm592, %v1036, %v1089
      %1091 = vst [vmem:[%s716 + $0xd8] sm:$0xff] %v1090
      %v1092 = vld [vmem:[%s716 + $0xf0] sm:$0xff]
      %v1093 = vsel %vm592, %v1038, %v1092
      %1094 = vst [vmem:[%s716 + $0xf0] sm:$0xff] %v1093
      %v1095 = vld [vmem:[%s716 + $0x108] sm:$0xff]
      %v1096 = vsel %vm592, %v1040, %v1095
      %1097 = vst [vmem:[%s716 + $0x108] sm:$0xff] %v1096
      %v1098 = vld [vmem:[%s716 + $0x120] sm:$0xff]
      %v1099 = vsel %vm592, %v1042, %v1098
      %1100 = vst [vmem:[%s716 + $0x120] sm:$0xff] %v1099
      %v1101 = vld [vmem:[%s716 + $0x138] sm:$0xff]
      %v1102 = vsel %vm592, %v1044, %v1101
      %1103 = vst [vmem:[%s716 + $0x138] sm:$0xff] %v1102
      %v1104 = vld [vmem:[%s716 + $0x150] sm:$0xff]
      %v1105 = vsel %vm592, %v1046, %v1104
      %1106 = vst [vmem:[%s716 + $0x150] sm:$0xff] %v1105
      %v1109 = vunpack.c.l.b16 %v531
      %v1110 = vunpack.c.l.b16 %v532
      %v1111 = vpack.c.b16 %v1110, %v1109
      %vm1128 = vcmask 261120
      %1129 = vst.msk [vmem:[#allocation2 + $0x8] sm:$0xff] %vm1128, %v656
      %1130 = vst.msk [vmem:[#allocation2 + $0x20] sm:$0xff] %vm1128, %v657
      %1131 = vst.msk [vmem:[#allocation2 + $0x38] sm:$0xff] %vm1128, %v658
      %1132 = vst.msk [vmem:[#allocation2 + $0x50] sm:$0xff] %vm1128, %v659
      %1133 = vst.msk [vmem:[#allocation2 + $0x68] sm:$0xff] %vm1128, %v660
      %1134 = vst.msk [vmem:[#allocation2 + $0x80] sm:$0xff] %vm1128, %v661
      %1135 = vst.msk [vmem:[#allocation2 + $0x98] sm:$0xff] %vm1128, %v662
      %1136 = vst.msk [vmem:[#allocation2 + $0xb0] sm:$0xff] %vm1128, %v663
      %1137 = vst.msk [vmem:[#allocation2 + $0xc8] sm:$0xff] %vm1128, %v664
      %1138 = vst.msk [vmem:[#allocation2 + $0xe0] sm:$0xff] %vm1128, %v665
      %1139 = vst.msk [vmem:[#allocation2 + $0xf8] sm:$0xff] %vm1128, %v666
      %1140 = vst.msk [vmem:[#allocation2 + $0x110] sm:$0xff] %vm1128, %v667
      %1141 = vst.msk [vmem:[#allocation2 + $0x128] sm:$0xff] %vm1128, %v668
      %1142 = vst.msk [vmem:[#allocation2 + $0x140] sm:$0xff] %vm1128, %v669
      %1143 = vst.msk [vmem:[#allocation2 + $0x158] sm:$0xff] %vm1128, %v670
      %1144 = vst.msk [vmem:[#allocation2 + $0x170] sm:$0xff] %vm1128, %v1111
      %vm1145 = vcmask 1041152
      %vm1146 = vmand %vm1145, %vm560
      %v1147 = vld [vmem:[#allocation2] sm:$0x1]
      %v1148 = vsel %vm1146, 0, %v1147
      %1149 = vst [vmem:[#allocation2] sm:$0x1] %v1148
      %v1150 = vld [vmem:[#allocation2 + $0x18] sm:$0x1]
      %v1151 = vsel %vm1146, 0, %v1150
      %1152 = vst [vmem:[#allocation2 + $0x18] sm:$0x1] %v1151
      %v1153 = vld [vmem:[#allocation2 + $0x30] sm:$0x1]
      %v1154 = vsel %vm1146, 0, %v1153
      %1155 = vst [vmem:[#allocation2 + $0x30] sm:$0x1] %v1154
      %v1156 = vld [vmem:[#allocation2 + $0x48] sm:$0x1]
      %v1157 = vsel %vm1146, 0, %v1156
      %1158 = vst [vmem:[#allocation2 + $0x48] sm:$0x1] %v1157
      %v1159 = vld [vmem:[#allocation2 + $0x60] sm:$0x1]
      %v1160 = vsel %vm1146, 0, %v1159
      %1161 = vst [vmem:[#allocation2 + $0x60] sm:$0x1] %v1160
      %v1162 = vld [vmem:[#allocation2 + $0x78] sm:$0x1]
      %v1163 = vsel %vm1146, 0, %v1162
      %1164 = vst [vmem:[#allocation2 + $0x78] sm:$0x1] %v1163
      %v1165 = vld [vmem:[#allocation2 + $0x90] sm:$0x1]
      %v1166 = vsel %vm1146, 0, %v1165
      %1167 = vst [vmem:[#allocation2 + $0x90] sm:$0x1] %v1166
      %v1168 = vld [vmem:[#allocation2 + $0xa8] sm:$0x1]
      %v1169 = vsel %vm1146, 0, %v1168
      %1170 = vst [vmem:[#allocation2 + $0xa8] sm:$0x1] %v1169
      %v1171 = vld [vmem:[#allocation2 + $0xc0] sm:$0x1]
      %v1172 = vsel %vm1146, 0, %v1171
      %1173 = vst [vmem:[#allocation2 + $0xc0] sm:$0x1] %v1172
      %v1174 = vld [vmem:[#allocation2 + $0xd8] sm:$0x1]
      %v1175 = vsel %vm1146, 0, %v1174
      %1176 = vst [vmem:[#allocation2 + $0xd8] sm:$0x1] %v1175
      %v1177 = vld [vmem:[#allocation2 + $0xf0] sm:$0x1]
      %v1178 = vsel %vm1146, 0, %v1177
      %1179 = vst [vmem:[#allocation2 + $0xf0] sm:$0x1] %v1178
      %v1180 = vld [vmem:[#allocation2 + $0x108] sm:$0x1]
      %v1181 = vsel %vm1146, 0, %v1180
      %1182 = vst [vmem:[#allocation2 + $0x108] sm:$0x1] %v1181
      %v1183 = vld [vmem:[#allocation2 + $0x120] sm:$0x1]
      %v1184 = vsel %vm1146, 0, %v1183
      %1185 = vst [vmem:[#allocation2 + $0x120] sm:$0x1] %v1184
      %v1186 = vld [vmem:[#allocation2 + $0x138] sm:$0x1]
      %v1187 = vsel %vm1146, 0, %v1186
      %1188 = vst [vmem:[#allocation2 + $0x138] sm:$0x1] %v1187
      %v1189 = vld [vmem:[#allocation2 + $0x150] sm:$0x1]
      %v1190 = vsel %vm1146, 0, %v1189
      %1191 = vst [vmem:[#allocation2 + $0x150] sm:$0x1] %v1190
      %v1192 = vld [vmem:[#allocation2 + $0x168] sm:$0x1]
      %v1193 = vsel %vm1146, 0, %v1192
      %1194 = vst [vmem:[#allocation2 + $0x168] sm:$0x1] %v1193
      %v1196 = vshrl.u32 %v1111, 16
      %v1198 = vrot.slane %v1196, 7
      %v1199 = vshll.u32 %v1111, 16
      %v1201 = vor.u32 %v1198, %v1199
      %1202 = vrot.lane.b32.xlu0 %v783, 96
      %v1203 = vpop.permute.xlu0 %1202
      %1204 = vrot.lane.b32.xlu0 %v790, 96
      %v1205 = vpop.permute.xlu0 %1204
      %1206 = vrot.lane.b32.xlu0 %v797, 96
      %v1207 = vpop.permute.xlu0 %1206
      %1208 = vrot.lane.b32.xlu0 %v804, 96
      %v1209 = vpop.permute.xlu0 %1208
      %1210 = vrot.lane.b32.xlu0 %v811, 96
      %v1211 = vpop.permute.xlu0 %1210
      %1212 = vrot.lane.b32.xlu0 %v818, 96
      %v1213 = vpop.permute.xlu0 %1212
      %1214 = vrot.lane.b32.xlu0 %v825, 96
      %v1215 = vpop.permute.xlu0 %1214
      %1216 = vrot.lane.b32.xlu0 %v832, 96
      %v1217 = vpop.permute.xlu0 %1216
      %1218 = vrot.lane.b32.xlu0 %v839, 96
      %v1219 = vpop.permute.xlu0 %1218
      %1220 = vrot.lane.b32.xlu0 %v846, 96
      %v1221 = vpop.permute.xlu0 %1220
      %1222 = vrot.lane.b32.xlu0 %v853, 96
      %v1223 = vpop.permute.xlu0 %1222
      %1224 = vrot.lane.b32.xlu0 %v860, 96
      %v1225 = vpop.permute.xlu0 %1224
      %1226 = vrot.lane.b32.xlu0 %v867, 96
      %v1227 = vpop.permute.xlu0 %1226
      %1228 = vrot.lane.b32.xlu0 %v874, 96
      %v1229 = vpop.permute.xlu0 %1228
      %1230 = vrot.lane.b32.xlu0 %v881, 96
      %v1231 = vpop.permute.xlu0 %1230
      %1232 = vrot.lane.b32.xlu0 %v1201, 96
      %v1233 = vpop.permute.xlu0 %1232
      %vm1250 = vcmask 1048320
      %vm1251 = vmand %vm1250, %vm574
      %v1252 = vld [vmem:[#allocation2] sm:$0xff]
      %v1253 = vsel %vm1251, %v1203, %v1252
      %1254 = vst [vmem:[#allocation2] sm:$0xff] %v1253
      %v1255 = vld [vmem:[#allocation2 + $0x18] sm:$0xff]
      %v1256 = vsel %vm1251, %v1205, %v1255
      %1257 = vst [vmem:[#allocation2 + $0x18] sm:$0xff] %v1256
      %v1258 = vld [vmem:[#allocation2 + $0x30] sm:$0xff]
      %v1259 = vsel %vm1251, %v1207, %v1258
      %1260 = vst [vmem:[#allocation2 + $0x30] sm:$0xff] %v1259
      %v1261 = vld [vmem:[#allocation2 + $0x48] sm:$0xff]
      %v1262 = vsel %vm1251, %v1209, %v1261
      %1263 = vst [vmem:[#allocation2 + $0x48] sm:$0xff] %v1262
      %v1264 = vld [vmem:[#allocation2 + $0x60] sm:$0xff]
      %v1265 = vsel %vm1251, %v1211, %v1264
      %1266 = vst [vmem:[#allocation2 + $0x60] sm:$0xff] %v1265
      %v1267 = vld [vmem:[#allocation2 + $0x78] sm:$0xff]
      %v1268 = vsel %vm1251, %v1213, %v1267
      %1269 = vst [vmem:[#allocation2 + $0x78] sm:$0xff] %v1268
      %v1270 = vld [vmem:[#allocation2 + $0x90] sm:$0xff]
      %v1271 = vsel %vm1251, %v1215, %v1270
      %1272 = vst [vmem:[#allocation2 + $0x90] sm:$0xff] %v1271
      %v1273 = vld [vmem:[#allocation2 + $0xa8] sm:$0xff]
      %v1274 = vsel %vm1251, %v1217, %v1273
      %1275 = vst [vmem:[#allocation2 + $0xa8] sm:$0xff] %v1274
      %v1276 = vld [vmem:[#allocation2 + $0xc0] sm:$0xff]
      %v1277 = vsel %vm1251, %v1219, %v1276
      %1278 = vst [vmem:[#allocation2 + $0xc0] sm:$0xff] %v1277
      %v1279 = vld [vmem:[#allocation2 + $0xd8] sm:$0xff]
      %v1280 = vsel %vm1251, %v1221, %v1279
      %1281 = vst [vmem:[#allocation2 + $0xd8] sm:$0xff] %v1280
      %v1282 = vld [vmem:[#allocation2 + $0xf0] sm:$0xff]
      %v1283 = vsel %vm1251, %v1223, %v1282
      %1284 = vst [vmem:[#allocation2 + $0xf0] sm:$0xff] %v1283
      %v1285 = vld [vmem:[#allocation2 + $0x108] sm:$0xff]
      %v1286 = vsel %vm1251, %v1225, %v1285
      %1287 = vst [vmem:[#allocation2 + $0x108] sm:$0xff] %v1286
      %v1288 = vld [vmem:[#allocation2 + $0x120] sm:$0xff]
      %v1289 = vsel %vm1251, %v1227, %v1288
      %1290 = vst [vmem:[#allocation2 + $0x120] sm:$0xff] %v1289
      %v1291 = vld [vmem:[#allocation2 + $0x138] sm:$0xff]
      %v1292 = vsel %vm1251, %v1229, %v1291
      %1293 = vst [vmem:[#allocation2 + $0x138] sm:$0xff] %v1292
      %v1294 = vld [vmem:[#allocation2 + $0x150] sm:$0xff]
      %v1295 = vsel %vm1251, %v1231, %v1294
      %1296 = vst [vmem:[#allocation2 + $0x150] sm:$0xff] %v1295
      %v1297 = vld [vmem:[#allocation2 + $0x168] sm:$0xff]
      %v1298 = vsel %vm1251, %v1233, %v1297
      %1299 = vst [vmem:[#allocation2 + $0x168] sm:$0xff] %v1298
      %vm1300 = vcmask 523527
      %vm1301 = vmand %vm1300, %vm580
      %v1302 = vld [vmem:[#allocation2 + $0x8] sm:$0x80]
      %v1303 = vsel %vm1301, 0, %v1302
      %1304 = vst [vmem:[#allocation2 + $0x8] sm:$0x80] %v1303
      %v1305 = vld [vmem:[#allocation2 + $0x20] sm:$0x80]
      %v1306 = vsel %vm1301, 0, %v1305
      %1307 = vst [vmem:[#allocation2 + $0x20] sm:$0x80] %v1306
      %v1308 = vld [vmem:[#allocation2 + $0x38] sm:$0x80]
      %v1309 = vsel %vm1301, 0, %v1308
      %1310 = vst [vmem:[#allocation2 + $0x38] sm:$0x80] %v1309
      %v1311 = vld [vmem:[#allocation2 + $0x50] sm:$0x80]
      %v1312 = vsel %vm1301, 0, %v1311
      %1313 = vst [vmem:[#allocation2 + $0x50] sm:$0x80] %v1312
      %v1314 = vld [vmem:[#allocation2 + $0x68] sm:$0x80]
      %v1315 = vsel %vm1301, 0, %v1314
      %1316 = vst [vmem:[#allocation2 + $0x68] sm:$0x80] %v1315
      %v1317 = vld [vmem:[#allocation2 + $0x80] sm:$0x80]
      %v1318 = vsel %vm1301, 0, %v1317
      %1319 = vst [vmem:[#allocation2 + $0x80] sm:$0x80] %v1318
      %v1320 = vld [vmem:[#allocation2 + $0x98] sm:$0x80]
      %v1321 = vsel %vm1301, 0, %v1320
      %1322 = vst [vmem:[#allocation2 + $0x98] sm:$0x80] %v1321
      %v1323 = vld [vmem:[#allocation2 + $0xb0] sm:$0x80]
      %v1324 = vsel %vm1301, 0, %v1323
      %1325 = vst [vmem:[#allocation2 + $0xb0] sm:$0x80] %v1324
      %v1326 = vld [vmem:[#allocation2 + $0xc8] sm:$0x80]
      %v1327 = vsel %vm1301, 0, %v1326
      %1328 = vst [vmem:[#allocation2 + $0xc8] sm:$0x80] %v1327
      %v1329 = vld [vmem:[#allocation2 + $0xe0] sm:$0x80]
      %v1330 = vsel %vm1301, 0, %v1329
      %1331 = vst [vmem:[#allocation2 + $0xe0] sm:$0x80] %v1330
      %v1332 = vld [vmem:[#allocation2 + $0xf8] sm:$0x80]
      %v1333 = vsel %vm1301, 0, %v1332
      %1334 = vst [vmem:[#allocation2 + $0xf8] sm:$0x80] %v1333
      %v1335 = vld [vmem:[#allocation2 + $0x110] sm:$0x80]
      %v1336 = vsel %vm1301, 0, %v1335
      %1337 = vst [vmem:[#allocation2 + $0x110] sm:$0x80] %v1336
      %v1338 = vld [vmem:[#allocation2 + $0x128] sm:$0x80]
      %v1339 = vsel %vm1301, 0, %v1338
      %1340 = vst [vmem:[#allocation2 + $0x128] sm:$0x80] %v1339
      %v1341 = vld [vmem:[#allocation2 + $0x140] sm:$0x80]
      %v1342 = vsel %vm1301, 0, %v1341
      %1343 = vst [vmem:[#allocation2 + $0x140] sm:$0x80] %v1342
      %v1344 = vld [vmem:[#allocation2 + $0x158] sm:$0x80]
      %v1345 = vsel %vm1301, 0, %v1344
      %1346 = vst [vmem:[#allocation2 + $0x158] sm:$0x80] %v1345
      %v1347 = vld [vmem:[#allocation2 + $0x170] sm:$0x80]
      %v1348 = vsel %vm1301, 0, %v1347
      %1349 = vst [vmem:[#allocation2 + $0x170] sm:$0x80] %v1348
      %v1350 = vrot.slane %v1199, 1
      %v1351 = vor.u32 %v1196, %v1350
      %1352 = vrot.lane.b32.xlu0 %v988, 32
      %v1353 = vpop.permute.xlu0 %1352
      %1354 = vrot.lane.b32.xlu0 %v990, 32
      %v1355 = vpop.permute.xlu0 %1354
      %1356 = vrot.lane.b32.xlu0 %v992, 32
      %v1357 = vpop.permute.xlu0 %1356
      %1358 = vrot.lane.b32.xlu0 %v994, 32
      %v1359 = vpop.permute.xlu0 %1358
      %1360 = vrot.lane.b32.xlu0 %v996, 32
      %v1361 = vpop.permute.xlu0 %1360
      %1362 = vrot.lane.b32.xlu0 %v998, 32
      %v1363 = vpop.permute.xlu0 %1362
      %1364 = vrot.lane.b32.xlu0 %v1000, 32
      %v1365 = vpop.permute.xlu0 %1364
      %1366 = vrot.lane.b32.xlu0 %v1002, 32
      %v1367 = vpop.permute.xlu0 %1366
      %1368 = vrot.lane.b32.xlu0 %v1004, 32
      %v1369 = vpop.permute.xlu0 %1368
      %1370 = vrot.lane.b32.xlu0 %v1006, 32
      %v1371 = vpop.permute.xlu0 %1370
      %1372 = vrot.lane.b32.xlu0 %v1008, 32
      %v1373 = vpop.permute.xlu0 %1372
      %1374 = vrot.lane.b32.xlu0 %v1010, 32
      %v1375 = vpop.permute.xlu0 %1374
      %1376 = vrot.lane.b32.xlu0 %v1012, 32
      %v1377 = vpop.permute.xlu0 %1376
      %1378 = vrot.lane.b32.xlu0 %v1014, 32
      %v1379 = vpop.permute.xlu0 %1378
      %1380 = vrot.lane.b32.xlu0 %v1016, 32
      %v1381 = vpop.permute.xlu0 %1380
      %1382 = vrot.lane.b32.xlu0 %v1351, 32
      %v1383 = vpop.permute.xlu0 %1382
      %vm1400 = vcmask 523520
      %vm1401 = vmand %vm1400, %vm591
      %v1402 = vld [vmem:[#allocation2 + $0x8] sm:$0xff]
      %v1403 = vsel %vm1401, %v1353, %v1402
      %1404 = vst [vmem:[#allocation2 + $0x8] sm:$0xff] %v1403
      %v1405 = vld [vmem:[#allocation2 + $0x20] sm:$0xff]
      %v1406 = vsel %vm1401, %v1355, %v1405
      %1407 = vst [vmem:[#allocation2 + $0x20] sm:$0xff] %v1406
      %v1408 = vld [vmem:[#allocation2 + $0x38] sm:$0xff]
      %v1409 = vsel %vm1401, %v1357, %v1408
      %1410 = vst [vmem:[#allocation2 + $0x38] sm:$0xff] %v1409
      %v1411 = vld [vmem:[#allocation2 + $0x50] sm:$0xff]
      %v1412 = vsel %vm1401, %v1359, %v1411
      %1413 = vst [vmem:[#allocation2 + $0x50] sm:$0xff] %v1412
      %v1414 = vld [vmem:[#allocation2 + $0x68] sm:$0xff]
      %v1415 = vsel %vm1401, %v1361, %v1414
      %1416 = vst [vmem:[#allocation2 + $0x68] sm:$0xff] %v1415
      %v1417 = vld [vmem:[#allocation2 + $0x80] sm:$0xff]
      %v1418 = vsel %vm1401, %v1363, %v1417
      %1419 = vst [vmem:[#allocation2 + $0x80] sm:$0xff] %v1418
      %v1420 = vld [vmem:[#allocation2 + $0x98] sm:$0xff]
      %v1421 = vsel %vm1401, %v1365, %v1420
      %1422 = vst [vmem:[#allocation2 + $0x98] sm:$0xff] %v1421
      %v1423 = vld [vmem:[#allocation2 + $0xb0] sm:$0xff]
      %v1424 = vsel %vm1401, %v1367, %v1423
      %1425 = vst [vmem:[#allocation2 + $0xb0] sm:$0xff] %v1424
      %v1426 = vld [vmem:[#allocation2 + $0xc8] sm:$0xff]
      %v1427 = vsel %vm1401, %v1369, %v1426
      %1428 = vst [vmem:[#allocation2 + $0xc8] sm:$0xff] %v1427
      %v1429 = vld [vmem:[#allocation2 + $0xe0] sm:$0xff]
      %v1430 = vsel %vm1401, %v1371, %v1429
      %1431 = vst [vmem:[#allocation2 + $0xe0] sm:$0xff] %v1430
      %v1432 = vld [vmem:[#allocation2 + $0xf8] sm:$0xff]
      %v1433 = vsel %vm1401, %v1373, %v1432
      %1434 = vst [vmem:[#allocation2 + $0xf8] sm:$0xff] %v1433
      %v1435 = vld [vmem:[#allocation2 + $0x110] sm:$0xff]
      %v1436 = vsel %vm1401, %v1375, %v1435
      %1437 = vst [vmem:[#allocation2 + $0x110] sm:$0xff] %v1436
      %v1438 = vld [vmem:[#allocation2 + $0x128] sm:$0xff]
      %v1439 = vsel %vm1401, %v1377, %v1438
      %1440 = vst [vmem:[#allocation2 + $0x128] sm:$0xff] %v1439
      %v1441 = vld [vmem:[#allocation2 + $0x140] sm:$0xff]
      %v1442 = vsel %vm1401, %v1379, %v1441
      %1443 = vst [vmem:[#allocation2 + $0x140] sm:$0xff] %v1442
      %v1444 = vld [vmem:[#allocation2 + $0x158] sm:$0xff]
      %v1445 = vsel %vm1401, %v1381, %v1444
      %1446 = vst [vmem:[#allocation2 + $0x158] sm:$0xff] %v1445
      %v1447 = vld [vmem:[#allocation2 + $0x170] sm:$0xff]
      %v1448 = vsel %vm1401, %v1383, %v1447
      %1449 = vst [vmem:[#allocation2 + $0x170] sm:$0xff] %v1448
      %1450 = vrot.lane.b32.xlu0 %v657, 96
      %v1451 = vpop.permute.xlu0 %1450
      %1452 = vrot.lane.b32.xlu0 %v658, 96
      %v1453 = vpop.permute.xlu0 %1452
      %1454 = vrot.lane.b32.xlu0 %v659, 96
      %v1455 = vpop.permute.xlu0 %1454
      %1456 = vrot.lane.b32.xlu0 %v660, 96
      %v1457 = vpop.permute.xlu0 %1456
      %1458 = vrot.lane.b32.xlu0 %v661, 96
      %v1459 = vpop.permute.xlu0 %1458
      %1460 = vrot.lane.b32.xlu0 %v662, 96
      %v1461 = vpop.permute.xlu0 %1460
      %1462 = vrot.lane.b32.xlu0 %v663, 96
      %v1463 = vpop.permute.xlu0 %1462
      %1464 = vrot.lane.b32.xlu0 %v664, 96
      %v1465 = vpop.permute.xlu0 %1464
      %1466 = vrot.lane.b32.xlu0 %v665, 96
      %v1467 = vpop.permute.xlu0 %1466
      %1468 = vrot.lane.b32.xlu0 %v666, 96
      %v1469 = vpop.permute.xlu0 %1468
      %1470 = vrot.lane.b32.xlu0 %v667, 96
      %v1471 = vpop.permute.xlu0 %1470
      %1472 = vrot.lane.b32.xlu0 %v668, 96
      %v1473 = vpop.permute.xlu0 %1472
      %1474 = vrot.lane.b32.xlu0 %v669, 96
      %v1475 = vpop.permute.xlu0 %1474
      %1476 = vrot.lane.b32.xlu0 %v670, 96
      %v1477 = vpop.permute.xlu0 %1476
      %1478 = vrot.lane.b32.xlu0 %v1111, 96
      %v1479 = vpop.permute.xlu0 %1478
      %vm1495 = vcmask 1048320
      %1496 = vst.msk [vmem:[#allocation2 + $0x8] sm:$0xff] %vm1495, %v1451
      %1497 = vst.msk [vmem:[#allocation2 + $0x20] sm:$0xff] %vm1495, %v1453
      %1498 = vst.msk [vmem:[#allocation2 + $0x38] sm:$0xff] %vm1495, %v1455
      %1499 = vst.msk [vmem:[#allocation2 + $0x50] sm:$0xff] %vm1495, %v1457
      %1500 = vst.msk [vmem:[#allocation2 + $0x68] sm:$0xff] %vm1495, %v1459
      %1501 = vst.msk [vmem:[#allocation2 + $0x80] sm:$0xff] %vm1495, %v1461
      %1502 = vst.msk [vmem:[#allocation2 + $0x98] sm:$0xff] %vm1495, %v1463
      %1503 = vst.msk [vmem:[#allocation2 + $0xb0] sm:$0xff] %vm1495, %v1465
      %1504 = vst.msk [vmem:[#allocation2 + $0xc8] sm:$0xff] %vm1495, %v1467
      %1505 = vst.msk [vmem:[#allocation2 + $0xe0] sm:$0xff] %vm1495, %v1469
      %1506 = vst.msk [vmem:[#allocation2 + $0xf8] sm:$0xff] %vm1495, %v1471
      %1507 = vst.msk [vmem:[#allocation2 + $0x110] sm:$0xff] %vm1495, %v1473
      %1508 = vst.msk [vmem:[#allocation2 + $0x128] sm:$0xff] %vm1495, %v1475
      %1509 = vst.msk [vmem:[#allocation2 + $0x140] sm:$0xff] %vm1495, %v1477
      %1510 = vst.msk [vmem:[#allocation2 + $0x158] sm:$0xff] %vm1495, %v1479
      %vm1511 = vcmask 778752
      %vm1512 = vmand %vm1511, %vm560
      %v1513 = vld [vmem:[#allocation2 + $0x8] sm:$0x1]
      %v1514 = vsel %vm1512, 0, %v1513
      %1515 = vst [vmem:[#allocation2 + $0x8] sm:$0x1] %v1514
      %v1516 = vld [vmem:[#allocation2 + $0x20] sm:$0x1]
      %v1517 = vsel %vm1512, 0, %v1516
      %1518 = vst [vmem:[#allocation2 + $0x20] sm:$0x1] %v1517
      %v1519 = vld [vmem:[#allocation2 + $0x38] sm:$0x1]
      %v1520 = vsel %vm1512, 0, %v1519
      %1521 = vst [vmem:[#allocation2 + $0x38] sm:$0x1] %v1520
      %v1522 = vld [vmem:[#allocation2 + $0x50] sm:$0x1]
      %v1523 = vsel %vm1512, 0, %v1522
      %1524 = vst [vmem:[#allocation2 + $0x50] sm:$0x1] %v1523
      %v1525 = vld [vmem:[#allocation2 + $0x68] sm:$0x1]
      %v1526 = vsel %vm1512, 0, %v1525
      %1527 = vst [vmem:[#allocation2 + $0x68] sm:$0x1] %v1526
      %v1528 = vld [vmem:[#allocation2 + $0x80] sm:$0x1]
      %v1529 = vsel %vm1512, 0, %v1528
      %1530 = vst [vmem:[#allocation2 + $0x80] sm:$0x1] %v1529
      %v1531 = vld [vmem:[#allocation2 + $0x98] sm:$0x1]
      %v1532 = vsel %vm1512, 0, %v1531
      %1533 = vst [vmem:[#allocation2 + $0x98] sm:$0x1] %v1532
      %v1534 = vld [vmem:[#allocation2 + $0xb0] sm:$0x1]
      %v1535 = vsel %vm1512, 0, %v1534
      %1536 = vst [vmem:[#allocation2 + $0xb0] sm:$0x1] %v1535
      %v1537 = vld [vmem:[#allocation2 + $0xc8] sm:$0x1]
      %v1538 = vsel %vm1512, 0, %v1537
      %1539 = vst [vmem:[#allocation2 + $0xc8] sm:$0x1] %v1538
      %v1540 = vld [vmem:[#allocation2 + $0xe0] sm:$0x1]
      %v1541 = vsel %vm1512, 0, %v1540
      %1542 = vst [vmem:[#allocation2 + $0xe0] sm:$0x1] %v1541
      %v1543 = vld [vmem:[#allocation2 + $0xf8] sm:$0x1]
      %v1544 = vsel %vm1512, 0, %v1543
      %1545 = vst [vmem:[#allocation2 + $0xf8] sm:$0x1] %v1544
      %v1546 = vld [vmem:[#allocation2 + $0x110] sm:$0x1]
      %v1547 = vsel %vm1512, 0, %v1546
      %1548 = vst [vmem:[#allocation2 + $0x110] sm:$0x1] %v1547
      %v1549 = vld [vmem:[#allocation2 + $0x128] sm:$0x1]
      %v1550 = vsel %vm1512, 0, %v1549
      %1551 = vst [vmem:[#allocation2 + $0x128] sm:$0x1] %v1550
      %v1552 = vld [vmem:[#allocation2 + $0x140] sm:$0x1]
      %v1553 = vsel %vm1512, 0, %v1552
      %1554 = vst [vmem:[#allocation2 + $0x140] sm:$0x1] %v1553
      %v1555 = vld [vmem:[#allocation2 + $0x158] sm:$0x1]
      %v1556 = vsel %vm1512, 0, %v1555
      %1557 = vst [vmem:[#allocation2 + $0x158] sm:$0x1] %v1556
      %1558 = vrot.lane.b32.xlu0 %v790, 64
      %v1559 = vpop.permute.xlu0 %1558
      %1560 = vrot.lane.b32.xlu0 %v797, 64
      %v1561 = vpop.permute.xlu0 %1560
      %1562 = vrot.lane.b32.xlu0 %v804, 64
      %v1563 = vpop.permute.xlu0 %1562
      %1564 = vrot.lane.b32.xlu0 %v811, 64
      %v1565 = vpop.permute.xlu0 %1564
      %1566 = vrot.lane.b32.xlu0 %v818, 64
      %v1567 = vpop.permute.xlu0 %1566
      %1568 = vrot.lane.b32.xlu0 %v825, 64
      %v1569 = vpop.permute.xlu0 %1568
      %1570 = vrot.lane.b32.xlu0 %v832, 64
      %v1571 = vpop.permute.xlu0 %1570
      %1572 = vrot.lane.b32.xlu0 %v839, 64
      %v1573 = vpop.permute.xlu0 %1572
      %1574 = vrot.lane.b32.xlu0 %v846, 64
      %v1575 = vpop.permute.xlu0 %1574
      %1576 = vrot.lane.b32.xlu0 %v853, 64
      %v1577 = vpop.permute.xlu0 %1576
      %1578 = vrot.lane.b32.xlu0 %v860, 64
      %v1579 = vpop.permute.xlu0 %1578
      %1580 = vrot.lane.b32.xlu0 %v867, 64
      %v1581 = vpop.permute.xlu0 %1580
      %1582 = vrot.lane.b32.xlu0 %v874, 64
      %v1583 = vpop.permute.xlu0 %1582
      %1584 = vrot.lane.b32.xlu0 %v881, 64
      %v1585 = vpop.permute.xlu0 %1584
      %1586 = vrot.lane.b32.xlu0 %v1201, 64
      %v1587 = vpop.permute.xlu0 %1586
      %vm1603 = vmand %vm590, %vm574
      %v1604 = vld [vmem:[#allocation2 + $0x8] sm:$0xff]
      %v1605 = vsel %vm1603, %v1559, %v1604
      %1606 = vst [vmem:[#allocation2 + $0x8] sm:$0xff] %v1605
      %v1607 = vld [vmem:[#allocation2 + $0x20] sm:$0xff]
      %v1608 = vsel %vm1603, %v1561, %v1607
      %1609 = vst [vmem:[#allocation2 + $0x20] sm:$0xff] %v1608
      %v1610 = vld [vmem:[#allocation2 + $0x38] sm:$0xff]
      %v1611 = vsel %vm1603, %v1563, %v1610
      %1612 = vst [vmem:[#allocation2 + $0x38] sm:$0xff] %v1611
      %v1613 = vld [vmem:[#allocation2 + $0x50] sm:$0xff]
      %v1614 = vsel %vm1603, %v1565, %v1613
      %1615 = vst [vmem:[#allocation2 + $0x50] sm:$0xff] %v1614
      %v1616 = vld [vmem:[#allocation2 + $0x68] sm:$0xff]
      %v1617 = vsel %vm1603, %v1567, %v1616
      %1618 = vst [vmem:[#allocation2 + $0x68] sm:$0xff] %v1617
      %v1619 = vld [vmem:[#allocation2 + $0x80] sm:$0xff]
      %v1620 = vsel %vm1603, %v1569, %v1619
      %1621 = vst [vmem:[#allocation2 + $0x80] sm:$0xff] %v1620
      %v1622 = vld [vmem:[#allocation2 + $0x98] sm:$0xff]
      %v1623 = vsel %vm1603, %v1571, %v1622
      %1624 = vst [vmem:[#allocation2 + $0x98] sm:$0xff] %v1623
      %v1625 = vld [vmem:[#allocation2 + $0xb0] sm:$0xff]
      %v1626 = vsel %vm1603, %v1573, %v1625
      %1627 = vst [vmem:[#allocation2 + $0xb0] sm:$0xff] %v1626
      %v1628 = vld [vmem:[#allocation2 + $0xc8] sm:$0xff]
      %v1629 = vsel %vm1603, %v1575, %v1628
      %1630 = vst [vmem:[#allocation2 + $0xc8] sm:$0xff] %v1629
      %v1631 = vld [vmem:[#allocation2 + $0xe0] sm:$0xff]
      %v1632 = vsel %vm1603, %v1577, %v1631
      %1633 = vst [vmem:[#allocation2 + $0xe0] sm:$0xff] %v1632
      %v1634 = vld [vmem:[#allocation2 + $0xf8] sm:$0xff]
      %v1635 = vsel %vm1603, %v1579, %v1634
      %1636 = vst [vmem:[#allocation2 + $0xf8] sm:$0xff] %v1635
      %v1637 = vld [vmem:[#allocation2 + $0x110] sm:$0xff]
      %v1638 = vsel %vm1603, %v1581, %v1637
      %1639 = vst [vmem:[#allocation2 + $0x110] sm:$0xff] %v1638
      %v1640 = vld [vmem:[#allocation2 + $0x128] sm:$0xff]
      %v1641 = vsel %vm1603, %v1583, %v1640
      %1642 = vst [vmem:[#allocation2 + $0x128] sm:$0xff] %v1641
      %v1643 = vld [vmem:[#allocation2 + $0x140] sm:$0xff]
      %v1644 = vsel %vm1603, %v1585, %v1643
      %1645 = vst [vmem:[#allocation2 + $0x140] sm:$0xff] %v1644
      %v1646 = vld [vmem:[#allocation2 + $0x158] sm:$0xff]
      %v1647 = vsel %vm1603, %v1587, %v1646
      %1648 = vst [vmem:[#allocation2 + $0x158] sm:$0xff] %v1647
      %vm1649 = vcmask 261127
      %vm1650 = vmand %vm1649, %vm580
      %v1651 = vld [vmem:[#allocation2 + $0x10] sm:$0x80]
      %v1652 = vsel %vm1650, 0, %v1651
      %1653 = vst [vmem:[#allocation2 + $0x10] sm:$0x80] %v1652
      %v1654 = vld [vmem:[#allocation2 + $0x28] sm:$0x80]
      %v1655 = vsel %vm1650, 0, %v1654
      %1656 = vst [vmem:[#allocation2 + $0x28] sm:$0x80] %v1655
      %v1657 = vld [vmem:[#allocation2 + $0x40] sm:$0x80]
      %v1658 = vsel %vm1650, 0, %v1657
      %1659 = vst [vmem:[#allocation2 + $0x40] sm:$0x80] %v1658
      %v1660 = vld [vmem:[#allocation2 + $0x58] sm:$0x80]
      %v1661 = vsel %vm1650, 0, %v1660
      %1662 = vst [vmem:[#allocation2 + $0x58] sm:$0x80] %v1661
      %v1663 = vld [vmem:[#allocation2 + $0x70] sm:$0x80]
      %v1664 = vsel %vm1650, 0, %v1663
      %1665 = vst [vmem:[#allocation2 + $0x70] sm:$0x80] %v1664
      %v1666 = vld [vmem:[#allocation2 + $0x88] sm:$0x80]
      %v1667 = vsel %vm1650, 0, %v1666
      %1668 = vst [vmem:[#allocation2 + $0x88] sm:$0x80] %v1667
      %v1669 = vld [vmem:[#allocation2 + $0xa0] sm:$0x80]
      %v1670 = vsel %vm1650, 0, %v1669
      %1671 = vst [vmem:[#allocation2 + $0xa0] sm:$0x80] %v1670
      %v1672 = vld [vmem:[#allocation2 + $0xb8] sm:$0x80]
      %v1673 = vsel %vm1650, 0, %v1672
      %1674 = vst [vmem:[#allocation2 + $0xb8] sm:$0x80] %v1673
      %v1675 = vld [vmem:[#allocation2 + $0xd0] sm:$0x80]
      %v1676 = vsel %vm1650, 0, %v1675
      %1677 = vst [vmem:[#allocation2 + $0xd0] sm:$0x80] %v1676
      %v1678 = vld [vmem:[#allocation2 + $0xe8] sm:$0x80]
      %v1679 = vsel %vm1650, 0, %v1678
      %1680 = vst [vmem:[#allocation2 + $0xe8] sm:$0x80] %v1679
      %v1681 = vld [vmem:[#allocation2 + $0x100] sm:$0x80]
      %v1682 = vsel %vm1650, 0, %v1681
      %1683 = vst [vmem:[#allocation2 + $0x100] sm:$0x80] %v1682
      %v1684 = vld [vmem:[#allocation2 + $0x118] sm:$0x80]
      %v1685 = vsel %vm1650, 0, %v1684
      %1686 = vst [vmem:[#allocation2 + $0x118] sm:$0x80] %v1685
      %v1687 = vld [vmem:[#allocation2 + $0x130] sm:$0x80]
      %v1688 = vsel %vm1650, 0, %v1687
      %1689 = vst [vmem:[#allocation2 + $0x130] sm:$0x80] %v1688
      %v1690 = vld [vmem:[#allocation2 + $0x148] sm:$0x80]
      %v1691 = vsel %vm1650, 0, %v1690
      %1692 = vst [vmem:[#allocation2 + $0x148] sm:$0x80] %v1691
      %v1693 = vld [vmem:[#allocation2 + $0x160] sm:$0x80]
      %v1694 = vsel %vm1650, 0, %v1693
      %1695 = vst [vmem:[#allocation2 + $0x160] sm:$0x80] %v1694
      %vm1711 = vmand %vm573, %vm591
      %v1712 = vld [vmem:[#allocation2 + $0x10] sm:$0xff]
      %v1713 = vsel %vm1711, %v990, %v1712
      %1714 = vst [vmem:[#allocation2 + $0x10] sm:$0xff] %v1713
      %v1715 = vld [vmem:[#allocation2 + $0x28] sm:$0xff]
      %v1716 = vsel %vm1711, %v992, %v1715
      %1717 = vst [vmem:[#allocation2 + $0x28] sm:$0xff] %v1716
      %v1718 = vld [vmem:[#allocation2 + $0x40] sm:$0xff]
      %v1719 = vsel %vm1711, %v994, %v1718
      %1720 = vst [vmem:[#allocation2 + $0x40] sm:$0xff] %v1719
      %v1721 = vld [vmem:[#allocation2 + $0x58] sm:$0xff]
      %v1722 = vsel %vm1711, %v996, %v1721
      %1723 = vst [vmem:[#allocation2 + $0x58] sm:$0xff] %v1722
      %v1724 = vld [vmem:[#allocation2 + $0x70] sm:$0xff]
      %v1725 = vsel %vm1711, %v998, %v1724
      %1726 = vst [vmem:[#allocation2 + $0x70] sm:$0xff] %v1725
      %v1727 = vld [vmem:[#allocation2 + $0x88] sm:$0xff]
      %v1728 = vsel %vm1711, %v1000, %v1727
      %1729 = vst [vmem:[#allocation2 + $0x88] sm:$0xff] %v1728
      %v1730 = vld [vmem:[#allocation2 + $0xa0] sm:$0xff]
      %v1731 = vsel %vm1711, %v1002, %v1730
      %1732 = vst [vmem:[#allocation2 + $0xa0] sm:$0xff] %v1731
      %v1733 = vld [vmem:[#allocation2 + $0xb8] sm:$0xff]
      %v1734 = vsel %vm1711, %v1004, %v1733
      %1735 = vst [vmem:[#allocation2 + $0xb8] sm:$0xff] %v1734
      %v1736 = vld [vmem:[#allocation2 + $0xd0] sm:$0xff]
      %v1737 = vsel %vm1711, %v1006, %v1736
      %1738 = vst [vmem:[#allocation2 + $0xd0] sm:$0xff] %v1737
      %v1739 = vld [vmem:[#allocation2 + $0xe8] sm:$0xff]
      %v1740 = vsel %vm1711, %v1008, %v1739
      %1741 = vst [vmem:[#allocation2 + $0xe8] sm:$0xff] %v1740
      %v1742 = vld [vmem:[#allocation2 + $0x100] sm:$0xff]
      %v1743 = vsel %vm1711, %v1010, %v1742
      %1744 = vst [vmem:[#allocation2 + $0x100] sm:$0xff] %v1743
      %v1745 = vld [vmem:[#allocation2 + $0x118] sm:$0xff]
      %v1746 = vsel %vm1711, %v1012, %v1745
      %1747 = vst [vmem:[#allocation2 + $0x118] sm:$0xff] %v1746
      %v1748 = vld [vmem:[#allocation2 + $0x130] sm:$0xff]
      %v1749 = vsel %vm1711, %v1014, %v1748
      %1750 = vst [vmem:[#allocation2 + $0x130] sm:$0xff] %v1749
      %v1751 = vld [vmem:[#allocation2 + $0x148] sm:$0xff]
      %v1752 = vsel %vm1711, %v1016, %v1751
      %1753 = vst [vmem:[#allocation2 + $0x148] sm:$0xff] %v1752
      %v1754 = vld [vmem:[#allocation2 + $0x160] sm:$0xff]
      %v1755 = vsel %vm1711, %v1351, %v1754
      %1756 = vst [vmem:[#allocation2 + $0x160] sm:$0xff] %v1755
      %v1759 = vunpack.c.l.b16 %v547
      %v1760 = vunpack.c.l.b16 %v548
      %v1761 = vpack.c.b16 %v1760, %v1759
      %1762 = vrot.lane.b32.xlu0 %v1761, 96
      %v1763 = vpop.permute.xlu0 %1762
      %s1765 = scalar_lea.vmem [#allocation2], 360
      %1766 = vst.msk [vmem:[%s1765 + $0x8] sm:$0xff] %vm1495, %v1763
      %v1767 = vld [vmem:[%s1765 + $0x8] sm:$0x1]
      %v1768 = vsel %vm1512, 0, %v1767
      %1769 = vst [vmem:[%s1765 + $0x8] sm:$0x1] %v1768
      %v1771 = vshrl.u32 %v1761, 16
      %v1773 = vrot.slane %v1771, 7
      %v1774 = vshll.u32 %v1761, 16
      %v1776 = vor.u32 %v1773, %v1774
      %1777 = vrot.lane.b32.xlu0 %v1776, 64
      %v1778 = vpop.permute.xlu0 %1777
      %v1780 = vld [vmem:[%s1765 + $0x8] sm:$0xff]
      %v1781 = vsel %vm1603, %v1778, %v1780
      %1782 = vst [vmem:[%s1765 + $0x8] sm:$0xff] %v1781
      %v1783 = vld [vmem:[%s1765 + $0x10] sm:$0x80]
      %v1784 = vsel %vm1650, 0, %v1783
      %1785 = vst [vmem:[%s1765 + $0x10] sm:$0x80] %v1784
      %v1786 = vrot.slane %v1774, 1
      %v1787 = vor.u32 %v1771, %v1786
      %v1789 = vld [vmem:[%s1765 + $0x10] sm:$0xff]
      %v1790 = vsel %vm1711, %v1787, %v1789
      %1791 = vst [vmem:[%s1765 + $0x10] sm:$0xff] %v1790
      %v1792 = vld [vmem:[#allocation2] sm:$0xff]
      %v1793 = vld [vmem:[#allocation2 + $0x8] sm:$0xff]
      %v1794 = vld [vmem:[#allocation2 + $0x10] sm:$0xff]
      %v1795 = vld [vmem:[#allocation2 + $0x18] sm:$0xff]
      %v1796 = vld [vmem:[#allocation2 + $0x20] sm:$0xff]
      %v1797 = vld [vmem:[#allocation2 + $0x28] sm:$0xff]
      %v1798 = vld [vmem:[#allocation2 + $0x30] sm:$0xff]
      %v1799 = vld [vmem:[#allocation2 + $0x38] sm:$0xff]
      %v1800 = vld [vmem:[#allocation2 + $0x40] sm:$0xff]
      %v1801 = vld [vmem:[#allocation2 + $0x48] sm:$0xff]
      %v1802 = vld [vmem:[#allocation2 + $0x50] sm:$0xff]
      %v1803 = vld [vmem:[#allocation2 + $0x58] sm:$0xff]
      %v1804 = vld [vmem:[#allocation2 + $0x60] sm:$0xff]
      %v1805 = vld [vmem:[#allocation2 + $0x68] sm:$0xff]
      %v1806 = vld [vmem:[#allocation2 + $0x70] sm:$0xff]
      %v1807 = vld [vmem:[#allocation2 + $0x78] sm:$0xff]
      %v1808 = vld [vmem:[#allocation2 + $0x80] sm:$0xff]
      %v1809 = vld [vmem:[#allocation2 + $0x88] sm:$0xff]
      %v1810 = vld [vmem:[#allocation2 + $0x90] sm:$0xff]
      %v1811 = vld [vmem:[#allocation2 + $0x98] sm:$0xff]
      %v1812 = vld [vmem:[#allocation2 + $0xa0] sm:$0xff]
      %v1813 = vld [vmem:[#allocation2 + $0xa8] sm:$0xff]
      %v1814 = vld [vmem:[#allocation2 + $0xb0] sm:$0xff]
      %v1815 = vld [vmem:[#allocation2 + $0xb8] sm:$0xff]
      %v1816 = vld [vmem:[#allocation2 + $0xc0] sm:$0xff]
      %v1817 = vld [vmem:[#allocation2 + $0xc8] sm:$0xff]
      %v1818 = vld [vmem:[#allocation2 + $0xd0] sm:$0xff]
      %v1819 = vld [vmem:[#allocation2 + $0xd8] sm:$0xff]
      %v1820 = vld [vmem:[#allocation2 + $0xe0] sm:$0xff]
      %v1821 = vld [vmem:[#allocation2 + $0xe8] sm:$0xff]
      %v1822 = vld [vmem:[#allocation2 + $0xf0] sm:$0xff]
      %v1823 = vld [vmem:[#allocation2 + $0xf8] sm:$0xff]
      %v1824 = vld [vmem:[#allocation2 + $0x100] sm:$0xff]
      %v1825 = vld [vmem:[#allocation2 + $0x108] sm:$0xff]
      %v1826 = vld [vmem:[#allocation2 + $0x110] sm:$0xff]
      %v1827 = vld [vmem:[#allocation2 + $0x118] sm:$0xff]
      %v1828 = vld [vmem:[#allocation2 + $0x120] sm:$0xff]
      %v1829 = vld [vmem:[#allocation2 + $0x128] sm:$0xff]
      %v1830 = vld [vmem:[#allocation2 + $0x130] sm:$0xff]
      %v1831 = vld [vmem:[#allocation2 + $0x138] sm:$0xff]
      %v1832 = vld [vmem:[#allocation2 + $0x140] sm:$0xff]
      %v1833 = vld [vmem:[#allocation2 + $0x148] sm:$0xff]
      %v1834 = vld [vmem:[#allocation2 + $0x150] sm:$0xff]
      %v1835 = vld [vmem:[#allocation2 + $0x158] sm:$0xff]
      %v1836 = vld [vmem:[#allocation2 + $0x160] sm:$0xff]
      %v1837 = vld [vmem:[#allocation2 + $0x168] sm:$0xff]
      %v1838 = vld [vmem:[#allocation2 + $0x170] sm:$0xff]
      %v1839 = vld [vmem:[#allocation2 + $0x178] sm:$0xff]
      %v1840 = vld [vmem:[%s3] sm:$0xf]
      %v1841 = vld [vmem:[%s3 + $0x4] sm:$0xf]
      %v1842 = vld [vmem:[%s3 + $0x8] sm:$0xf]
      %v1843 = vld [vmem:[%s3 + $0xc] sm:$0xf]
      %v1844 = vld [vmem:[%s3 + $0x10] sm:$0xf]
      %v1845 = vld [vmem:[%s3 + $0x14] sm:$0xf]
      %v1846 = vld [vmem:[%s3 + $0x18] sm:$0xf]
      %v1847 = vld [vmem:[%s3 + $0x1c] sm:$0xf]
      %v1848 = vld [vmem:[%s3 + $0x20] sm:$0xf]
      %v1849 = vld [vmem:[%s3 + $0x24] sm:$0xf]
      %v1850 = vld [vmem:[%s3 + $0x28] sm:$0xf]
      %v1851 = vld [vmem:[%s3 + $0x2c] sm:$0xf]
      %v1852 = vld [vmem:[%s3 + $0x30] sm:$0xf]
      %v1853 = vld [vmem:[%s3 + $0x34] sm:$0xf]
      %v1854 = vld [vmem:[%s3 + $0x38] sm:$0xf]
      %v1855 = vld [vmem:[%s3 + $0x3c] sm:$0xf]
      %v1856 = vld [vmem:[%s3 + $0x40] sm:$0xf]
      %v1857 = vld [vmem:[%s3 + $0x44] sm:$0xf]
      %v1858 = vld [vmem:[%s3 + $0x48] sm:$0xf]
      %v1859 = vld [vmem:[%s3 + $0x4c] sm:$0xf]
      %v1860 = vld [vmem:[%s3 + $0x50] sm:$0xf]
      %v1861 = vld [vmem:[%s3 + $0x54] sm:$0xf]
      %v1862 = vld [vmem:[%s3 + $0x58] sm:$0xf]
      %v1863 = vld [vmem:[%s3 + $0x5c] sm:$0xf]
      %v1864 = vld [vmem:[%s3 + $0x60] sm:$0xf]
      %v1865 = vld [vmem:[%s3 + $0x64] sm:$0xf]
      %v1866 = vld [vmem:[%s3 + $0x68] sm:$0xf]
      %v1867 = vld [vmem:[%s3 + $0x6c] sm:$0xf]
      %v1868 = vld [vmem:[%s3 + $0x70] sm:$0xf]
      %v1869 = vld [vmem:[%s3 + $0x74] sm:$0xf]
      %v1870 = vld [vmem:[%s3 + $0x78] sm:$0xf]
      %v1871 = vld [vmem:[%s3 + $0x7c] sm:$0xf]
      %v1872 = vld [vmem:[%s3 + $0x80] sm:$0xf]
      %v1873 = vld [vmem:[%s3 + $0x84] sm:$0xf]
      %v1874 = vld [vmem:[%s3 + $0x88] sm:$0xf]
      %v1875 = vld [vmem:[%s3 + $0x8c] sm:$0xf]
      %v1876 = vld [vmem:[%s4] sm:$0x1]
      %v1878 = vlaneseq
      %v1879 = vshrl.u32 %v1878, 7
      %v1880 = vsub.s32 0, %v1879
      %v1881 = vrot.slane %v1876, %v1880
      %v1919 = vunpack.c.l.b16 %v1840
      %v1920 = vunpack.c.l.b16 %v1841
      %v1921 = vunpack.c.l.b16 %v1842
      %v1922 = vunpack.c.l.b16 %v1843
      %v1923 = vunpack.c.l.b16 %v1844
      %v1924 = vunpack.c.l.b16 %v1845
      %v1925 = vunpack.c.l.b16 %v1846
      %v1926 = vunpack.c.l.b16 %v1847
      %v1927 = vunpack.c.l.b16 %v1848
      %v1928 = vunpack.c.l.b16 %v1849
      %v1929 = vunpack.c.l.b16 %v1850
      %v1930 = vunpack.c.l.b16 %v1851
      %v1931 = vunpack.c.l.b16 %v1852
      %v1932 = vunpack.c.l.b16 %v1853
      %v1933 = vunpack.c.l.b16 %v1854
      %v1934 = vunpack.c.l.b16 %v1855
      %v1935 = vunpack.c.l.b16 %v1856
      %v1936 = vunpack.c.l.b16 %v1857
      %v1937 = vunpack.c.l.b16 %v1858
      %v1938 = vunpack.c.l.b16 %v1859
      %v1939 = vunpack.c.l.b16 %v1860
      %v1940 = vunpack.c.l.b16 %v1861
      %v1941 = vunpack.c.l.b16 %v1862
      %v1942 = vunpack.c.l.b16 %v1863
      %v1943 = vunpack.c.l.b16 %v1864
      %v1944 = vunpack.c.l.b16 %v1865
      %v1945 = vunpack.c.l.b16 %v1866
      %v1946 = vunpack.c.l.b16 %v1867
      %v1947 = vunpack.c.l.b16 %v1868
      %v1948 = vunpack.c.l.b16 %v1869
      %v1949 = vunpack.c.l.b16 %v1870
      %v1950 = vunpack.c.l.b16 %v1871
      %v1951 = vunpack.c.l.b16 %v1872
      %v1952 = vunpack.c.l.b16 %v1873
      %v1953 = vunpack.c.l.b16 %v1874
      %v1954 = vunpack.c.l.b16 %v1875
      %v1955 = vpack.c.b16 %v1920, %v1919
      %v1956 = vpack.c.b16 %v1922, %v1921
      %v1957 = vpack.c.b16 %v1924, %v1923
      %v1958 = vpack.c.b16 %v1926, %v1925
      %v1959 = vpack.c.b16 %v1928, %v1927
      %v1960 = vpack.c.b16 %v1930, %v1929
      %v1961 = vpack.c.b16 %v1932, %v1931
      %v1962 = vpack.c.b16 %v1934, %v1933
      %v1963 = vpack.c.b16 %v1936, %v1935
      %v1964 = vpack.c.b16 %v1938, %v1937
      %v1965 = vpack.c.b16 %v1940, %v1939
      %v1966 = vpack.c.b16 %v1942, %v1941
      %v1967 = vpack.c.b16 %v1944, %v1943
      %v1968 = vpack.c.b16 %v1946, %v1945
      %v1969 = vpack.c.b16 %v1948, %v1947
      %v1970 = vpack.c.b16 %v1950, %v1949
      %v1971 = vpack.c.b16 %v1952, %v1951
      %v1972 = vpack.c.b16 %v1954, %v1953
      %v1992 = vsel %vm1128, %v1794, 0
      %v1995 = vsel %vm1128, %v1797, 0
      %v1998 = vsel %vm1128, %v1800, 0
      %v2001 = vsel %vm1128, %v1803, 0
      %v2004 = vsel %vm1128, %v1806, 0
      %v2007 = vsel %vm1128, %v1809, 0
      %v2010 = vsel %vm1128, %v1812, 0
      %v2013 = vsel %vm1128, %v1815, 0
      %v2016 = vsel %vm1128, %v1818, 0
      %v2019 = vsel %vm1128, %v1821, 0
      %v2022 = vsel %vm1128, %v1824, 0
      %v2025 = vsel %vm1128, %v1827, 0
      %v2028 = vsel %vm1128, %v1830, 0
      %v2031 = vsel %vm1128, %v1833, 0
      %v2034 = vsel %vm1128, %v1836, 0
      %v2037 = vsel %vm1128, %v1839, 0
      %2039 = vmatprep.subr.bf16.mxu0 0
      %2040 = vmatpush1.bf16.msra.mxu0 %v1955
      %2041 = vmatprep.subr.bf16.mxu0 0
      %2042 = vmatpush1.bf16.msra.mxu0 %v1956
      %2043 = vmatprep.subr.bf16.mxu0 0
      %2044 = vmatpush1.bf16.msra.mxu0 %v1957
      %2045 = vmatprep.subr.bf16.mxu0 0
      %2046 = vmatpush1.bf16.msra.mxu0 %v1958
      %2047 = vmatprep.subr.bf16.mxu0 0
      %2048 = vmatpush1.bf16.msra.mxu0 %v1959
      %2049 = vmatprep.subr.bf16.mxu0 0
      %2050 = vmatpush1.bf16.msra.mxu0 %v1960
      %2051 = vmatprep.subr.bf16.mxu0 0
      %2052 = vmatpush1.bf16.msra.mxu0 %v1961
      %2053 = vmatprep.subr.bf16.mxu0 0
      %2054 = vmatpush1.bf16.msra.mxu0 %v1962
      %2055 = vmatprep.subr.bf16.mxu0 0
      %2056 = vmatpush1.bf16.msra.mxu0 %v1963
      %2057 = vmatprep.subr.bf16.mxu0 0
      %2058 = vmatpush1.bf16.msra.mxu0 %v1964
      %2059 = vmatprep.subr.bf16.mxu0 0
      %2060 = vmatpush1.bf16.msra.mxu0 %v1965
      %2061 = vmatprep.subr.bf16.mxu0 0
      %2062 = vmatpush1.bf16.msra.mxu0 %v1966
      %2063 = vmatprep.subr.bf16.mxu0 0
      %2064 = vmatpush1.bf16.msra.mxu0 %v1967
      %2065 = vmatprep.subr.bf16.mxu0 0
      %2066 = vmatpush1.bf16.msra.mxu0 %v1968
      %2067 = vmatprep.subr.bf16.mxu0 0
      %2068 = vmatpush1.bf16.msra.mxu0 %v1969
      %2069 = vmatprep.subr.bf16.mxu0 0
      %2070 = vmatpush1.bf16.msra.mxu0 %v1970
      %2071 = vmatprep.mubr.bf16.mxu0 %v1793
      %2072 = vmatmul.mubr.bf16.gmra.mrb[0].mxu0 %v1792
      %v2073 = vpop.f32.mrb[0].mxu0
      %v2074 = vadd.f32 %v1881, %v2073
      %v2075 = vpop.f32.mrb[0].mxu0
      %v2076 = vpop.f32.mrb[0].mxu0
      %v2077 = vadd.f32 %v1881, %v2076
      %v2078 = vpop.f32.mrb[0].mxu0
      %2079 = vmatprep.mubr.bf16.mxu0 %v1796
      %2080 = vmatmul.mubr.bf16.gmra.mrb[0].mxu0 %v1795
      %v2081 = vpop.f32.mrb[0].mxu0
      %v2082 = vadd.f32 %v1881, %v2081
      %v2083 = vpop.f32.mrb[0].mxu0
      %v2084 = vpop.f32.mrb[0].mxu0
      %v2085 = vadd.f32 %v1881, %v2084
      %v2086 = vpop.f32.mrb[0].mxu0
      %2087 = vmatprep.mubr.bf16.mxu0 %v1799
      %2088 = vmatmul.mubr.bf16.gmra.mrb[0].mxu0 %v1798
      %v2089 = vpop.f32.mrb[0].mxu0
      %v2090 = vadd.f32 %v1881, %v2089
      %v2091 = vpop.f32.mrb[0].mxu0
      %v2092 = vpop.f32.mrb[0].mxu0
      %v2093 = vadd.f32 %v1881, %v2092
      %v2094 = vpop.f32.mrb[0].mxu0
      %2095 = vmatprep.mubr.bf16.mxu0 %v1802
      %2096 = vmatmul.mubr.bf16.gmra.mrb[0].mxu0 %v1801
      %v2097 = vpop.f32.mrb[0].mxu0
      %v2098 = vadd.f32 %v1881, %v2097
      %v2099 = vpop.f32.mrb[0].mxu0
      %v2100 = vpop.f32.mrb[0].mxu0
      %v2101 = vadd.f32 %v1881, %v2100
      %v2102 = vpop.f32.mrb[0].mxu0
      %2103 = vmatprep.mubr.bf16.mxu0 %v1805
      %2104 = vmatmul.mubr.bf16.gmra.mrb[0].mxu0 %v1804
      %v2105 = vpop.f32.mrb[0].mxu0
      %v2106 = vadd.f32 %v1881, %v2105
      %v2107 = vpop.f32.mrb[0].mxu0
      %v2108 = vpop.f32.mrb[0].mxu0
      %v2109 = vadd.f32 %v1881, %v2108
      %v2110 = vpop.f32.mrb[0].mxu0
      %2111 = vmatprep.mubr.bf16.mxu0 %v1808
      %2112 = vmatmul.mubr.bf16.gmra.mrb[0].mxu0 %v1807
      %v2113 = vpop.f32.mrb[0].mxu0
      %v2114 = vadd.f32 %v1881, %v2113
      %v2115 = vpop.f32.mrb[0].mxu0
      %v2116 = vpop.f32.mrb[0].mxu0
      %v2117 = vadd.f32 %v1881, %v2116
      %v2118 = vpop.f32.mrb[0].mxu0
      %2119 = vmatprep.mubr.bf16.mxu0 %v1811
      %2120 = vmatmul.mubr.bf16.gmra.mrb[0].mxu0 %v1810
      %v2121 = vpop.f32.mrb[0].mxu0
      %v2122 = vadd.f32 %v1881, %v2121
      %v2123 = vpop.f32.mrb[0].mxu0
      %v2124 = vpop.f32.mrb[0].mxu0
      %v2125 = vadd.f32 %v1881, %v2124
      %v2126 = vpop.f32.mrb[0].mxu0
      %2127 = vmatprep.mubr.bf16.mxu0 %v1814
      %2128 = vmatmul.mubr.bf16.gmra.mrb[0].mxu0 %v1813
      %v2129 = vpop.f32.mrb[0].mxu0
      %v2130 = vadd.f32 %v1881, %v2129
      %v2131 = vpop.f32.mrb[0].mxu0
      %v2132 = vpop.f32.mrb[0].mxu0
      %v2133 = vadd.f32 %v1881, %v2132
      %v2134 = vpop.f32.mrb[0].mxu0
      %2135 = vmatprep.mubr.bf16.mxu0 %v1817
      %2136 = vmatmul.mubr.bf16.gmra.mrb[0].mxu0 %v1816
      %v2137 = vpop.f32.mrb[0].mxu0
      %v2138 = vadd.f32 %v1881, %v2137
      %v2139 = vpop.f32.mrb[0].mxu0
      %v2140 = vpop.f32.mrb[0].mxu0
      %v2141 = vadd.f32 %v1881, %v2140
      %v2142 = vpop.f32.mrb[0].mxu0
      %2143 = vmatprep.mubr.bf16.mxu0 %v1820
      %2144 = vmatmul.mubr.bf16.gmra.mrb[0].mxu0 %v1819
      %v2145 = vpop.f32.mrb[0].mxu0
      %v2146 = vadd.f32 %v1881, %v2145
      %v2147 = vpop.f32.mrb[0].mxu0
      %v2148 = vpop.f32.mrb[0].mxu0
      %v2149 = vadd.f32 %v1881, %v2148
      %v2150 = vpop.f32.mrb[0].mxu0
      %2151 = vmatprep.mubr.bf16.mxu0 %v1823
      %2152 = vmatmul.mubr.bf16.gmra.mrb[0].mxu0 %v1822
      %v2153 = vpop.f32.mrb[0].mxu0
      %v2154 = vadd.f32 %v1881, %v2153
      %v2155 = vpop.f32.mrb[0].mxu0
      %v2156 = vpop.f32.mrb[0].mxu0
      %v2157 = vadd.f32 %v1881, %v2156
      %v2158 = vpop.f32.mrb[0].mxu0
      %2159 = vmatprep.mubr.bf16.mxu0 %v1826
      %2160 = vmatmul.mubr.bf16.gmra.mrb[0].mxu0 %v1825
      %v2161 = vpop.f32.mrb[0].mxu0
      %v2162 = vadd.f32 %v1881, %v2161
      %v2163 = vpop.f32.mrb[0].mxu0
      %v2164 = vpop.f32.mrb[0].mxu0
      %v2165 = vadd.f32 %v1881, %v2164
      %v2166 = vpop.f32.mrb[0].mxu0
      %2167 = vmatprep.mubr.bf16.mxu0 %v1829
      %2168 = vmatmul.mubr.bf16.gmra.mrb[0].mxu0 %v1828
      %v2169 = vpop.f32.mrb[0].mxu0
      %v2170 = vadd.f32 %v1881, %v2169
      %v2171 = vpop.f32.mrb[0].mxu0
      %v2172 = vpop.f32.mrb[0].mxu0
      %v2173 = vadd.f32 %v1881, %v2172
      %v2174 = vpop.f32.mrb[0].mxu0
      %2175 = vmatprep.mubr.bf16.mxu0 %v1832
      %2176 = vmatmul.mubr.bf16.gmra.mrb[0].mxu0 %v1831
      %v2177 = vpop.f32.mrb[0].mxu0
      %v2178 = vadd.f32 %v1881, %v2177
      %v2179 = vpop.f32.mrb[0].mxu0
      %v2180 = vpop.f32.mrb[0].mxu0
      %v2181 = vadd.f32 %v1881, %v2180
      %v2182 = vpop.f32.mrb[0].mxu0
      %2183 = vmatprep.mubr.bf16.mxu0 %v1835
      %2184 = vmatmul.mubr.bf16.gmra.mrb[0].mxu0 %v1834
      %v2185 = vpop.f32.mrb[0].mxu0
      %v2186 = vadd.f32 %v1881, %v2185
      %v2187 = vpop.f32.mrb[0].mxu0
      %v2188 = vpop.f32.mrb[0].mxu0
      %v2189 = vadd.f32 %v1881, %v2188
      %v2190 = vpop.f32.mrb[0].mxu0
      %2191 = vmatprep.mubr.bf16.mxu0 %v1838
      %2192 = vmatmul.mubr.bf16.gmra.mrb[0].mxu0 %v1837
      %v2193 = vpop.f32.mrb[0].mxu0
      %v2194 = vadd.f32 %v1881, %v2193
      %v2195 = vpop.f32.mrb[0].mxu0
      %v2196 = vpop.f32.mrb[0].mxu0
      %v2197 = vadd.f32 %v1881, %v2196
      %v2198 = vpop.f32.mrb[0].mxu0
      %2199 = vdwg.mxu0
      %2200 = vmatprep.subr.bf16.mxu0 0
      %2201 = vmatpush1.bf16.msra.mxu0 %v1971
      %2202 = vmatprep.subr.bf16.mxu0 0
      %2203 = vmatpush1.bf16.msra.mxu0 %v1972
      %2204 = vmatprep.subr.bf16.mxu0 0
      %2205 = vmatpush1.bf16.msra.mxu0 0
      %2206 = vmatprep.subr.bf16.mxu0 0
      %2207 = vmatpush1.bf16.msra.mxu0 0
      %2208 = vmatprep.subr.bf16.mxu0 0
      %2209 = vmatpush1.bf16.msra.mxu0 0
      %2210 = vmatprep.subr.bf16.mxu0 0
      %2211 = vmatpush1.bf16.msra.mxu0 0
      %2212 = vmatprep.subr.bf16.mxu0 0
      %2213 = vmatpush1.bf16.msra.mxu0 0
      %2214 = vmatprep.subr.bf16.mxu0 0
      %2215 = vmatpush1.bf16.msra.mxu0 0
      %2216 = vmatprep.subr.bf16.mxu0 0
      %2217 = vmatpush1.bf16.msra.mxu0 0
      %2218 = vmatprep.subr.bf16.mxu0 0
      %2219 = vmatpush1.bf16.msra.mxu0 0
      %2220 = vmatprep.subr.bf16.mxu0 0
      %2221 = vmatpush1.bf16.msra.mxu0 0
      %2222 = vmatprep.subr.bf16.mxu0 0
      %2223 = vmatpush1.bf16.msra.mxu0 0
      %2224 = vmatprep.subr.bf16.mxu0 0
      %2225 = vmatpush1.bf16.msra.mxu0 0
      %2226 = vmatprep.subr.bf16.mxu0 0
      %2227 = vmatpush1.bf16.msra.mxu0 0
      %2228 = vmatprep.subr.bf16.mxu0 0
      %2229 = vmatpush1.bf16.msra.mxu0 0
      %2230 = vmatprep.subr.bf16.mxu0 0
      %2231 = vmatpush1.bf16.msra.mxu0 0
      %2232 = vmatprep.mubr.bf16.mxu0 0
      %2233 = vmatmul.mubr.bf16.gmra.mrb[0].mxu0 %v1992
      %v2234 = vpop.f32.mrb[0].mxu0
      %v2235 = vadd.f32 %v2074, %v2234
      %v2236 = vpop.f32.mrb[0].mxu0
      %v2237 = vpop.f32.mrb[0].mxu0
      %v2238 = vadd.f32 %v2077, %v2237
      %v2239 = vpop.f32.mrb[0].mxu0
      %2240 = vmatprep.mubr.bf16.mxu0 0
      %2241 = vmatmul.mubr.bf16.gmra.mrb[0].mxu0 %v1995
      %v2242 = vpop.f32.mrb[0].mxu0
      %v2243 = vadd.f32 %v2082, %v2242
      %v2244 = vpop.f32.mrb[0].mxu0
      %v2245 = vpop.f32.mrb[0].mxu0
      %v2246 = vadd.f32 %v2085, %v2245
      %v2247 = vpop.f32.mrb[0].mxu0
      %2248 = vmatprep.mubr.bf16.mxu0 0
      %2249 = vmatmul.mubr.bf16.gmra.mrb[0].mxu0 %v1998
      %v2250 = vpop.f32.mrb[0].mxu0
      %v2251 = vadd.f32 %v2090, %v2250
      %v2252 = vpop.f32.mrb[0].mxu0
      %v2253 = vpop.f32.mrb[0].mxu0
      %v2254 = vadd.f32 %v2093, %v2253
      %v2255 = vpop.f32.mrb[0].mxu0
      %2256 = vmatprep.mubr.bf16.mxu0 0
      %2257 = vmatmul.mubr.bf16.gmra.mrb[0].mxu0 %v2001
      %v2258 = vpop.f32.mrb[0].mxu0
      %v2259 = vadd.f32 %v2098, %v2258
      %v2260 = vpop.f32.mrb[0].mxu0
      %v2261 = vpop.f32.mrb[0].mxu0
      %v2262 = vadd.f32 %v2101, %v2261
      %v2263 = vpop.f32.mrb[0].mxu0
      %2264 = vmatprep.mubr.bf16.mxu0 0
      %2265 = vmatmul.mubr.bf16.gmra.mrb[0].mxu0 %v2004
      %v2266 = vpop.f32.mrb[0].mxu0
      %v2267 = vadd.f32 %v2106, %v2266
      %v2268 = vpop.f32.mrb[0].mxu0
      %v2269 = vpop.f32.mrb[0].mxu0
      %v2270 = vadd.f32 %v2109, %v2269
      %v2271 = vpop.f32.mrb[0].mxu0
      %2272 = vmatprep.mubr.bf16.mxu0 0
      %2273 = vmatmul.mubr.bf16.gmra.mrb[0].mxu0 %v2007
      %v2274 = vpop.f32.mrb[0].mxu0
      %v2275 = vadd.f32 %v2114, %v2274
      %v2276 = vpop.f32.mrb[0].mxu0
      %v2277 = vpop.f32.mrb[0].mxu0
      %v2278 = vadd.f32 %v2117, %v2277
      %v2279 = vpop.f32.mrb[0].mxu0
      %2280 = vmatprep.mubr.bf16.mxu0 0
      %2281 = vmatmul.mubr.bf16.gmra.mrb[0].mxu0 %v2010
      %v2282 = vpop.f32.mrb[0].mxu0
      %v2283 = vadd.f32 %v2122, %v2282
      %v2284 = vpop.f32.mrb[0].mxu0
      %v2285 = vpop.f32.mrb[0].mxu0
      %v2286 = vadd.f32 %v2125, %v2285
      %v2287 = vpop.f32.mrb[0].mxu0
      %2288 = vmatprep.mubr.bf16.mxu0 0
      %2289 = vmatmul.mubr.bf16.gmra.mrb[0].mxu0 %v2013
      %v2290 = vpop.f32.mrb[0].mxu0
      %v2291 = vadd.f32 %v2130, %v2290
      %v2292 = vpop.f32.mrb[0].mxu0
      %v2293 = vpop.f32.mrb[0].mxu0
      %v2294 = vadd.f32 %v2133, %v2293
      %v2295 = vpop.f32.mrb[0].mxu0
      %2296 = vmatprep.mubr.bf16.mxu0 0
      %2297 = vmatmul.mubr.bf16.gmra.mrb[0].mxu0 %v2016
      %v2298 = vpop.f32.mrb[0].mxu0
      %v2299 = vadd.f32 %v2138, %v2298
      %v2300 = vpop.f32.mrb[0].mxu0
      %v2301 = vpop.f32.mrb[0].mxu0
      %v2302 = vadd.f32 %v2141, %v2301
      %v2303 = vpop.f32.mrb[0].mxu0
      %2304 = vmatprep.mubr.bf16.mxu0 0
      %2305 = vmatmul.mubr.bf16.gmra.mrb[0].mxu0 %v2019
      %v2306 = vpop.f32.mrb[0].mxu0
      %v2307 = vadd.f32 %v2146, %v2306
      %v2308 = vpop.f32.mrb[0].mxu0
      %v2309 = vpop.f32.mrb[0].mxu0
      %v2310 = vadd.f32 %v2149, %v2309
      %v2311 = vpop.f32.mrb[0].mxu0
      %2312 = vmatprep.mubr.bf16.mxu0 0
      %2313 = vmatmul.mubr.bf16.gmra.mrb[0].mxu0 %v2022
      %v2314 = vpop.f32.mrb[0].mxu0
      %v2315 = vadd.f32 %v2154, %v2314
      %v2316 = vpop.f32.mrb[0].mxu0
      %v2317 = vpop.f32.mrb[0].mxu0
      %v2318 = vadd.f32 %v2157, %v2317
      %v2319 = vpop.f32.mrb[0].mxu0
      %2320 = vmatprep.mubr.bf16.mxu0 0
      %2321 = vmatmul.mubr.bf16.gmra.mrb[0].mxu0 %v2025
      %v2322 = vpop.f32.mrb[0].mxu0
      %v2323 = vadd.f32 %v2162, %v2322
      %v2324 = vpop.f32.mrb[0].mxu0
      %v2325 = vpop.f32.mrb[0].mxu0
      %v2326 = vadd.f32 %v2165, %v2325
      %v2327 = vpop.f32.mrb[0].mxu0
      %2328 = vmatprep.mubr.bf16.mxu0 0
      %2329 = vmatmul.mubr.bf16.gmra.mrb[0].mxu0 %v2028
      %v2330 = vpop.f32.mrb[0].mxu0
      %v2331 = vadd.f32 %v2170, %v2330
      %v2332 = vpop.f32.mrb[0].mxu0
      %v2333 = vpop.f32.mrb[0].mxu0
      %v2334 = vadd.f32 %v2173, %v2333
      %v2335 = vpop.f32.mrb[0].mxu0
      %2336 = vmatprep.mubr.bf16.mxu0 0
      %2337 = vmatmul.mubr.bf16.gmra.mrb[0].mxu0 %v2031
      %v2338 = vpop.f32.mrb[0].mxu0
      %v2339 = vadd.f32 %v2178, %v2338
      %v2340 = vpop.f32.mrb[0].mxu0
      %v2341 = vpop.f32.mrb[0].mxu0
      %v2342 = vadd.f32 %v2181, %v2341
      %v2343 = vpop.f32.mrb[0].mxu0
      %2344 = vmatprep.mubr.bf16.mxu0 0
      %2345 = vmatmul.mubr.bf16.gmra.mrb[0].mxu0 %v2034
      %v2346 = vpop.f32.mrb[0].mxu0
      %v2347 = vadd.f32 %v2186, %v2346
      %v2348 = vpop.f32.mrb[0].mxu0
      %v2349 = vpop.f32.mrb[0].mxu0
      %v2350 = vadd.f32 %v2189, %v2349
      %v2351 = vpop.f32.mrb[0].mxu0
      %2352 = vmatprep.mubr.bf16.mxu0 0
      %2353 = vmatmul.mubr.bf16.gmra.mrb[0].mxu0 %v2037
      %v2354 = vpop.f32.mrb[0].mxu0
      %v2355 = vadd.f32 %v2194, %v2354
      %v2356 = vpop.f32.mrb[0].mxu0
      %v2357 = vpop.f32.mrb[0].mxu0
      %v2358 = vadd.f32 %v2197, %v2357
      %v2359 = vpop.f32.mrb[0].mxu0
      %2360 = vdwg.mxu0
      %v2361 = vmax.f32 %v2235, 0.0
      %v2362 = vmax.f32 %v2238, 0.0
      %v2363 = vmax.f32 %v2243, 0.0
      %v2364 = vmax.f32 %v2246, 0.0
      %v2365 = vmax.f32 %v2251, 0.0
      %v2366 = vmax.f32 %v2254, 0.0
      %v2367 = vmax.f32 %v2259, 0.0
      %v2368 = vmax.f32 %v2262, 0.0
      %v2369 = vmax.f32 %v2267, 0.0
      %v2370 = vmax.f32 %v2270, 0.0
      %v2371 = vmax.f32 %v2275, 0.0
      %v2372 = vmax.f32 %v2278, 0.0
      %v2373 = vmax.f32 %v2283, 0.0
      %v2374 = vmax.f32 %v2286, 0.0
      %v2375 = vmax.f32 %v2291, 0.0
      %v2376 = vmax.f32 %v2294, 0.0
      %v2377 = vmax.f32 %v2299, 0.0
      %v2378 = vmax.f32 %v2302, 0.0
      %v2379 = vmax.f32 %v2307, 0.0
      %v2380 = vmax.f32 %v2310, 0.0
      %v2381 = vmax.f32 %v2315, 0.0
      %v2382 = vmax.f32 %v2318, 0.0
      %v2383 = vmax.f32 %v2323, 0.0
      %v2384 = vmax.f32 %v2326, 0.0
      %v2385 = vmax.f32 %v2331, 0.0
      %v2386 = vmax.f32 %v2334, 0.0
      %v2387 = vmax.f32 %v2339, 0.0
      %v2388 = vmax.f32 %v2342, 0.0
      %v2389 = vmax.f32 %v2347, 0.0
      %v2390 = vmax.f32 %v2350, 0.0
      %v2391 = vmax.f32 %v2355, 0.0
      %v2392 = vmax.f32 %v2358, 0.0
      %v2393 = vpack.c.bf16 %v2362, %v2361
      %v2394 = vpack.c.bf16 %v2364, %v2363
      %v2395 = vpack.c.bf16 %v2366, %v2365
      %v2396 = vpack.c.bf16 %v2368, %v2367
      %v2397 = vpack.c.bf16 %v2370, %v2369
      %v2398 = vpack.c.bf16 %v2372, %v2371
      %v2399 = vpack.c.bf16 %v2374, %v2373
      %v2400 = vpack.c.bf16 %v2376, %v2375
      %v2401 = vpack.c.bf16 %v2378, %v2377
      %v2402 = vpack.c.bf16 %v2380, %v2379
      %v2403 = vpack.c.bf16 %v2382, %v2381
      %v2404 = vpack.c.bf16 %v2384, %v2383
      %v2405 = vpack.c.bf16 %v2386, %v2385
      %v2406 = vpack.c.bf16 %v2388, %v2387
      %v2407 = vpack.c.bf16 %v2390, %v2389
      %v2408 = vpack.c.bf16 %v2392, %v2391
      %v2409 = vld [vmem:[%s5] sm:$0xf]
      %v2410 = vld [vmem:[%s5 + $0x4] sm:$0xf]
      %v2411 = vld [vmem:[%s5 + $0x8] sm:$0xf]
      %v2412 = vld [vmem:[%s5 + $0xc] sm:$0xf]
      %v2413 = vld [vmem:[%s5 + $0x10] sm:$0xf]
      %v2414 = vld [vmem:[%s5 + $0x14] sm:$0xf]
      %v2415 = vld [vmem:[%s5 + $0x18] sm:$0xf]
      %v2416 = vld [vmem:[%s5 + $0x1c] sm:$0xf]
      %v2417 = vld [vmem:[%s5 + $0x20] sm:$0xf]
      %v2418 = vld [vmem:[%s5 + $0x24] sm:$0xf]
      %v2419 = vld [vmem:[%s5 + $0x28] sm:$0xf]
      %v2420 = vld [vmem:[%s5 + $0x2c] sm:$0xf]
      %v2421 = vld [vmem:[%s6] sm:$0x1]
      %v2423 = vlaneseq
      %v2424 = vshrl.u32 %v2423, 7
      %v2425 = vsub.s32 0, %v2424
      %v2426 = vrot.slane %v2421, %v2425
      %v2440 = vunpack.c.l.b16 %v2409
      %v2441 = vunpack.c.l.b16 %v2410
      %v2442 = vunpack.c.l.b16 %v2411
      %v2443 = vunpack.c.l.b16 %v2412
      %v2444 = vunpack.c.l.b16 %v2413
      %v2445 = vunpack.c.l.b16 %v2414
      %v2446 = vunpack.c.l.b16 %v2415
      %v2447 = vunpack.c.l.b16 %v2416
      %v2448 = vunpack.c.l.b16 %v2417
      %v2449 = vunpack.c.l.b16 %v2418
      %v2450 = vunpack.c.l.b16 %v2419
      %v2451 = vunpack.c.l.b16 %v2420
      %v2452 = vpack.c.b16 %v2441, %v2440
      %v2453 = vpack.c.b16 %v2443, %v2442
      %v2454 = vpack.c.b16 %v2445, %v2444
      %v2455 = vpack.c.b16 %v2447, %v2446
      %v2456 = vpack.c.b16 %v2449, %v2448
      %v2457 = vpack.c.b16 %v2451, %v2450
      %vm2464 = vcmask 785408
      %v2466 = vsel %vm2464, %v2393, 0
      %v2469 = vsel %vm2464, %v2394, 0
      %v2472 = vsel %vm2464, %v2395, 0
      %v2475 = vsel %vm2464, %v2396, 0
      %v2478 = vsel %vm2464, %v2397, 0
      %v2481 = vsel %vm2464, %v2398, 0
      %v2484 = vsel %vm2464, %v2399, 0
      %v2487 = vsel %vm2464, %v2400, 0
      %v2490 = vsel %vm2464, %v2401, 0
      %v2493 = vsel %vm2464, %v2402, 0
      %v2496 = vsel %vm2464, %v2403, 0
      %v2499 = vsel %vm2464, %v2404, 0
      %v2502 = vsel %vm2464, %v2405, 0
      %v2505 = vsel %vm2464, %v2406, 0
      %v2508 = vsel %vm2464, %v2407, 0
      %v2511 = vsel %vm2464, %v2408, 0
      %2513 = vmatprep.subr.bf16.mxu0 0
      %2514 = vmatpush1.bf16.msra.mxu0 %v2452
      %2515 = vmatprep.subr.bf16.mxu0 0
      %2516 = vmatpush1.bf16.msra.mxu0 %v2453
      %2517 = vmatprep.subr.bf16.mxu0 0
      %2518 = vmatpush1.bf16.msra.mxu0 %v2454
      %2519 = vmatprep.subr.bf16.mxu0 0
      %2520 = vmatpush1.bf16.msra.mxu0 %v2455
      %2521 = vmatprep.subr.bf16.mxu0 0
      %2522 = vmatpush1.bf16.msra.mxu0 %v2456
      %2523 = vmatprep.subr.bf16.mxu0 0
      %2524 = vmatpush1.bf16.msra.mxu0 %v2457
      %2525 = vmatprep.subr.bf16.mxu0 0
      %2526 = vmatpush1.bf16.msra.mxu0 0
      %2527 = vmatprep.subr.bf16.mxu0 0
      %2528 = vmatpush1.bf16.msra.mxu0 0
      %2529 = vmatprep.subr.bf16.mxu0 0
      %2530 = vmatpush1.bf16.msra.mxu0 0
      %2531 = vmatprep.subr.bf16.mxu0 0
      %2532 = vmatpush1.bf16.msra.mxu0 0
      %2533 = vmatprep.subr.bf16.mxu0 0
      %2534 = vmatpush1.bf16.msra.mxu0 0
      %2535 = vmatprep.subr.bf16.mxu0 0
      %2536 = vmatpush1.bf16.msra.mxu0 0
      %2537 = vmatprep.subr.bf16.mxu0 0
      %2538 = vmatpush1.bf16.msra.mxu0 0
      %2539 = vmatprep.subr.bf16.mxu0 0
      %2540 = vmatpush1.bf16.msra.mxu0 0
      %2541 = vmatprep.subr.bf16.mxu0 0
      %2542 = vmatpush1.bf16.msra.mxu0 0
      %2543 = vmatprep.subr.bf16.mxu0 0
      %2544 = vmatpush1.bf16.msra.mxu0 0
      %2545 = vmatprep.mubr.bf16.mxu0 0
      %2546 = vmatmul.mubr.bf16.gmra.mrb[0].mxu0 %v2466
      %v2547 = vpop.f32.mrb[0].mxu0
      %v2548 = vadd.f32 %v2426, %v2547
      %v2549 = vpop.f32.mrb[0].mxu0
      %v2550 = vpop.f32.mrb[0].mxu0
      %v2551 = vadd.f32 %v2426, %v2550
      %v2552 = vpop.f32.mrb[0].mxu0
      %2553 = vmatprep.mubr.bf16.mxu0 0
      %2554 = vmatmul.mubr.bf16.gmra.mrb[0].mxu0 %v2469
      %v2555 = vpop.f32.mrb[0].mxu0
      %v2556 = vadd.f32 %v2426, %v2555
      %v2557 = vpop.f32.mrb[0].mxu0
      %v2558 = vpop.f32.mrb[0].mxu0
      %v2559 = vadd.f32 %v2426, %v2558
      %v2560 = vpop.f32.mrb[0].mxu0
      %2561 = vmatprep.mubr.bf16.mxu0 0
      %2562 = vmatmul.mubr.bf16.gmra.mrb[0].mxu0 %v2472
      %v2563 = vpop.f32.mrb[0].mxu0
      %v2564 = vadd.f32 %v2426, %v2563
      %v2565 = vpop.f32.mrb[0].mxu0
      %v2566 = vpop.f32.mrb[0].mxu0
      %v2567 = vadd.f32 %v2426, %v2566
      %v2568 = vpop.f32.mrb[0].mxu0
      %2569 = vmatprep.mubr.bf16.mxu0 0
      %2570 = vmatmul.mubr.bf16.gmra.mrb[0].mxu0 %v2475
      %v2571 = vpop.f32.mrb[0].mxu0
      %v2572 = vadd.f32 %v2426, %v2571
      %v2573 = vpop.f32.mrb[0].mxu0
      %v2574 = vpop.f32.mrb[0].mxu0
      %v2575 = vadd.f32 %v2426, %v2574
      %v2576 = vpop.f32.mrb[0].mxu0
      %2577 = vmatprep.mubr.bf16.mxu0 0
      %2578 = vmatmul.mubr.bf16.gmra.mrb[0].mxu0 %v2478
      %v2579 = vpop.f32.mrb[0].mxu0
      %v2580 = vadd.f32 %v2426, %v2579
      %v2581 = vpop.f32.mrb[0].mxu0
      %v2582 = vpop.f32.mrb[0].mxu0
      %v2583 = vadd.f32 %v2426, %v2582
      %v2584 = vpop.f32.mrb[0].mxu0
      %2585 = vmatprep.mubr.bf16.mxu0 0
      %2586 = vmatmul.mubr.bf16.gmra.mrb[0].mxu0 %v2481
      %v2587 = vpop.f32.mrb[0].mxu0
      %v2588 = vadd.f32 %v2426, %v2587
      %v2589 = vpop.f32.mrb[0].mxu0
      %v2590 = vpop.f32.mrb[0].mxu0
      %v2591 = vadd.f32 %v2426, %v2590
      %v2592 = vpop.f32.mrb[0].mxu0
      %2593 = vmatprep.mubr.bf16.mxu0 0
      %2594 = vmatmul.mubr.bf16.gmra.mrb[0].mxu0 %v2484
      %v2595 = vpop.f32.mrb[0].mxu0
      %v2596 = vadd.f32 %v2426, %v2595
      %v2597 = vpop.f32.mrb[0].mxu0
      %v2598 = vpop.f32.mrb[0].mxu0
      %v2599 = vadd.f32 %v2426, %v2598
      %v2600 = vpop.f32.mrb[0].mxu0
      %2601 = vmatprep.mubr.bf16.mxu0 0
      %2602 = vmatmul.mubr.bf16.gmra.mrb[0].mxu0 %v2487
      %v2603 = vpop.f32.mrb[0].mxu0
      %v2604 = vadd.f32 %v2426, %v2603
      %v2605 = vpop.f32.mrb[0].mxu0
      %v2606 = vpop.f32.mrb[0].mxu0
      %v2607 = vadd.f32 %v2426, %v2606
      %v2608 = vpop.f32.mrb[0].mxu0
      %2609 = vmatprep.mubr.bf16.mxu0 0
      %2610 = vmatmul.mubr.bf16.gmra.mrb[0].mxu0 %v2490
      %v2611 = vpop.f32.mrb[0].mxu0
      %v2612 = vadd.f32 %v2426, %v2611
      %v2613 = vpop.f32.mrb[0].mxu0
      %v2614 = vpop.f32.mrb[0].mxu0
      %v2615 = vadd.f32 %v2426, %v2614
      %v2616 = vpop.f32.mrb[0].mxu0
      %2617 = vmatprep.mubr.bf16.mxu0 0
      %2618 = vmatmul.mubr.bf16.gmra.mrb[0].mxu0 %v2493
      %v2619 = vpop.f32.mrb[0].mxu0
      %v2620 = vadd.f32 %v2426, %v2619
      %v2621 = vpop.f32.mrb[0].mxu0
      %v2622 = vpop.f32.mrb[0].mxu0
      %v2623 = vadd.f32 %v2426, %v2622
      %v2624 = vpop.f32.mrb[0].mxu0
      %2625 = vmatprep.mubr.bf16.mxu0 0
      %2626 = vmatmul.mubr.bf16.gmra.mrb[0].mxu0 %v2496
      %v2627 = vpop.f32.mrb[0].mxu0
      %v2628 = vadd.f32 %v2426, %v2627
      %v2629 = vpop.f32.mrb[0].mxu0
      %v2630 = vpop.f32.mrb[0].mxu0
      %v2631 = vadd.f32 %v2426, %v2630
      %v2632 = vpop.f32.mrb[0].mxu0
      %2633 = vmatprep.mubr.bf16.mxu0 0
      %2634 = vmatmul.mubr.bf16.gmra.mrb[0].mxu0 %v2499
      %v2635 = vpop.f32.mrb[0].mxu0
      %v2636 = vadd.f32 %v2426, %v2635
      %v2637 = vpop.f32.mrb[0].mxu0
      %v2638 = vpop.f32.mrb[0].mxu0
      %v2639 = vadd.f32 %v2426, %v2638
      %v2640 = vpop.f32.mrb[0].mxu0
      %2641 = vmatprep.mubr.bf16.mxu0 0
      %2642 = vmatmul.mubr.bf16.gmra.mrb[0].mxu0 %v2502
      %v2643 = vpop.f32.mrb[0].mxu0
      %v2644 = vadd.f32 %v2426, %v2643
      %v2645 = vpop.f32.mrb[0].mxu0
      %v2646 = vpop.f32.mrb[0].mxu0
      %v2647 = vadd.f32 %v2426, %v2646
      %v2648 = vpop.f32.mrb[0].mxu0
      %2649 = vmatprep.mubr.bf16.mxu0 0
      %2650 = vmatmul.mubr.bf16.gmra.mrb[0].mxu0 %v2505
      %v2651 = vpop.f32.mrb[0].mxu0
      %v2652 = vadd.f32 %v2426, %v2651
      %v2653 = vpop.f32.mrb[0].mxu0
      %v2654 = vpop.f32.mrb[0].mxu0
      %v2655 = vadd.f32 %v2426, %v2654
      %v2656 = vpop.f32.mrb[0].mxu0
      %2657 = vmatprep.mubr.bf16.mxu0 0
      %2658 = vmatmul.mubr.bf16.gmra.mrb[0].mxu0 %v2508
      %v2659 = vpop.f32.mrb[0].mxu0
      %v2660 = vadd.f32 %v2426, %v2659
      %v2661 = vpop.f32.mrb[0].mxu0
      %v2662 = vpop.f32.mrb[0].mxu0
      %v2663 = vadd.f32 %v2426, %v2662
      %v2664 = vpop.f32.mrb[0].mxu0
      %2665 = vmatprep.mubr.bf16.mxu0 0
      %2666 = vmatmul.mubr.bf16.gmra.mrb[0].mxu0 %v2511
      %v2667 = vpop.f32.mrb[0].mxu0
      %v2668 = vadd.f32 %v2426, %v2667
      %v2669 = vpop.f32.mrb[0].mxu0
      %v2670 = vpop.f32.mrb[0].mxu0
      %v2671 = vadd.f32 %v2426, %v2670
      %v2672 = vpop.f32.mrb[0].mxu0
      %2673 = vdwg.mxu0
      %v2690 = vunpack.c.l.b16 %v2393
      %v2691 = vunpack.c.h.b16 %v2393
      %v2692 = vunpack.c.l.b16 %v2394
      %v2693 = vunpack.c.h.b16 %v2394
      %v2694 = vunpack.c.l.b16 %v2395
      %v2695 = vunpack.c.h.b16 %v2395
      %v2696 = vunpack.c.l.b16 %v2396
      %v2697 = vunpack.c.h.b16 %v2396
      %v2698 = vunpack.c.l.b16 %v2397
      %v2699 = vunpack.c.h.b16 %v2397
      %v2700 = vunpack.c.l.b16 %v2398
      %v2701 = vunpack.c.h.b16 %v2398
      %v2702 = vunpack.c.l.b16 %v2399
      %v2703 = vunpack.c.h.b16 %v2399
      %v2704 = vunpack.c.l.b16 %v2400
      %v2705 = vunpack.c.h.b16 %v2400
      %v2706 = vunpack.c.l.b16 %v2401
      %v2707 = vunpack.c.h.b16 %v2401
      %v2708 = vunpack.c.l.b16 %v2402
      %v2709 = vunpack.c.h.b16 %v2402
      %v2710 = vunpack.c.l.b16 %v2403
      %v2711 = vunpack.c.h.b16 %v2403
      %v2712 = vunpack.c.l.b16 %v2404
      %v2713 = vunpack.c.h.b16 %v2404
      %v2714 = vunpack.c.l.b16 %v2405
      %v2715 = vunpack.c.h.b16 %v2405
      %v2716 = vunpack.c.l.b16 %v2406
      %v2717 = vunpack.c.h.b16 %v2406
      %v2718 = vunpack.c.l.b16 %v2407
      %v2719 = vunpack.c.h.b16 %v2407
      %v2720 = vunpack.c.l.b16 %v2408
      %v2721 = vunpack.c.h.b16 %v2408
      %v2722 = vpack.c.b16 %v2690, %v2690
      %v2723 = vpack.c.b16 %v2691, %v2691
      %v2724 = vpack.c.b16 %v2692, %v2692
      %v2725 = vpack.c.b16 %v2693, %v2693
      %v2726 = vpack.c.b16 %v2694, %v2694
      %v2727 = vpack.c.b16 %v2695, %v2695
      %v2728 = vpack.c.b16 %v2696, %v2696
      %v2729 = vpack.c.b16 %v2697, %v2697
      %v2730 = vpack.c.b16 %v2698, %v2698
      %v2731 = vpack.c.b16 %v2699, %v2699
      %v2732 = vpack.c.b16 %v2700, %v2700
      %v2733 = vpack.c.b16 %v2701, %v2701
      %v2734 = vpack.c.b16 %v2702, %v2702
      %v2735 = vpack.c.b16 %v2703, %v2703
      %v2736 = vpack.c.b16 %v2704, %v2704
      %v2737 = vpack.c.b16 %v2705, %v2705
      %v2738 = vpack.c.b16 %v2706, %v2706
      %v2739 = vpack.c.b16 %v2707, %v2707
      %v2740 = vpack.c.b16 %v2708, %v2708
      %v2741 = vpack.c.b16 %v2709, %v2709
      %v2742 = vpack.c.b16 %v2710, %v2710
      %v2743 = vpack.c.b16 %v2711, %v2711
      %v2744 = vpack.c.b16 %v2712, %v2712
      %v2745 = vpack.c.b16 %v2713, %v2713
      %v2746 = vpack.c.b16 %v2714, %v2714
      %v2747 = vpack.c.b16 %v2715, %v2715
      %v2748 = vpack.c.b16 %v2716, %v2716
      %v2749 = vpack.c.b16 %v2717, %v2717
      %v2750 = vpack.c.b16 %v2718, %v2718
      %v2751 = vpack.c.b16 %v2719, %v2719
      %v2752 = vpack.c.b16 %v2720, %v2720
      %v2753 = vpack.c.b16 %v2721, %v2721
      %vm2786 = vcmask 781312
      %2787 = vst.msk [vmem:[%s487] sm:$0xf] %vm2786, %v2722
      %2788 = vst.msk [vmem:[%s487 + $0x4] sm:$0xf] %vm2786, %v2723
      %2789 = vst.msk [vmem:[%s487 + $0x8] sm:$0xf] %vm2786, %v2724
      %2790 = vst.msk [vmem:[%s487 + $0xc] sm:$0xf] %vm2786, %v2725
      %2791 = vst.msk [vmem:[%s487 + $0x10] sm:$0xf] %vm2786, %v2726
      %2792 = vst.msk [vmem:[%s487 + $0x14] sm:$0xf] %vm2786, %v2727
      %2793 = vst.msk [vmem:[%s487 + $0x18] sm:$0xf] %vm2786, %v2728
      %2794 = vst.msk [vmem:[%s487 + $0x1c] sm:$0xf] %vm2786, %v2729
      %2795 = vst.msk [vmem:[%s487 + $0x20] sm:$0xf] %vm2786, %v2730
      %2796 = vst.msk [vmem:[%s487 + $0x24] sm:$0xf] %vm2786, %v2731
      %2797 = vst.msk [vmem:[%s487 + $0x28] sm:$0xf] %vm2786, %v2732
      %2798 = vst.msk [vmem:[%s487 + $0x2c] sm:$0xf] %vm2786, %v2733
      %2799 = vst.msk [vmem:[%s487 + $0x30] sm:$0xf] %vm2786, %v2734
      %2800 = vst.msk [vmem:[%s487 + $0x34] sm:$0xf] %vm2786, %v2735
      %2801 = vst.msk [vmem:[%s487 + $0x38] sm:$0xf] %vm2786, %v2736
      %2802 = vst.msk [vmem:[%s487 + $0x3c] sm:$0xf] %vm2786, %v2737
      %2803 = vst.msk [vmem:[%s487 + $0x40] sm:$0xf] %vm2786, %v2738
      %2804 = vst.msk [vmem:[%s487 + $0x44] sm:$0xf] %vm2786, %v2739
      %2805 = vst.msk [vmem:[%s487 + $0x48] sm:$0xf] %vm2786, %v2740
      %2806 = vst.msk [vmem:[%s487 + $0x4c] sm:$0xf] %vm2786, %v2741
      %2807 = vst.msk [vmem:[%s487 + $0x50] sm:$0xf] %vm2786, %v2742
      %2808 = vst.msk [vmem:[%s487 + $0x54] sm:$0xf] %vm2786, %v2743
      %2809 = vst.msk [vmem:[%s487 + $0x58] sm:$0xf] %vm2786, %v2744
      %2810 = vst.msk [vmem:[%s487 + $0x5c] sm:$0xf] %vm2786, %v2745
      %2811 = vst.msk [vmem:[%s487 + $0x60] sm:$0xf] %vm2786, %v2746
      %2812 = vst.msk [vmem:[%s487 + $0x64] sm:$0xf] %vm2786, %v2747
      %2813 = vst.msk [vmem:[%s487 + $0x68] sm:$0xf] %vm2786, %v2748
      %2814 = vst.msk [vmem:[%s487 + $0x6c] sm:$0xf] %vm2786, %v2749
      %2815 = vst.msk [vmem:[%s487 + $0x70] sm:$0xf] %vm2786, %v2750
      %2816 = vst.msk [vmem:[%s487 + $0x74] sm:$0xf] %vm2786, %v2751
      %2817 = vst.msk [vmem:[%s487 + $0x78] sm:$0xf] %vm2786, %v2752
      %2818 = vst.msk [vmem:[%s487 + $0x7c] sm:$0xf] %vm2786, %v2753
      %v2819 = vpack.c.bf16 %v2551, %v2548
      %v2820 = vpack.c.bf16 %v2559, %v2556
      %v2821 = vpack.c.bf16 %v2567, %v2564
      %v2822 = vpack.c.bf16 %v2575, %v2572
      %v2823 = vpack.c.bf16 %v2583, %v2580
      %v2824 = vpack.c.bf16 %v2591, %v2588
      %v2825 = vpack.c.bf16 %v2599, %v2596
      %v2826 = vpack.c.bf16 %v2607, %v2604
      %v2827 = vpack.c.bf16 %v2615, %v2612
      %v2828 = vpack.c.bf16 %v2623, %v2620
      %v2829 = vpack.c.bf16 %v2631, %v2628
      %v2830 = vpack.c.bf16 %v2639, %v2636
      %v2831 = vpack.c.bf16 %v2647, %v2644
      %v2832 = vpack.c.bf16 %v2655, %v2652
      %v2833 = vpack.c.bf16 %v2663, %v2660
      %v2834 = vpack.c.bf16 %v2671, %v2668
      %v2851 = vunpack.c.l.b16 %v2819
      %v2852 = vunpack.c.h.b16 %v2819
      %v2853 = vunpack.c.l.b16 %v2820
      %v2854 = vunpack.c.h.b16 %v2820
      %v2855 = vunpack.c.l.b16 %v2821
      %v2856 = vunpack.c.h.b16 %v2821
      %v2857 = vunpack.c.l.b16 %v2822
      %v2858 = vunpack.c.h.b16 %v2822
      %v2859 = vunpack.c.l.b16 %v2823
      %v2860 = vunpack.c.h.b16 %v2823
      %v2861 = vunpack.c.l.b16 %v2824
      %v2862 = vunpack.c.h.b16 %v2824
      %v2863 = vunpack.c.l.b16 %v2825
      %v2864 = vunpack.c.h.b16 %v2825
      %v2865 = vunpack.c.l.b16 %v2826
      %v2866 = vunpack.c.h.b16 %v2826
      %v2867 = vunpack.c.l.b16 %v2827
      %v2868 = vunpack.c.h.b16 %v2827
      %v2869 = vunpack.c.l.b16 %v2828
      %v2870 = vunpack.c.h.b16 %v2828
      %v2871 = vunpack.c.l.b16 %v2829
      %v2872 = vunpack.c.h.b16 %v2829
      %v2873 = vunpack.c.l.b16 %v2830
      %v2874 = vunpack.c.h.b16 %v2830
      %v2875 = vunpack.c.l.b16 %v2831
      %v2876 = vunpack.c.h.b16 %v2831
      %v2877 = vunpack.c.l.b16 %v2832
      %v2878 = vunpack.c.h.b16 %v2832
      %v2879 = vunpack.c.l.b16 %v2833
      %v2880 = vunpack.c.h.b16 %v2833
      %v2881 = vunpack.c.l.b16 %v2834
      %v2882 = vunpack.c.h.b16 %v2834
      %v2883 = vpack.c.b16 %v2851, %v2851
      %v2884 = vpack.c.b16 %v2852, %v2852
      %v2885 = vpack.c.b16 %v2853, %v2853
      %v2886 = vpack.c.b16 %v2854, %v2854
      %v2887 = vpack.c.b16 %v2855, %v2855
      %v2888 = vpack.c.b16 %v2856, %v2856
      %v2889 = vpack.c.b16 %v2857, %v2857
      %v2890 = vpack.c.b16 %v2858, %v2858
      %v2891 = vpack.c.b16 %v2859, %v2859
      %v2892 = vpack.c.b16 %v2860, %v2860
      %v2893 = vpack.c.b16 %v2861, %v2861
      %v2894 = vpack.c.b16 %v2862, %v2862
      %v2895 = vpack.c.b16 %v2863, %v2863
      %v2896 = vpack.c.b16 %v2864, %v2864
      %v2897 = vpack.c.b16 %v2865, %v2865
      %v2898 = vpack.c.b16 %v2866, %v2866
      %v2899 = vpack.c.b16 %v2867, %v2867
      %v2900 = vpack.c.b16 %v2868, %v2868
      %v2901 = vpack.c.b16 %v2869, %v2869
      %v2902 = vpack.c.b16 %v2870, %v2870
      %v2903 = vpack.c.b16 %v2871, %v2871
      %v2904 = vpack.c.b16 %v2872, %v2872
      %v2905 = vpack.c.b16 %v2873, %v2873
      %v2906 = vpack.c.b16 %v2874, %v2874
      %v2907 = vpack.c.b16 %v2875, %v2875
      %v2908 = vpack.c.b16 %v2876, %v2876
      %v2909 = vpack.c.b16 %v2877, %v2877
      %v2910 = vpack.c.b16 %v2878, %v2878
      %v2911 = vpack.c.b16 %v2879, %v2879
      %v2912 = vpack.c.b16 %v2880, %v2880
      %v2913 = vpack.c.b16 %v2881, %v2881
      %v2914 = vpack.c.b16 %v2882, %v2882
      %2947 = vst [vmem:[%s498] sm:$0xf] %v2883
      %2948 = vst [vmem:[%s498 + $0x4] sm:$0xf] %v2884
      %2949 = vst [vmem:[%s498 + $0x8] sm:$0xf] %v2885
      %2950 = vst [vmem:[%s498 + $0xc] sm:$0xf] %v2886
      %2951 = vst [vmem:[%s498 + $0x10] sm:$0xf] %v2887
      %2952 = vst [vmem:[%s498 + $0x14] sm:$0xf] %v2888
      %2953 = vst [vmem:[%s498 + $0x18] sm:$0xf] %v2889
      %2954 = vst [vmem:[%s498 + $0x1c] sm:$0xf] %v2890
      %2955 = vst [vmem:[%s498 + $0x20] sm:$0xf] %v2891
      %2956 = vst [vmem:[%s498 + $0x24] sm:$0xf] %v2892
      %2957 = vst [vmem:[%s498 + $0x28] sm:$0xf] %v2893
      %2958 = vst [vmem:[%s498 + $0x2c] sm:$0xf] %v2894
      %2959 = vst [vmem:[%s498 + $0x30] sm:$0xf] %v2895
      %2960 = vst [vmem:[%s498 + $0x34] sm:$0xf] %v2896
      %2961 = vst [vmem:[%s498 + $0x38] sm:$0xf] %v2897
      %2962 = vst [vmem:[%s498 + $0x3c] sm:$0xf] %v2898
      %2963 = vst [vmem:[%s498 + $0x40] sm:$0xf] %v2899
      %2964 = vst [vmem:[%s498 + $0x44] sm:$0xf] %v2900
      %2965 = vst [vmem:[%s498 + $0x48] sm:$0xf] %v2901
      %2966 = vst [vmem:[%s498 + $0x4c] sm:$0xf] %v2902
      %2967 = vst [vmem:[%s498 + $0x50] sm:$0xf] %v2903
      %2968 = vst [vmem:[%s498 + $0x54] sm:$0xf] %v2904
      %2969 = vst [vmem:[%s498 + $0x58] sm:$0xf] %v2905
      %2970 = vst [vmem:[%s498 + $0x5c] sm:$0xf] %v2906
      %2971 = vst [vmem:[%s498 + $0x60] sm:$0xf] %v2907
      %2972 = vst [vmem:[%s498 + $0x64] sm:$0xf] %v2908
      %2973 = vst [vmem:[%s498 + $0x68] sm:$0xf] %v2909
      %2974 = vst [vmem:[%s498 + $0x6c] sm:$0xf] %v2910
      %2975 = vst [vmem:[%s498 + $0x70] sm:$0xf] %v2911
      %2976 = vst [vmem:[%s498 + $0x74] sm:$0xf] %v2912
      %2977 = vst [vmem:[%s498 + $0x78] sm:$0xf] %v2913
      %2978 = vst [vmem:[%s498 + $0x7c] sm:$0xf] %v2914
      %s2979 = smul.u32 16, %s25
      %p2980 = scmp.lt.s32.totalorder %s24, 1
      %s2981 = scalar_select %p2980, %s24, 1
      %p2982 = scmp.lt.s32.totalorder %s2979, 15
      %s2983 = scalar_select %p2982, %s2979, 15
      %s2984 = smul.addr %s2983, 2
      %s2985 = smul.addr %s2981, 32
      %s2986 = sadd.s32 %s2984, %s2985
      %s2987 = smul.addr %s2986, 4
      %s2988 = scalar_lea.vmem %s7, %s2987
      %s2989 = smul.u32 16, %s25
      %p2990 = scmp.lt.s32.totalorder %s24, 1
      %s2991 = scalar_select %p2990, %s24, 1
      %p2992 = scmp.lt.s32.totalorder %s2989, 15
      %s2993 = scalar_select %p2992, %s2989, 15
      %s2994 = smul.addr %s2993, 2
      %s2995 = smul.addr %s2991, 32
      %s2996 = sadd.s32 %s2994, %s2995
      %s2997 = smul.addr %s2996, 4
      %s2998 = scalar_lea.vmem %s8, %s2997
      // Predicated region
      $region49: #{_rpn_head_level.1} parent=47 // pred_check
        %p2999 = pneg %p236
      $region50: #{_rpn_head_level.1} parent=47 // pred_check_branch
        %3001 = sbr.rel (%p2999) target = $region52
      $region51: #{_rpn_head_level.1} parent=47 // pred_region
        %s3002 = smul.u32 16, %s25
      $region52: #{_rpn_head_level.1} parent=47 // pred_fallthru
        _
      // Predicated region
      $region53: #{_rpn_head_level.1} parent=47 // pred_check
        %p3003 = pneg %p264
      $region54: #{_rpn_head_level.1} parent=47 // pred_check_branch
        %3005 = sbr.rel (%p3003) target = $region56
      $region55: #{_rpn_head_level.1} parent=47 // pred_region
        %s3006 = smul.u32 16, %s25
      $region56: #{_rpn_head_level.1} parent=47 // pred_fallthru
        _
    $region48: #{_rpn_head_level.1} parent=5 // pred_fallthru
      _
    %p3007 = scmp.le.s32.totalorder 2, %s15
    // Predicated region
    $region57: #{_rpn_head_level.1} parent=5 // pred_check
      %p3008 = pneg %p3007
    $region58: #{_rpn_head_level.1} parent=5 // pred_check_branch
      %3010 = sbr.rel (%p3008) target = $region60
    $region59: #{_rpn_head_level.1} parent=5 // pred_region
      %s3011 = ssub.s32 %s15, 2
      // Predicated region
      $region61: #{_rpn_head_level.1} parent=59 // pred_check
        %p3012 = pneg %p242
      $region62: #{_rpn_head_level.1} parent=59 // pred_check_branch
        %3014 = sbr.rel (%p3012) target = $region64
      $region63: #{_rpn_head_level.1} parent=59 // pred_region
        %s3015 = smul.u32 16, %s27
        %p3016 = scmp.lt.s32.totalorder %s26, 1
        %s3017 = scalar_select %p3016, %s26, 1
        %p3018 = scmp.lt.s32.totalorder %s3015, 15
        %s3019 = scalar_select %p3018, %s3015, 15
        %s3020 = smul.addr %s3019, 2
        %s3021 = smul.addr %s3017, 32
        %s3022 = sadd.s32 %s3020, %s3021
        %s3023 = smul.addr %s3022, 4
        %s3024 = scalar_lea.vmem %s7, %s3023
      $region64: #{_rpn_head_level.1} parent=59 // pred_fallthru
        _
      // Predicated region
      $region65: #{_rpn_head_level.1} parent=59 // pred_check
        %p3025 = pneg %p270
      $region66: #{_rpn_head_level.1} parent=59 // pred_check_branch
        %3027 = sbr.rel (%p3025) target = $region68
      $region67: #{_rpn_head_level.1} parent=59 // pred_region
        %s3028 = smul.u32 16, %s27
        %p3029 = scmp.lt.s32.totalorder %s26, 1
        %s3030 = scalar_select %p3029, %s26, 1
        %p3031 = scmp.lt.s32.totalorder %s3028, 15
        %s3032 = scalar_select %p3031, %s3028, 15
        %s3033 = smul.addr %s3032, 2
        %s3034 = smul.addr %s3030, 32
        %s3035 = sadd.s32 %s3033, %s3034
        %s3036 = smul.addr %s3035, 4
        %s3037 = scalar_lea.vmem %s8, %s3036
      $region68: #{_rpn_head_level.1} parent=59 // pred_fallthru
        _
    $region60: #{_rpn_head_level.1} parent=5 // pred_fallthru
      _
  $region6: #{_rpn_head_level.1} parent=0 // loop_footer
    %s19 = sadd.s32 1, %s15
  $region7: #{_rpn_head_level.1} parent=0 // loop_footer_branch
    %14 = sbr.rel target = $region3
  $region8: #{_rpn_head_level.1} parent=0 // loop_exit
    _

</llo_original>
